<compile_context>
chip_gen: v5e
topology: v5e:2x2
jax: 0.10.0
libtpu: 0.0.40
codegen_flags: <defaults>
</compile_context>

<pallas_src>
import functools

import jax
import jax.numpy as jnp
from jax.experimental import pallas as pl
from jax.experimental.pallas import tpu as pltpu

_LANES = 128
_TARGET_BLOCK_BYTES = 4 << 20          # ~4 MiB per block per buffer
_VMEM_LIMIT_BYTES = 32 * 1024 * 1024   # explicit: 4 x 4 MiB buffers fit on v5e too
_MIN_PALLAS_BYTES = 256 * 1024         # below this, launch overhead dominates


def _sine_kernel(x_ref, o_ref, *, w_0):
    # Compute in f32 regardless of storage dtype, cast back on store.
    x = x_ref[...].astype(jnp.float32)
    o_ref[...] = jnp.sin(jnp.float32(w_0) * x).astype(o_ref.dtype)


def _sublane_granularity(dtype) -> int:
    # (8,128) tiles for 32-bit, (16,128) for 16-bit, (32,128) for 8-bit dtypes.
    itemsize = jnp.dtype(dtype).itemsize
    return max(8, 32 // itemsize)


def _sine_slab(slab: jax.Array, w_0: float, block_rows: int) -> jax.Array:
    rows = slab.shape[0]
    grid = (pl.cdiv(rows, block_rows),)  # ragged last block clipped by Pallas
    kernel = functools.partial(_sine_kernel, w_0=float(w_0))
    return pl.pallas_call(
        kernel,
        out_shape=jax.ShapeDtypeStruct(slab.shape, slab.dtype),
        grid_spec=pl.GridSpec(
            grid=grid,
            in_specs=[pl.BlockSpec((block_rows, _LANES), lambda i: (i, 0))],
            out_specs=pl.BlockSpec((block_rows, _LANES), lambda i: (i, 0)),
        ),
        compiler_params=pltpu.CompilerParams(
            dimension_semantics=("parallel",),
            vmem_limit_bytes=_VMEM_LIMIT_BYTES,
        ),
    )(slab)


def sine(x: jax.Array, w_0: float, *,
         min_pallas_bytes: int = _MIN_PALLAS_BYTES) -> jax.Array:
    """Elementwise sin(w_0 * x); Pallas TPU kernel for non-tiny inputs."""
    orig_shape = x.shape
    dtype = x.dtype
    itemsize = jnp.dtype(dtype).itemsize
    sublanes = _sublane_granularity(dtype)
    n = x.size

    # Small-input fallback: pallas_call launch + single-step grid overhead
    # dominates tiny tensors; XLA already fuses elementwise ops well there.
    if n * itemsize < min_pallas_bytes or n < sublanes * _LANES:
        y = jnp.sin(jnp.float32(w_0) * x.astype(jnp.float32)).astype(dtype)
        return y.reshape(orig_shape)

    flat = x.reshape(-1)

    # Only whole 128-lane rows go through the kernel; a <128-element ragged
    # tail (rare) is computed with plain jnp.sin instead of padding + slicing
    # the whole tensor.
    n_main = (n // _LANES) * _LANES
    if n_main != n:
        tail = flat[n_main:]
        main = flat[:n_main]
    else:
        tail = None
        main = flat

    rows = n_main // _LANES
    slab = main.reshape(rows, _LANES)

    # ~4 MiB blocks (near the HBM roofline), dtype-aware sublane granularity.
    block_rows = max(sublanes, _TARGET_BLOCK_BYTES // (_LANES * itemsize))
    block_rows = (block_rows // sublanes) * sublanes
    # Force >= 2 grid steps so the "parallel" axis can shard across both
    # v7x TensorCores even for mid-size inputs.
    two_step_rows = ((pl.cdiv(rows, 2) + sublanes - 1) // sublanes) * sublanes
    block_rows = max(sublanes, min(block_rows, two_step_rows, rows))

    out = _sine_slab(slab, w_0, block_rows).reshape(-1)

    if tail is not None:
        tail_out = jnp.sin(jnp.float32(w_0) * tail.astype(jnp.float32)).astype(dtype)
        out = jnp.concatenate([out, tail_out])
    return out.reshape(orig_shape)


if __name__ == "__main__":
    w_0 = 30.0  # typical SIREN frequency
    key = jax.random.PRNGKey(0)
    k1, k2, k3, k4 = jax.random.split(key, 4)

    def check(x, y, atol, rtol):
        ref = jnp.sin(jnp.float32(w_0) * x.astype(jnp.float32)).astype(x.dtype)
        assert y.shape == x.shape and y.dtype == x.dtype
        assert jnp.allclose(y.astype(jnp.float32), ref.astype(jnp.float32),
                            atol=atol, rtol=rtol)

    # 1) Aligned f32 feature map (512 KiB) -> Pallas path, 2-step parallel grid.
    x = jax.random.normal(k1, (2, 4, 128, 128), dtype=jnp.float32)
    y = jax.block_until_ready(sine(x, w_0))
    check(x, y, 1e-5, 1e-5)

    # 2) Small f32 input (module-typical small activation) -> XLA fallback path.
    x_s = jax.random.normal(k2, (2, 4, 16, 16), dtype=jnp.float32)
    y_s = jax.block_until_ready(sine(x_s, w_0))
    check(x_s, y_s, 1e-5, 1e-5)

    # 3) Ragged f32 (n % 128 != 0) -> Pallas prefix + jnp.sin tail.
    x_r = jax.random.normal(k3, (300, 257), dtype=jnp.float32)
    y_r = jax.block_until_ready(sine(x_r, w_0))
    check(x_r, y_r, 1e-5, 1e-5)

    # 4) bf16 storage, f32 compute inside the kernel.
    x_b = jax.random.normal(k4, (2, 4, 128, 256), dtype=jnp.bfloat16)
    y_b = jax.block_until_ready(sine(x_b, w_0))
    check(x_b, y_b, 2e-2, 2e-2)

    print("KERNEL_OK")
</pallas_src>

<mosaic_0001>
module attributes {stable_mosaic.version = 11 : i64} {
  func.func @_sine_kernel(%arg0: i32, %arg1: memref<512x128xf32, #tpu.memory_space<vmem>>, %arg2: memref<512x128xf32, #tpu.memory_space<vmem>>) attributes {dimension_semantics = [#tpu.dimension_semantics<parallel>], iteration_bounds = array<i64: 2>, scalar_prefetch = 0 : i64, scratch_operands = 0 : i64, tpu.core_type = #tpu.core_type<tc>, window_params = [{transform_indices = @transform_0, window_bounds = array<i64: 512, 128>}, {transform_indices = @transform_1, window_bounds = array<i64: 512, 128>}]} {
    %c0 = arith.constant 0 : index
    %c0_0 = arith.constant 0 : index
    %0 = vector.load %arg1[%c0, %c0_0] : memref<512x128xf32, #tpu.memory_space<vmem>>, vector<512x128xf32>
    %cst = arith.constant 3.000000e+01 : f32
    %1 = vector.broadcast %cst : f32 to vector<512x128xf32>
    %2 = arith.mulf %1, %0 : vector<512x128xf32>
    %3 = math.sin %2 : vector<512x128xf32>
    %c0_1 = arith.constant 0 : index
    %c0_2 = arith.constant 0 : index
    %4 = vector.load %arg2[%c0_1, %c0_2] : memref<512x128xf32, #tpu.memory_space<vmem>>, vector<512x128xf32>
    tpu.vector_store %arg2[%c0_1, %c0_2], %3 {strides = array<i32>} : memref<512x128xf32, #tpu.memory_space<vmem>>, vector<512x128xf32>,
    return
  }
  func.func @transform_0(%arg0: i32) -> (i32, i32) {
    %c0_i32 = arith.constant 0 : i32
    %c0_i32_0 = arith.constant 0 : i32
    return %arg0, %c0_i32 : i32, i32
  }
  func.func @transform_1(%arg0: i32) -> (i32, i32) {
    %c0_i32 = arith.constant 0 : i32
    %c0_i32_0 = arith.constant 0 : i32
    return %arg0, %c0_i32 : i32, i32
  }
}

</mosaic_0001>

<llo_original>
// kernel: tpu_custom_call.1
$region0: #{tpu_custom_call.1}
  #allocation0 [shape = 'u32[]', space=smem, size = 0x4, offset = 0x4, fixed_abs, tag = 'smem constant byte address 0x4 - core index']
  #allocation1 [shape = 'u32[72,128]{1,0:T(1,128)}', space=vmem, size = 0x9000, scoped, tag = 'internal scratch']
  %s0 = inlined_call_operand.hbm [shape: f32[1024,128], index: 0, kind: input, shape index: {}]
  %s1 = inlined_call_operand.hbm [shape: f32[1024,128], index: 1, kind: output, shape index: {}]
  %s2 = sld [smem:[#allocation0]]
  $region41: #{tpu_custom_call.1} parent=0
    _
  %s4 = ssub.s32 1, %s2
  %s5 = scalar_select 0, %s4, %s2
  $region1: #{tpu_custom_call.1} parent=0
    #allocation2 [shape = 'u8[524288]{0}', space=vmem, size = 0x80000, scoped, tag = 'input window, operand 0']
    #allocation3 [shape = 's32[2]{0}', space=sflag, size = 0x8, scoped, tag = 'scoped memory for tpu_custom_call.1']
    #allocation4 [shape = 's32[2]{0}', space=sflag, size = 0x8, scoped, tag = 'scoped memory for tpu_custom_call.1']
    #allocation5 [shape = 'u8[524288]{0}', space=vmem, size = 0x80000, scoped, tag = 'output window, operand 0']
    %6 = vsyncpa [#allocation3], 0
    %s7 = scalar_lea.sflag [#allocation3], 1
    %8 = vsyncpa %s7, 0
    %9 = vsyncpa [#allocation4], 0
    %s10 = scalar_lea.sflag [#allocation4], 1
    %11 = vsyncpa %s10, 0
    loop: start=0, step=1, limit=4
    $region2: #{tpu_custom_call.1} parent=1 // loop_pre_header
      _
    $region3: #{tpu_custom_call.1} parent=1 // loop_header
      %s13 = sphi 0, %s17
      %p14 = scmp.ge.s32.totalorder %s13, 4
      %s23 = sphi 0, %s25
      %s26 = sphi 0, %s23
      %s27 = sphi 0, %s26
      %s43 = sphi 0, %s27
      %s49 = sphi 0, %s51
      %s52 = sphi 0, %s49
      %s53 = sphi 0, %s52
      %s69 = sphi 0, %s53
    $region4: #{tpu_custom_call.1} parent=1 // loop_header_branch
      %16 = sbr.rel (%p14) target = $region8
    $region5: #{tpu_custom_call.1} parent=1 // loop_body
      %s18 = ssub.s32 %s13, 1
      %s19 = ssub.s32 %s13, 2
      %s20 = sadd.s32 %s13, 1
      %s21 = ssub.s32 %s13, %s20
      %p22 = scmp.eq.s32.totalorder %s21, 0
      %s24 = sadd.s32 %s23, 1
      %s25 = scalar_select %p22, %s23, %s24
      %p28 = pneg %p22
      %p29 = scmp.eq.s32.totalorder %s13, 1
      %p30 = por %p28, %p29
      %p31 = scmp.ne.s32.totalorder %s23, %s26
      %p32 = scmp.eq.s32.totalorder %s13, 0
      %p33 = por %p31, %p32
      %p34 = scmp.ne.s32.totalorder %s23, %s26
      %p35 = scmp.eq.s32.totalorder %s18, 1
      %p36 = por %p34, %p35
      %p37 = scmp.ne.s32.totalorder %s26, %s27
      %p38 = scmp.eq.s32.totalorder %s18, 0
      %p39 = por %p37, %p38
      %p40 = scmp.ne.s32.totalorder %s26, %s27
      %p41 = scmp.eq.s32.totalorder %s19, 1
      %p42 = por %p40, %p41
      %p44 = scmp.ne.s32.totalorder %s27, %s43
      %p45 = scmp.eq.s32.totalorder %s19, 0
      %p46 = por %p44, %p45
      %s47 = ssub.s32 %s13, %s20
      %p48 = scmp.eq.s32.totalorder %s47, 0
      %s50 = sadd.s32 %s49, 1
      %s51 = scalar_select %p48, %s49, %s50
      %p54 = pneg %p48
      %p55 = scmp.eq.s32.totalorder %s13, 1
      %p56 = por %p54, %p55
      %p57 = scmp.ne.s32.totalorder %s49, %s52
      %p58 = scmp.eq.s32.totalorder %s13, 0
      %p59 = por %p57, %p58
      %p60 = scmp.ne.s32.totalorder %s49, %s52
      %p61 = scmp.eq.s32.totalorder %s18, 1
      %p62 = por %p60, %p61
      %p63 = scmp.ne.s32.totalorder %s52, %s53
      %p64 = scmp.eq.s32.totalorder %s18, 0
      %p65 = por %p63, %p64
      %p66 = scmp.ne.s32.totalorder %s52, %s53
      %p67 = scmp.eq.s32.totalorder %s19, 1
      %p68 = por %p66, %p67
      %p70 = scmp.ne.s32.totalorder %s53, %s69
      %p71 = scmp.eq.s32.totalorder %s19, 0
      %p72 = por %p70, %p71
      %p73 = scmp.le.s32.totalorder 1, %s13
      %p74 = scmp.lt.s32.totalorder %s13, 3
      %p75 = pnand %p73, %p74
      %p76 = pneg %p75
      // Predicated region
      $region9: #{tpu_custom_call.1} parent=5 // pred_check
        _
      $region10: #{tpu_custom_call.1} parent=5 // pred_check_branch
        %78 = sbr.rel (%p75) target = $region12
      $region11: #{tpu_custom_call.1} parent=5 // pred_region
        %s79 = ssub.s32 %s13, 1
      $region12: #{tpu_custom_call.1} parent=5 // pred_fallthru
        _
      %p80 = scmp.lt.s32.totalorder %s13, 2
      // Predicated region
      $region13: #{tpu_custom_call.1} parent=5 // pred_check
        %p81 = pneg %p80
      $region14: #{tpu_custom_call.1} parent=5 // pred_check_branch
        %83 = sbr.rel (%p81) target = $region16
      $region15: #{tpu_custom_call.1} parent=5 // pred_region
        // Predicated region
        $region17: #{tpu_custom_call.1} parent=15 // pred_check
          %p84 = pneg %p33
        $region18: #{tpu_custom_call.1} parent=15 // pred_check_branch
          %86 = sbr.rel (%p84) target = $region20
        $region19: #{tpu_custom_call.1} parent=15 // pred_region
          %s87 = sand.u32 %s23, 1
          %s88 = scalar_lea.sflag [#allocation3], %s87
          %s89 = sand.u32 %s23, 1
          %s90 = smul.addr %s89, 512
          %s91 = scalar_lea.vmem [#allocation2], %s90
          %s92 = smul.u32 64, %s13
          %94 = vsyncadd %s88, 0
          %s95 = smul.addr %s92, 8
          %s96 = scalar_lea.hbm %s0, %s95
          %s97 = sshll.u32 %s96, 4
          %s98 = int_to_ptr.hbm [resolvable:$true] %s97
          %s99 = sshll.u32 %s91, 4
          %s100 = int_to_ptr.vmem [resolvable:$true] %s99
          %105 = dma.hbm_to_vmem [thread:$0]  %s98, 8192, %s100, %s88, 128, 128, 8
        $region20: #{tpu_custom_call.1} parent=15 // pred_fallthru
          _
      $region16: #{tpu_custom_call.1} parent=5 // pred_fallthru
        _
      %p106 = scmp.le.s32.totalorder 1, %s13
      %p107 = scmp.lt.s32.totalorder %s13, 3
      %p108 = pnand %p106, %p107
      %p109 = pneg %p108
      // Predicated region
      $region21: #{tpu_custom_call.1} parent=5 // pred_check
        _
      $region22: #{tpu_custom_call.1} parent=5 // pred_check_branch
        %111 = sbr.rel (%p108) target = $region24
      $region23: #{tpu_custom_call.1} parent=5 // pred_region
        %s112 = ssub.s32 %s13, 1
        %s113 = sand.u32 %s26, 1
        %s114 = scalar_lea.sflag [#allocation3], %s113
        %s115 = sand.u32 %s26, 1
        %s116 = smul.addr %s115, 512
        %s117 = scalar_lea.vmem [#allocation2], %s116
        // Predicated region
        $region25: #{tpu_custom_call.1} parent=23 // pred_check
          %p118 = pneg %p39
        $region26: #{tpu_custom_call.1} parent=23 // pred_check_branch
          %120 = sbr.rel (%p118) target = $region28
        $region27: #{tpu_custom_call.1} parent=23 // pred_region
          %122 = dma.done %s114, 8192
        $region28: #{tpu_custom_call.1} parent=23 // pred_fallthru
          _
        %s123 = sand.u32 %s26, 1
        %s124 = scalar_lea.sflag [#allocation3], %s123
        %s125 = sand.u32 %s26, 1
        %s126 = smul.addr %s125, 512
        %s127 = scalar_lea.vmem [#allocation2], %s126
        %p128 = pneg %p39
        %p129 = pneg %p36
        %p130 = pneg %p65
        %p131 = pneg %p62
        %s132 = sand.u32 %s52, 1
        %s133 = scalar_lea.sflag [#allocation4], %s132
        %s134 = sand.u32 %s52, 1
        %s135 = smul.addr %s134, 512
        %s136 = scalar_lea.vmem [#allocation5], %s135
        %s137 = smul.u32 64, %s18
        %s138 = smul.u32 64, %s18
        %v139 = vld [vmem:[%s117] sm:$0xff]
        %v140 = vld [vmem:[%s117 + $0x8] sm:$0xff]
        %v141 = vld [vmem:[%s117 + $0x10] sm:$0xff]
        %v142 = vld [vmem:[%s117 + $0x18] sm:$0xff]
        %v143 = vld [vmem:[%s117 + $0x20] sm:$0xff]
        %v144 = vld [vmem:[%s117 + $0x28] sm:$0xff]
        %v145 = vld [vmem:[%s117 + $0x30] sm:$0xff]
        %v146 = vld [vmem:[%s117 + $0x38] sm:$0xff]
        %v147 = vld [vmem:[%s117 + $0x40] sm:$0xff]
        %v148 = vld [vmem:[%s117 + $0x48] sm:$0xff]
        %v149 = vld [vmem:[%s117 + $0x50] sm:$0xff]
        %v150 = vld [vmem:[%s117 + $0x58] sm:$0xff]
        %v151 = vld [vmem:[%s117 + $0x60] sm:$0xff]
        %v152 = vld [vmem:[%s117 + $0x68] sm:$0xff]
        %v153 = vld [vmem:[%s117 + $0x70] sm:$0xff]
        %v154 = vld [vmem:[%s117 + $0x78] sm:$0xff]
        %v155 = vld [vmem:[%s117 + $0x80] sm:$0xff]
        %v156 = vld [vmem:[%s117 + $0x88] sm:$0xff]
        %v157 = vld [vmem:[%s117 + $0x90] sm:$0xff]
        %v158 = vld [vmem:[%s117 + $0x98] sm:$0xff]
        %v159 = vld [vmem:[%s117 + $0xa0] sm:$0xff]
        %v160 = vld [vmem:[%s117 + $0xa8] sm:$0xff]
        %v161 = vld [vmem:[%s117 + $0xb0] sm:$0xff]
        %v162 = vld [vmem:[%s117 + $0xb8] sm:$0xff]
        %v163 = vld [vmem:[%s117 + $0xc0] sm:$0xff]
        %v164 = vld [vmem:[%s117 + $0xc8] sm:$0xff]
        %v165 = vld [vmem:[%s117 + $0xd0] sm:$0xff]
        %v166 = vld [vmem:[%s117 + $0xd8] sm:$0xff]
        %v167 = vld [vmem:[%s117 + $0xe0] sm:$0xff]
        %v168 = vld [vmem:[%s117 + $0xe8] sm:$0xff]
        %v169 = vld [vmem:[%s117 + $0xf0] sm:$0xff]
        %v170 = vld [vmem:[%s117 + $0xf8] sm:$0xff]
        %v171 = vld [vmem:[%s117 + $0x100] sm:$0xff]
        %v172 = vld [vmem:[%s117 + $0x108] sm:$0xff]
        %v173 = vld [vmem:[%s117 + $0x110] sm:$0xff]
        %v174 = vld [vmem:[%s117 + $0x118] sm:$0xff]
        %v175 = vld [vmem:[%s117 + $0x120] sm:$0xff]
        %v176 = vld [vmem:[%s117 + $0x128] sm:$0xff]
        %v177 = vld [vmem:[%s117 + $0x130] sm:$0xff]
        %v178 = vld [vmem:[%s117 + $0x138] sm:$0xff]
        %v179 = vld [vmem:[%s117 + $0x140] sm:$0xff]
        %v180 = vld [vmem:[%s117 + $0x148] sm:$0xff]
        %v181 = vld [vmem:[%s117 + $0x150] sm:$0xff]
        %v182 = vld [vmem:[%s117 + $0x158] sm:$0xff]
        %v183 = vld [vmem:[%s117 + $0x160] sm:$0xff]
        %v184 = vld [vmem:[%s117 + $0x168] sm:$0xff]
        %v185 = vld [vmem:[%s117 + $0x170] sm:$0xff]
        %v186 = vld [vmem:[%s117 + $0x178] sm:$0xff]
        %v187 = vld [vmem:[%s117 + $0x180] sm:$0xff]
        %v188 = vld [vmem:[%s117 + $0x188] sm:$0xff]
        %v189 = vld [vmem:[%s117 + $0x190] sm:$0xff]
        %v190 = vld [vmem:[%s117 + $0x198] sm:$0xff]
        %v191 = vld [vmem:[%s117 + $0x1a0] sm:$0xff]
        %v192 = vld [vmem:[%s117 + $0x1a8] sm:$0xff]
        %v193 = vld [vmem:[%s117 + $0x1b0] sm:$0xff]
        %v194 = vld [vmem:[%s117 + $0x1b8] sm:$0xff]
        %v195 = vld [vmem:[%s117 + $0x1c0] sm:$0xff]
        %v196 = vld [vmem:[%s117 + $0x1c8] sm:$0xff]
        %v197 = vld [vmem:[%s117 + $0x1d0] sm:$0xff]
        %v198 = vld [vmem:[%s117 + $0x1d8] sm:$0xff]
        %v199 = vld [vmem:[%s117 + $0x1e0] sm:$0xff]
        %v200 = vld [vmem:[%s117 + $0x1e8] sm:$0xff]
        %v201 = vld [vmem:[%s117 + $0x1f0] sm:$0xff]
        %v202 = vld [vmem:[%s117 + $0x1f8] sm:$0xff]
        %v203 = vmul.f32 %v139, 30.0
        %v204 = vmul.f32 %v140, 30.0
        %v205 = vmul.f32 %v141, 30.0
        %v206 = vmul.f32 %v142, 30.0
        %v207 = vmul.f32 %v143, 30.0
        %v208 = vmul.f32 %v144, 30.0
        %v209 = vmul.f32 %v145, 30.0
        %v210 = vmul.f32 %v146, 30.0
        %v211 = vmul.f32 %v147, 30.0
        %v212 = vmul.f32 %v148, 30.0
        %v213 = vmul.f32 %v149, 30.0
        %v214 = vmul.f32 %v150, 30.0
        %v215 = vmul.f32 %v151, 30.0
        %v216 = vmul.f32 %v152, 30.0
        %v217 = vmul.f32 %v153, 30.0
        %v218 = vmul.f32 %v154, 30.0
        %v219 = vmul.f32 %v155, 30.0
        %v220 = vmul.f32 %v156, 30.0
        %v221 = vmul.f32 %v157, 30.0
        %v222 = vmul.f32 %v158, 30.0
        %v223 = vmul.f32 %v159, 30.0
        %v224 = vmul.f32 %v160, 30.0
        %v225 = vmul.f32 %v161, 30.0
        %v226 = vmul.f32 %v162, 30.0
        %v227 = vmul.f32 %v163, 30.0
        %v228 = vmul.f32 %v164, 30.0
        %v229 = vmul.f32 %v165, 30.0
        %v230 = vmul.f32 %v166, 30.0
        %v231 = vmul.f32 %v167, 30.0
        %v232 = vmul.f32 %v168, 30.0
        %v233 = vmul.f32 %v169, 30.0
        %v234 = vmul.f32 %v170, 30.0
        %v235 = vmul.f32 %v171, 30.0
        %v236 = vmul.f32 %v172, 30.0
        %v237 = vmul.f32 %v173, 30.0
        %v238 = vmul.f32 %v174, 30.0
        %v239 = vmul.f32 %v175, 30.0
        %v240 = vmul.f32 %v176, 30.0
        %v241 = vmul.f32 %v177, 30.0
        %v242 = vmul.f32 %v178, 30.0
        %v243 = vmul.f32 %v179, 30.0
        %v244 = vmul.f32 %v180, 30.0
        %v245 = vmul.f32 %v181, 30.0
        %v246 = vmul.f32 %v182, 30.0
        %v247 = vmul.f32 %v183, 30.0
        %v248 = vmul.f32 %v184, 30.0
        %v249 = vmul.f32 %v185, 30.0
        %v250 = vmul.f32 %v186, 30.0
        %v251 = vmul.f32 %v187, 30.0
        %v252 = vmul.f32 %v188, 30.0
        %v253 = vmul.f32 %v189, 30.0
        %v254 = vmul.f32 %v190, 30.0
        %v255 = vmul.f32 %v191, 30.0
        %v256 = vmul.f32 %v192, 30.0
        %v257 = vmul.f32 %v193, 30.0
        %v258 = vmul.f32 %v194, 30.0
        %v259 = vmul.f32 %v195, 30.0
        %v260 = vmul.f32 %v196, 30.0
        %v261 = vmul.f32 %v197, 30.0
        %v262 = vmul.f32 %v198, 30.0
        %v263 = vmul.f32 %v199, 30.0
        %v264 = vmul.f32 %v200, 30.0
        %v265 = vmul.f32 %v201, 30.0
        %v266 = vmul.f32 %v202, 30.0
        %v267 = vand.u32 2147483647, %v203
        %vm268 = vcmp.le.f32.partialorder %v267, 0.7853982
        %vm269 = vcmp.lt.s32.totalorder %v203, 0
        %v270 = vand.u32 %v203, 2139095040
        %v271 = vshrl.u32 %v270, 23
        %v272 = vsub.s32 %v271, 127
        %v273 = vand.u32 2147483647, %v203
        %v274 = vand.u32 %v273, 8388607
        %v275 = vor.u32 %v274, 8388608
        %v276 = vsub.s32 0, %v275
        %v277 = vadd.s32 %v272, 1
        %vm278 = vcmp.gt.s32.totalorder %v277, 0
        %v279 = vsel %vm278, %v277, 0
        %v280 = vshrl.u32 %v279, 5
        %v281 = vand.u32 %v279, 31
        %v282 = vsub.s32 32, %v281
        %v283 = vshrl.u32 683565275, %v282
        %v284 = vshll.u32 683565275, %v281
        %v285 = vshrl.u32 2475754826, %v282
        %v286 = vor.u32 %v284, %v285
        %v287 = vshll.u32 2475754826, %v281
        %v288 = vshrl.u32 2131351028, %v282
        %v289 = vor.u32 %v287, %v288
        %v290 = vshll.u32 2131351028, %v281
        %v291 = vshrl.u32 2102212464, %v282
        %v292 = vor.u32 %v290, %v291
        %v293 = vshll.u32 2102212464, %v281
        %v294 = vshrl.u32 920167782, %v282
        %v295 = vor.u32 %v293, %v294
        %v296 = vshll.u32 920167782, %v281
        %v297 = vshrl.u32 1326507024, %v282
        %v298 = vor.u32 %v296, %v297
        %vm299 = vcmp.lt.s32.totalorder %v280, 1
        %vm300 = vcmp.lt.s32.totalorder %v280, 2
        %vm301 = vcmp.lt.s32.totalorder %v280, 3
        %vm302 = vcmp.lt.s32.totalorder %v280, 4
        %v303 = vsel %vm299, %v283, %v286
        %v304 = vsel %vm302, %v292, 2102212464
        %v305 = vsel %vm301, %v289, %v304
        %v306 = vsel %vm300, %v303, %v305
        %v307 = vsel %vm299, %v286, %v289
        %v308 = vsel %vm302, %v295, 920167782
        %v309 = vsel %vm301, %v292, %v308
        %v310 = vsel %vm300, %v307, %v309
        %v311 = vsel %vm299, %v289, %v292
        %v312 = vsel %vm302, %v298, 1326507024
        %v313 = vsel %vm301, %v295, %v312
        %v314 = vsel %vm300, %v311, %v313
        %v315 = vshll.u32 %v275, 8
        %v316 = vand.u32 %v315, 65535
        %v317 = vshrl.u32 %v315, 16
        %v318 = vand.u32 %v314, 65535
        %v319 = vshrl.u32 %v314, 16
        %v320 = vmul.u32 %v316, %v318
        %v321 = vmul.u32 %v316, %v319
        %v322 = vmul.u32 %v317, %v318
        %v323 = vmul.u32 %v317, %v319
        %v324 = vshll.u32 %v321, 16
        %v325 = vshrl.u32 %v321, 16
        %v326 = vshll.u32 %v322, 16
        %v327 = vshrl.u32 %v322, 16
        %vm328 = vc.u32 %v320, %v324
        %v329 = vsel %vm328, 1, 0
        %v330 = vadd.s32 %v320, %v324
        %v331 = vadd.s32 %v323, %v329
        %vm332 = vc.u32 %v330, %v326
        %v333 = vsel %vm332, 1, 0
        %v334 = vadd.s32 %v330, %v326
        %v335 = vadd.s32 %v331, %v333
        %v336 = vadd.s32 %v335, %v325
        %v337 = vadd.s32 %v336, %v327
        %v338 = vand.u32 %v315, 65535
        %v339 = vshrl.u32 %v315, 16
        %v340 = vand.u32 %v310, 65535
        %v341 = vshrl.u32 %v310, 16
        %v342 = vmul.u32 %v338, %v340
        %v343 = vmul.u32 %v338, %v341
        %v344 = vmul.u32 %v339, %v340
        %v345 = vmul.u32 %v339, %v341
        %v346 = vshll.u32 %v343, 16
        %v347 = vshrl.u32 %v343, 16
        %v348 = vshll.u32 %v344, 16
        %v349 = vshrl.u32 %v344, 16
        %vm350 = vc.u32 %v342, %v346
        %v351 = vsel %vm350, 1, 0
        %v352 = vadd.s32 %v342, %v346
        %v353 = vadd.s32 %v345, %v351
        %vm354 = vc.u32 %v352, %v348
        %v355 = vsel %vm354, 1, 0
        %v356 = vadd.s32 %v352, %v348
        %v357 = vadd.s32 %v353, %v355
        %v358 = vadd.s32 %v357, %v347
        %v359 = vadd.s32 %v358, %v349
        %v360 = vmul.u32 %v315, %v306
        %v361 = vadd.s32 %v337, %v356
        %vm362 = vc.u32 %v337, %v356
        %v363 = vadd.s32 %v359, 1
        %v364 = vsel %vm362, %v363, %v359
        %v365 = vadd.s32 %v360, %v364
        %v366 = vadd.s32 %v365, 536870912
        %v367 = vshrl.u32 %v366, 30
        %v368 = vshll.u32 %v367, 30
        %v369 = vsub.s32 %v365, %v368
        %vm370 = vcmp.lt.s32.totalorder %v369, 0
        %v371 = vsub.s32 0, %v369
        %v372 = vsel %vm370, %v371, %v369
        %v373 = vclz %v372
        %v374 = vsub.s32 %v373, 2
        %vm375 = vcmp.gt.s32.totalorder 0, %v374
        %v376 = vsel %vm375, 0, %v374
        %v377 = vsub.s32 32, %v376
        %v378 = vshll.u32 %v369, %v376
        %v379 = vshrl.u32 %v361, %v377
        %v380 = vor.u32 %v378, %v379
        %v381 = vsub.s32 4294967266, %v376
        %v382 = vadd.s32 %v381, 127
        %v383 = vshll.u32 %v382, 23
        %v384 = vor.u32 4788187, %v383
        %v385 = vand.u32 2147483647, %v384
        %v387 = vcvt.s32.f32 %v380
        %v388 = vmul.f32 %v387, %v385
        %v389 = vxor.u32 %v388, 2147483648
        %v390 = vsel %vm269, %v389, %v388
        %v391 = vsub.s32 4, %v367
        %v392 = vsel %vm269, %v391, %v367
        %v393 = vsel %vm268, %v203, %v390
        %v394 = vsel %vm268, 0, %v392
        %v395 = vmul.f32 %v393, %v393
        %v396 = vmul.f32 %v395, -0.001358992
        %v397 = vadd.f32 %v396, 0.041655596
        %v398 = vmul.f32 %v395, %v397
        %v399 = vadd.f32 %v398, -0.4999988
        %v400 = vmul.f32 %v395, %v399
        %v401 = vadd.f32 1.0, %v400
        %v402 = vmul.f32 %v393, %v393
        %v403 = vmul.f32 %v402, -0.00019511016
        %v404 = vadd.f32 %v403, 0.008332121
        %v405 = vmul.f32 %v402, %v404
        %v406 = vadd.f32 %v405, -0.16666654
        %v407 = vmul.f32 %v402, %v406
        %v408 = vadd.f32 %v407, 1.0
        %v409 = vmul.f32 %v408, %v393
        %vm410 = vweird.f32 %v203
        %v411 = vadd.s32 %v394, 3
        %v412 = vand.u32 %v411, 3
        %vm413 = vcmp.lt.s32.totalorder %v412, 2
        %vm414 = vcmp.eq.s32.totalorder %v412, 0
        %v415 = vxor.u32 %v409, 2147483648
        %v416 = vsel %vm414, %v401, %v415
        %vm417 = vcmp.eq.s32.totalorder %v412, 2
        %v418 = vxor.u32 %v401, 2147483648
        %v419 = vsel %vm417, %v418, %v409
        %v420 = vsel %vm413, %v416, %v419
        %v421 = vsel %vm410, nan, %v420
        %v422 = vand.u32 2147483647, %v204
        %vm423 = vcmp.le.f32.partialorder %v422, 0.7853982
        %vm424 = vcmp.lt.s32.totalorder %v204, 0
        %v425 = vand.u32 %v204, 2139095040
        %v426 = vshrl.u32 %v425, 23
        %v427 = vsub.s32 %v426, 127
        %v428 = vand.u32 2147483647, %v204
        %v429 = vand.u32 %v428, 8388607
        %v430 = vor.u32 %v429, 8388608
        %v431 = vsub.s32 0, %v430
        %v432 = vadd.s32 %v427, 1
        %vm433 = vcmp.gt.s32.totalorder %v432, 0
        %v434 = vsel %vm433, %v432, 0
        %v435 = vshrl.u32 %v434, 5
        %v436 = vand.u32 %v434, 31
        %v437 = vsub.s32 32, %v436
        %v438 = vshrl.u32 683565275, %v437
        %v439 = vshll.u32 683565275, %v436
        %v440 = vshrl.u32 2475754826, %v437
        %v441 = vor.u32 %v439, %v440
        %v442 = vshll.u32 2475754826, %v436
        %v443 = vshrl.u32 2131351028, %v437
        %v444 = vor.u32 %v442, %v443
        %v445 = vshll.u32 2131351028, %v436
        %v446 = vshrl.u32 2102212464, %v437
        %v447 = vor.u32 %v445, %v446
        %v448 = vshll.u32 2102212464, %v436
        %v449 = vshrl.u32 920167782, %v437
        %v450 = vor.u32 %v448, %v449
        %v451 = vshll.u32 920167782, %v436
        %v452 = vshrl.u32 1326507024, %v437
        %v453 = vor.u32 %v451, %v452
        %vm454 = vcmp.lt.s32.totalorder %v435, 1
        %vm455 = vcmp.lt.s32.totalorder %v435, 2
        %vm456 = vcmp.lt.s32.totalorder %v435, 3
        %vm457 = vcmp.lt.s32.totalorder %v435, 4
        %v458 = vsel %vm454, %v438, %v441
        %v459 = vsel %vm457, %v447, 2102212464
        %v460 = vsel %vm456, %v444, %v459
        %v461 = vsel %vm455, %v458, %v460
        %v462 = vsel %vm454, %v441, %v444
        %v463 = vsel %vm457, %v450, 920167782
        %v464 = vsel %vm456, %v447, %v463
        %v465 = vsel %vm455, %v462, %v464
        %v466 = vsel %vm454, %v444, %v447
        %v467 = vsel %vm457, %v453, 1326507024
        %v468 = vsel %vm456, %v450, %v467
        %v469 = vsel %vm455, %v466, %v468
        %v470 = vshll.u32 %v430, 8
        %v471 = vand.u32 %v470, 65535
        %v472 = vshrl.u32 %v470, 16
        %v473 = vand.u32 %v469, 65535
        %v474 = vshrl.u32 %v469, 16
        %v475 = vmul.u32 %v471, %v473
        %v476 = vmul.u32 %v471, %v474
        %v477 = vmul.u32 %v472, %v473
        %v478 = vmul.u32 %v472, %v474
        %v479 = vshll.u32 %v476, 16
        %v480 = vshrl.u32 %v476, 16
        %v481 = vshll.u32 %v477, 16
        %v482 = vshrl.u32 %v477, 16
        %vm483 = vc.u32 %v475, %v479
        %v484 = vsel %vm483, 1, 0
        %v485 = vadd.s32 %v475, %v479
        %v486 = vadd.s32 %v478, %v484
        %vm487 = vc.u32 %v485, %v481
        %v488 = vsel %vm487, 1, 0
        %v489 = vadd.s32 %v485, %v481
        %v490 = vadd.s32 %v486, %v488
        %v491 = vadd.s32 %v490, %v480
        %v492 = vadd.s32 %v491, %v482
        %v493 = vand.u32 %v470, 65535
        %v494 = vshrl.u32 %v470, 16
        %v495 = vand.u32 %v465, 65535
        %v496 = vshrl.u32 %v465, 16
        %v497 = vmul.u32 %v493, %v495
        %v498 = vmul.u32 %v493, %v496
        %v499 = vmul.u32 %v494, %v495
        %v500 = vmul.u32 %v494, %v496
        %v501 = vshll.u32 %v498, 16
        %v502 = vshrl.u32 %v498, 16
        %v503 = vshll.u32 %v499, 16
        %v504 = vshrl.u32 %v499, 16
        %vm505 = vc.u32 %v497, %v501
        %v506 = vsel %vm505, 1, 0
        %v507 = vadd.s32 %v497, %v501
        %v508 = vadd.s32 %v500, %v506
        %vm509 = vc.u32 %v507, %v503
        %v510 = vsel %vm509, 1, 0
        %v511 = vadd.s32 %v507, %v503
        %v512 = vadd.s32 %v508, %v510
        %v513 = vadd.s32 %v512, %v502
        %v514 = vadd.s32 %v513, %v504
        %v515 = vmul.u32 %v470, %v461
        %v516 = vadd.s32 %v492, %v511
        %vm517 = vc.u32 %v492, %v511
        %v518 = vadd.s32 %v514, 1
        %v519 = vsel %vm517, %v518, %v514
        %v520 = vadd.s32 %v515, %v519
        %v521 = vadd.s32 %v520, 536870912
        %v522 = vshrl.u32 %v521, 30
        %v523 = vshll.u32 %v522, 30
        %v524 = vsub.s32 %v520, %v523
        %vm525 = vcmp.lt.s32.totalorder %v524, 0
        %v526 = vsub.s32 0, %v524
        %v527 = vsel %vm525, %v526, %v524
        %v528 = vclz %v527
        %v529 = vsub.s32 %v528, 2
        %vm530 = vcmp.gt.s32.totalorder 0, %v529
        %v531 = vsel %vm530, 0, %v529
        %v532 = vsub.s32 32, %v531
        %v533 = vshll.u32 %v524, %v531
        %v534 = vshrl.u32 %v516, %v532
        %v535 = vor.u32 %v533, %v534
        %v536 = vsub.s32 4294967266, %v531
        %v537 = vadd.s32 %v536, 127
        %v538 = vshll.u32 %v537, 23
        %v539 = vor.u32 4788187, %v538
        %v540 = vand.u32 2147483647, %v539
        %v542 = vcvt.s32.f32 %v535
        %v543 = vmul.f32 %v542, %v540
        %v544 = vxor.u32 %v543, 2147483648
        %v545 = vsel %vm424, %v544, %v543
        %v546 = vsub.s32 4, %v522
        %v547 = vsel %vm424, %v546, %v522
        %v548 = vsel %vm423, %v204, %v545
        %v549 = vsel %vm423, 0, %v547
        %v550 = vmul.f32 %v548, %v548
        %v551 = vmul.f32 %v550, -0.001358992
        %v552 = vadd.f32 %v551, 0.041655596
        %v553 = vmul.f32 %v550, %v552
        %v554 = vadd.f32 %v553, -0.4999988
        %v555 = vmul.f32 %v550, %v554
        %v556 = vadd.f32 1.0, %v555
        %v557 = vmul.f32 %v548, %v548
        %v558 = vmul.f32 %v557, -0.00019511016
        %v559 = vadd.f32 %v558, 0.008332121
        %v560 = vmul.f32 %v557, %v559
        %v561 = vadd.f32 %v560, -0.16666654
        %v562 = vmul.f32 %v557, %v561
        %v563 = vadd.f32 %v562, 1.0
        %v564 = vmul.f32 %v563, %v548
        %vm565 = vweird.f32 %v204
        %v566 = vadd.s32 %v549, 3
        %v567 = vand.u32 %v566, 3
        %vm568 = vcmp.lt.s32.totalorder %v567, 2
        %vm569 = vcmp.eq.s32.totalorder %v567, 0
        %v570 = vxor.u32 %v564, 2147483648
        %v571 = vsel %vm569, %v556, %v570
        %vm572 = vcmp.eq.s32.totalorder %v567, 2
        %v573 = vxor.u32 %v556, 2147483648
        %v574 = vsel %vm572, %v573, %v564
        %v575 = vsel %vm568, %v571, %v574
        %v576 = vsel %vm565, nan, %v575
        %v577 = vand.u32 2147483647, %v205
        %vm578 = vcmp.le.f32.partialorder %v577, 0.7853982
        %vm579 = vcmp.lt.s32.totalorder %v205, 0
        %v580 = vand.u32 %v205, 2139095040
        %v581 = vshrl.u32 %v580, 23
        %v582 = vsub.s32 %v581, 127
        %v583 = vand.u32 2147483647, %v205
        %v584 = vand.u32 %v583, 8388607
        %v585 = vor.u32 %v584, 8388608
        %v586 = vsub.s32 0, %v585
        %v587 = vadd.s32 %v582, 1
        %vm588 = vcmp.gt.s32.totalorder %v587, 0
        %v589 = vsel %vm588, %v587, 0
        %v590 = vshrl.u32 %v589, 5
        %v591 = vand.u32 %v589, 31
        %v592 = vsub.s32 32, %v591
        %v593 = vshrl.u32 683565275, %v592
        %v594 = vshll.u32 683565275, %v591
        %v595 = vshrl.u32 2475754826, %v592
        %v596 = vor.u32 %v594, %v595
        %v597 = vshll.u32 2475754826, %v591
        %v598 = vshrl.u32 2131351028, %v592
        %v599 = vor.u32 %v597, %v598
        %v600 = vshll.u32 2131351028, %v591
        %v601 = vshrl.u32 2102212464, %v592
        %v602 = vor.u32 %v600, %v601
        %v603 = vshll.u32 2102212464, %v591
        %v604 = vshrl.u32 920167782, %v592
        %v605 = vor.u32 %v603, %v604
        %v606 = vshll.u32 920167782, %v591
        %v607 = vshrl.u32 1326507024, %v592
        %v608 = vor.u32 %v606, %v607
        %vm609 = vcmp.lt.s32.totalorder %v590, 1
        %vm610 = vcmp.lt.s32.totalorder %v590, 2
        %vm611 = vcmp.lt.s32.totalorder %v590, 3
        %vm612 = vcmp.lt.s32.totalorder %v590, 4
        %v613 = vsel %vm609, %v593, %v596
        %v614 = vsel %vm612, %v602, 2102212464
        %v615 = vsel %vm611, %v599, %v614
        %v616 = vsel %vm610, %v613, %v615
        %v617 = vsel %vm609, %v596, %v599
        %v618 = vsel %vm612, %v605, 920167782
        %v619 = vsel %vm611, %v602, %v618
        %v620 = vsel %vm610, %v617, %v619
        %v621 = vsel %vm609, %v599, %v602
        %v622 = vsel %vm612, %v608, 1326507024
        %v623 = vsel %vm611, %v605, %v622
        %v624 = vsel %vm610, %v621, %v623
        %v625 = vshll.u32 %v585, 8
        %v626 = vand.u32 %v625, 65535
        %v627 = vshrl.u32 %v625, 16
        %v628 = vand.u32 %v624, 65535
        %v629 = vshrl.u32 %v624, 16
        %v630 = vmul.u32 %v626, %v628
        %v631 = vmul.u32 %v626, %v629
        %v632 = vmul.u32 %v627, %v628
        %v633 = vmul.u32 %v627, %v629
        %v634 = vshll.u32 %v631, 16
        %v635 = vshrl.u32 %v631, 16
        %v636 = vshll.u32 %v632, 16
        %v637 = vshrl.u32 %v632, 16
        %vm638 = vc.u32 %v630, %v634
        %v639 = vsel %vm638, 1, 0
        %v640 = vadd.s32 %v630, %v634
        %v641 = vadd.s32 %v633, %v639
        %vm642 = vc.u32 %v640, %v636
        %v643 = vsel %vm642, 1, 0
        %v644 = vadd.s32 %v640, %v636
        %v645 = vadd.s32 %v641, %v643
        %v646 = vadd.s32 %v645, %v635
        %v647 = vadd.s32 %v646, %v637
        %v648 = vand.u32 %v625, 65535
        %v649 = vshrl.u32 %v625, 16
        %v650 = vand.u32 %v620, 65535
        %v651 = vshrl.u32 %v620, 16
        %v652 = vmul.u32 %v648, %v650
        %v653 = vmul.u32 %v648, %v651
        %v654 = vmul.u32 %v649, %v650
        %v655 = vmul.u32 %v649, %v651
        %v656 = vshll.u32 %v653, 16
        %v657 = vshrl.u32 %v653, 16
        %v658 = vshll.u32 %v654, 16
        %v659 = vshrl.u32 %v654, 16
        %vm660 = vc.u32 %v652, %v656
        %v661 = vsel %vm660, 1, 0
        %v662 = vadd.s32 %v652, %v656
        %v663 = vadd.s32 %v655, %v661
        %vm664 = vc.u32 %v662, %v658
        %v665 = vsel %vm664, 1, 0
        %v666 = vadd.s32 %v662, %v658
        %v667 = vadd.s32 %v663, %v665
        %v668 = vadd.s32 %v667, %v657
        %v669 = vadd.s32 %v668, %v659
        %v670 = vmul.u32 %v625, %v616
        %v671 = vadd.s32 %v647, %v666
        %vm672 = vc.u32 %v647, %v666
        %v673 = vadd.s32 %v669, 1
        %v674 = vsel %vm672, %v673, %v669
        %v675 = vadd.s32 %v670, %v674
        %v676 = vadd.s32 %v675, 536870912
        %v677 = vshrl.u32 %v676, 30
        %v678 = vshll.u32 %v677, 30
        %v679 = vsub.s32 %v675, %v678
        %vm680 = vcmp.lt.s32.totalorder %v679, 0
        %v681 = vsub.s32 0, %v679
        %v682 = vsel %vm680, %v681, %v679
        %v683 = vclz %v682
        %v684 = vsub.s32 %v683, 2
        %vm685 = vcmp.gt.s32.totalorder 0, %v684
        %v686 = vsel %vm685, 0, %v684
        %v687 = vsub.s32 32, %v686
        %v688 = vshll.u32 %v679, %v686
        %v689 = vshrl.u32 %v671, %v687
        %v690 = vor.u32 %v688, %v689
        %v691 = vsub.s32 4294967266, %v686
        %v692 = vadd.s32 %v691, 127
        %v693 = vshll.u32 %v692, 23
        %v694 = vor.u32 4788187, %v693
        %v695 = vand.u32 2147483647, %v694
        %v697 = vcvt.s32.f32 %v690
        %v698 = vmul.f32 %v697, %v695
        %v699 = vxor.u32 %v698, 2147483648
        %v700 = vsel %vm579, %v699, %v698
        %v701 = vsub.s32 4, %v677
        %v702 = vsel %vm579, %v701, %v677
        %v703 = vsel %vm578, %v205, %v700
        %v704 = vsel %vm578, 0, %v702
        %v705 = vmul.f32 %v703, %v703
        %v706 = vmul.f32 %v705, -0.001358992
        %v707 = vadd.f32 %v706, 0.041655596
        %v708 = vmul.f32 %v705, %v707
        %v709 = vadd.f32 %v708, -0.4999988
        %v710 = vmul.f32 %v705, %v709
        %v711 = vadd.f32 1.0, %v710
        %v712 = vmul.f32 %v703, %v703
        %v713 = vmul.f32 %v712, -0.00019511016
        %v714 = vadd.f32 %v713, 0.008332121
        %v715 = vmul.f32 %v712, %v714
        %v716 = vadd.f32 %v715, -0.16666654
        %v717 = vmul.f32 %v712, %v716
        %v718 = vadd.f32 %v717, 1.0
        %v719 = vmul.f32 %v718, %v703
        %vm720 = vweird.f32 %v205
        %v721 = vadd.s32 %v704, 3
        %v722 = vand.u32 %v721, 3
        %vm723 = vcmp.lt.s32.totalorder %v722, 2
        %vm724 = vcmp.eq.s32.totalorder %v722, 0
        %v725 = vxor.u32 %v719, 2147483648
        %v726 = vsel %vm724, %v711, %v725
        %vm727 = vcmp.eq.s32.totalorder %v722, 2
        %v728 = vxor.u32 %v711, 2147483648
        %v729 = vsel %vm727, %v728, %v719
        %v730 = vsel %vm723, %v726, %v729
        %v731 = vsel %vm720, nan, %v730
        %v732 = vand.u32 2147483647, %v206
        %vm733 = vcmp.le.f32.partialorder %v732, 0.7853982
        %vm734 = vcmp.lt.s32.totalorder %v206, 0
        %v735 = vand.u32 %v206, 2139095040
        %v736 = vshrl.u32 %v735, 23
        %v737 = vsub.s32 %v736, 127
        %v738 = vand.u32 2147483647, %v206
        %v739 = vand.u32 %v738, 8388607
        %v740 = vor.u32 %v739, 8388608
        %v741 = vsub.s32 0, %v740
        %v742 = vadd.s32 %v737, 1
        %vm743 = vcmp.gt.s32.totalorder %v742, 0
        %v744 = vsel %vm743, %v742, 0
        %v745 = vshrl.u32 %v744, 5
        %v746 = vand.u32 %v744, 31
        %v747 = vsub.s32 32, %v746
        %v748 = vshrl.u32 683565275, %v747
        %v749 = vshll.u32 683565275, %v746
        %v750 = vshrl.u32 2475754826, %v747
        %v751 = vor.u32 %v749, %v750
        %v752 = vshll.u32 2475754826, %v746
        %v753 = vshrl.u32 2131351028, %v747
        %v754 = vor.u32 %v752, %v753
        %v755 = vshll.u32 2131351028, %v746
        %v756 = vshrl.u32 2102212464, %v747
        %v757 = vor.u32 %v755, %v756
        %v758 = vshll.u32 2102212464, %v746
        %v759 = vshrl.u32 920167782, %v747
        %v760 = vor.u32 %v758, %v759
        %v761 = vshll.u32 920167782, %v746
        %v762 = vshrl.u32 1326507024, %v747
        %v763 = vor.u32 %v761, %v762
        %vm764 = vcmp.lt.s32.totalorder %v745, 1
        %vm765 = vcmp.lt.s32.totalorder %v745, 2
        %vm766 = vcmp.lt.s32.totalorder %v745, 3
        %vm767 = vcmp.lt.s32.totalorder %v745, 4
        %v768 = vsel %vm764, %v748, %v751
        %v769 = vsel %vm767, %v757, 2102212464
        %v770 = vsel %vm766, %v754, %v769
        %v771 = vsel %vm765, %v768, %v770
        %v772 = vsel %vm764, %v751, %v754
        %v773 = vsel %vm767, %v760, 920167782
        %v774 = vsel %vm766, %v757, %v773
        %v775 = vsel %vm765, %v772, %v774
        %v776 = vsel %vm764, %v754, %v757
        %v777 = vsel %vm767, %v763, 1326507024
        %v778 = vsel %vm766, %v760, %v777
        %v779 = vsel %vm765, %v776, %v778
        %v780 = vshll.u32 %v740, 8
        %v781 = vand.u32 %v780, 65535
        %v782 = vshrl.u32 %v780, 16
        %v783 = vand.u32 %v779, 65535
        %v784 = vshrl.u32 %v779, 16
        %v785 = vmul.u32 %v781, %v783
        %v786 = vmul.u32 %v781, %v784
        %v787 = vmul.u32 %v782, %v783
        %v788 = vmul.u32 %v782, %v784
        %v789 = vshll.u32 %v786, 16
        %v790 = vshrl.u32 %v786, 16
        %v791 = vshll.u32 %v787, 16
        %v792 = vshrl.u32 %v787, 16
        %vm793 = vc.u32 %v785, %v789
        %v794 = vsel %vm793, 1, 0
        %v795 = vadd.s32 %v785, %v789
        %v796 = vadd.s32 %v788, %v794
        %vm797 = vc.u32 %v795, %v791
        %v798 = vsel %vm797, 1, 0
        %v799 = vadd.s32 %v795, %v791
        %v800 = vadd.s32 %v796, %v798
        %v801 = vadd.s32 %v800, %v790
        %v802 = vadd.s32 %v801, %v792
        %v803 = vand.u32 %v780, 65535
        %v804 = vshrl.u32 %v780, 16
        %v805 = vand.u32 %v775, 65535
        %v806 = vshrl.u32 %v775, 16
        %v807 = vmul.u32 %v803, %v805
        %v808 = vmul.u32 %v803, %v806
        %v809 = vmul.u32 %v804, %v805
        %v810 = vmul.u32 %v804, %v806
        %v811 = vshll.u32 %v808, 16
        %v812 = vshrl.u32 %v808, 16
        %v813 = vshll.u32 %v809, 16
        %v814 = vshrl.u32 %v809, 16
        %vm815 = vc.u32 %v807, %v811
        %v816 = vsel %vm815, 1, 0
        %v817 = vadd.s32 %v807, %v811
        %v818 = vadd.s32 %v810, %v816
        %vm819 = vc.u32 %v817, %v813
        %v820 = vsel %vm819, 1, 0
        %v821 = vadd.s32 %v817, %v813
        %v822 = vadd.s32 %v818, %v820
        %v823 = vadd.s32 %v822, %v812
        %v824 = vadd.s32 %v823, %v814
        %v825 = vmul.u32 %v780, %v771
        %v826 = vadd.s32 %v802, %v821
        %vm827 = vc.u32 %v802, %v821
        %v828 = vadd.s32 %v824, 1
        %v829 = vsel %vm827, %v828, %v824
        %v830 = vadd.s32 %v825, %v829
        %v831 = vadd.s32 %v830, 536870912
        %v832 = vshrl.u32 %v831, 30
        %v833 = vshll.u32 %v832, 30
        %v834 = vsub.s32 %v830, %v833
        %vm835 = vcmp.lt.s32.totalorder %v834, 0
        %v836 = vsub.s32 0, %v834
        %v837 = vsel %vm835, %v836, %v834
        %v838 = vclz %v837
        %v839 = vsub.s32 %v838, 2
        %vm840 = vcmp.gt.s32.totalorder 0, %v839
        %v841 = vsel %vm840, 0, %v839
        %v842 = vsub.s32 32, %v841
        %v843 = vshll.u32 %v834, %v841
        %v844 = vshrl.u32 %v826, %v842
        %v845 = vor.u32 %v843, %v844
        %v846 = vsub.s32 4294967266, %v841
        %v847 = vadd.s32 %v846, 127
        %v848 = vshll.u32 %v847, 23
        %v849 = vor.u32 4788187, %v848
        %v850 = vand.u32 2147483647, %v849
        %v852 = vcvt.s32.f32 %v845
        %v853 = vmul.f32 %v852, %v850
        %v854 = vxor.u32 %v853, 2147483648
        %v855 = vsel %vm734, %v854, %v853
        %v856 = vsub.s32 4, %v832
        %v857 = vsel %vm734, %v856, %v832
        %v858 = vsel %vm733, %v206, %v855
        %v859 = vsel %vm733, 0, %v857
        %v860 = vmul.f32 %v858, %v858
        %v861 = vmul.f32 %v860, -0.001358992
        %v862 = vadd.f32 %v861, 0.041655596
        %v863 = vmul.f32 %v860, %v862
        %v864 = vadd.f32 %v863, -0.4999988
        %v865 = vmul.f32 %v860, %v864
        %v866 = vadd.f32 1.0, %v865
        %v867 = vmul.f32 %v858, %v858
        %v868 = vmul.f32 %v867, -0.00019511016
        %v869 = vadd.f32 %v868, 0.008332121
        %v870 = vmul.f32 %v867, %v869
        %v871 = vadd.f32 %v870, -0.16666654
        %v872 = vmul.f32 %v867, %v871
        %v873 = vadd.f32 %v872, 1.0
        %v874 = vmul.f32 %v873, %v858
        %vm875 = vweird.f32 %v206
        %v876 = vadd.s32 %v859, 3
        %v877 = vand.u32 %v876, 3
        %vm878 = vcmp.lt.s32.totalorder %v877, 2
        %vm879 = vcmp.eq.s32.totalorder %v877, 0
        %v880 = vxor.u32 %v874, 2147483648
        %v881 = vsel %vm879, %v866, %v880
        %vm882 = vcmp.eq.s32.totalorder %v877, 2
        %v883 = vxor.u32 %v866, 2147483648
        %v884 = vsel %vm882, %v883, %v874
        %v885 = vsel %vm878, %v881, %v884
        %v886 = vsel %vm875, nan, %v885
        %v887 = vand.u32 2147483647, %v207
        %vm888 = vcmp.le.f32.partialorder %v887, 0.7853982
        %vm889 = vcmp.lt.s32.totalorder %v207, 0
        %v890 = vand.u32 %v207, 2139095040
        %v891 = vshrl.u32 %v890, 23
        %v892 = vsub.s32 %v891, 127
        %v893 = vand.u32 2147483647, %v207
        %v894 = vand.u32 %v893, 8388607
        %v895 = vor.u32 %v894, 8388608
        %v896 = vsub.s32 0, %v895
        %v897 = vadd.s32 %v892, 1
        %vm898 = vcmp.gt.s32.totalorder %v897, 0
        %v899 = vsel %vm898, %v897, 0
        %v900 = vshrl.u32 %v899, 5
        %v901 = vand.u32 %v899, 31
        %v902 = vsub.s32 32, %v901
        %v903 = vshrl.u32 683565275, %v902
        %v904 = vshll.u32 683565275, %v901
        %v905 = vshrl.u32 2475754826, %v902
        %v906 = vor.u32 %v904, %v905
        %v907 = vshll.u32 2475754826, %v901
        %v908 = vshrl.u32 2131351028, %v902
        %v909 = vor.u32 %v907, %v908
        %v910 = vshll.u32 2131351028, %v901
        %v911 = vshrl.u32 2102212464, %v902
        %v912 = vor.u32 %v910, %v911
        %v913 = vshll.u32 2102212464, %v901
        %v914 = vshrl.u32 920167782, %v902
        %v915 = vor.u32 %v913, %v914
        %v916 = vshll.u32 920167782, %v901
        %v917 = vshrl.u32 1326507024, %v902
        %v918 = vor.u32 %v916, %v917
        %vm919 = vcmp.lt.s32.totalorder %v900, 1
        %vm920 = vcmp.lt.s32.totalorder %v900, 2
        %vm921 = vcmp.lt.s32.totalorder %v900, 3
        %vm922 = vcmp.lt.s32.totalorder %v900, 4
        %v923 = vsel %vm919, %v903, %v906
        %v924 = vsel %vm922, %v912, 2102212464
        %v925 = vsel %vm921, %v909, %v924
        %v926 = vsel %vm920, %v923, %v925
        %v927 = vsel %vm919, %v906, %v909
        %v928 = vsel %vm922, %v915, 920167782
        %v929 = vsel %vm921, %v912, %v928
        %v930 = vsel %vm920, %v927, %v929
        %v931 = vsel %vm919, %v909, %v912
        %v932 = vsel %vm922, %v918, 1326507024
        %v933 = vsel %vm921, %v915, %v932
        %v934 = vsel %vm920, %v931, %v933
        %v935 = vshll.u32 %v895, 8
        %v936 = vand.u32 %v935, 65535
        %v937 = vshrl.u32 %v935, 16
        %v938 = vand.u32 %v934, 65535
        %v939 = vshrl.u32 %v934, 16
        %v940 = vmul.u32 %v936, %v938
        %v941 = vmul.u32 %v936, %v939
        %v942 = vmul.u32 %v937, %v938
        %v943 = vmul.u32 %v937, %v939
        %v944 = vshll.u32 %v941, 16
        %v945 = vshrl.u32 %v941, 16
        %v946 = vshll.u32 %v942, 16
        %v947 = vshrl.u32 %v942, 16
        %vm948 = vc.u32 %v940, %v944
        %v949 = vsel %vm948, 1, 0
        %v950 = vadd.s32 %v940, %v944
        %v951 = vadd.s32 %v943, %v949
        %vm952 = vc.u32 %v950, %v946
        %v953 = vsel %vm952, 1, 0
        %v954 = vadd.s32 %v950, %v946
        %v955 = vadd.s32 %v951, %v953
        %v956 = vadd.s32 %v955, %v945
        %v957 = vadd.s32 %v956, %v947
        %v958 = vand.u32 %v935, 65535
        %v959 = vshrl.u32 %v935, 16
        %v960 = vand.u32 %v930, 65535
        %v961 = vshrl.u32 %v930, 16
        %v962 = vmul.u32 %v958, %v960
        %v963 = vmul.u32 %v958, %v961
        %v964 = vmul.u32 %v959, %v960
        %v965 = vmul.u32 %v959, %v961
        %v966 = vshll.u32 %v963, 16
        %v967 = vshrl.u32 %v963, 16
        %v968 = vshll.u32 %v964, 16
        %v969 = vshrl.u32 %v964, 16
        %vm970 = vc.u32 %v962, %v966
        %v971 = vsel %vm970, 1, 0
        %v972 = vadd.s32 %v962, %v966
        %v973 = vadd.s32 %v965, %v971
        %vm974 = vc.u32 %v972, %v968
        %v975 = vsel %vm974, 1, 0
        %v976 = vadd.s32 %v972, %v968
        %v977 = vadd.s32 %v973, %v975
        %v978 = vadd.s32 %v977, %v967
        %v979 = vadd.s32 %v978, %v969
        %v980 = vmul.u32 %v935, %v926
        %v981 = vadd.s32 %v957, %v976
        %vm982 = vc.u32 %v957, %v976
        %v983 = vadd.s32 %v979, 1
        %v984 = vsel %vm982, %v983, %v979
        %v985 = vadd.s32 %v980, %v984
        %v986 = vadd.s32 %v985, 536870912
        %v987 = vshrl.u32 %v986, 30
        %v988 = vshll.u32 %v987, 30
        %v989 = vsub.s32 %v985, %v988
        %vm990 = vcmp.lt.s32.totalorder %v989, 0
        %v991 = vsub.s32 0, %v989
        %v992 = vsel %vm990, %v991, %v989
        %v993 = vclz %v992
        %v994 = vsub.s32 %v993, 2
        %vm995 = vcmp.gt.s32.totalorder 0, %v994
        %v996 = vsel %vm995, 0, %v994
        %v997 = vsub.s32 32, %v996
        %v998 = vshll.u32 %v989, %v996
        %v999 = vshrl.u32 %v981, %v997
        %v1000 = vor.u32 %v998, %v999
        %v1001 = vsub.s32 4294967266, %v996
        %v1002 = vadd.s32 %v1001, 127
        %v1003 = vshll.u32 %v1002, 23
        %v1004 = vor.u32 4788187, %v1003
        %v1005 = vand.u32 2147483647, %v1004
        %v1007 = vcvt.s32.f32 %v1000
        %v1008 = vmul.f32 %v1007, %v1005
        %v1009 = vxor.u32 %v1008, 2147483648
        %v1010 = vsel %vm889, %v1009, %v1008
        %v1011 = vsub.s32 4, %v987
        %v1012 = vsel %vm889, %v1011, %v987
        %v1013 = vsel %vm888, %v207, %v1010
        %v1014 = vsel %vm888, 0, %v1012
        %v1015 = vmul.f32 %v1013, %v1013
        %v1016 = vmul.f32 %v1015, -0.001358992
        %v1017 = vadd.f32 %v1016, 0.041655596
        %v1018 = vmul.f32 %v1015, %v1017
        %v1019 = vadd.f32 %v1018, -0.4999988
        %v1020 = vmul.f32 %v1015, %v1019
        %v1021 = vadd.f32 1.0, %v1020
        %v1022 = vmul.f32 %v1013, %v1013
        %v1023 = vmul.f32 %v1022, -0.00019511016
        %v1024 = vadd.f32 %v1023, 0.008332121
        %v1025 = vmul.f32 %v1022, %v1024
        %v1026 = vadd.f32 %v1025, -0.16666654
        %v1027 = vmul.f32 %v1022, %v1026
        %v1028 = vadd.f32 %v1027, 1.0
        %v1029 = vmul.f32 %v1028, %v1013
        %vm1030 = vweird.f32 %v207
        %v1031 = vadd.s32 %v1014, 3
        %v1032 = vand.u32 %v1031, 3
        %vm1033 = vcmp.lt.s32.totalorder %v1032, 2
        %vm1034 = vcmp.eq.s32.totalorder %v1032, 0
        %v1035 = vxor.u32 %v1029, 2147483648
        %v1036 = vsel %vm1034, %v1021, %v1035
        %vm1037 = vcmp.eq.s32.totalorder %v1032, 2
        %v1038 = vxor.u32 %v1021, 2147483648
        %v1039 = vsel %vm1037, %v1038, %v1029
        %v1040 = vsel %vm1033, %v1036, %v1039
        %v1041 = vsel %vm1030, nan, %v1040
        %v1042 = vand.u32 2147483647, %v208
        %vm1043 = vcmp.le.f32.partialorder %v1042, 0.7853982
        %vm1044 = vcmp.lt.s32.totalorder %v208, 0
        %v1045 = vand.u32 %v208, 2139095040
        %v1046 = vshrl.u32 %v1045, 23
        %v1047 = vsub.s32 %v1046, 127
        %v1048 = vand.u32 2147483647, %v208
        %v1049 = vand.u32 %v1048, 8388607
        %v1050 = vor.u32 %v1049, 8388608
        %v1051 = vsub.s32 0, %v1050
        %v1052 = vadd.s32 %v1047, 1
        %vm1053 = vcmp.gt.s32.totalorder %v1052, 0
        %v1054 = vsel %vm1053, %v1052, 0
        %v1055 = vshrl.u32 %v1054, 5
        %v1056 = vand.u32 %v1054, 31
        %v1057 = vsub.s32 32, %v1056
        %v1058 = vshrl.u32 683565275, %v1057
        %v1059 = vshll.u32 683565275, %v1056
        %v1060 = vshrl.u32 2475754826, %v1057
        %v1061 = vor.u32 %v1059, %v1060
        %v1062 = vshll.u32 2475754826, %v1056
        %v1063 = vshrl.u32 2131351028, %v1057
        %v1064 = vor.u32 %v1062, %v1063
        %v1065 = vshll.u32 2131351028, %v1056
        %v1066 = vshrl.u32 2102212464, %v1057
        %v1067 = vor.u32 %v1065, %v1066
        %v1068 = vshll.u32 2102212464, %v1056
        %v1069 = vshrl.u32 920167782, %v1057
        %v1070 = vor.u32 %v1068, %v1069
        %v1071 = vshll.u32 920167782, %v1056
        %v1072 = vshrl.u32 1326507024, %v1057
        %v1073 = vor.u32 %v1071, %v1072
        %vm1074 = vcmp.lt.s32.totalorder %v1055, 1
        %vm1075 = vcmp.lt.s32.totalorder %v1055, 2
        %vm1076 = vcmp.lt.s32.totalorder %v1055, 3
        %vm1077 = vcmp.lt.s32.totalorder %v1055, 4
        %v1078 = vsel %vm1074, %v1058, %v1061
        %v1079 = vsel %vm1077, %v1067, 2102212464
        %v1080 = vsel %vm1076, %v1064, %v1079
        %v1081 = vsel %vm1075, %v1078, %v1080
        %v1082 = vsel %vm1074, %v1061, %v1064
        %v1083 = vsel %vm1077, %v1070, 920167782
        %v1084 = vsel %vm1076, %v1067, %v1083
        %v1085 = vsel %vm1075, %v1082, %v1084
        %v1086 = vsel %vm1074, %v1064, %v1067
        %v1087 = vsel %vm1077, %v1073, 1326507024
        %v1088 = vsel %vm1076, %v1070, %v1087
        %v1089 = vsel %vm1075, %v1086, %v1088
        %v1090 = vshll.u32 %v1050, 8
        %v1091 = vand.u32 %v1090, 65535
        %v1092 = vshrl.u32 %v1090, 16
        %v1093 = vand.u32 %v1089, 65535
        %v1094 = vshrl.u32 %v1089, 16
        %v1095 = vmul.u32 %v1091, %v1093
        %v1096 = vmul.u32 %v1091, %v1094
        %v1097 = vmul.u32 %v1092, %v1093
        %v1098 = vmul.u32 %v1092, %v1094
        %v1099 = vshll.u32 %v1096, 16
        %v1100 = vshrl.u32 %v1096, 16
        %v1101 = vshll.u32 %v1097, 16
        %v1102 = vshrl.u32 %v1097, 16
        %vm1103 = vc.u32 %v1095, %v1099
        %v1104 = vsel %vm1103, 1, 0
        %v1105 = vadd.s32 %v1095, %v1099
        %v1106 = vadd.s32 %v1098, %v1104
        %vm1107 = vc.u32 %v1105, %v1101
        %v1108 = vsel %vm1107, 1, 0
        %v1109 = vadd.s32 %v1105, %v1101
        %v1110 = vadd.s32 %v1106, %v1108
        %v1111 = vadd.s32 %v1110, %v1100
        %v1112 = vadd.s32 %v1111, %v1102
        %v1113 = vand.u32 %v1090, 65535
        %v1114 = vshrl.u32 %v1090, 16
        %v1115 = vand.u32 %v1085, 65535
        %v1116 = vshrl.u32 %v1085, 16
        %v1117 = vmul.u32 %v1113, %v1115
        %v1118 = vmul.u32 %v1113, %v1116
        %v1119 = vmul.u32 %v1114, %v1115
        %v1120 = vmul.u32 %v1114, %v1116
        %v1121 = vshll.u32 %v1118, 16
        %v1122 = vshrl.u32 %v1118, 16
        %v1123 = vshll.u32 %v1119, 16
        %v1124 = vshrl.u32 %v1119, 16
        %vm1125 = vc.u32 %v1117, %v1121
        %v1126 = vsel %vm1125, 1, 0
        %v1127 = vadd.s32 %v1117, %v1121
        %v1128 = vadd.s32 %v1120, %v1126
        %vm1129 = vc.u32 %v1127, %v1123
        %v1130 = vsel %vm1129, 1, 0
        %v1131 = vadd.s32 %v1127, %v1123
        %v1132 = vadd.s32 %v1128, %v1130
        %v1133 = vadd.s32 %v1132, %v1122
        %v1134 = vadd.s32 %v1133, %v1124
        %v1135 = vmul.u32 %v1090, %v1081
        %v1136 = vadd.s32 %v1112, %v1131
        %vm1137 = vc.u32 %v1112, %v1131
        %v1138 = vadd.s32 %v1134, 1
        %v1139 = vsel %vm1137, %v1138, %v1134
        %v1140 = vadd.s32 %v1135, %v1139
        %v1141 = vadd.s32 %v1140, 536870912
        %v1142 = vshrl.u32 %v1141, 30
        %v1143 = vshll.u32 %v1142, 30
        %v1144 = vsub.s32 %v1140, %v1143
        %vm1145 = vcmp.lt.s32.totalorder %v1144, 0
        %v1146 = vsub.s32 0, %v1144
        %v1147 = vsel %vm1145, %v1146, %v1144
        %v1148 = vclz %v1147
        %v1149 = vsub.s32 %v1148, 2
        %vm1150 = vcmp.gt.s32.totalorder 0, %v1149
        %v1151 = vsel %vm1150, 0, %v1149
        %v1152 = vsub.s32 32, %v1151
        %v1153 = vshll.u32 %v1144, %v1151
        %v1154 = vshrl.u32 %v1136, %v1152
        %v1155 = vor.u32 %v1153, %v1154
        %v1156 = vsub.s32 4294967266, %v1151
        %v1157 = vadd.s32 %v1156, 127
        %v1158 = vshll.u32 %v1157, 23
        %v1159 = vor.u32 4788187, %v1158
        %v1160 = vand.u32 2147483647, %v1159
        %v1162 = vcvt.s32.f32 %v1155
        %v1163 = vmul.f32 %v1162, %v1160
        %v1164 = vxor.u32 %v1163, 2147483648
        %v1165 = vsel %vm1044, %v1164, %v1163
        %v1166 = vsub.s32 4, %v1142
        %v1167 = vsel %vm1044, %v1166, %v1142
        %v1168 = vsel %vm1043, %v208, %v1165
        %v1169 = vsel %vm1043, 0, %v1167
        %v1170 = vmul.f32 %v1168, %v1168
        %v1171 = vmul.f32 %v1170, -0.001358992
        %v1172 = vadd.f32 %v1171, 0.041655596
        %v1173 = vmul.f32 %v1170, %v1172
        %v1174 = vadd.f32 %v1173, -0.4999988
        %v1175 = vmul.f32 %v1170, %v1174
        %v1176 = vadd.f32 1.0, %v1175
        %v1177 = vmul.f32 %v1168, %v1168
        %v1178 = vmul.f32 %v1177, -0.00019511016
        %v1179 = vadd.f32 %v1178, 0.008332121
        %v1180 = vmul.f32 %v1177, %v1179
        %v1181 = vadd.f32 %v1180, -0.16666654
        %v1182 = vmul.f32 %v1177, %v1181
        %v1183 = vadd.f32 %v1182, 1.0
        %v1184 = vmul.f32 %v1183, %v1168
        %vm1185 = vweird.f32 %v208
        %v1186 = vadd.s32 %v1169, 3
        %v1187 = vand.u32 %v1186, 3
        %vm1188 = vcmp.lt.s32.totalorder %v1187, 2
        %vm1189 = vcmp.eq.s32.totalorder %v1187, 0
        %v1190 = vxor.u32 %v1184, 2147483648
        %v1191 = vsel %vm1189, %v1176, %v1190
        %vm1192 = vcmp.eq.s32.totalorder %v1187, 2
        %v1193 = vxor.u32 %v1176, 2147483648
        %v1194 = vsel %vm1192, %v1193, %v1184
        %v1195 = vsel %vm1188, %v1191, %v1194
        %v1196 = vsel %vm1185, nan, %v1195
        %v1197 = vand.u32 2147483647, %v209
        %vm1198 = vcmp.le.f32.partialorder %v1197, 0.7853982
        %vm1199 = vcmp.lt.s32.totalorder %v209, 0
        %v1200 = vand.u32 %v209, 2139095040
        %v1201 = vshrl.u32 %v1200, 23
        %v1202 = vsub.s32 %v1201, 127
        %v1203 = vand.u32 2147483647, %v209
        %v1204 = vand.u32 %v1203, 8388607
        %v1205 = vor.u32 %v1204, 8388608
        %v1206 = vsub.s32 0, %v1205
        %v1207 = vadd.s32 %v1202, 1
        %vm1208 = vcmp.gt.s32.totalorder %v1207, 0
        %v1209 = vsel %vm1208, %v1207, 0
        %v1210 = vshrl.u32 %v1209, 5
        %v1211 = vand.u32 %v1209, 31
        %v1212 = vsub.s32 32, %v1211
        %v1213 = vshrl.u32 683565275, %v1212
        %v1214 = vshll.u32 683565275, %v1211
        %v1215 = vshrl.u32 2475754826, %v1212
        %v1216 = vor.u32 %v1214, %v1215
        %v1217 = vshll.u32 2475754826, %v1211
        %v1218 = vshrl.u32 2131351028, %v1212
        %v1219 = vor.u32 %v1217, %v1218
        %v1220 = vshll.u32 2131351028, %v1211
        %v1221 = vshrl.u32 2102212464, %v1212
        %v1222 = vor.u32 %v1220, %v1221
        %v1223 = vshll.u32 2102212464, %v1211
        %v1224 = vshrl.u32 920167782, %v1212
        %v1225 = vor.u32 %v1223, %v1224
        %v1226 = vshll.u32 920167782, %v1211
        %v1227 = vshrl.u32 1326507024, %v1212
        %v1228 = vor.u32 %v1226, %v1227
        %vm1229 = vcmp.lt.s32.totalorder %v1210, 1
        %vm1230 = vcmp.lt.s32.totalorder %v1210, 2
        %vm1231 = vcmp.lt.s32.totalorder %v1210, 3
        %vm1232 = vcmp.lt.s32.totalorder %v1210, 4
        %v1233 = vsel %vm1229, %v1213, %v1216
        %v1234 = vsel %vm1232, %v1222, 2102212464
        %v1235 = vsel %vm1231, %v1219, %v1234
        %v1236 = vsel %vm1230, %v1233, %v1235
        %v1237 = vsel %vm1229, %v1216, %v1219
        %v1238 = vsel %vm1232, %v1225, 920167782
        %v1239 = vsel %vm1231, %v1222, %v1238
        %v1240 = vsel %vm1230, %v1237, %v1239
        %v1241 = vsel %vm1229, %v1219, %v1222
        %v1242 = vsel %vm1232, %v1228, 1326507024
        %v1243 = vsel %vm1231, %v1225, %v1242
        %v1244 = vsel %vm1230, %v1241, %v1243
        %v1245 = vshll.u32 %v1205, 8
        %v1246 = vand.u32 %v1245, 65535
        %v1247 = vshrl.u32 %v1245, 16
        %v1248 = vand.u32 %v1244, 65535
        %v1249 = vshrl.u32 %v1244, 16
        %v1250 = vmul.u32 %v1246, %v1248
        %v1251 = vmul.u32 %v1246, %v1249
        %v1252 = vmul.u32 %v1247, %v1248
        %v1253 = vmul.u32 %v1247, %v1249
        %v1254 = vshll.u32 %v1251, 16
        %v1255 = vshrl.u32 %v1251, 16
        %v1256 = vshll.u32 %v1252, 16
        %v1257 = vshrl.u32 %v1252, 16
        %vm1258 = vc.u32 %v1250, %v1254
        %v1259 = vsel %vm1258, 1, 0
        %v1260 = vadd.s32 %v1250, %v1254
        %v1261 = vadd.s32 %v1253, %v1259
        %vm1262 = vc.u32 %v1260, %v1256
        %v1263 = vsel %vm1262, 1, 0
        %v1264 = vadd.s32 %v1260, %v1256
        %v1265 = vadd.s32 %v1261, %v1263
        %v1266 = vadd.s32 %v1265, %v1255
        %v1267 = vadd.s32 %v1266, %v1257
        %v1268 = vand.u32 %v1245, 65535
        %v1269 = vshrl.u32 %v1245, 16
        %v1270 = vand.u32 %v1240, 65535
        %v1271 = vshrl.u32 %v1240, 16
        %v1272 = vmul.u32 %v1268, %v1270
        %v1273 = vmul.u32 %v1268, %v1271
        %v1274 = vmul.u32 %v1269, %v1270
        %v1275 = vmul.u32 %v1269, %v1271
        %v1276 = vshll.u32 %v1273, 16
        %v1277 = vshrl.u32 %v1273, 16
        %v1278 = vshll.u32 %v1274, 16
        %v1279 = vshrl.u32 %v1274, 16
        %vm1280 = vc.u32 %v1272, %v1276
        %v1281 = vsel %vm1280, 1, 0
        %v1282 = vadd.s32 %v1272, %v1276
        %v1283 = vadd.s32 %v1275, %v1281
        %vm1284 = vc.u32 %v1282, %v1278
        %v1285 = vsel %vm1284, 1, 0
        %v1286 = vadd.s32 %v1282, %v1278
        %v1287 = vadd.s32 %v1283, %v1285
        %v1288 = vadd.s32 %v1287, %v1277
        %v1289 = vadd.s32 %v1288, %v1279
        %v1290 = vmul.u32 %v1245, %v1236
        %v1291 = vadd.s32 %v1267, %v1286
        %vm1292 = vc.u32 %v1267, %v1286
        %v1293 = vadd.s32 %v1289, 1
        %v1294 = vsel %vm1292, %v1293, %v1289
        %v1295 = vadd.s32 %v1290, %v1294
        %v1296 = vadd.s32 %v1295, 536870912
        %v1297 = vshrl.u32 %v1296, 30
        %v1298 = vshll.u32 %v1297, 30
        %v1299 = vsub.s32 %v1295, %v1298
        %vm1300 = vcmp.lt.s32.totalorder %v1299, 0
        %v1301 = vsub.s32 0, %v1299
        %v1302 = vsel %vm1300, %v1301, %v1299
        %v1303 = vclz %v1302
        %v1304 = vsub.s32 %v1303, 2
        %vm1305 = vcmp.gt.s32.totalorder 0, %v1304
        %v1306 = vsel %vm1305, 0, %v1304
        %v1307 = vsub.s32 32, %v1306
        %v1308 = vshll.u32 %v1299, %v1306
        %v1309 = vshrl.u32 %v1291, %v1307
        %v1310 = vor.u32 %v1308, %v1309
        %v1311 = vsub.s32 4294967266, %v1306
        %v1312 = vadd.s32 %v1311, 127
        %v1313 = vshll.u32 %v1312, 23
        %v1314 = vor.u32 4788187, %v1313
        %v1315 = vand.u32 2147483647, %v1314
        %v1317 = vcvt.s32.f32 %v1310
        %v1318 = vmul.f32 %v1317, %v1315
        %v1319 = vxor.u32 %v1318, 2147483648
        %v1320 = vsel %vm1199, %v1319, %v1318
        %v1321 = vsub.s32 4, %v1297
        %v1322 = vsel %vm1199, %v1321, %v1297
        %v1323 = vsel %vm1198, %v209, %v1320
        %v1324 = vsel %vm1198, 0, %v1322
        %v1325 = vmul.f32 %v1323, %v1323
        %v1326 = vmul.f32 %v1325, -0.001358992
        %v1327 = vadd.f32 %v1326, 0.041655596
        %v1328 = vmul.f32 %v1325, %v1327
        %v1329 = vadd.f32 %v1328, -0.4999988
        %v1330 = vmul.f32 %v1325, %v1329
        %v1331 = vadd.f32 1.0, %v1330
        %v1332 = vmul.f32 %v1323, %v1323
        %v1333 = vmul.f32 %v1332, -0.00019511016
        %v1334 = vadd.f32 %v1333, 0.008332121
        %v1335 = vmul.f32 %v1332, %v1334
        %v1336 = vadd.f32 %v1335, -0.16666654
        %v1337 = vmul.f32 %v1332, %v1336
        %v1338 = vadd.f32 %v1337, 1.0
        %v1339 = vmul.f32 %v1338, %v1323
        %vm1340 = vweird.f32 %v209
        %v1341 = vadd.s32 %v1324, 3
        %v1342 = vand.u32 %v1341, 3
        %vm1343 = vcmp.lt.s32.totalorder %v1342, 2
        %vm1344 = vcmp.eq.s32.totalorder %v1342, 0
        %v1345 = vxor.u32 %v1339, 2147483648
        %v1346 = vsel %vm1344, %v1331, %v1345
        %vm1347 = vcmp.eq.s32.totalorder %v1342, 2
        %v1348 = vxor.u32 %v1331, 2147483648
        %v1349 = vsel %vm1347, %v1348, %v1339
        %v1350 = vsel %vm1343, %v1346, %v1349
        %v1351 = vsel %vm1340, nan, %v1350
        %v1352 = vand.u32 2147483647, %v210
        %vm1353 = vcmp.le.f32.partialorder %v1352, 0.7853982
        %vm1354 = vcmp.lt.s32.totalorder %v210, 0
        %v1355 = vand.u32 %v210, 2139095040
        %v1356 = vshrl.u32 %v1355, 23
        %v1357 = vsub.s32 %v1356, 127
        %v1358 = vand.u32 2147483647, %v210
        %v1359 = vand.u32 %v1358, 8388607
        %v1360 = vor.u32 %v1359, 8388608
        %v1361 = vsub.s32 0, %v1360
        %v1362 = vadd.s32 %v1357, 1
        %vm1363 = vcmp.gt.s32.totalorder %v1362, 0
        %v1364 = vsel %vm1363, %v1362, 0
        %v1365 = vshrl.u32 %v1364, 5
        %v1366 = vand.u32 %v1364, 31
        %v1367 = vsub.s32 32, %v1366
        %v1368 = vshrl.u32 683565275, %v1367
        %v1369 = vshll.u32 683565275, %v1366
        %v1370 = vshrl.u32 2475754826, %v1367
        %v1371 = vor.u32 %v1369, %v1370
        %v1372 = vshll.u32 2475754826, %v1366
        %v1373 = vshrl.u32 2131351028, %v1367
        %v1374 = vor.u32 %v1372, %v1373
        %v1375 = vshll.u32 2131351028, %v1366
        %v1376 = vshrl.u32 2102212464, %v1367
        %v1377 = vor.u32 %v1375, %v1376
        %v1378 = vshll.u32 2102212464, %v1366
        %v1379 = vshrl.u32 920167782, %v1367
        %v1380 = vor.u32 %v1378, %v1379
        %v1381 = vshll.u32 920167782, %v1366
        %v1382 = vshrl.u32 1326507024, %v1367
        %v1383 = vor.u32 %v1381, %v1382
        %vm1384 = vcmp.lt.s32.totalorder %v1365, 1
        %vm1385 = vcmp.lt.s32.totalorder %v1365, 2
        %vm1386 = vcmp.lt.s32.totalorder %v1365, 3
        %vm1387 = vcmp.lt.s32.totalorder %v1365, 4
        %v1388 = vsel %vm1384, %v1368, %v1371
        %v1389 = vsel %vm1387, %v1377, 2102212464
        %v1390 = vsel %vm1386, %v1374, %v1389
        %v1391 = vsel %vm1385, %v1388, %v1390
        %v1392 = vsel %vm1384, %v1371, %v1374
        %v1393 = vsel %vm1387, %v1380, 920167782
        %v1394 = vsel %vm1386, %v1377, %v1393
        %v1395 = vsel %vm1385, %v1392, %v1394
        %v1396 = vsel %vm1384, %v1374, %v1377
        %v1397 = vsel %vm1387, %v1383, 1326507024
        %v1398 = vsel %vm1386, %v1380, %v1397
        %v1399 = vsel %vm1385, %v1396, %v1398
        %v1400 = vshll.u32 %v1360, 8
        %v1401 = vand.u32 %v1400, 65535
        %v1402 = vshrl.u32 %v1400, 16
        %v1403 = vand.u32 %v1399, 65535
        %v1404 = vshrl.u32 %v1399, 16
        %v1405 = vmul.u32 %v1401, %v1403
        %v1406 = vmul.u32 %v1401, %v1404
        %v1407 = vmul.u32 %v1402, %v1403
        %v1408 = vmul.u32 %v1402, %v1404
        %v1409 = vshll.u32 %v1406, 16
        %v1410 = vshrl.u32 %v1406, 16
        %v1411 = vshll.u32 %v1407, 16
        %v1412 = vshrl.u32 %v1407, 16
        %vm1413 = vc.u32 %v1405, %v1409
        %v1414 = vsel %vm1413, 1, 0
        %v1415 = vadd.s32 %v1405, %v1409
        %v1416 = vadd.s32 %v1408, %v1414
        %vm1417 = vc.u32 %v1415, %v1411
        %v1418 = vsel %vm1417, 1, 0
        %v1419 = vadd.s32 %v1415, %v1411
        %v1420 = vadd.s32 %v1416, %v1418
        %v1421 = vadd.s32 %v1420, %v1410
        %v1422 = vadd.s32 %v1421, %v1412
        %v1423 = vand.u32 %v1400, 65535
        %v1424 = vshrl.u32 %v1400, 16
        %v1425 = vand.u32 %v1395, 65535
        %v1426 = vshrl.u32 %v1395, 16
        %v1427 = vmul.u32 %v1423, %v1425
        %v1428 = vmul.u32 %v1423, %v1426
        %v1429 = vmul.u32 %v1424, %v1425
        %v1430 = vmul.u32 %v1424, %v1426
        %v1431 = vshll.u32 %v1428, 16
        %v1432 = vshrl.u32 %v1428, 16
        %v1433 = vshll.u32 %v1429, 16
        %v1434 = vshrl.u32 %v1429, 16
        %vm1435 = vc.u32 %v1427, %v1431
        %v1436 = vsel %vm1435, 1, 0
        %v1437 = vadd.s32 %v1427, %v1431
        %v1438 = vadd.s32 %v1430, %v1436
        %vm1439 = vc.u32 %v1437, %v1433
        %v1440 = vsel %vm1439, 1, 0
        %v1441 = vadd.s32 %v1437, %v1433
        %v1442 = vadd.s32 %v1438, %v1440
        %v1443 = vadd.s32 %v1442, %v1432
        %v1444 = vadd.s32 %v1443, %v1434
        %v1445 = vmul.u32 %v1400, %v1391
        %v1446 = vadd.s32 %v1422, %v1441
        %vm1447 = vc.u32 %v1422, %v1441
        %v1448 = vadd.s32 %v1444, 1
        %v1449 = vsel %vm1447, %v1448, %v1444
        %v1450 = vadd.s32 %v1445, %v1449
        %v1451 = vadd.s32 %v1450, 536870912
        %v1452 = vshrl.u32 %v1451, 30
        %v1453 = vshll.u32 %v1452, 30
        %v1454 = vsub.s32 %v1450, %v1453
        %vm1455 = vcmp.lt.s32.totalorder %v1454, 0
        %v1456 = vsub.s32 0, %v1454
        %v1457 = vsel %vm1455, %v1456, %v1454
        %v1458 = vclz %v1457
        %v1459 = vsub.s32 %v1458, 2
        %vm1460 = vcmp.gt.s32.totalorder 0, %v1459
        %v1461 = vsel %vm1460, 0, %v1459
        %v1462 = vsub.s32 32, %v1461
        %v1463 = vshll.u32 %v1454, %v1461
        %v1464 = vshrl.u32 %v1446, %v1462
        %v1465 = vor.u32 %v1463, %v1464
        %v1466 = vsub.s32 4294967266, %v1461
        %v1467 = vadd.s32 %v1466, 127
        %v1468 = vshll.u32 %v1467, 23
        %v1469 = vor.u32 4788187, %v1468
        %v1470 = vand.u32 2147483647, %v1469
        %v1472 = vcvt.s32.f32 %v1465
        %v1473 = vmul.f32 %v1472, %v1470
        %v1474 = vxor.u32 %v1473, 2147483648
        %v1475 = vsel %vm1354, %v1474, %v1473
        %v1476 = vsub.s32 4, %v1452
        %v1477 = vsel %vm1354, %v1476, %v1452
        %v1478 = vsel %vm1353, %v210, %v1475
        %v1479 = vsel %vm1353, 0, %v1477
        %v1480 = vmul.f32 %v1478, %v1478
        %v1481 = vmul.f32 %v1480, -0.001358992
        %v1482 = vadd.f32 %v1481, 0.041655596
        %v1483 = vmul.f32 %v1480, %v1482
        %v1484 = vadd.f32 %v1483, -0.4999988
        %v1485 = vmul.f32 %v1480, %v1484
        %v1486 = vadd.f32 1.0, %v1485
        %v1487 = vmul.f32 %v1478, %v1478
        %v1488 = vmul.f32 %v1487, -0.00019511016
        %v1489 = vadd.f32 %v1488, 0.008332121
        %v1490 = vmul.f32 %v1487, %v1489
        %v1491 = vadd.f32 %v1490, -0.16666654
        %v1492 = vmul.f32 %v1487, %v1491
        %v1493 = vadd.f32 %v1492, 1.0
        %v1494 = vmul.f32 %v1493, %v1478
        %vm1495 = vweird.f32 %v210
        %v1496 = vadd.s32 %v1479, 3
        %v1497 = vand.u32 %v1496, 3
        %vm1498 = vcmp.lt.s32.totalorder %v1497, 2
        %vm1499 = vcmp.eq.s32.totalorder %v1497, 0
        %v1500 = vxor.u32 %v1494, 2147483648
        %v1501 = vsel %vm1499, %v1486, %v1500
        %vm1502 = vcmp.eq.s32.totalorder %v1497, 2
        %v1503 = vxor.u32 %v1486, 2147483648
        %v1504 = vsel %vm1502, %v1503, %v1494
        %v1505 = vsel %vm1498, %v1501, %v1504
        %v1506 = vsel %vm1495, nan, %v1505
        %v1507 = vand.u32 2147483647, %v211
        %vm1508 = vcmp.le.f32.partialorder %v1507, 0.7853982
        %vm1509 = vcmp.lt.s32.totalorder %v211, 0
        %v1510 = vand.u32 %v211, 2139095040
        %v1511 = vshrl.u32 %v1510, 23
        %v1512 = vsub.s32 %v1511, 127
        %v1513 = vand.u32 2147483647, %v211
        %v1514 = vand.u32 %v1513, 8388607
        %v1515 = vor.u32 %v1514, 8388608
        %v1516 = vsub.s32 0, %v1515
        %v1517 = vadd.s32 %v1512, 1
        %vm1518 = vcmp.gt.s32.totalorder %v1517, 0
        %v1519 = vsel %vm1518, %v1517, 0
        %v1520 = vshrl.u32 %v1519, 5
        %v1521 = vand.u32 %v1519, 31
        %v1522 = vsub.s32 32, %v1521
        %v1523 = vshrl.u32 683565275, %v1522
        %v1524 = vshll.u32 683565275, %v1521
        %v1525 = vshrl.u32 2475754826, %v1522
        %v1526 = vor.u32 %v1524, %v1525
        %v1527 = vshll.u32 2475754826, %v1521
        %v1528 = vshrl.u32 2131351028, %v1522
        %v1529 = vor.u32 %v1527, %v1528
        %v1530 = vshll.u32 2131351028, %v1521
        %v1531 = vshrl.u32 2102212464, %v1522
        %v1532 = vor.u32 %v1530, %v1531
        %v1533 = vshll.u32 2102212464, %v1521
        %v1534 = vshrl.u32 920167782, %v1522
        %v1535 = vor.u32 %v1533, %v1534
        %v1536 = vshll.u32 920167782, %v1521
        %v1537 = vshrl.u32 1326507024, %v1522
        %v1538 = vor.u32 %v1536, %v1537
        %vm1539 = vcmp.lt.s32.totalorder %v1520, 1
        %vm1540 = vcmp.lt.s32.totalorder %v1520, 2
        %vm1541 = vcmp.lt.s32.totalorder %v1520, 3
        %vm1542 = vcmp.lt.s32.totalorder %v1520, 4
        %v1543 = vsel %vm1539, %v1523, %v1526
        %v1544 = vsel %vm1542, %v1532, 2102212464
        %v1545 = vsel %vm1541, %v1529, %v1544
        %v1546 = vsel %vm1540, %v1543, %v1545
        %v1547 = vsel %vm1539, %v1526, %v1529
        %v1548 = vsel %vm1542, %v1535, 920167782
        %v1549 = vsel %vm1541, %v1532, %v1548
        %v1550 = vsel %vm1540, %v1547, %v1549
        %v1551 = vsel %vm1539, %v1529, %v1532
        %v1552 = vsel %vm1542, %v1538, 1326507024
        %v1553 = vsel %vm1541, %v1535, %v1552
        %v1554 = vsel %vm1540, %v1551, %v1553
        %v1555 = vshll.u32 %v1515, 8
        %v1556 = vand.u32 %v1555, 65535
        %v1557 = vshrl.u32 %v1555, 16
        %v1558 = vand.u32 %v1554, 65535
        %v1559 = vshrl.u32 %v1554, 16
        %v1560 = vmul.u32 %v1556, %v1558
        %v1561 = vmul.u32 %v1556, %v1559
        %v1562 = vmul.u32 %v1557, %v1558
        %v1563 = vmul.u32 %v1557, %v1559
        %v1564 = vshll.u32 %v1561, 16
        %v1565 = vshrl.u32 %v1561, 16
        %v1566 = vshll.u32 %v1562, 16
        %v1567 = vshrl.u32 %v1562, 16
        %vm1568 = vc.u32 %v1560, %v1564
        %v1569 = vsel %vm1568, 1, 0
        %v1570 = vadd.s32 %v1560, %v1564
        %v1571 = vadd.s32 %v1563, %v1569
        %vm1572 = vc.u32 %v1570, %v1566
        %v1573 = vsel %vm1572, 1, 0
        %v1574 = vadd.s32 %v1570, %v1566
        %v1575 = vadd.s32 %v1571, %v1573
        %v1576 = vadd.s32 %v1575, %v1565
        %v1577 = vadd.s32 %v1576, %v1567
        %v1578 = vand.u32 %v1555, 65535
        %v1579 = vshrl.u32 %v1555, 16
        %v1580 = vand.u32 %v1550, 65535
        %v1581 = vshrl.u32 %v1550, 16
        %v1582 = vmul.u32 %v1578, %v1580
        %v1583 = vmul.u32 %v1578, %v1581
        %v1584 = vmul.u32 %v1579, %v1580
        %v1585 = vmul.u32 %v1579, %v1581
        %v1586 = vshll.u32 %v1583, 16
        %v1587 = vshrl.u32 %v1583, 16
        %v1588 = vshll.u32 %v1584, 16
        %v1589 = vshrl.u32 %v1584, 16
        %vm1590 = vc.u32 %v1582, %v1586
        %v1591 = vsel %vm1590, 1, 0
        %v1592 = vadd.s32 %v1582, %v1586
        %v1593 = vadd.s32 %v1585, %v1591
        %vm1594 = vc.u32 %v1592, %v1588
        %v1595 = vsel %vm1594, 1, 0
        %v1596 = vadd.s32 %v1592, %v1588
        %v1597 = vadd.s32 %v1593, %v1595
        %v1598 = vadd.s32 %v1597, %v1587
        %v1599 = vadd.s32 %v1598, %v1589
        %v1600 = vmul.u32 %v1555, %v1546
        %v1601 = vadd.s32 %v1577, %v1596
        %vm1602 = vc.u32 %v1577, %v1596
        %v1603 = vadd.s32 %v1599, 1
        %v1604 = vsel %vm1602, %v1603, %v1599
        %v1605 = vadd.s32 %v1600, %v1604
        %v1606 = vadd.s32 %v1605, 536870912
        %v1607 = vshrl.u32 %v1606, 30
        %v1608 = vshll.u32 %v1607, 30
        %v1609 = vsub.s32 %v1605, %v1608
        %vm1610 = vcmp.lt.s32.totalorder %v1609, 0
        %v1611 = vsub.s32 0, %v1609
        %v1612 = vsel %vm1610, %v1611, %v1609
        %v1613 = vclz %v1612
        %v1614 = vsub.s32 %v1613, 2
        %vm1615 = vcmp.gt.s32.totalorder 0, %v1614
        %v1616 = vsel %vm1615, 0, %v1614
        %v1617 = vsub.s32 32, %v1616
        %v1618 = vshll.u32 %v1609, %v1616
        %v1619 = vshrl.u32 %v1601, %v1617
        %v1620 = vor.u32 %v1618, %v1619
        %v1621 = vsub.s32 4294967266, %v1616
        %v1622 = vadd.s32 %v1621, 127
        %v1623 = vshll.u32 %v1622, 23
        %v1624 = vor.u32 4788187, %v1623
        %v1625 = vand.u32 2147483647, %v1624
        %v1627 = vcvt.s32.f32 %v1620
        %v1628 = vmul.f32 %v1627, %v1625
        %v1629 = vxor.u32 %v1628, 2147483648
        %v1630 = vsel %vm1509, %v1629, %v1628
        %v1631 = vsub.s32 4, %v1607
        %v1632 = vsel %vm1509, %v1631, %v1607
        %v1633 = vsel %vm1508, %v211, %v1630
        %v1634 = vsel %vm1508, 0, %v1632
        %v1635 = vmul.f32 %v1633, %v1633
        %v1636 = vmul.f32 %v1635, -0.001358992
        %v1637 = vadd.f32 %v1636, 0.041655596
        %v1638 = vmul.f32 %v1635, %v1637
        %v1639 = vadd.f32 %v1638, -0.4999988
        %v1640 = vmul.f32 %v1635, %v1639
        %v1641 = vadd.f32 1.0, %v1640
        %v1642 = vmul.f32 %v1633, %v1633
        %v1643 = vmul.f32 %v1642, -0.00019511016
        %v1644 = vadd.f32 %v1643, 0.008332121
        %v1645 = vmul.f32 %v1642, %v1644
        %v1646 = vadd.f32 %v1645, -0.16666654
        %v1647 = vmul.f32 %v1642, %v1646
        %v1648 = vadd.f32 %v1647, 1.0
        %v1649 = vmul.f32 %v1648, %v1633
        %vm1650 = vweird.f32 %v211
        %v1651 = vadd.s32 %v1634, 3
        %v1652 = vand.u32 %v1651, 3
        %vm1653 = vcmp.lt.s32.totalorder %v1652, 2
        %vm1654 = vcmp.eq.s32.totalorder %v1652, 0
        %v1655 = vxor.u32 %v1649, 2147483648
        %v1656 = vsel %vm1654, %v1641, %v1655
        %vm1657 = vcmp.eq.s32.totalorder %v1652, 2
        %v1658 = vxor.u32 %v1641, 2147483648
        %v1659 = vsel %vm1657, %v1658, %v1649
        %v1660 = vsel %vm1653, %v1656, %v1659
        %v1661 = vsel %vm1650, nan, %v1660
        %v1662 = vand.u32 2147483647, %v212
        %vm1663 = vcmp.le.f32.partialorder %v1662, 0.7853982
        %vm1664 = vcmp.lt.s32.totalorder %v212, 0
        %v1665 = vand.u32 %v212, 2139095040
        %v1666 = vshrl.u32 %v1665, 23
        %v1667 = vsub.s32 %v1666, 127
        %v1668 = vand.u32 2147483647, %v212
        %v1669 = vand.u32 %v1668, 8388607
        %v1670 = vor.u32 %v1669, 8388608
        %v1671 = vsub.s32 0, %v1670
        %v1672 = vadd.s32 %v1667, 1
        %vm1673 = vcmp.gt.s32.totalorder %v1672, 0
        %v1674 = vsel %vm1673, %v1672, 0
        %v1675 = vshrl.u32 %v1674, 5
        %v1676 = vand.u32 %v1674, 31
        %v1677 = vsub.s32 32, %v1676
        %v1678 = vshrl.u32 683565275, %v1677
        %v1679 = vshll.u32 683565275, %v1676
        %v1680 = vshrl.u32 2475754826, %v1677
        %v1681 = vor.u32 %v1679, %v1680
        %v1682 = vshll.u32 2475754826, %v1676
        %v1683 = vshrl.u32 2131351028, %v1677
        %v1684 = vor.u32 %v1682, %v1683
        %v1685 = vshll.u32 2131351028, %v1676
        %v1686 = vshrl.u32 2102212464, %v1677
        %v1687 = vor.u32 %v1685, %v1686
        %v1688 = vshll.u32 2102212464, %v1676
        %v1689 = vshrl.u32 920167782, %v1677
        %v1690 = vor.u32 %v1688, %v1689
        %v1691 = vshll.u32 920167782, %v1676
        %v1692 = vshrl.u32 1326507024, %v1677
        %v1693 = vor.u32 %v1691, %v1692
        %vm1694 = vcmp.lt.s32.totalorder %v1675, 1
        %vm1695 = vcmp.lt.s32.totalorder %v1675, 2
        %vm1696 = vcmp.lt.s32.totalorder %v1675, 3
        %vm1697 = vcmp.lt.s32.totalorder %v1675, 4
        %v1698 = vsel %vm1694, %v1678, %v1681
        %v1699 = vsel %vm1697, %v1687, 2102212464
        %v1700 = vsel %vm1696, %v1684, %v1699
        %v1701 = vsel %vm1695, %v1698, %v1700
        %v1702 = vsel %vm1694, %v1681, %v1684
        %v1703 = vsel %vm1697, %v1690, 920167782
        %v1704 = vsel %vm1696, %v1687, %v1703
        %v1705 = vsel %vm1695, %v1702, %v1704
        %v1706 = vsel %vm1694, %v1684, %v1687
        %v1707 = vsel %vm1697, %v1693, 1326507024
        %v1708 = vsel %vm1696, %v1690, %v1707
        %v1709 = vsel %vm1695, %v1706, %v1708
        %v1710 = vshll.u32 %v1670, 8
        %v1711 = vand.u32 %v1710, 65535
        %v1712 = vshrl.u32 %v1710, 16
        %v1713 = vand.u32 %v1709, 65535
        %v1714 = vshrl.u32 %v1709, 16
        %v1715 = vmul.u32 %v1711, %v1713
        %v1716 = vmul.u32 %v1711, %v1714
        %v1717 = vmul.u32 %v1712, %v1713
        %v1718 = vmul.u32 %v1712, %v1714
        %v1719 = vshll.u32 %v1716, 16
        %v1720 = vshrl.u32 %v1716, 16
        %v1721 = vshll.u32 %v1717, 16
        %v1722 = vshrl.u32 %v1717, 16
        %vm1723 = vc.u32 %v1715, %v1719
        %v1724 = vsel %vm1723, 1, 0
        %v1725 = vadd.s32 %v1715, %v1719
        %v1726 = vadd.s32 %v1718, %v1724
        %vm1727 = vc.u32 %v1725, %v1721
        %v1728 = vsel %vm1727, 1, 0
        %v1729 = vadd.s32 %v1725, %v1721
        %v1730 = vadd.s32 %v1726, %v1728
        %v1731 = vadd.s32 %v1730, %v1720
        %v1732 = vadd.s32 %v1731, %v1722
        %v1733 = vand.u32 %v1710, 65535
        %v1734 = vshrl.u32 %v1710, 16
        %v1735 = vand.u32 %v1705, 65535
        %v1736 = vshrl.u32 %v1705, 16
        %v1737 = vmul.u32 %v1733, %v1735
        %v1738 = vmul.u32 %v1733, %v1736
        %v1739 = vmul.u32 %v1734, %v1735
        %v1740 = vmul.u32 %v1734, %v1736
        %v1741 = vshll.u32 %v1738, 16
        %v1742 = vshrl.u32 %v1738, 16
        %v1743 = vshll.u32 %v1739, 16
        %v1744 = vshrl.u32 %v1739, 16
        %vm1745 = vc.u32 %v1737, %v1741
        %v1746 = vsel %vm1745, 1, 0
        %v1747 = vadd.s32 %v1737, %v1741
        %v1748 = vadd.s32 %v1740, %v1746
        %vm1749 = vc.u32 %v1747, %v1743
        %v1750 = vsel %vm1749, 1, 0
        %v1751 = vadd.s32 %v1747, %v1743
        %v1752 = vadd.s32 %v1748, %v1750
        %v1753 = vadd.s32 %v1752, %v1742
        %v1754 = vadd.s32 %v1753, %v1744
        %v1755 = vmul.u32 %v1710, %v1701
        %v1756 = vadd.s32 %v1732, %v1751
        %vm1757 = vc.u32 %v1732, %v1751
        %v1758 = vadd.s32 %v1754, 1
        %v1759 = vsel %vm1757, %v1758, %v1754
        %v1760 = vadd.s32 %v1755, %v1759
        %v1761 = vadd.s32 %v1760, 536870912
        %v1762 = vshrl.u32 %v1761, 30
        %v1763 = vshll.u32 %v1762, 30
        %v1764 = vsub.s32 %v1760, %v1763
        %vm1765 = vcmp.lt.s32.totalorder %v1764, 0
        %v1766 = vsub.s32 0, %v1764
        %v1767 = vsel %vm1765, %v1766, %v1764
        %v1768 = vclz %v1767
        %v1769 = vsub.s32 %v1768, 2
        %vm1770 = vcmp.gt.s32.totalorder 0, %v1769
        %v1771 = vsel %vm1770, 0, %v1769
        %v1772 = vsub.s32 32, %v1771
        %v1773 = vshll.u32 %v1764, %v1771
        %v1774 = vshrl.u32 %v1756, %v1772
        %v1775 = vor.u32 %v1773, %v1774
        %v1776 = vsub.s32 4294967266, %v1771
        %v1777 = vadd.s32 %v1776, 127
        %v1778 = vshll.u32 %v1777, 23
        %v1779 = vor.u32 4788187, %v1778
        %v1780 = vand.u32 2147483647, %v1779
        %v1782 = vcvt.s32.f32 %v1775
        %v1783 = vmul.f32 %v1782, %v1780
        %v1784 = vxor.u32 %v1783, 2147483648
        %v1785 = vsel %vm1664, %v1784, %v1783
        %v1786 = vsub.s32 4, %v1762
        %v1787 = vsel %vm1664, %v1786, %v1762
        %v1788 = vsel %vm1663, %v212, %v1785
        %v1789 = vsel %vm1663, 0, %v1787
        %v1790 = vmul.f32 %v1788, %v1788
        %v1791 = vmul.f32 %v1790, -0.001358992
        %v1792 = vadd.f32 %v1791, 0.041655596
        %v1793 = vmul.f32 %v1790, %v1792
        %v1794 = vadd.f32 %v1793, -0.4999988
        %v1795 = vmul.f32 %v1790, %v1794
        %v1796 = vadd.f32 1.0, %v1795
        %v1797 = vmul.f32 %v1788, %v1788
        %v1798 = vmul.f32 %v1797, -0.00019511016
        %v1799 = vadd.f32 %v1798, 0.008332121
        %v1800 = vmul.f32 %v1797, %v1799
        %v1801 = vadd.f32 %v1800, -0.16666654
        %v1802 = vmul.f32 %v1797, %v1801
        %v1803 = vadd.f32 %v1802, 1.0
        %v1804 = vmul.f32 %v1803, %v1788
        %vm1805 = vweird.f32 %v212
        %v1806 = vadd.s32 %v1789, 3
        %v1807 = vand.u32 %v1806, 3
        %vm1808 = vcmp.lt.s32.totalorder %v1807, 2
        %vm1809 = vcmp.eq.s32.totalorder %v1807, 0
        %v1810 = vxor.u32 %v1804, 2147483648
        %v1811 = vsel %vm1809, %v1796, %v1810
        %vm1812 = vcmp.eq.s32.totalorder %v1807, 2
        %v1813 = vxor.u32 %v1796, 2147483648
        %v1814 = vsel %vm1812, %v1813, %v1804
        %v1815 = vsel %vm1808, %v1811, %v1814
        %v1816 = vsel %vm1805, nan, %v1815
        %v1817 = vand.u32 2147483647, %v213
        %vm1818 = vcmp.le.f32.partialorder %v1817, 0.7853982
        %vm1819 = vcmp.lt.s32.totalorder %v213, 0
        %v1820 = vand.u32 %v213, 2139095040
        %v1821 = vshrl.u32 %v1820, 23
        %v1822 = vsub.s32 %v1821, 127
        %v1823 = vand.u32 2147483647, %v213
        %v1824 = vand.u32 %v1823, 8388607
        %v1825 = vor.u32 %v1824, 8388608
        %v1826 = vsub.s32 0, %v1825
        %v1827 = vadd.s32 %v1822, 1
        %vm1828 = vcmp.gt.s32.totalorder %v1827, 0
        %v1829 = vsel %vm1828, %v1827, 0
        %v1830 = vshrl.u32 %v1829, 5
        %v1831 = vand.u32 %v1829, 31
        %v1832 = vsub.s32 32, %v1831
        %v1833 = vshrl.u32 683565275, %v1832
        %v1834 = vshll.u32 683565275, %v1831
        %v1835 = vshrl.u32 2475754826, %v1832
        %v1836 = vor.u32 %v1834, %v1835
        %v1837 = vshll.u32 2475754826, %v1831
        %v1838 = vshrl.u32 2131351028, %v1832
        %v1839 = vor.u32 %v1837, %v1838
        %v1840 = vshll.u32 2131351028, %v1831
        %v1841 = vshrl.u32 2102212464, %v1832
        %v1842 = vor.u32 %v1840, %v1841
        %v1843 = vshll.u32 2102212464, %v1831
        %v1844 = vshrl.u32 920167782, %v1832
        %v1845 = vor.u32 %v1843, %v1844
        %v1846 = vshll.u32 920167782, %v1831
        %v1847 = vshrl.u32 1326507024, %v1832
        %v1848 = vor.u32 %v1846, %v1847
        %vm1849 = vcmp.lt.s32.totalorder %v1830, 1
        %vm1850 = vcmp.lt.s32.totalorder %v1830, 2
        %vm1851 = vcmp.lt.s32.totalorder %v1830, 3
        %vm1852 = vcmp.lt.s32.totalorder %v1830, 4
        %v1853 = vsel %vm1849, %v1833, %v1836
        %v1854 = vsel %vm1852, %v1842, 2102212464
        %v1855 = vsel %vm1851, %v1839, %v1854
        %v1856 = vsel %vm1850, %v1853, %v1855
        %v1857 = vsel %vm1849, %v1836, %v1839
        %v1858 = vsel %vm1852, %v1845, 920167782
        %v1859 = vsel %vm1851, %v1842, %v1858
        %v1860 = vsel %vm1850, %v1857, %v1859
        %v1861 = vsel %vm1849, %v1839, %v1842
        %v1862 = vsel %vm1852, %v1848, 1326507024
        %v1863 = vsel %vm1851, %v1845, %v1862
        %v1864 = vsel %vm1850, %v1861, %v1863
        %v1865 = vshll.u32 %v1825, 8
        %v1866 = vand.u32 %v1865, 65535
        %v1867 = vshrl.u32 %v1865, 16
        %v1868 = vand.u32 %v1864, 65535
        %v1869 = vshrl.u32 %v1864, 16
        %v1870 = vmul.u32 %v1866, %v1868
        %v1871 = vmul.u32 %v1866, %v1869
        %v1872 = vmul.u32 %v1867, %v1868
        %v1873 = vmul.u32 %v1867, %v1869
        %v1874 = vshll.u32 %v1871, 16
        %v1875 = vshrl.u32 %v1871, 16
        %v1876 = vshll.u32 %v1872, 16
        %v1877 = vshrl.u32 %v1872, 16
        %vm1878 = vc.u32 %v1870, %v1874
        %v1879 = vsel %vm1878, 1, 0
        %v1880 = vadd.s32 %v1870, %v1874
        %v1881 = vadd.s32 %v1873, %v1879
        %vm1882 = vc.u32 %v1880, %v1876
        %v1883 = vsel %vm1882, 1, 0
        %v1884 = vadd.s32 %v1880, %v1876
        %v1885 = vadd.s32 %v1881, %v1883
        %v1886 = vadd.s32 %v1885, %v1875
        %v1887 = vadd.s32 %v1886, %v1877
        %v1888 = vand.u32 %v1865, 65535
        %v1889 = vshrl.u32 %v1865, 16
        %v1890 = vand.u32 %v1860, 65535
        %v1891 = vshrl.u32 %v1860, 16
        %v1892 = vmul.u32 %v1888, %v1890
        %v1893 = vmul.u32 %v1888, %v1891
        %v1894 = vmul.u32 %v1889, %v1890
        %v1895 = vmul.u32 %v1889, %v1891
        %v1896 = vshll.u32 %v1893, 16
        %v1897 = vshrl.u32 %v1893, 16
        %v1898 = vshll.u32 %v1894, 16
        %v1899 = vshrl.u32 %v1894, 16
        %vm1900 = vc.u32 %v1892, %v1896
        %v1901 = vsel %vm1900, 1, 0
        %v1902 = vadd.s32 %v1892, %v1896
        %v1903 = vadd.s32 %v1895, %v1901
        %vm1904 = vc.u32 %v1902, %v1898
        %v1905 = vsel %vm1904, 1, 0
        %v1906 = vadd.s32 %v1902, %v1898
        %v1907 = vadd.s32 %v1903, %v1905
        %v1908 = vadd.s32 %v1907, %v1897
        %v1909 = vadd.s32 %v1908, %v1899
        %v1910 = vmul.u32 %v1865, %v1856
        %v1911 = vadd.s32 %v1887, %v1906
        %vm1912 = vc.u32 %v1887, %v1906
        %v1913 = vadd.s32 %v1909, 1
        %v1914 = vsel %vm1912, %v1913, %v1909
        %v1915 = vadd.s32 %v1910, %v1914
        %v1916 = vadd.s32 %v1915, 536870912
        %v1917 = vshrl.u32 %v1916, 30
        %v1918 = vshll.u32 %v1917, 30
        %v1919 = vsub.s32 %v1915, %v1918
        %vm1920 = vcmp.lt.s32.totalorder %v1919, 0
        %v1921 = vsub.s32 0, %v1919
        %v1922 = vsel %vm1920, %v1921, %v1919
        %v1923 = vclz %v1922
        %v1924 = vsub.s32 %v1923, 2
        %vm1925 = vcmp.gt.s32.totalorder 0, %v1924
        %v1926 = vsel %vm1925, 0, %v1924
        %v1927 = vsub.s32 32, %v1926
        %v1928 = vshll.u32 %v1919, %v1926
        %v1929 = vshrl.u32 %v1911, %v1927
        %v1930 = vor.u32 %v1928, %v1929
        %v1931 = vsub.s32 4294967266, %v1926
        %v1932 = vadd.s32 %v1931, 127
        %v1933 = vshll.u32 %v1932, 23
        %v1934 = vor.u32 4788187, %v1933
        %v1935 = vand.u32 2147483647, %v1934
        %v1937 = vcvt.s32.f32 %v1930
        %v1938 = vmul.f32 %v1937, %v1935
        %v1939 = vxor.u32 %v1938, 2147483648
        %v1940 = vsel %vm1819, %v1939, %v1938
        %v1941 = vsub.s32 4, %v1917
        %v1942 = vsel %vm1819, %v1941, %v1917
        %v1943 = vsel %vm1818, %v213, %v1940
        %v1944 = vsel %vm1818, 0, %v1942
        %v1945 = vmul.f32 %v1943, %v1943
        %v1946 = vmul.f32 %v1945, -0.001358992
        %v1947 = vadd.f32 %v1946, 0.041655596
        %v1948 = vmul.f32 %v1945, %v1947
        %v1949 = vadd.f32 %v1948, -0.4999988
        %v1950 = vmul.f32 %v1945, %v1949
        %v1951 = vadd.f32 1.0, %v1950
        %v1952 = vmul.f32 %v1943, %v1943
        %v1953 = vmul.f32 %v1952, -0.00019511016
        %v1954 = vadd.f32 %v1953, 0.008332121
        %v1955 = vmul.f32 %v1952, %v1954
        %v1956 = vadd.f32 %v1955, -0.16666654
        %v1957 = vmul.f32 %v1952, %v1956
        %v1958 = vadd.f32 %v1957, 1.0
        %v1959 = vmul.f32 %v1958, %v1943
        %vm1960 = vweird.f32 %v213
        %v1961 = vadd.s32 %v1944, 3
        %v1962 = vand.u32 %v1961, 3
        %vm1963 = vcmp.lt.s32.totalorder %v1962, 2
        %vm1964 = vcmp.eq.s32.totalorder %v1962, 0
        %v1965 = vxor.u32 %v1959, 2147483648
        %v1966 = vsel %vm1964, %v1951, %v1965
        %vm1967 = vcmp.eq.s32.totalorder %v1962, 2
        %v1968 = vxor.u32 %v1951, 2147483648
        %v1969 = vsel %vm1967, %v1968, %v1959
        %v1970 = vsel %vm1963, %v1966, %v1969
        %v1971 = vsel %vm1960, nan, %v1970
        %v1972 = vand.u32 2147483647, %v214
        %vm1973 = vcmp.le.f32.partialorder %v1972, 0.7853982
        %vm1974 = vcmp.lt.s32.totalorder %v214, 0
        %v1975 = vand.u32 %v214, 2139095040
        %v1976 = vshrl.u32 %v1975, 23
        %v1977 = vsub.s32 %v1976, 127
        %v1978 = vand.u32 2147483647, %v214
        %v1979 = vand.u32 %v1978, 8388607
        %v1980 = vor.u32 %v1979, 8388608
        %v1981 = vsub.s32 0, %v1980
        %v1982 = vadd.s32 %v1977, 1
        %vm1983 = vcmp.gt.s32.totalorder %v1982, 0
        %v1984 = vsel %vm1983, %v1982, 0
        %v1985 = vshrl.u32 %v1984, 5
        %v1986 = vand.u32 %v1984, 31
        %v1987 = vsub.s32 32, %v1986
        %v1988 = vshrl.u32 683565275, %v1987
        %v1989 = vshll.u32 683565275, %v1986
        %v1990 = vshrl.u32 2475754826, %v1987
        %v1991 = vor.u32 %v1989, %v1990
        %v1992 = vshll.u32 2475754826, %v1986
        %v1993 = vshrl.u32 2131351028, %v1987
        %v1994 = vor.u32 %v1992, %v1993
        %v1995 = vshll.u32 2131351028, %v1986
        %v1996 = vshrl.u32 2102212464, %v1987
        %v1997 = vor.u32 %v1995, %v1996
        %v1998 = vshll.u32 2102212464, %v1986
        %v1999 = vshrl.u32 920167782, %v1987
        %v2000 = vor.u32 %v1998, %v1999
        %v2001 = vshll.u32 920167782, %v1986
        %v2002 = vshrl.u32 1326507024, %v1987
        %v2003 = vor.u32 %v2001, %v2002
        %vm2004 = vcmp.lt.s32.totalorder %v1985, 1
        %vm2005 = vcmp.lt.s32.totalorder %v1985, 2
        %vm2006 = vcmp.lt.s32.totalorder %v1985, 3
        %vm2007 = vcmp.lt.s32.totalorder %v1985, 4
        %v2008 = vsel %vm2004, %v1988, %v1991
        %v2009 = vsel %vm2007, %v1997, 2102212464
        %v2010 = vsel %vm2006, %v1994, %v2009
        %v2011 = vsel %vm2005, %v2008, %v2010
        %v2012 = vsel %vm2004, %v1991, %v1994
        %v2013 = vsel %vm2007, %v2000, 920167782
        %v2014 = vsel %vm2006, %v1997, %v2013
        %v2015 = vsel %vm2005, %v2012, %v2014
        %v2016 = vsel %vm2004, %v1994, %v1997
        %v2017 = vsel %vm2007, %v2003, 1326507024
        %v2018 = vsel %vm2006, %v2000, %v2017
        %v2019 = vsel %vm2005, %v2016, %v2018
        %v2020 = vshll.u32 %v1980, 8
        %v2021 = vand.u32 %v2020, 65535
        %v2022 = vshrl.u32 %v2020, 16
        %v2023 = vand.u32 %v2019, 65535
        %v2024 = vshrl.u32 %v2019, 16
        %v2025 = vmul.u32 %v2021, %v2023
        %v2026 = vmul.u32 %v2021, %v2024
        %v2027 = vmul.u32 %v2022, %v2023
        %v2028 = vmul.u32 %v2022, %v2024
        %v2029 = vshll.u32 %v2026, 16
        %v2030 = vshrl.u32 %v2026, 16
        %v2031 = vshll.u32 %v2027, 16
        %v2032 = vshrl.u32 %v2027, 16
        %vm2033 = vc.u32 %v2025, %v2029
        %v2034 = vsel %vm2033, 1, 0
        %v2035 = vadd.s32 %v2025, %v2029
        %v2036 = vadd.s32 %v2028, %v2034
        %vm2037 = vc.u32 %v2035, %v2031
        %v2038 = vsel %vm2037, 1, 0
        %v2039 = vadd.s32 %v2035, %v2031
        %v2040 = vadd.s32 %v2036, %v2038
        %v2041 = vadd.s32 %v2040, %v2030
        %v2042 = vadd.s32 %v2041, %v2032
        %v2043 = vand.u32 %v2020, 65535
        %v2044 = vshrl.u32 %v2020, 16
        %v2045 = vand.u32 %v2015, 65535
        %v2046 = vshrl.u32 %v2015, 16
        %v2047 = vmul.u32 %v2043, %v2045
        %v2048 = vmul.u32 %v2043, %v2046
        %v2049 = vmul.u32 %v2044, %v2045
        %v2050 = vmul.u32 %v2044, %v2046
        %v2051 = vshll.u32 %v2048, 16
        %v2052 = vshrl.u32 %v2048, 16
        %v2053 = vshll.u32 %v2049, 16
        %v2054 = vshrl.u32 %v2049, 16
        %vm2055 = vc.u32 %v2047, %v2051
        %v2056 = vsel %vm2055, 1, 0
        %v2057 = vadd.s32 %v2047, %v2051
        %v2058 = vadd.s32 %v2050, %v2056
        %vm2059 = vc.u32 %v2057, %v2053
        %v2060 = vsel %vm2059, 1, 0
        %v2061 = vadd.s32 %v2057, %v2053
        %v2062 = vadd.s32 %v2058, %v2060
        %v2063 = vadd.s32 %v2062, %v2052
        %v2064 = vadd.s32 %v2063, %v2054
        %v2065 = vmul.u32 %v2020, %v2011
        %v2066 = vadd.s32 %v2042, %v2061
        %vm2067 = vc.u32 %v2042, %v2061
        %v2068 = vadd.s32 %v2064, 1
        %v2069 = vsel %vm2067, %v2068, %v2064
        %v2070 = vadd.s32 %v2065, %v2069
        %v2071 = vadd.s32 %v2070, 536870912
        %v2072 = vshrl.u32 %v2071, 30
        %v2073 = vshll.u32 %v2072, 30
        %v2074 = vsub.s32 %v2070, %v2073
        %vm2075 = vcmp.lt.s32.totalorder %v2074, 0
        %v2076 = vsub.s32 0, %v2074
        %v2077 = vsel %vm2075, %v2076, %v2074
        %v2078 = vclz %v2077
        %v2079 = vsub.s32 %v2078, 2
        %vm2080 = vcmp.gt.s32.totalorder 0, %v2079
        %v2081 = vsel %vm2080, 0, %v2079
        %v2082 = vsub.s32 32, %v2081
        %v2083 = vshll.u32 %v2074, %v2081
        %v2084 = vshrl.u32 %v2066, %v2082
        %v2085 = vor.u32 %v2083, %v2084
        %v2086 = vsub.s32 4294967266, %v2081
        %v2087 = vadd.s32 %v2086, 127
        %v2088 = vshll.u32 %v2087, 23
        %v2089 = vor.u32 4788187, %v2088
        %v2090 = vand.u32 2147483647, %v2089
        %v2092 = vcvt.s32.f32 %v2085
        %v2093 = vmul.f32 %v2092, %v2090
        %v2094 = vxor.u32 %v2093, 2147483648
        %v2095 = vsel %vm1974, %v2094, %v2093
        %v2096 = vsub.s32 4, %v2072
        %v2097 = vsel %vm1974, %v2096, %v2072
        %v2098 = vsel %vm1973, %v214, %v2095
        %v2099 = vsel %vm1973, 0, %v2097
        %v2100 = vmul.f32 %v2098, %v2098
        %v2101 = vmul.f32 %v2100, -0.001358992
        %v2102 = vadd.f32 %v2101, 0.041655596
        %v2103 = vmul.f32 %v2100, %v2102
        %v2104 = vadd.f32 %v2103, -0.4999988
        %v2105 = vmul.f32 %v2100, %v2104
        %v2106 = vadd.f32 1.0, %v2105
        %v2107 = vmul.f32 %v2098, %v2098
        %v2108 = vmul.f32 %v2107, -0.00019511016
        %v2109 = vadd.f32 %v2108, 0.008332121
        %v2110 = vmul.f32 %v2107, %v2109
        %v2111 = vadd.f32 %v2110, -0.16666654
        %v2112 = vmul.f32 %v2107, %v2111
        %v2113 = vadd.f32 %v2112, 1.0
        %v2114 = vmul.f32 %v2113, %v2098
        %vm2115 = vweird.f32 %v214
        %v2116 = vadd.s32 %v2099, 3
        %v2117 = vand.u32 %v2116, 3
        %vm2118 = vcmp.lt.s32.totalorder %v2117, 2
        %vm2119 = vcmp.eq.s32.totalorder %v2117, 0
        %v2120 = vxor.u32 %v2114, 2147483648
        %v2121 = vsel %vm2119, %v2106, %v2120
        %vm2122 = vcmp.eq.s32.totalorder %v2117, 2
        %v2123 = vxor.u32 %v2106, 2147483648
        %v2124 = vsel %vm2122, %v2123, %v2114
        %v2125 = vsel %vm2118, %v2121, %v2124
        %v2126 = vsel %vm2115, nan, %v2125
        %v2127 = vand.u32 2147483647, %v215
        %vm2128 = vcmp.le.f32.partialorder %v2127, 0.7853982
        %vm2129 = vcmp.lt.s32.totalorder %v215, 0
        %v2130 = vand.u32 %v215, 2139095040
        %v2131 = vshrl.u32 %v2130, 23
        %v2132 = vsub.s32 %v2131, 127
        %v2133 = vand.u32 2147483647, %v215
        %v2134 = vand.u32 %v2133, 8388607
        %v2135 = vor.u32 %v2134, 8388608
        %v2136 = vsub.s32 0, %v2135
        %v2137 = vadd.s32 %v2132, 1
        %vm2138 = vcmp.gt.s32.totalorder %v2137, 0
        %v2139 = vsel %vm2138, %v2137, 0
        %v2140 = vshrl.u32 %v2139, 5
        %v2141 = vand.u32 %v2139, 31
        %v2142 = vsub.s32 32, %v2141
        %v2143 = vshrl.u32 683565275, %v2142
        %v2144 = vshll.u32 683565275, %v2141
        %v2145 = vshrl.u32 2475754826, %v2142
        %v2146 = vor.u32 %v2144, %v2145
        %v2147 = vshll.u32 2475754826, %v2141
        %v2148 = vshrl.u32 2131351028, %v2142
        %v2149 = vor.u32 %v2147, %v2148
        %v2150 = vshll.u32 2131351028, %v2141
        %v2151 = vshrl.u32 2102212464, %v2142
        %v2152 = vor.u32 %v2150, %v2151
        %v2153 = vshll.u32 2102212464, %v2141
        %v2154 = vshrl.u32 920167782, %v2142
        %v2155 = vor.u32 %v2153, %v2154
        %v2156 = vshll.u32 920167782, %v2141
        %v2157 = vshrl.u32 1326507024, %v2142
        %v2158 = vor.u32 %v2156, %v2157
        %vm2159 = vcmp.lt.s32.totalorder %v2140, 1
        %vm2160 = vcmp.lt.s32.totalorder %v2140, 2
        %vm2161 = vcmp.lt.s32.totalorder %v2140, 3
        %vm2162 = vcmp.lt.s32.totalorder %v2140, 4
        %v2163 = vsel %vm2159, %v2143, %v2146
        %v2164 = vsel %vm2162, %v2152, 2102212464
        %v2165 = vsel %vm2161, %v2149, %v2164
        %v2166 = vsel %vm2160, %v2163, %v2165
        %v2167 = vsel %vm2159, %v2146, %v2149
        %v2168 = vsel %vm2162, %v2155, 920167782
        %v2169 = vsel %vm2161, %v2152, %v2168
        %v2170 = vsel %vm2160, %v2167, %v2169
        %v2171 = vsel %vm2159, %v2149, %v2152
        %v2172 = vsel %vm2162, %v2158, 1326507024
        %v2173 = vsel %vm2161, %v2155, %v2172
        %v2174 = vsel %vm2160, %v2171, %v2173
        %v2175 = vshll.u32 %v2135, 8
        %v2176 = vand.u32 %v2175, 65535
        %v2177 = vshrl.u32 %v2175, 16
        %v2178 = vand.u32 %v2174, 65535
        %v2179 = vshrl.u32 %v2174, 16
        %v2180 = vmul.u32 %v2176, %v2178
        %v2181 = vmul.u32 %v2176, %v2179
        %v2182 = vmul.u32 %v2177, %v2178
        %v2183 = vmul.u32 %v2177, %v2179
        %v2184 = vshll.u32 %v2181, 16
        %v2185 = vshrl.u32 %v2181, 16
        %v2186 = vshll.u32 %v2182, 16
        %v2187 = vshrl.u32 %v2182, 16
        %vm2188 = vc.u32 %v2180, %v2184
        %v2189 = vsel %vm2188, 1, 0
        %v2190 = vadd.s32 %v2180, %v2184
        %v2191 = vadd.s32 %v2183, %v2189
        %vm2192 = vc.u32 %v2190, %v2186
        %v2193 = vsel %vm2192, 1, 0
        %v2194 = vadd.s32 %v2190, %v2186
        %v2195 = vadd.s32 %v2191, %v2193
        %v2196 = vadd.s32 %v2195, %v2185
        %v2197 = vadd.s32 %v2196, %v2187
        %v2198 = vand.u32 %v2175, 65535
        %v2199 = vshrl.u32 %v2175, 16
        %v2200 = vand.u32 %v2170, 65535
        %v2201 = vshrl.u32 %v2170, 16
        %v2202 = vmul.u32 %v2198, %v2200
        %v2203 = vmul.u32 %v2198, %v2201
        %v2204 = vmul.u32 %v2199, %v2200
        %v2205 = vmul.u32 %v2199, %v2201
        %v2206 = vshll.u32 %v2203, 16
        %v2207 = vshrl.u32 %v2203, 16
        %v2208 = vshll.u32 %v2204, 16
        %v2209 = vshrl.u32 %v2204, 16
        %vm2210 = vc.u32 %v2202, %v2206
        %v2211 = vsel %vm2210, 1, 0
        %v2212 = vadd.s32 %v2202, %v2206
        %v2213 = vadd.s32 %v2205, %v2211
        %vm2214 = vc.u32 %v2212, %v2208
        %v2215 = vsel %vm2214, 1, 0
        %v2216 = vadd.s32 %v2212, %v2208
        %v2217 = vadd.s32 %v2213, %v2215
        %v2218 = vadd.s32 %v2217, %v2207
        %v2219 = vadd.s32 %v2218, %v2209
        %v2220 = vmul.u32 %v2175, %v2166
        %v2221 = vadd.s32 %v2197, %v2216
        %vm2222 = vc.u32 %v2197, %v2216
        %v2223 = vadd.s32 %v2219, 1
        %v2224 = vsel %vm2222, %v2223, %v2219
        %v2225 = vadd.s32 %v2220, %v2224
        %v2226 = vadd.s32 %v2225, 536870912
        %v2227 = vshrl.u32 %v2226, 30
        %v2228 = vshll.u32 %v2227, 30
        %v2229 = vsub.s32 %v2225, %v2228
        %vm2230 = vcmp.lt.s32.totalorder %v2229, 0
        %v2231 = vsub.s32 0, %v2229
        %v2232 = vsel %vm2230, %v2231, %v2229
        %v2233 = vclz %v2232
        %v2234 = vsub.s32 %v2233, 2
        %vm2235 = vcmp.gt.s32.totalorder 0, %v2234
        %v2236 = vsel %vm2235, 0, %v2234
        %v2237 = vsub.s32 32, %v2236
        %v2238 = vshll.u32 %v2229, %v2236
        %v2239 = vshrl.u32 %v2221, %v2237
        %v2240 = vor.u32 %v2238, %v2239
        %v2241 = vsub.s32 4294967266, %v2236
        %v2242 = vadd.s32 %v2241, 127
        %v2243 = vshll.u32 %v2242, 23
        %v2244 = vor.u32 4788187, %v2243
        %v2245 = vand.u32 2147483647, %v2244
        %v2247 = vcvt.s32.f32 %v2240
        %v2248 = vmul.f32 %v2247, %v2245
        %v2249 = vxor.u32 %v2248, 2147483648
        %v2250 = vsel %vm2129, %v2249, %v2248
        %v2251 = vsub.s32 4, %v2227
        %v2252 = vsel %vm2129, %v2251, %v2227
        %v2253 = vsel %vm2128, %v215, %v2250
        %v2254 = vsel %vm2128, 0, %v2252
        %v2255 = vmul.f32 %v2253, %v2253
        %v2256 = vmul.f32 %v2255, -0.001358992
        %v2257 = vadd.f32 %v2256, 0.041655596
        %v2258 = vmul.f32 %v2255, %v2257
        %v2259 = vadd.f32 %v2258, -0.4999988
        %v2260 = vmul.f32 %v2255, %v2259
        %v2261 = vadd.f32 1.0, %v2260
        %v2262 = vmul.f32 %v2253, %v2253
        %v2263 = vmul.f32 %v2262, -0.00019511016
        %v2264 = vadd.f32 %v2263, 0.008332121
        %v2265 = vmul.f32 %v2262, %v2264
        %v2266 = vadd.f32 %v2265, -0.16666654
        %v2267 = vmul.f32 %v2262, %v2266
        %v2268 = vadd.f32 %v2267, 1.0
        %v2269 = vmul.f32 %v2268, %v2253
        %vm2270 = vweird.f32 %v215
        %v2271 = vadd.s32 %v2254, 3
        %v2272 = vand.u32 %v2271, 3
        %vm2273 = vcmp.lt.s32.totalorder %v2272, 2
        %vm2274 = vcmp.eq.s32.totalorder %v2272, 0
        %v2275 = vxor.u32 %v2269, 2147483648
        %v2276 = vsel %vm2274, %v2261, %v2275
        %vm2277 = vcmp.eq.s32.totalorder %v2272, 2
        %v2278 = vxor.u32 %v2261, 2147483648
        %v2279 = vsel %vm2277, %v2278, %v2269
        %v2280 = vsel %vm2273, %v2276, %v2279
        %v2281 = vsel %vm2270, nan, %v2280
        %v2282 = vand.u32 2147483647, %v216
        %vm2283 = vcmp.le.f32.partialorder %v2282, 0.7853982
        %vm2284 = vcmp.lt.s32.totalorder %v216, 0
        %v2285 = vand.u32 %v216, 2139095040
        %v2286 = vshrl.u32 %v2285, 23
        %v2287 = vsub.s32 %v2286, 127
        %v2288 = vand.u32 2147483647, %v216
        %v2289 = vand.u32 %v2288, 8388607
        %v2290 = vor.u32 %v2289, 8388608
        %v2291 = vsub.s32 0, %v2290
        %v2292 = vadd.s32 %v2287, 1
        %vm2293 = vcmp.gt.s32.totalorder %v2292, 0
        %v2294 = vsel %vm2293, %v2292, 0
        %v2295 = vshrl.u32 %v2294, 5
        %v2296 = vand.u32 %v2294, 31
        %v2297 = vsub.s32 32, %v2296
        %v2298 = vshrl.u32 683565275, %v2297
        %v2299 = vshll.u32 683565275, %v2296
        %v2300 = vshrl.u32 2475754826, %v2297
        %v2301 = vor.u32 %v2299, %v2300
        %v2302 = vshll.u32 2475754826, %v2296
        %v2303 = vshrl.u32 2131351028, %v2297
        %v2304 = vor.u32 %v2302, %v2303
        %v2305 = vshll.u32 2131351028, %v2296
        %v2306 = vshrl.u32 2102212464, %v2297
        %v2307 = vor.u32 %v2305, %v2306
        %v2308 = vshll.u32 2102212464, %v2296
        %v2309 = vshrl.u32 920167782, %v2297
        %v2310 = vor.u32 %v2308, %v2309
        %v2311 = vshll.u32 920167782, %v2296
        %v2312 = vshrl.u32 1326507024, %v2297
        %v2313 = vor.u32 %v2311, %v2312
        %vm2314 = vcmp.lt.s32.totalorder %v2295, 1
        %vm2315 = vcmp.lt.s32.totalorder %v2295, 2
        %vm2316 = vcmp.lt.s32.totalorder %v2295, 3
        %vm2317 = vcmp.lt.s32.totalorder %v2295, 4
        %v2318 = vsel %vm2314, %v2298, %v2301
        %v2319 = vsel %vm2317, %v2307, 2102212464
        %v2320 = vsel %vm2316, %v2304, %v2319
        %v2321 = vsel %vm2315, %v2318, %v2320
        %v2322 = vsel %vm2314, %v2301, %v2304
        %v2323 = vsel %vm2317, %v2310, 920167782
        %v2324 = vsel %vm2316, %v2307, %v2323
        %v2325 = vsel %vm2315, %v2322, %v2324
        %v2326 = vsel %vm2314, %v2304, %v2307
        %v2327 = vsel %vm2317, %v2313, 1326507024
        %v2328 = vsel %vm2316, %v2310, %v2327
        %v2329 = vsel %vm2315, %v2326, %v2328
        %v2330 = vshll.u32 %v2290, 8
        %v2331 = vand.u32 %v2330, 65535
        %v2332 = vshrl.u32 %v2330, 16
        %v2333 = vand.u32 %v2329, 65535
        %v2334 = vshrl.u32 %v2329, 16
        %v2335 = vmul.u32 %v2331, %v2333
        %v2336 = vmul.u32 %v2331, %v2334
        %v2337 = vmul.u32 %v2332, %v2333
        %v2338 = vmul.u32 %v2332, %v2334
        %v2339 = vshll.u32 %v2336, 16
        %v2340 = vshrl.u32 %v2336, 16
        %v2341 = vshll.u32 %v2337, 16
        %v2342 = vshrl.u32 %v2337, 16
        %vm2343 = vc.u32 %v2335, %v2339
        %v2344 = vsel %vm2343, 1, 0
        %v2345 = vadd.s32 %v2335, %v2339
        %v2346 = vadd.s32 %v2338, %v2344
        %vm2347 = vc.u32 %v2345, %v2341
        %v2348 = vsel %vm2347, 1, 0
        %v2349 = vadd.s32 %v2345, %v2341
        %v2350 = vadd.s32 %v2346, %v2348
        %v2351 = vadd.s32 %v2350, %v2340
        %v2352 = vadd.s32 %v2351, %v2342
        %v2353 = vand.u32 %v2330, 65535
        %v2354 = vshrl.u32 %v2330, 16
        %v2355 = vand.u32 %v2325, 65535
        %v2356 = vshrl.u32 %v2325, 16
        %v2357 = vmul.u32 %v2353, %v2355
        %v2358 = vmul.u32 %v2353, %v2356
        %v2359 = vmul.u32 %v2354, %v2355
        %v2360 = vmul.u32 %v2354, %v2356
        %v2361 = vshll.u32 %v2358, 16
        %v2362 = vshrl.u32 %v2358, 16
        %v2363 = vshll.u32 %v2359, 16
        %v2364 = vshrl.u32 %v2359, 16
        %vm2365 = vc.u32 %v2357, %v2361
        %v2366 = vsel %vm2365, 1, 0
        %v2367 = vadd.s32 %v2357, %v2361
        %v2368 = vadd.s32 %v2360, %v2366
        %vm2369 = vc.u32 %v2367, %v2363
        %v2370 = vsel %vm2369, 1, 0
        %v2371 = vadd.s32 %v2367, %v2363
        %v2372 = vadd.s32 %v2368, %v2370
        %v2373 = vadd.s32 %v2372, %v2362
        %v2374 = vadd.s32 %v2373, %v2364
        %v2375 = vmul.u32 %v2330, %v2321
        %v2376 = vadd.s32 %v2352, %v2371
        %vm2377 = vc.u32 %v2352, %v2371
        %v2378 = vadd.s32 %v2374, 1
        %v2379 = vsel %vm2377, %v2378, %v2374
        %v2380 = vadd.s32 %v2375, %v2379
        %v2381 = vadd.s32 %v2380, 536870912
        %v2382 = vshrl.u32 %v2381, 30
        %v2383 = vshll.u32 %v2382, 30
        %v2384 = vsub.s32 %v2380, %v2383
        %vm2385 = vcmp.lt.s32.totalorder %v2384, 0
        %v2386 = vsub.s32 0, %v2384
        %v2387 = vsel %vm2385, %v2386, %v2384
        %v2388 = vclz %v2387
        %v2389 = vsub.s32 %v2388, 2
        %vm2390 = vcmp.gt.s32.totalorder 0, %v2389
        %v2391 = vsel %vm2390, 0, %v2389
        %v2392 = vsub.s32 32, %v2391
        %v2393 = vshll.u32 %v2384, %v2391
        %v2394 = vshrl.u32 %v2376, %v2392
        %v2395 = vor.u32 %v2393, %v2394
        %v2396 = vsub.s32 4294967266, %v2391
        %v2397 = vadd.s32 %v2396, 127
        %v2398 = vshll.u32 %v2397, 23
        %v2399 = vor.u32 4788187, %v2398
        %v2400 = vand.u32 2147483647, %v2399
        %v2402 = vcvt.s32.f32 %v2395
        %v2403 = vmul.f32 %v2402, %v2400
        %v2404 = vxor.u32 %v2403, 2147483648
        %v2405 = vsel %vm2284, %v2404, %v2403
        %v2406 = vsub.s32 4, %v2382
        %v2407 = vsel %vm2284, %v2406, %v2382
        %v2408 = vsel %vm2283, %v216, %v2405
        %v2409 = vsel %vm2283, 0, %v2407
        %v2410 = vmul.f32 %v2408, %v2408
        %v2411 = vmul.f32 %v2410, -0.001358992
        %v2412 = vadd.f32 %v2411, 0.041655596
        %v2413 = vmul.f32 %v2410, %v2412
        %v2414 = vadd.f32 %v2413, -0.4999988
        %v2415 = vmul.f32 %v2410, %v2414
        %v2416 = vadd.f32 1.0, %v2415
        %v2417 = vmul.f32 %v2408, %v2408
        %v2418 = vmul.f32 %v2417, -0.00019511016
        %v2419 = vadd.f32 %v2418, 0.008332121
        %v2420 = vmul.f32 %v2417, %v2419
        %v2421 = vadd.f32 %v2420, -0.16666654
        %v2422 = vmul.f32 %v2417, %v2421
        %v2423 = vadd.f32 %v2422, 1.0
        %v2424 = vmul.f32 %v2423, %v2408
        %vm2425 = vweird.f32 %v216
        %v2426 = vadd.s32 %v2409, 3
        %v2427 = vand.u32 %v2426, 3
        %vm2428 = vcmp.lt.s32.totalorder %v2427, 2
        %vm2429 = vcmp.eq.s32.totalorder %v2427, 0
        %v2430 = vxor.u32 %v2424, 2147483648
        %v2431 = vsel %vm2429, %v2416, %v2430
        %vm2432 = vcmp.eq.s32.totalorder %v2427, 2
        %v2433 = vxor.u32 %v2416, 2147483648
        %v2434 = vsel %vm2432, %v2433, %v2424
        %v2435 = vsel %vm2428, %v2431, %v2434
        %v2436 = vsel %vm2425, nan, %v2435
        %v2437 = vand.u32 2147483647, %v217
        %vm2438 = vcmp.le.f32.partialorder %v2437, 0.7853982
        %vm2439 = vcmp.lt.s32.totalorder %v217, 0
        %v2440 = vand.u32 %v217, 2139095040
        %v2441 = vshrl.u32 %v2440, 23
        %v2442 = vsub.s32 %v2441, 127
        %v2443 = vand.u32 2147483647, %v217
        %v2444 = vand.u32 %v2443, 8388607
        %v2445 = vor.u32 %v2444, 8388608
        %v2446 = vsub.s32 0, %v2445
        %v2447 = vadd.s32 %v2442, 1
        %vm2448 = vcmp.gt.s32.totalorder %v2447, 0
        %v2449 = vsel %vm2448, %v2447, 0
        %v2450 = vshrl.u32 %v2449, 5
        %v2451 = vand.u32 %v2449, 31
        %v2452 = vsub.s32 32, %v2451
        %v2453 = vshrl.u32 683565275, %v2452
        %v2454 = vshll.u32 683565275, %v2451
        %v2455 = vshrl.u32 2475754826, %v2452
        %v2456 = vor.u32 %v2454, %v2455
        %v2457 = vshll.u32 2475754826, %v2451
        %v2458 = vshrl.u32 2131351028, %v2452
        %v2459 = vor.u32 %v2457, %v2458
        %v2460 = vshll.u32 2131351028, %v2451
        %v2461 = vshrl.u32 2102212464, %v2452
        %v2462 = vor.u32 %v2460, %v2461
        %v2463 = vshll.u32 2102212464, %v2451
        %v2464 = vshrl.u32 920167782, %v2452
        %v2465 = vor.u32 %v2463, %v2464
        %v2466 = vshll.u32 920167782, %v2451
        %v2467 = vshrl.u32 1326507024, %v2452
        %v2468 = vor.u32 %v2466, %v2467
        %vm2469 = vcmp.lt.s32.totalorder %v2450, 1
        %vm2470 = vcmp.lt.s32.totalorder %v2450, 2
        %vm2471 = vcmp.lt.s32.totalorder %v2450, 3
        %vm2472 = vcmp.lt.s32.totalorder %v2450, 4
        %v2473 = vsel %vm2469, %v2453, %v2456
        %v2474 = vsel %vm2472, %v2462, 2102212464
        %v2475 = vsel %vm2471, %v2459, %v2474
        %v2476 = vsel %vm2470, %v2473, %v2475
        %v2477 = vsel %vm2469, %v2456, %v2459
        %v2478 = vsel %vm2472, %v2465, 920167782
        %v2479 = vsel %vm2471, %v2462, %v2478
        %v2480 = vsel %vm2470, %v2477, %v2479
        %v2481 = vsel %vm2469, %v2459, %v2462
        %v2482 = vsel %vm2472, %v2468, 1326507024
        %v2483 = vsel %vm2471, %v2465, %v2482
        %v2484 = vsel %vm2470, %v2481, %v2483
        %v2485 = vshll.u32 %v2445, 8
        %v2486 = vand.u32 %v2485, 65535
        %v2487 = vshrl.u32 %v2485, 16
        %v2488 = vand.u32 %v2484, 65535
        %v2489 = vshrl.u32 %v2484, 16
        %v2490 = vmul.u32 %v2486, %v2488
        %v2491 = vmul.u32 %v2486, %v2489
        %v2492 = vmul.u32 %v2487, %v2488
        %v2493 = vmul.u32 %v2487, %v2489
        %v2494 = vshll.u32 %v2491, 16
        %v2495 = vshrl.u32 %v2491, 16
        %v2496 = vshll.u32 %v2492, 16
        %v2497 = vshrl.u32 %v2492, 16
        %vm2498 = vc.u32 %v2490, %v2494
        %v2499 = vsel %vm2498, 1, 0
        %v2500 = vadd.s32 %v2490, %v2494
        %v2501 = vadd.s32 %v2493, %v2499
        %vm2502 = vc.u32 %v2500, %v2496
        %v2503 = vsel %vm2502, 1, 0
        %v2504 = vadd.s32 %v2500, %v2496
        %v2505 = vadd.s32 %v2501, %v2503
        %v2506 = vadd.s32 %v2505, %v2495
        %v2507 = vadd.s32 %v2506, %v2497
        %v2508 = vand.u32 %v2485, 65535
        %v2509 = vshrl.u32 %v2485, 16
        %v2510 = vand.u32 %v2480, 65535
        %v2511 = vshrl.u32 %v2480, 16
        %v2512 = vmul.u32 %v2508, %v2510
        %v2513 = vmul.u32 %v2508, %v2511
        %v2514 = vmul.u32 %v2509, %v2510
        %v2515 = vmul.u32 %v2509, %v2511
        %v2516 = vshll.u32 %v2513, 16
        %v2517 = vshrl.u32 %v2513, 16
        %v2518 = vshll.u32 %v2514, 16
        %v2519 = vshrl.u32 %v2514, 16
        %vm2520 = vc.u32 %v2512, %v2516
        %v2521 = vsel %vm2520, 1, 0
        %v2522 = vadd.s32 %v2512, %v2516
        %v2523 = vadd.s32 %v2515, %v2521
        %vm2524 = vc.u32 %v2522, %v2518
        %v2525 = vsel %vm2524, 1, 0
        %v2526 = vadd.s32 %v2522, %v2518
        %v2527 = vadd.s32 %v2523, %v2525
        %v2528 = vadd.s32 %v2527, %v2517
        %v2529 = vadd.s32 %v2528, %v2519
        %v2530 = vmul.u32 %v2485, %v2476
        %v2531 = vadd.s32 %v2507, %v2526
        %vm2532 = vc.u32 %v2507, %v2526
        %v2533 = vadd.s32 %v2529, 1
        %v2534 = vsel %vm2532, %v2533, %v2529
        %v2535 = vadd.s32 %v2530, %v2534
        %v2536 = vadd.s32 %v2535, 536870912
        %v2537 = vshrl.u32 %v2536, 30
        %v2538 = vshll.u32 %v2537, 30
        %v2539 = vsub.s32 %v2535, %v2538
        %vm2540 = vcmp.lt.s32.totalorder %v2539, 0
        %v2541 = vsub.s32 0, %v2539
        %v2542 = vsel %vm2540, %v2541, %v2539
        %v2543 = vclz %v2542
        %v2544 = vsub.s32 %v2543, 2
        %vm2545 = vcmp.gt.s32.totalorder 0, %v2544
        %v2546 = vsel %vm2545, 0, %v2544
        %v2547 = vsub.s32 32, %v2546
        %v2548 = vshll.u32 %v2539, %v2546
        %v2549 = vshrl.u32 %v2531, %v2547
        %v2550 = vor.u32 %v2548, %v2549
        %v2551 = vsub.s32 4294967266, %v2546
        %v2552 = vadd.s32 %v2551, 127
        %v2553 = vshll.u32 %v2552, 23
        %v2554 = vor.u32 4788187, %v2553
        %v2555 = vand.u32 2147483647, %v2554
        %v2557 = vcvt.s32.f32 %v2550
        %v2558 = vmul.f32 %v2557, %v2555
        %v2559 = vxor.u32 %v2558, 2147483648
        %v2560 = vsel %vm2439, %v2559, %v2558
        %v2561 = vsub.s32 4, %v2537
        %v2562 = vsel %vm2439, %v2561, %v2537
        %v2563 = vsel %vm2438, %v217, %v2560
        %v2564 = vsel %vm2438, 0, %v2562
        %v2565 = vmul.f32 %v2563, %v2563
        %v2566 = vmul.f32 %v2565, -0.001358992
        %v2567 = vadd.f32 %v2566, 0.041655596
        %v2568 = vmul.f32 %v2565, %v2567
        %v2569 = vadd.f32 %v2568, -0.4999988
        %v2570 = vmul.f32 %v2565, %v2569
        %v2571 = vadd.f32 1.0, %v2570
        %v2572 = vmul.f32 %v2563, %v2563
        %v2573 = vmul.f32 %v2572, -0.00019511016
        %v2574 = vadd.f32 %v2573, 0.008332121
        %v2575 = vmul.f32 %v2572, %v2574
        %v2576 = vadd.f32 %v2575, -0.16666654
        %v2577 = vmul.f32 %v2572, %v2576
        %v2578 = vadd.f32 %v2577, 1.0
        %v2579 = vmul.f32 %v2578, %v2563
        %vm2580 = vweird.f32 %v217
        %v2581 = vadd.s32 %v2564, 3
        %v2582 = vand.u32 %v2581, 3
        %vm2583 = vcmp.lt.s32.totalorder %v2582, 2
        %vm2584 = vcmp.eq.s32.totalorder %v2582, 0
        %v2585 = vxor.u32 %v2579, 2147483648
        %v2586 = vsel %vm2584, %v2571, %v2585
        %vm2587 = vcmp.eq.s32.totalorder %v2582, 2
        %v2588 = vxor.u32 %v2571, 2147483648
        %v2589 = vsel %vm2587, %v2588, %v2579
        %v2590 = vsel %vm2583, %v2586, %v2589
        %v2591 = vsel %vm2580, nan, %v2590
        %v2592 = vand.u32 2147483647, %v218
        %vm2593 = vcmp.le.f32.partialorder %v2592, 0.7853982
        %vm2594 = vcmp.lt.s32.totalorder %v218, 0
        %v2595 = vand.u32 %v218, 2139095040
        %v2596 = vshrl.u32 %v2595, 23
        %v2597 = vsub.s32 %v2596, 127
        %v2598 = vand.u32 2147483647, %v218
        %v2599 = vand.u32 %v2598, 8388607
        %v2600 = vor.u32 %v2599, 8388608
        %v2601 = vsub.s32 0, %v2600
        %v2602 = vadd.s32 %v2597, 1
        %vm2603 = vcmp.gt.s32.totalorder %v2602, 0
        %v2604 = vsel %vm2603, %v2602, 0
        %v2605 = vshrl.u32 %v2604, 5
        %v2606 = vand.u32 %v2604, 31
        %v2607 = vsub.s32 32, %v2606
        %v2608 = vshrl.u32 683565275, %v2607
        %v2609 = vshll.u32 683565275, %v2606
        %v2610 = vshrl.u32 2475754826, %v2607
        %v2611 = vor.u32 %v2609, %v2610
        %v2612 = vshll.u32 2475754826, %v2606
        %v2613 = vshrl.u32 2131351028, %v2607
        %v2614 = vor.u32 %v2612, %v2613
        %v2615 = vshll.u32 2131351028, %v2606
        %v2616 = vshrl.u32 2102212464, %v2607
        %v2617 = vor.u32 %v2615, %v2616
        %v2618 = vshll.u32 2102212464, %v2606
        %v2619 = vshrl.u32 920167782, %v2607
        %v2620 = vor.u32 %v2618, %v2619
        %v2621 = vshll.u32 920167782, %v2606
        %v2622 = vshrl.u32 1326507024, %v2607
        %v2623 = vor.u32 %v2621, %v2622
        %vm2624 = vcmp.lt.s32.totalorder %v2605, 1
        %vm2625 = vcmp.lt.s32.totalorder %v2605, 2
        %vm2626 = vcmp.lt.s32.totalorder %v2605, 3
        %vm2627 = vcmp.lt.s32.totalorder %v2605, 4
        %v2628 = vsel %vm2624, %v2608, %v2611
        %v2629 = vsel %vm2627, %v2617, 2102212464
        %v2630 = vsel %vm2626, %v2614, %v2629
        %v2631 = vsel %vm2625, %v2628, %v2630
        %v2632 = vsel %vm2624, %v2611, %v2614
        %v2633 = vsel %vm2627, %v2620, 920167782
        %v2634 = vsel %vm2626, %v2617, %v2633
        %v2635 = vsel %vm2625, %v2632, %v2634
        %v2636 = vsel %vm2624, %v2614, %v2617
        %v2637 = vsel %vm2627, %v2623, 1326507024
        %v2638 = vsel %vm2626, %v2620, %v2637
        %v2639 = vsel %vm2625, %v2636, %v2638
        %v2640 = vshll.u32 %v2600, 8
        %v2641 = vand.u32 %v2640, 65535
        %v2642 = vshrl.u32 %v2640, 16
        %v2643 = vand.u32 %v2639, 65535
        %v2644 = vshrl.u32 %v2639, 16
        %v2645 = vmul.u32 %v2641, %v2643
        %v2646 = vmul.u32 %v2641, %v2644
        %v2647 = vmul.u32 %v2642, %v2643
        %v2648 = vmul.u32 %v2642, %v2644
        %v2649 = vshll.u32 %v2646, 16
        %v2650 = vshrl.u32 %v2646, 16
        %v2651 = vshll.u32 %v2647, 16
        %v2652 = vshrl.u32 %v2647, 16
        %vm2653 = vc.u32 %v2645, %v2649
        %v2654 = vsel %vm2653, 1, 0
        %v2655 = vadd.s32 %v2645, %v2649
        %v2656 = vadd.s32 %v2648, %v2654
        %vm2657 = vc.u32 %v2655, %v2651
        %v2658 = vsel %vm2657, 1, 0
        %v2659 = vadd.s32 %v2655, %v2651
        %v2660 = vadd.s32 %v2656, %v2658
        %v2661 = vadd.s32 %v2660, %v2650
        %v2662 = vadd.s32 %v2661, %v2652
        %v2663 = vand.u32 %v2640, 65535
        %v2664 = vshrl.u32 %v2640, 16
        %v2665 = vand.u32 %v2635, 65535
        %v2666 = vshrl.u32 %v2635, 16
        %v2667 = vmul.u32 %v2663, %v2665
        %v2668 = vmul.u32 %v2663, %v2666
        %v2669 = vmul.u32 %v2664, %v2665
        %v2670 = vmul.u32 %v2664, %v2666
        %v2671 = vshll.u32 %v2668, 16
        %v2672 = vshrl.u32 %v2668, 16
        %v2673 = vshll.u32 %v2669, 16
        %v2674 = vshrl.u32 %v2669, 16
        %vm2675 = vc.u32 %v2667, %v2671
        %v2676 = vsel %vm2675, 1, 0
        %v2677 = vadd.s32 %v2667, %v2671
        %v2678 = vadd.s32 %v2670, %v2676
        %vm2679 = vc.u32 %v2677, %v2673
        %v2680 = vsel %vm2679, 1, 0
        %v2681 = vadd.s32 %v2677, %v2673
        %v2682 = vadd.s32 %v2678, %v2680
        %v2683 = vadd.s32 %v2682, %v2672
        %v2684 = vadd.s32 %v2683, %v2674
        %v2685 = vmul.u32 %v2640, %v2631
        %v2686 = vadd.s32 %v2662, %v2681
        %vm2687 = vc.u32 %v2662, %v2681
        %v2688 = vadd.s32 %v2684, 1
        %v2689 = vsel %vm2687, %v2688, %v2684
        %v2690 = vadd.s32 %v2685, %v2689
        %v2691 = vadd.s32 %v2690, 536870912
        %v2692 = vshrl.u32 %v2691, 30
        %v2693 = vshll.u32 %v2692, 30
        %v2694 = vsub.s32 %v2690, %v2693
        %vm2695 = vcmp.lt.s32.totalorder %v2694, 0
        %v2696 = vsub.s32 0, %v2694
        %v2697 = vsel %vm2695, %v2696, %v2694
        %v2698 = vclz %v2697
        %v2699 = vsub.s32 %v2698, 2
        %vm2700 = vcmp.gt.s32.totalorder 0, %v2699
        %v2701 = vsel %vm2700, 0, %v2699
        %v2702 = vsub.s32 32, %v2701
        %v2703 = vshll.u32 %v2694, %v2701
        %v2704 = vshrl.u32 %v2686, %v2702
        %v2705 = vor.u32 %v2703, %v2704
        %v2706 = vsub.s32 4294967266, %v2701
        %v2707 = vadd.s32 %v2706, 127
        %v2708 = vshll.u32 %v2707, 23
        %v2709 = vor.u32 4788187, %v2708
        %v2710 = vand.u32 2147483647, %v2709
        %v2712 = vcvt.s32.f32 %v2705
        %v2713 = vmul.f32 %v2712, %v2710
        %v2714 = vxor.u32 %v2713, 2147483648
        %v2715 = vsel %vm2594, %v2714, %v2713
        %v2716 = vsub.s32 4, %v2692
        %v2717 = vsel %vm2594, %v2716, %v2692
        %v2718 = vsel %vm2593, %v218, %v2715
        %v2719 = vsel %vm2593, 0, %v2717
        %v2720 = vmul.f32 %v2718, %v2718
        %v2721 = vmul.f32 %v2720, -0.001358992
        %v2722 = vadd.f32 %v2721, 0.041655596
        %v2723 = vmul.f32 %v2720, %v2722
        %v2724 = vadd.f32 %v2723, -0.4999988
        %v2725 = vmul.f32 %v2720, %v2724
        %v2726 = vadd.f32 1.0, %v2725
        %v2727 = vmul.f32 %v2718, %v2718
        %v2728 = vmul.f32 %v2727, -0.00019511016
        %v2729 = vadd.f32 %v2728, 0.008332121
        %v2730 = vmul.f32 %v2727, %v2729
        %v2731 = vadd.f32 %v2730, -0.16666654
        %v2732 = vmul.f32 %v2727, %v2731
        %v2733 = vadd.f32 %v2732, 1.0
        %v2734 = vmul.f32 %v2733, %v2718
        %vm2735 = vweird.f32 %v218
        %v2736 = vadd.s32 %v2719, 3
        %v2737 = vand.u32 %v2736, 3
        %vm2738 = vcmp.lt.s32.totalorder %v2737, 2
        %vm2739 = vcmp.eq.s32.totalorder %v2737, 0
        %v2740 = vxor.u32 %v2734, 2147483648
        %v2741 = vsel %vm2739, %v2726, %v2740
        %vm2742 = vcmp.eq.s32.totalorder %v2737, 2
        %v2743 = vxor.u32 %v2726, 2147483648
        %v2744 = vsel %vm2742, %v2743, %v2734
        %v2745 = vsel %vm2738, %v2741, %v2744
        %v2746 = vsel %vm2735, nan, %v2745
        %v2747 = vand.u32 2147483647, %v219
        %vm2748 = vcmp.le.f32.partialorder %v2747, 0.7853982
        %vm2749 = vcmp.lt.s32.totalorder %v219, 0
        %v2750 = vand.u32 %v219, 2139095040
        %v2751 = vshrl.u32 %v2750, 23
        %v2752 = vsub.s32 %v2751, 127
        %v2753 = vand.u32 2147483647, %v219
        %v2754 = vand.u32 %v2753, 8388607
        %v2755 = vor.u32 %v2754, 8388608
        %v2756 = vsub.s32 0, %v2755
        %v2757 = vadd.s32 %v2752, 1
        %vm2758 = vcmp.gt.s32.totalorder %v2757, 0
        %v2759 = vsel %vm2758, %v2757, 0
        %v2760 = vshrl.u32 %v2759, 5
        %v2761 = vand.u32 %v2759, 31
        %v2762 = vsub.s32 32, %v2761
        %v2763 = vshrl.u32 683565275, %v2762
        %v2764 = vshll.u32 683565275, %v2761
        %v2765 = vshrl.u32 2475754826, %v2762
        %v2766 = vor.u32 %v2764, %v2765
        %v2767 = vshll.u32 2475754826, %v2761
        %v2768 = vshrl.u32 2131351028, %v2762
        %v2769 = vor.u32 %v2767, %v2768
        %v2770 = vshll.u32 2131351028, %v2761
        %v2771 = vshrl.u32 2102212464, %v2762
        %v2772 = vor.u32 %v2770, %v2771
        %v2773 = vshll.u32 2102212464, %v2761
        %v2774 = vshrl.u32 920167782, %v2762
        %v2775 = vor.u32 %v2773, %v2774
        %v2776 = vshll.u32 920167782, %v2761
        %v2777 = vshrl.u32 1326507024, %v2762
        %v2778 = vor.u32 %v2776, %v2777
        %vm2779 = vcmp.lt.s32.totalorder %v2760, 1
        %vm2780 = vcmp.lt.s32.totalorder %v2760, 2
        %vm2781 = vcmp.lt.s32.totalorder %v2760, 3
        %vm2782 = vcmp.lt.s32.totalorder %v2760, 4
        %v2783 = vsel %vm2779, %v2763, %v2766
        %v2784 = vsel %vm2782, %v2772, 2102212464
        %v2785 = vsel %vm2781, %v2769, %v2784
        %v2786 = vsel %vm2780, %v2783, %v2785
        %v2787 = vsel %vm2779, %v2766, %v2769
        %v2788 = vsel %vm2782, %v2775, 920167782
        %v2789 = vsel %vm2781, %v2772, %v2788
        %v2790 = vsel %vm2780, %v2787, %v2789
        %v2791 = vsel %vm2779, %v2769, %v2772
        %v2792 = vsel %vm2782, %v2778, 1326507024
        %v2793 = vsel %vm2781, %v2775, %v2792
        %v2794 = vsel %vm2780, %v2791, %v2793
        %v2795 = vshll.u32 %v2755, 8
        %v2796 = vand.u32 %v2795, 65535
        %v2797 = vshrl.u32 %v2795, 16
        %v2798 = vand.u32 %v2794, 65535
        %v2799 = vshrl.u32 %v2794, 16
        %v2800 = vmul.u32 %v2796, %v2798
        %v2801 = vmul.u32 %v2796, %v2799
        %v2802 = vmul.u32 %v2797, %v2798
        %v2803 = vmul.u32 %v2797, %v2799
        %v2804 = vshll.u32 %v2801, 16
        %v2805 = vshrl.u32 %v2801, 16
        %v2806 = vshll.u32 %v2802, 16
        %v2807 = vshrl.u32 %v2802, 16
        %vm2808 = vc.u32 %v2800, %v2804
        %v2809 = vsel %vm2808, 1, 0
        %v2810 = vadd.s32 %v2800, %v2804
        %v2811 = vadd.s32 %v2803, %v2809
        %vm2812 = vc.u32 %v2810, %v2806
        %v2813 = vsel %vm2812, 1, 0
        %v2814 = vadd.s32 %v2810, %v2806
        %v2815 = vadd.s32 %v2811, %v2813
        %v2816 = vadd.s32 %v2815, %v2805
        %v2817 = vadd.s32 %v2816, %v2807
        %v2818 = vand.u32 %v2795, 65535
        %v2819 = vshrl.u32 %v2795, 16
        %v2820 = vand.u32 %v2790, 65535
        %v2821 = vshrl.u32 %v2790, 16
        %v2822 = vmul.u32 %v2818, %v2820
        %v2823 = vmul.u32 %v2818, %v2821
        %v2824 = vmul.u32 %v2819, %v2820
        %v2825 = vmul.u32 %v2819, %v2821
        %v2826 = vshll.u32 %v2823, 16
        %v2827 = vshrl.u32 %v2823, 16
        %v2828 = vshll.u32 %v2824, 16
        %v2829 = vshrl.u32 %v2824, 16
        %vm2830 = vc.u32 %v2822, %v2826
        %v2831 = vsel %vm2830, 1, 0
        %v2832 = vadd.s32 %v2822, %v2826
        %v2833 = vadd.s32 %v2825, %v2831
        %vm2834 = vc.u32 %v2832, %v2828
        %v2835 = vsel %vm2834, 1, 0
        %v2836 = vadd.s32 %v2832, %v2828
        %v2837 = vadd.s32 %v2833, %v2835
        %v2838 = vadd.s32 %v2837, %v2827
        %v2839 = vadd.s32 %v2838, %v2829
        %v2840 = vmul.u32 %v2795, %v2786
        %v2841 = vadd.s32 %v2817, %v2836
        %vm2842 = vc.u32 %v2817, %v2836
        %v2843 = vadd.s32 %v2839, 1
        %v2844 = vsel %vm2842, %v2843, %v2839
        %v2845 = vadd.s32 %v2840, %v2844
        %v2846 = vadd.s32 %v2845, 536870912
        %v2847 = vshrl.u32 %v2846, 30
        %v2848 = vshll.u32 %v2847, 30
        %v2849 = vsub.s32 %v2845, %v2848
        %vm2850 = vcmp.lt.s32.totalorder %v2849, 0
        %v2851 = vsub.s32 0, %v2849
        %v2852 = vsel %vm2850, %v2851, %v2849
        %v2853 = vclz %v2852
        %v2854 = vsub.s32 %v2853, 2
        %vm2855 = vcmp.gt.s32.totalorder 0, %v2854
        %v2856 = vsel %vm2855, 0, %v2854
        %v2857 = vsub.s32 32, %v2856
        %v2858 = vshll.u32 %v2849, %v2856
        %v2859 = vshrl.u32 %v2841, %v2857
        %v2860 = vor.u32 %v2858, %v2859
        %v2861 = vsub.s32 4294967266, %v2856
        %v2862 = vadd.s32 %v2861, 127
        %v2863 = vshll.u32 %v2862, 23
        %v2864 = vor.u32 4788187, %v2863
        %v2865 = vand.u32 2147483647, %v2864
        %v2867 = vcvt.s32.f32 %v2860
        %v2868 = vmul.f32 %v2867, %v2865
        %v2869 = vxor.u32 %v2868, 2147483648
        %v2870 = vsel %vm2749, %v2869, %v2868
        %v2871 = vsub.s32 4, %v2847
        %v2872 = vsel %vm2749, %v2871, %v2847
        %v2873 = vsel %vm2748, %v219, %v2870
        %v2874 = vsel %vm2748, 0, %v2872
        %v2875 = vmul.f32 %v2873, %v2873
        %v2876 = vmul.f32 %v2875, -0.001358992
        %v2877 = vadd.f32 %v2876, 0.041655596
        %v2878 = vmul.f32 %v2875, %v2877
        %v2879 = vadd.f32 %v2878, -0.4999988
        %v2880 = vmul.f32 %v2875, %v2879
        %v2881 = vadd.f32 1.0, %v2880
        %v2882 = vmul.f32 %v2873, %v2873
        %v2883 = vmul.f32 %v2882, -0.00019511016
        %v2884 = vadd.f32 %v2883, 0.008332121
        %v2885 = vmul.f32 %v2882, %v2884
        %v2886 = vadd.f32 %v2885, -0.16666654
        %v2887 = vmul.f32 %v2882, %v2886
        %v2888 = vadd.f32 %v2887, 1.0
        %v2889 = vmul.f32 %v2888, %v2873
        %vm2890 = vweird.f32 %v219
        %v2891 = vadd.s32 %v2874, 3
        %v2892 = vand.u32 %v2891, 3
        %vm2893 = vcmp.lt.s32.totalorder %v2892, 2
        %vm2894 = vcmp.eq.s32.totalorder %v2892, 0
        %v2895 = vxor.u32 %v2889, 2147483648
        %v2896 = vsel %vm2894, %v2881, %v2895
        %vm2897 = vcmp.eq.s32.totalorder %v2892, 2
        %v2898 = vxor.u32 %v2881, 2147483648
        %v2899 = vsel %vm2897, %v2898, %v2889
        %v2900 = vsel %vm2893, %v2896, %v2899
        %v2901 = vsel %vm2890, nan, %v2900
        %v2902 = vand.u32 2147483647, %v220
        %vm2903 = vcmp.le.f32.partialorder %v2902, 0.7853982
        %vm2904 = vcmp.lt.s32.totalorder %v220, 0
        %v2905 = vand.u32 %v220, 2139095040
        %v2906 = vshrl.u32 %v2905, 23
        %v2907 = vsub.s32 %v2906, 127
        %v2908 = vand.u32 2147483647, %v220
        %v2909 = vand.u32 %v2908, 8388607
        %v2910 = vor.u32 %v2909, 8388608
        %v2911 = vsub.s32 0, %v2910
        %v2912 = vadd.s32 %v2907, 1
        %vm2913 = vcmp.gt.s32.totalorder %v2912, 0
        %v2914 = vsel %vm2913, %v2912, 0
        %v2915 = vshrl.u32 %v2914, 5
        %v2916 = vand.u32 %v2914, 31
        %v2917 = vsub.s32 32, %v2916
        %v2918 = vshrl.u32 683565275, %v2917
        %v2919 = vshll.u32 683565275, %v2916
        %v2920 = vshrl.u32 2475754826, %v2917
        %v2921 = vor.u32 %v2919, %v2920
        %v2922 = vshll.u32 2475754826, %v2916
        %v2923 = vshrl.u32 2131351028, %v2917
        %v2924 = vor.u32 %v2922, %v2923
        %v2925 = vshll.u32 2131351028, %v2916
        %v2926 = vshrl.u32 2102212464, %v2917
        %v2927 = vor.u32 %v2925, %v2926
        %v2928 = vshll.u32 2102212464, %v2916
        %v2929 = vshrl.u32 920167782, %v2917
        %v2930 = vor.u32 %v2928, %v2929
        %v2931 = vshll.u32 920167782, %v2916
        %v2932 = vshrl.u32 1326507024, %v2917
        %v2933 = vor.u32 %v2931, %v2932
        %vm2934 = vcmp.lt.s32.totalorder %v2915, 1
        %vm2935 = vcmp.lt.s32.totalorder %v2915, 2
        %vm2936 = vcmp.lt.s32.totalorder %v2915, 3
        %vm2937 = vcmp.lt.s32.totalorder %v2915, 4
        %v2938 = vsel %vm2934, %v2918, %v2921
        %v2939 = vsel %vm2937, %v2927, 2102212464
        %v2940 = vsel %vm2936, %v2924, %v2939
        %v2941 = vsel %vm2935, %v2938, %v2940
        %v2942 = vsel %vm2934, %v2921, %v2924
        %v2943 = vsel %vm2937, %v2930, 920167782
        %v2944 = vsel %vm2936, %v2927, %v2943
        %v2945 = vsel %vm2935, %v2942, %v2944
        %v2946 = vsel %vm2934, %v2924, %v2927
        %v2947 = vsel %vm2937, %v2933, 1326507024
        %v2948 = vsel %vm2936, %v2930, %v2947
        %v2949 = vsel %vm2935, %v2946, %v2948
        %v2950 = vshll.u32 %v2910, 8
        %v2951 = vand.u32 %v2950, 65535
        %v2952 = vshrl.u32 %v2950, 16
        %v2953 = vand.u32 %v2949, 65535
        %v2954 = vshrl.u32 %v2949, 16
        %v2955 = vmul.u32 %v2951, %v2953
        %v2956 = vmul.u32 %v2951, %v2954
        %v2957 = vmul.u32 %v2952, %v2953
        %v2958 = vmul.u32 %v2952, %v2954
        %v2959 = vshll.u32 %v2956, 16
        %v2960 = vshrl.u32 %v2956, 16
        %v2961 = vshll.u32 %v2957, 16
        %v2962 = vshrl.u32 %v2957, 16
        %vm2963 = vc.u32 %v2955, %v2959
        %v2964 = vsel %vm2963, 1, 0
        %v2965 = vadd.s32 %v2955, %v2959
        %v2966 = vadd.s32 %v2958, %v2964
        %vm2967 = vc.u32 %v2965, %v2961
        %v2968 = vsel %vm2967, 1, 0
        %v2969 = vadd.s32 %v2965, %v2961
        %v2970 = vadd.s32 %v2966, %v2968
        %v2971 = vadd.s32 %v2970, %v2960
        %v2972 = vadd.s32 %v2971, %v2962
        %v2973 = vand.u32 %v2950, 65535
        %v2974 = vshrl.u32 %v2950, 16
        %v2975 = vand.u32 %v2945, 65535
        %v2976 = vshrl.u32 %v2945, 16
        %v2977 = vmul.u32 %v2973, %v2975
        %v2978 = vmul.u32 %v2973, %v2976
        %v2979 = vmul.u32 %v2974, %v2975
        %v2980 = vmul.u32 %v2974, %v2976
        %v2981 = vshll.u32 %v2978, 16
        %v2982 = vshrl.u32 %v2978, 16
        %v2983 = vshll.u32 %v2979, 16
        %v2984 = vshrl.u32 %v2979, 16
        %vm2985 = vc.u32 %v2977, %v2981
        %v2986 = vsel %vm2985, 1, 0
        %v2987 = vadd.s32 %v2977, %v2981
        %v2988 = vadd.s32 %v2980, %v2986
        %vm2989 = vc.u32 %v2987, %v2983
        %v2990 = vsel %vm2989, 1, 0
        %v2991 = vadd.s32 %v2987, %v2983
        %v2992 = vadd.s32 %v2988, %v2990
        %v2993 = vadd.s32 %v2992, %v2982
        %v2994 = vadd.s32 %v2993, %v2984
        %v2995 = vmul.u32 %v2950, %v2941
        %v2996 = vadd.s32 %v2972, %v2991
        %vm2997 = vc.u32 %v2972, %v2991
        %v2998 = vadd.s32 %v2994, 1
        %v2999 = vsel %vm2997, %v2998, %v2994
        %v3000 = vadd.s32 %v2995, %v2999
        %v3001 = vadd.s32 %v3000, 536870912
        %v3002 = vshrl.u32 %v3001, 30
        %v3003 = vshll.u32 %v3002, 30
        %v3004 = vsub.s32 %v3000, %v3003
        %vm3005 = vcmp.lt.s32.totalorder %v3004, 0
        %v3006 = vsub.s32 0, %v3004
        %v3007 = vsel %vm3005, %v3006, %v3004
        %v3008 = vclz %v3007
        %v3009 = vsub.s32 %v3008, 2
        %vm3010 = vcmp.gt.s32.totalorder 0, %v3009
        %v3011 = vsel %vm3010, 0, %v3009
        %v3012 = vsub.s32 32, %v3011
        %v3013 = vshll.u32 %v3004, %v3011
        %v3014 = vshrl.u32 %v2996, %v3012
        %v3015 = vor.u32 %v3013, %v3014
        %v3016 = vsub.s32 4294967266, %v3011
        %v3017 = vadd.s32 %v3016, 127
        %v3018 = vshll.u32 %v3017, 23
        %v3019 = vor.u32 4788187, %v3018
        %v3020 = vand.u32 2147483647, %v3019
        %v3022 = vcvt.s32.f32 %v3015
        %v3023 = vmul.f32 %v3022, %v3020
        %v3024 = vxor.u32 %v3023, 2147483648
        %v3025 = vsel %vm2904, %v3024, %v3023
        %v3026 = vsub.s32 4, %v3002
        %v3027 = vsel %vm2904, %v3026, %v3002
        %v3028 = vsel %vm2903, %v220, %v3025
        %v3029 = vsel %vm2903, 0, %v3027
        %v3030 = vmul.f32 %v3028, %v3028
        %v3031 = vmul.f32 %v3030, -0.001358992
        %v3032 = vadd.f32 %v3031, 0.041655596
        %v3033 = vmul.f32 %v3030, %v3032
        %v3034 = vadd.f32 %v3033, -0.4999988
        %v3035 = vmul.f32 %v3030, %v3034
        %v3036 = vadd.f32 1.0, %v3035
        %v3037 = vmul.f32 %v3028, %v3028
        %v3038 = vmul.f32 %v3037, -0.00019511016
        %v3039 = vadd.f32 %v3038, 0.008332121
        %v3040 = vmul.f32 %v3037, %v3039
        %v3041 = vadd.f32 %v3040, -0.16666654
        %v3042 = vmul.f32 %v3037, %v3041
        %v3043 = vadd.f32 %v3042, 1.0
        %v3044 = vmul.f32 %v3043, %v3028
        %vm3045 = vweird.f32 %v220
        %v3046 = vadd.s32 %v3029, 3
        %v3047 = vand.u32 %v3046, 3
        %vm3048 = vcmp.lt.s32.totalorder %v3047, 2
        %vm3049 = vcmp.eq.s32.totalorder %v3047, 0
        %v3050 = vxor.u32 %v3044, 2147483648
        %v3051 = vsel %vm3049, %v3036, %v3050
        %vm3052 = vcmp.eq.s32.totalorder %v3047, 2
        %v3053 = vxor.u32 %v3036, 2147483648
        %v3054 = vsel %vm3052, %v3053, %v3044
        %v3055 = vsel %vm3048, %v3051, %v3054
        %v3056 = vsel %vm3045, nan, %v3055
        %v3057 = vand.u32 2147483647, %v221
        %vm3058 = vcmp.le.f32.partialorder %v3057, 0.7853982
        %vm3059 = vcmp.lt.s32.totalorder %v221, 0
        %v3060 = vand.u32 %v221, 2139095040
        %v3061 = vshrl.u32 %v3060, 23
        %v3062 = vsub.s32 %v3061, 127
        %v3063 = vand.u32 2147483647, %v221
        %v3064 = vand.u32 %v3063, 8388607
        %v3065 = vor.u32 %v3064, 8388608
        %v3066 = vsub.s32 0, %v3065
        %v3067 = vadd.s32 %v3062, 1
        %vm3068 = vcmp.gt.s32.totalorder %v3067, 0
        %v3069 = vsel %vm3068, %v3067, 0
        %v3070 = vshrl.u32 %v3069, 5
        %v3071 = vand.u32 %v3069, 31
        %v3072 = vsub.s32 32, %v3071
        %v3073 = vshrl.u32 683565275, %v3072
        %v3074 = vshll.u32 683565275, %v3071
        %v3075 = vshrl.u32 2475754826, %v3072
        %v3076 = vor.u32 %v3074, %v3075
        %v3077 = vshll.u32 2475754826, %v3071
        %v3078 = vshrl.u32 2131351028, %v3072
        %v3079 = vor.u32 %v3077, %v3078
        %v3080 = vshll.u32 2131351028, %v3071
        %v3081 = vshrl.u32 2102212464, %v3072
        %v3082 = vor.u32 %v3080, %v3081
        %v3083 = vshll.u32 2102212464, %v3071
        %v3084 = vshrl.u32 920167782, %v3072
        %v3085 = vor.u32 %v3083, %v3084
        %v3086 = vshll.u32 920167782, %v3071
        %v3087 = vshrl.u32 1326507024, %v3072
        %v3088 = vor.u32 %v3086, %v3087
        %vm3089 = vcmp.lt.s32.totalorder %v3070, 1
        %vm3090 = vcmp.lt.s32.totalorder %v3070, 2
        %vm3091 = vcmp.lt.s32.totalorder %v3070, 3
        %vm3092 = vcmp.lt.s32.totalorder %v3070, 4
        %v3093 = vsel %vm3089, %v3073, %v3076
        %v3094 = vsel %vm3092, %v3082, 2102212464
        %v3095 = vsel %vm3091, %v3079, %v3094
        %v3096 = vsel %vm3090, %v3093, %v3095
        %v3097 = vsel %vm3089, %v3076, %v3079
        %v3098 = vsel %vm3092, %v3085, 920167782
        %v3099 = vsel %vm3091, %v3082, %v3098
        %v3100 = vsel %vm3090, %v3097, %v3099
        %v3101 = vsel %vm3089, %v3079, %v3082
        %v3102 = vsel %vm3092, %v3088, 1326507024
        %v3103 = vsel %vm3091, %v3085, %v3102
        %v3104 = vsel %vm3090, %v3101, %v3103
        %v3105 = vshll.u32 %v3065, 8
        %v3106 = vand.u32 %v3105, 65535
        %v3107 = vshrl.u32 %v3105, 16
        %v3108 = vand.u32 %v3104, 65535
        %v3109 = vshrl.u32 %v3104, 16
        %v3110 = vmul.u32 %v3106, %v3108
        %v3111 = vmul.u32 %v3106, %v3109
        %v3112 = vmul.u32 %v3107, %v3108
        %v3113 = vmul.u32 %v3107, %v3109
        %v3114 = vshll.u32 %v3111, 16
        %v3115 = vshrl.u32 %v3111, 16
        %v3116 = vshll.u32 %v3112, 16
        %v3117 = vshrl.u32 %v3112, 16
        %vm3118 = vc.u32 %v3110, %v3114
        %v3119 = vsel %vm3118, 1, 0
        %v3120 = vadd.s32 %v3110, %v3114
        %v3121 = vadd.s32 %v3113, %v3119
        %vm3122 = vc.u32 %v3120, %v3116
        %v3123 = vsel %vm3122, 1, 0
        %v3124 = vadd.s32 %v3120, %v3116
        %v3125 = vadd.s32 %v3121, %v3123
        %v3126 = vadd.s32 %v3125, %v3115
        %v3127 = vadd.s32 %v3126, %v3117
        %v3128 = vand.u32 %v3105, 65535
        %v3129 = vshrl.u32 %v3105, 16
        %v3130 = vand.u32 %v3100, 65535
        %v3131 = vshrl.u32 %v3100, 16
        %v3132 = vmul.u32 %v3128, %v3130
        %v3133 = vmul.u32 %v3128, %v3131
        %v3134 = vmul.u32 %v3129, %v3130
        %v3135 = vmul.u32 %v3129, %v3131
        %v3136 = vshll.u32 %v3133, 16
        %v3137 = vshrl.u32 %v3133, 16
        %v3138 = vshll.u32 %v3134, 16
        %v3139 = vshrl.u32 %v3134, 16
        %vm3140 = vc.u32 %v3132, %v3136
        %v3141 = vsel %vm3140, 1, 0
        %v3142 = vadd.s32 %v3132, %v3136
        %v3143 = vadd.s32 %v3135, %v3141
        %vm3144 = vc.u32 %v3142, %v3138
        %v3145 = vsel %vm3144, 1, 0
        %v3146 = vadd.s32 %v3142, %v3138
        %v3147 = vadd.s32 %v3143, %v3145
        %v3148 = vadd.s32 %v3147, %v3137
        %v3149 = vadd.s32 %v3148, %v3139
        %v3150 = vmul.u32 %v3105, %v3096
        %v3151 = vadd.s32 %v3127, %v3146
        %vm3152 = vc.u32 %v3127, %v3146
        %v3153 = vadd.s32 %v3149, 1
        %v3154 = vsel %vm3152, %v3153, %v3149
        %v3155 = vadd.s32 %v3150, %v3154
        %v3156 = vadd.s32 %v3155, 536870912
        %v3157 = vshrl.u32 %v3156, 30
        %v3158 = vshll.u32 %v3157, 30
        %v3159 = vsub.s32 %v3155, %v3158
        %vm3160 = vcmp.lt.s32.totalorder %v3159, 0
        %v3161 = vsub.s32 0, %v3159
        %v3162 = vsel %vm3160, %v3161, %v3159
        %v3163 = vclz %v3162
        %v3164 = vsub.s32 %v3163, 2
        %vm3165 = vcmp.gt.s32.totalorder 0, %v3164
        %v3166 = vsel %vm3165, 0, %v3164
        %v3167 = vsub.s32 32, %v3166
        %v3168 = vshll.u32 %v3159, %v3166
        %v3169 = vshrl.u32 %v3151, %v3167
        %v3170 = vor.u32 %v3168, %v3169
        %v3171 = vsub.s32 4294967266, %v3166
        %v3172 = vadd.s32 %v3171, 127
        %v3173 = vshll.u32 %v3172, 23
        %v3174 = vor.u32 4788187, %v3173
        %v3175 = vand.u32 2147483647, %v3174
        %v3177 = vcvt.s32.f32 %v3170
        %v3178 = vmul.f32 %v3177, %v3175
        %v3179 = vxor.u32 %v3178, 2147483648
        %v3180 = vsel %vm3059, %v3179, %v3178
        %v3181 = vsub.s32 4, %v3157
        %v3182 = vsel %vm3059, %v3181, %v3157
        %v3183 = vsel %vm3058, %v221, %v3180
        %v3184 = vsel %vm3058, 0, %v3182
        %v3185 = vmul.f32 %v3183, %v3183
        %v3186 = vmul.f32 %v3185, -0.001358992
        %v3187 = vadd.f32 %v3186, 0.041655596
        %v3188 = vmul.f32 %v3185, %v3187
        %v3189 = vadd.f32 %v3188, -0.4999988
        %v3190 = vmul.f32 %v3185, %v3189
        %v3191 = vadd.f32 1.0, %v3190
        %v3192 = vmul.f32 %v3183, %v3183
        %v3193 = vmul.f32 %v3192, -0.00019511016
        %v3194 = vadd.f32 %v3193, 0.008332121
        %v3195 = vmul.f32 %v3192, %v3194
        %v3196 = vadd.f32 %v3195, -0.16666654
        %v3197 = vmul.f32 %v3192, %v3196
        %v3198 = vadd.f32 %v3197, 1.0
        %v3199 = vmul.f32 %v3198, %v3183
        %vm3200 = vweird.f32 %v221
        %v3201 = vadd.s32 %v3184, 3
        %v3202 = vand.u32 %v3201, 3
        %vm3203 = vcmp.lt.s32.totalorder %v3202, 2
        %vm3204 = vcmp.eq.s32.totalorder %v3202, 0
        %v3205 = vxor.u32 %v3199, 2147483648
        %v3206 = vsel %vm3204, %v3191, %v3205
        %vm3207 = vcmp.eq.s32.totalorder %v3202, 2
        %v3208 = vxor.u32 %v3191, 2147483648
        %v3209 = vsel %vm3207, %v3208, %v3199
        %v3210 = vsel %vm3203, %v3206, %v3209
        %v3211 = vsel %vm3200, nan, %v3210
        %v3212 = vand.u32 2147483647, %v222
        %vm3213 = vcmp.le.f32.partialorder %v3212, 0.7853982
        %vm3214 = vcmp.lt.s32.totalorder %v222, 0
        %v3215 = vand.u32 %v222, 2139095040
        %v3216 = vshrl.u32 %v3215, 23
        %v3217 = vsub.s32 %v3216, 127
        %v3218 = vand.u32 2147483647, %v222
        %v3219 = vand.u32 %v3218, 8388607
        %v3220 = vor.u32 %v3219, 8388608
        %v3221 = vsub.s32 0, %v3220
        %v3222 = vadd.s32 %v3217, 1
        %vm3223 = vcmp.gt.s32.totalorder %v3222, 0
        %v3224 = vsel %vm3223, %v3222, 0
        %v3225 = vshrl.u32 %v3224, 5
        %v3226 = vand.u32 %v3224, 31
        %v3227 = vsub.s32 32, %v3226
        %v3228 = vshrl.u32 683565275, %v3227
        %v3229 = vshll.u32 683565275, %v3226
        %v3230 = vshrl.u32 2475754826, %v3227
        %v3231 = vor.u32 %v3229, %v3230
        %v3232 = vshll.u32 2475754826, %v3226
        %v3233 = vshrl.u32 2131351028, %v3227
        %v3234 = vor.u32 %v3232, %v3233
        %v3235 = vshll.u32 2131351028, %v3226
        %v3236 = vshrl.u32 2102212464, %v3227
        %v3237 = vor.u32 %v3235, %v3236
        %v3238 = vshll.u32 2102212464, %v3226
        %v3239 = vshrl.u32 920167782, %v3227
        %v3240 = vor.u32 %v3238, %v3239
        %v3241 = vshll.u32 920167782, %v3226
        %v3242 = vshrl.u32 1326507024, %v3227
        %v3243 = vor.u32 %v3241, %v3242
        %vm3244 = vcmp.lt.s32.totalorder %v3225, 1
        %vm3245 = vcmp.lt.s32.totalorder %v3225, 2
        %vm3246 = vcmp.lt.s32.totalorder %v3225, 3
        %vm3247 = vcmp.lt.s32.totalorder %v3225, 4
        %v3248 = vsel %vm3244, %v3228, %v3231
        %v3249 = vsel %vm3247, %v3237, 2102212464
        %v3250 = vsel %vm3246, %v3234, %v3249
        %v3251 = vsel %vm3245, %v3248, %v3250
        %v3252 = vsel %vm3244, %v3231, %v3234
        %v3253 = vsel %vm3247, %v3240, 920167782
        %v3254 = vsel %vm3246, %v3237, %v3253
        %v3255 = vsel %vm3245, %v3252, %v3254
        %v3256 = vsel %vm3244, %v3234, %v3237
        %v3257 = vsel %vm3247, %v3243, 1326507024
        %v3258 = vsel %vm3246, %v3240, %v3257
        %v3259 = vsel %vm3245, %v3256, %v3258
        %v3260 = vshll.u32 %v3220, 8
        %v3261 = vand.u32 %v3260, 65535
        %v3262 = vshrl.u32 %v3260, 16
        %v3263 = vand.u32 %v3259, 65535
        %v3264 = vshrl.u32 %v3259, 16
        %v3265 = vmul.u32 %v3261, %v3263
        %v3266 = vmul.u32 %v3261, %v3264
        %v3267 = vmul.u32 %v3262, %v3263
        %v3268 = vmul.u32 %v3262, %v3264
        %v3269 = vshll.u32 %v3266, 16
        %v3270 = vshrl.u32 %v3266, 16
        %v3271 = vshll.u32 %v3267, 16
        %v3272 = vshrl.u32 %v3267, 16
        %vm3273 = vc.u32 %v3265, %v3269
        %v3274 = vsel %vm3273, 1, 0
        %v3275 = vadd.s32 %v3265, %v3269
        %v3276 = vadd.s32 %v3268, %v3274
        %vm3277 = vc.u32 %v3275, %v3271
        %v3278 = vsel %vm3277, 1, 0
        %v3279 = vadd.s32 %v3275, %v3271
        %v3280 = vadd.s32 %v3276, %v3278
        %v3281 = vadd.s32 %v3280, %v3270
        %v3282 = vadd.s32 %v3281, %v3272
        %v3283 = vand.u32 %v3260, 65535
        %v3284 = vshrl.u32 %v3260, 16
        %v3285 = vand.u32 %v3255, 65535
        %v3286 = vshrl.u32 %v3255, 16
        %v3287 = vmul.u32 %v3283, %v3285
        %v3288 = vmul.u32 %v3283, %v3286
        %v3289 = vmul.u32 %v3284, %v3285
        %v3290 = vmul.u32 %v3284, %v3286
        %v3291 = vshll.u32 %v3288, 16
        %v3292 = vshrl.u32 %v3288, 16
        %v3293 = vshll.u32 %v3289, 16
        %v3294 = vshrl.u32 %v3289, 16
        %vm3295 = vc.u32 %v3287, %v3291
        %v3296 = vsel %vm3295, 1, 0
        %v3297 = vadd.s32 %v3287, %v3291
        %v3298 = vadd.s32 %v3290, %v3296
        %vm3299 = vc.u32 %v3297, %v3293
        %v3300 = vsel %vm3299, 1, 0
        %v3301 = vadd.s32 %v3297, %v3293
        %v3302 = vadd.s32 %v3298, %v3300
        %v3303 = vadd.s32 %v3302, %v3292
        %v3304 = vadd.s32 %v3303, %v3294
        %v3305 = vmul.u32 %v3260, %v3251
        %v3306 = vadd.s32 %v3282, %v3301
        %vm3307 = vc.u32 %v3282, %v3301
        %v3308 = vadd.s32 %v3304, 1
        %v3309 = vsel %vm3307, %v3308, %v3304
        %v3310 = vadd.s32 %v3305, %v3309
        %v3311 = vadd.s32 %v3310, 536870912
        %v3312 = vshrl.u32 %v3311, 30
        %v3313 = vshll.u32 %v3312, 30
        %v3314 = vsub.s32 %v3310, %v3313
        %vm3315 = vcmp.lt.s32.totalorder %v3314, 0
        %v3316 = vsub.s32 0, %v3314
        %v3317 = vsel %vm3315, %v3316, %v3314
        %v3318 = vclz %v3317
        %v3319 = vsub.s32 %v3318, 2
        %vm3320 = vcmp.gt.s32.totalorder 0, %v3319
        %v3321 = vsel %vm3320, 0, %v3319
        %v3322 = vsub.s32 32, %v3321
        %v3323 = vshll.u32 %v3314, %v3321
        %v3324 = vshrl.u32 %v3306, %v3322
        %v3325 = vor.u32 %v3323, %v3324
        %v3326 = vsub.s32 4294967266, %v3321
        %v3327 = vadd.s32 %v3326, 127
        %v3328 = vshll.u32 %v3327, 23
        %v3329 = vor.u32 4788187, %v3328
        %v3330 = vand.u32 2147483647, %v3329
        %v3332 = vcvt.s32.f32 %v3325
        %v3333 = vmul.f32 %v3332, %v3330
        %v3334 = vxor.u32 %v3333, 2147483648
        %v3335 = vsel %vm3214, %v3334, %v3333
        %v3336 = vsub.s32 4, %v3312
        %v3337 = vsel %vm3214, %v3336, %v3312
        %v3338 = vsel %vm3213, %v222, %v3335
        %v3339 = vsel %vm3213, 0, %v3337
        %v3340 = vmul.f32 %v3338, %v3338
        %v3341 = vmul.f32 %v3340, -0.001358992
        %v3342 = vadd.f32 %v3341, 0.041655596
        %v3343 = vmul.f32 %v3340, %v3342
        %v3344 = vadd.f32 %v3343, -0.4999988
        %v3345 = vmul.f32 %v3340, %v3344
        %v3346 = vadd.f32 1.0, %v3345
        %v3347 = vmul.f32 %v3338, %v3338
        %v3348 = vmul.f32 %v3347, -0.00019511016
        %v3349 = vadd.f32 %v3348, 0.008332121
        %v3350 = vmul.f32 %v3347, %v3349
        %v3351 = vadd.f32 %v3350, -0.16666654
        %v3352 = vmul.f32 %v3347, %v3351
        %v3353 = vadd.f32 %v3352, 1.0
        %v3354 = vmul.f32 %v3353, %v3338
        %vm3355 = vweird.f32 %v222
        %v3356 = vadd.s32 %v3339, 3
        %v3357 = vand.u32 %v3356, 3
        %vm3358 = vcmp.lt.s32.totalorder %v3357, 2
        %vm3359 = vcmp.eq.s32.totalorder %v3357, 0
        %v3360 = vxor.u32 %v3354, 2147483648
        %v3361 = vsel %vm3359, %v3346, %v3360
        %vm3362 = vcmp.eq.s32.totalorder %v3357, 2
        %v3363 = vxor.u32 %v3346, 2147483648
        %v3364 = vsel %vm3362, %v3363, %v3354
        %v3365 = vsel %vm3358, %v3361, %v3364
        %v3366 = vsel %vm3355, nan, %v3365
        %v3367 = vand.u32 2147483647, %v223
        %vm3368 = vcmp.le.f32.partialorder %v3367, 0.7853982
        %vm3369 = vcmp.lt.s32.totalorder %v223, 0
        %v3370 = vand.u32 %v223, 2139095040
        %v3371 = vshrl.u32 %v3370, 23
        %v3372 = vsub.s32 %v3371, 127
        %v3373 = vand.u32 2147483647, %v223
        %v3374 = vand.u32 %v3373, 8388607
        %v3375 = vor.u32 %v3374, 8388608
        %v3376 = vsub.s32 0, %v3375
        %v3377 = vadd.s32 %v3372, 1
        %vm3378 = vcmp.gt.s32.totalorder %v3377, 0
        %v3379 = vsel %vm3378, %v3377, 0
        %v3380 = vshrl.u32 %v3379, 5
        %v3381 = vand.u32 %v3379, 31
        %v3382 = vsub.s32 32, %v3381
        %v3383 = vshrl.u32 683565275, %v3382
        %v3384 = vshll.u32 683565275, %v3381
        %v3385 = vshrl.u32 2475754826, %v3382
        %v3386 = vor.u32 %v3384, %v3385
        %v3387 = vshll.u32 2475754826, %v3381
        %v3388 = vshrl.u32 2131351028, %v3382
        %v3389 = vor.u32 %v3387, %v3388
        %v3390 = vshll.u32 2131351028, %v3381
        %v3391 = vshrl.u32 2102212464, %v3382
        %v3392 = vor.u32 %v3390, %v3391
        %v3393 = vshll.u32 2102212464, %v3381
        %v3394 = vshrl.u32 920167782, %v3382
        %v3395 = vor.u32 %v3393, %v3394
        %v3396 = vshll.u32 920167782, %v3381
        %v3397 = vshrl.u32 1326507024, %v3382
        %v3398 = vor.u32 %v3396, %v3397
        %vm3399 = vcmp.lt.s32.totalorder %v3380, 1
        %vm3400 = vcmp.lt.s32.totalorder %v3380, 2
        %vm3401 = vcmp.lt.s32.totalorder %v3380, 3
        %vm3402 = vcmp.lt.s32.totalorder %v3380, 4
        %v3403 = vsel %vm3399, %v3383, %v3386
        %v3404 = vsel %vm3402, %v3392, 2102212464
        %v3405 = vsel %vm3401, %v3389, %v3404
        %v3406 = vsel %vm3400, %v3403, %v3405
        %v3407 = vsel %vm3399, %v3386, %v3389
        %v3408 = vsel %vm3402, %v3395, 920167782
        %v3409 = vsel %vm3401, %v3392, %v3408
        %v3410 = vsel %vm3400, %v3407, %v3409
        %v3411 = vsel %vm3399, %v3389, %v3392
        %v3412 = vsel %vm3402, %v3398, 1326507024
        %v3413 = vsel %vm3401, %v3395, %v3412
        %v3414 = vsel %vm3400, %v3411, %v3413
        %v3415 = vshll.u32 %v3375, 8
        %v3416 = vand.u32 %v3415, 65535
        %v3417 = vshrl.u32 %v3415, 16
        %v3418 = vand.u32 %v3414, 65535
        %v3419 = vshrl.u32 %v3414, 16
        %v3420 = vmul.u32 %v3416, %v3418
        %v3421 = vmul.u32 %v3416, %v3419
        %v3422 = vmul.u32 %v3417, %v3418
        %v3423 = vmul.u32 %v3417, %v3419
        %v3424 = vshll.u32 %v3421, 16
        %v3425 = vshrl.u32 %v3421, 16
        %v3426 = vshll.u32 %v3422, 16
        %v3427 = vshrl.u32 %v3422, 16
        %vm3428 = vc.u32 %v3420, %v3424
        %v3429 = vsel %vm3428, 1, 0
        %v3430 = vadd.s32 %v3420, %v3424
        %v3431 = vadd.s32 %v3423, %v3429
        %vm3432 = vc.u32 %v3430, %v3426
        %v3433 = vsel %vm3432, 1, 0
        %v3434 = vadd.s32 %v3430, %v3426
        %v3435 = vadd.s32 %v3431, %v3433
        %v3436 = vadd.s32 %v3435, %v3425
        %v3437 = vadd.s32 %v3436, %v3427
        %v3438 = vand.u32 %v3415, 65535
        %v3439 = vshrl.u32 %v3415, 16
        %v3440 = vand.u32 %v3410, 65535
        %v3441 = vshrl.u32 %v3410, 16
        %v3442 = vmul.u32 %v3438, %v3440
        %v3443 = vmul.u32 %v3438, %v3441
        %v3444 = vmul.u32 %v3439, %v3440
        %v3445 = vmul.u32 %v3439, %v3441
        %v3446 = vshll.u32 %v3443, 16
        %v3447 = vshrl.u32 %v3443, 16
        %v3448 = vshll.u32 %v3444, 16
        %v3449 = vshrl.u32 %v3444, 16
        %vm3450 = vc.u32 %v3442, %v3446
        %v3451 = vsel %vm3450, 1, 0
        %v3452 = vadd.s32 %v3442, %v3446
        %v3453 = vadd.s32 %v3445, %v3451
        %vm3454 = vc.u32 %v3452, %v3448
        %v3455 = vsel %vm3454, 1, 0
        %v3456 = vadd.s32 %v3452, %v3448
        %v3457 = vadd.s32 %v3453, %v3455
        %v3458 = vadd.s32 %v3457, %v3447
        %v3459 = vadd.s32 %v3458, %v3449
        %v3460 = vmul.u32 %v3415, %v3406
        %v3461 = vadd.s32 %v3437, %v3456
        %vm3462 = vc.u32 %v3437, %v3456
        %v3463 = vadd.s32 %v3459, 1
        %v3464 = vsel %vm3462, %v3463, %v3459
        %v3465 = vadd.s32 %v3460, %v3464
        %v3466 = vadd.s32 %v3465, 536870912
        %v3467 = vshrl.u32 %v3466, 30
        %v3468 = vshll.u32 %v3467, 30
        %v3469 = vsub.s32 %v3465, %v3468
        %vm3470 = vcmp.lt.s32.totalorder %v3469, 0
        %v3471 = vsub.s32 0, %v3469
        %v3472 = vsel %vm3470, %v3471, %v3469
        %v3473 = vclz %v3472
        %v3474 = vsub.s32 %v3473, 2
        %vm3475 = vcmp.gt.s32.totalorder 0, %v3474
        %v3476 = vsel %vm3475, 0, %v3474
        %v3477 = vsub.s32 32, %v3476
        %v3478 = vshll.u32 %v3469, %v3476
        %v3479 = vshrl.u32 %v3461, %v3477
        %v3480 = vor.u32 %v3478, %v3479
        %v3481 = vsub.s32 4294967266, %v3476
        %v3482 = vadd.s32 %v3481, 127
        %v3483 = vshll.u32 %v3482, 23
        %v3484 = vor.u32 4788187, %v3483
        %v3485 = vand.u32 2147483647, %v3484
        %v3487 = vcvt.s32.f32 %v3480
        %v3488 = vmul.f32 %v3487, %v3485
        %v3489 = vxor.u32 %v3488, 2147483648
        %v3490 = vsel %vm3369, %v3489, %v3488
        %v3491 = vsub.s32 4, %v3467
        %v3492 = vsel %vm3369, %v3491, %v3467
        %v3493 = vsel %vm3368, %v223, %v3490
        %v3494 = vsel %vm3368, 0, %v3492
        %v3495 = vmul.f32 %v3493, %v3493
        %v3496 = vmul.f32 %v3495, -0.001358992
        %v3497 = vadd.f32 %v3496, 0.041655596
        %v3498 = vmul.f32 %v3495, %v3497
        %v3499 = vadd.f32 %v3498, -0.4999988
        %v3500 = vmul.f32 %v3495, %v3499
        %v3501 = vadd.f32 1.0, %v3500
        %v3502 = vmul.f32 %v3493, %v3493
        %v3503 = vmul.f32 %v3502, -0.00019511016
        %v3504 = vadd.f32 %v3503, 0.008332121
        %v3505 = vmul.f32 %v3502, %v3504
        %v3506 = vadd.f32 %v3505, -0.16666654
        %v3507 = vmul.f32 %v3502, %v3506
        %v3508 = vadd.f32 %v3507, 1.0
        %v3509 = vmul.f32 %v3508, %v3493
        %vm3510 = vweird.f32 %v223
        %v3511 = vadd.s32 %v3494, 3
        %v3512 = vand.u32 %v3511, 3
        %vm3513 = vcmp.lt.s32.totalorder %v3512, 2
        %vm3514 = vcmp.eq.s32.totalorder %v3512, 0
        %v3515 = vxor.u32 %v3509, 2147483648
        %v3516 = vsel %vm3514, %v3501, %v3515
        %vm3517 = vcmp.eq.s32.totalorder %v3512, 2
        %v3518 = vxor.u32 %v3501, 2147483648
        %v3519 = vsel %vm3517, %v3518, %v3509
        %v3520 = vsel %vm3513, %v3516, %v3519
        %v3521 = vsel %vm3510, nan, %v3520
        %v3522 = vand.u32 2147483647, %v224
        %vm3523 = vcmp.le.f32.partialorder %v3522, 0.7853982
        %vm3524 = vcmp.lt.s32.totalorder %v224, 0
        %v3525 = vand.u32 %v224, 2139095040
        %v3526 = vshrl.u32 %v3525, 23
        %v3527 = vsub.s32 %v3526, 127
        %v3528 = vand.u32 2147483647, %v224
        %v3529 = vand.u32 %v3528, 8388607
        %v3530 = vor.u32 %v3529, 8388608
        %v3531 = vsub.s32 0, %v3530
        %v3532 = vadd.s32 %v3527, 1
        %vm3533 = vcmp.gt.s32.totalorder %v3532, 0
        %v3534 = vsel %vm3533, %v3532, 0
        %v3535 = vshrl.u32 %v3534, 5
        %v3536 = vand.u32 %v3534, 31
        %v3537 = vsub.s32 32, %v3536
        %v3538 = vshrl.u32 683565275, %v3537
        %v3539 = vshll.u32 683565275, %v3536
        %v3540 = vshrl.u32 2475754826, %v3537
        %v3541 = vor.u32 %v3539, %v3540
        %v3542 = vshll.u32 2475754826, %v3536
        %v3543 = vshrl.u32 2131351028, %v3537
        %v3544 = vor.u32 %v3542, %v3543
        %v3545 = vshll.u32 2131351028, %v3536
        %v3546 = vshrl.u32 2102212464, %v3537
        %v3547 = vor.u32 %v3545, %v3546
        %v3548 = vshll.u32 2102212464, %v3536
        %v3549 = vshrl.u32 920167782, %v3537
        %v3550 = vor.u32 %v3548, %v3549
        %v3551 = vshll.u32 920167782, %v3536
        %v3552 = vshrl.u32 1326507024, %v3537
        %v3553 = vor.u32 %v3551, %v3552
        %vm3554 = vcmp.lt.s32.totalorder %v3535, 1
        %vm3555 = vcmp.lt.s32.totalorder %v3535, 2
        %vm3556 = vcmp.lt.s32.totalorder %v3535, 3
        %vm3557 = vcmp.lt.s32.totalorder %v3535, 4
        %v3558 = vsel %vm3554, %v3538, %v3541
        %v3559 = vsel %vm3557, %v3547, 2102212464
        %v3560 = vsel %vm3556, %v3544, %v3559
        %v3561 = vsel %vm3555, %v3558, %v3560
        %v3562 = vsel %vm3554, %v3541, %v3544
        %v3563 = vsel %vm3557, %v3550, 920167782
        %v3564 = vsel %vm3556, %v3547, %v3563
        %v3565 = vsel %vm3555, %v3562, %v3564
        %v3566 = vsel %vm3554, %v3544, %v3547
        %v3567 = vsel %vm3557, %v3553, 1326507024
        %v3568 = vsel %vm3556, %v3550, %v3567
        %v3569 = vsel %vm3555, %v3566, %v3568
        %v3570 = vshll.u32 %v3530, 8
        %v3571 = vand.u32 %v3570, 65535
        %v3572 = vshrl.u32 %v3570, 16
        %v3573 = vand.u32 %v3569, 65535
        %v3574 = vshrl.u32 %v3569, 16
        %v3575 = vmul.u32 %v3571, %v3573
        %v3576 = vmul.u32 %v3571, %v3574
        %v3577 = vmul.u32 %v3572, %v3573
        %v3578 = vmul.u32 %v3572, %v3574
        %v3579 = vshll.u32 %v3576, 16
        %v3580 = vshrl.u32 %v3576, 16
        %v3581 = vshll.u32 %v3577, 16
        %v3582 = vshrl.u32 %v3577, 16
        %vm3583 = vc.u32 %v3575, %v3579
        %v3584 = vsel %vm3583, 1, 0
        %v3585 = vadd.s32 %v3575, %v3579
        %v3586 = vadd.s32 %v3578, %v3584
        %vm3587 = vc.u32 %v3585, %v3581
        %v3588 = vsel %vm3587, 1, 0
        %v3589 = vadd.s32 %v3585, %v3581
        %v3590 = vadd.s32 %v3586, %v3588
        %v3591 = vadd.s32 %v3590, %v3580
        %v3592 = vadd.s32 %v3591, %v3582
        %v3593 = vand.u32 %v3570, 65535
        %v3594 = vshrl.u32 %v3570, 16
        %v3595 = vand.u32 %v3565, 65535
        %v3596 = vshrl.u32 %v3565, 16
        %v3597 = vmul.u32 %v3593, %v3595
        %v3598 = vmul.u32 %v3593, %v3596
        %v3599 = vmul.u32 %v3594, %v3595
        %v3600 = vmul.u32 %v3594, %v3596
        %v3601 = vshll.u32 %v3598, 16
        %v3602 = vshrl.u32 %v3598, 16
        %v3603 = vshll.u32 %v3599, 16
        %v3604 = vshrl.u32 %v3599, 16
        %vm3605 = vc.u32 %v3597, %v3601
        %v3606 = vsel %vm3605, 1, 0
        %v3607 = vadd.s32 %v3597, %v3601
        %v3608 = vadd.s32 %v3600, %v3606
        %vm3609 = vc.u32 %v3607, %v3603
        %v3610 = vsel %vm3609, 1, 0
        %v3611 = vadd.s32 %v3607, %v3603
        %v3612 = vadd.s32 %v3608, %v3610
        %v3613 = vadd.s32 %v3612, %v3602
        %v3614 = vadd.s32 %v3613, %v3604
        %v3615 = vmul.u32 %v3570, %v3561
        %v3616 = vadd.s32 %v3592, %v3611
        %vm3617 = vc.u32 %v3592, %v3611
        %v3618 = vadd.s32 %v3614, 1
        %v3619 = vsel %vm3617, %v3618, %v3614
        %v3620 = vadd.s32 %v3615, %v3619
        %v3621 = vadd.s32 %v3620, 536870912
        %v3622 = vshrl.u32 %v3621, 30
        %v3623 = vshll.u32 %v3622, 30
        %v3624 = vsub.s32 %v3620, %v3623
        %vm3625 = vcmp.lt.s32.totalorder %v3624, 0
        %v3626 = vsub.s32 0, %v3624
        %v3627 = vsel %vm3625, %v3626, %v3624
        %v3628 = vclz %v3627
        %v3629 = vsub.s32 %v3628, 2
        %vm3630 = vcmp.gt.s32.totalorder 0, %v3629
        %v3631 = vsel %vm3630, 0, %v3629
        %v3632 = vsub.s32 32, %v3631
        %v3633 = vshll.u32 %v3624, %v3631
        %v3634 = vshrl.u32 %v3616, %v3632
        %v3635 = vor.u32 %v3633, %v3634
        %v3636 = vsub.s32 4294967266, %v3631
        %v3637 = vadd.s32 %v3636, 127
        %v3638 = vshll.u32 %v3637, 23
        %v3639 = vor.u32 4788187, %v3638
        %v3640 = vand.u32 2147483647, %v3639
        %v3642 = vcvt.s32.f32 %v3635
        %v3643 = vmul.f32 %v3642, %v3640
        %v3644 = vxor.u32 %v3643, 2147483648
        %v3645 = vsel %vm3524, %v3644, %v3643
        %v3646 = vsub.s32 4, %v3622
        %v3647 = vsel %vm3524, %v3646, %v3622
        %v3648 = vsel %vm3523, %v224, %v3645
        %v3649 = vsel %vm3523, 0, %v3647
        %v3650 = vmul.f32 %v3648, %v3648
        %v3651 = vmul.f32 %v3650, -0.001358992
        %v3652 = vadd.f32 %v3651, 0.041655596
        %v3653 = vmul.f32 %v3650, %v3652
        %v3654 = vadd.f32 %v3653, -0.4999988
        %v3655 = vmul.f32 %v3650, %v3654
        %v3656 = vadd.f32 1.0, %v3655
        %v3657 = vmul.f32 %v3648, %v3648
        %v3658 = vmul.f32 %v3657, -0.00019511016
        %v3659 = vadd.f32 %v3658, 0.008332121
        %v3660 = vmul.f32 %v3657, %v3659
        %v3661 = vadd.f32 %v3660, -0.16666654
        %v3662 = vmul.f32 %v3657, %v3661
        %v3663 = vadd.f32 %v3662, 1.0
        %v3664 = vmul.f32 %v3663, %v3648
        %vm3665 = vweird.f32 %v224
        %v3666 = vadd.s32 %v3649, 3
        %v3667 = vand.u32 %v3666, 3
        %vm3668 = vcmp.lt.s32.totalorder %v3667, 2
        %vm3669 = vcmp.eq.s32.totalorder %v3667, 0
        %v3670 = vxor.u32 %v3664, 2147483648
        %v3671 = vsel %vm3669, %v3656, %v3670
        %vm3672 = vcmp.eq.s32.totalorder %v3667, 2
        %v3673 = vxor.u32 %v3656, 2147483648
        %v3674 = vsel %vm3672, %v3673, %v3664
        %v3675 = vsel %vm3668, %v3671, %v3674
        %v3676 = vsel %vm3665, nan, %v3675
        %v3677 = vand.u32 2147483647, %v225
        %vm3678 = vcmp.le.f32.partialorder %v3677, 0.7853982
        %vm3679 = vcmp.lt.s32.totalorder %v225, 0
        %v3680 = vand.u32 %v225, 2139095040
        %v3681 = vshrl.u32 %v3680, 23
        %v3682 = vsub.s32 %v3681, 127
        %v3683 = vand.u32 2147483647, %v225
        %v3684 = vand.u32 %v3683, 8388607
        %v3685 = vor.u32 %v3684, 8388608
        %v3686 = vsub.s32 0, %v3685
        %v3687 = vadd.s32 %v3682, 1
        %vm3688 = vcmp.gt.s32.totalorder %v3687, 0
        %v3689 = vsel %vm3688, %v3687, 0
        %v3690 = vshrl.u32 %v3689, 5
        %v3691 = vand.u32 %v3689, 31
        %v3692 = vsub.s32 32, %v3691
        %v3693 = vshrl.u32 683565275, %v3692
        %v3694 = vshll.u32 683565275, %v3691
        %v3695 = vshrl.u32 2475754826, %v3692
        %v3696 = vor.u32 %v3694, %v3695
        %v3697 = vshll.u32 2475754826, %v3691
        %v3698 = vshrl.u32 2131351028, %v3692
        %v3699 = vor.u32 %v3697, %v3698
        %v3700 = vshll.u32 2131351028, %v3691
        %v3701 = vshrl.u32 2102212464, %v3692
        %v3702 = vor.u32 %v3700, %v3701
        %v3703 = vshll.u32 2102212464, %v3691
        %v3704 = vshrl.u32 920167782, %v3692
        %v3705 = vor.u32 %v3703, %v3704
        %v3706 = vshll.u32 920167782, %v3691
        %v3707 = vshrl.u32 1326507024, %v3692
        %v3708 = vor.u32 %v3706, %v3707
        %vm3709 = vcmp.lt.s32.totalorder %v3690, 1
        %vm3710 = vcmp.lt.s32.totalorder %v3690, 2
        %vm3711 = vcmp.lt.s32.totalorder %v3690, 3
        %vm3712 = vcmp.lt.s32.totalorder %v3690, 4
        %v3713 = vsel %vm3709, %v3693, %v3696
        %v3714 = vsel %vm3712, %v3702, 2102212464
        %v3715 = vsel %vm3711, %v3699, %v3714
        %v3716 = vsel %vm3710, %v3713, %v3715
        %v3717 = vsel %vm3709, %v3696, %v3699
        %v3718 = vsel %vm3712, %v3705, 920167782
        %v3719 = vsel %vm3711, %v3702, %v3718
        %v3720 = vsel %vm3710, %v3717, %v3719
        %v3721 = vsel %vm3709, %v3699, %v3702
        %v3722 = vsel %vm3712, %v3708, 1326507024
        %v3723 = vsel %vm3711, %v3705, %v3722
        %v3724 = vsel %vm3710, %v3721, %v3723
        %v3725 = vshll.u32 %v3685, 8
        %v3726 = vand.u32 %v3725, 65535
        %v3727 = vshrl.u32 %v3725, 16
        %v3728 = vand.u32 %v3724, 65535
        %v3729 = vshrl.u32 %v3724, 16
        %v3730 = vmul.u32 %v3726, %v3728
        %v3731 = vmul.u32 %v3726, %v3729
        %v3732 = vmul.u32 %v3727, %v3728
        %v3733 = vmul.u32 %v3727, %v3729
        %v3734 = vshll.u32 %v3731, 16
        %v3735 = vshrl.u32 %v3731, 16
        %v3736 = vshll.u32 %v3732, 16
        %v3737 = vshrl.u32 %v3732, 16
        %vm3738 = vc.u32 %v3730, %v3734
        %v3739 = vsel %vm3738, 1, 0
        %v3740 = vadd.s32 %v3730, %v3734
        %v3741 = vadd.s32 %v3733, %v3739
        %vm3742 = vc.u32 %v3740, %v3736
        %v3743 = vsel %vm3742, 1, 0
        %v3744 = vadd.s32 %v3740, %v3736
        %v3745 = vadd.s32 %v3741, %v3743
        %v3746 = vadd.s32 %v3745, %v3735
        %v3747 = vadd.s32 %v3746, %v3737
        %v3748 = vand.u32 %v3725, 65535
        %v3749 = vshrl.u32 %v3725, 16
        %v3750 = vand.u32 %v3720, 65535
        %v3751 = vshrl.u32 %v3720, 16
        %v3752 = vmul.u32 %v3748, %v3750
        %v3753 = vmul.u32 %v3748, %v3751
        %v3754 = vmul.u32 %v3749, %v3750
        %v3755 = vmul.u32 %v3749, %v3751
        %v3756 = vshll.u32 %v3753, 16
        %v3757 = vshrl.u32 %v3753, 16
        %v3758 = vshll.u32 %v3754, 16
        %v3759 = vshrl.u32 %v3754, 16
        %vm3760 = vc.u32 %v3752, %v3756
        %v3761 = vsel %vm3760, 1, 0
        %v3762 = vadd.s32 %v3752, %v3756
        %v3763 = vadd.s32 %v3755, %v3761
        %vm3764 = vc.u32 %v3762, %v3758
        %v3765 = vsel %vm3764, 1, 0
        %v3766 = vadd.s32 %v3762, %v3758
        %v3767 = vadd.s32 %v3763, %v3765
        %v3768 = vadd.s32 %v3767, %v3757
        %v3769 = vadd.s32 %v3768, %v3759
        %v3770 = vmul.u32 %v3725, %v3716
        %v3771 = vadd.s32 %v3747, %v3766
        %vm3772 = vc.u32 %v3747, %v3766
        %v3773 = vadd.s32 %v3769, 1
        %v3774 = vsel %vm3772, %v3773, %v3769
        %v3775 = vadd.s32 %v3770, %v3774
        %v3776 = vadd.s32 %v3775, 536870912
        %v3777 = vshrl.u32 %v3776, 30
        %v3778 = vshll.u32 %v3777, 30
        %v3779 = vsub.s32 %v3775, %v3778
        %vm3780 = vcmp.lt.s32.totalorder %v3779, 0
        %v3781 = vsub.s32 0, %v3779
        %v3782 = vsel %vm3780, %v3781, %v3779
        %v3783 = vclz %v3782
        %v3784 = vsub.s32 %v3783, 2
        %vm3785 = vcmp.gt.s32.totalorder 0, %v3784
        %v3786 = vsel %vm3785, 0, %v3784
        %v3787 = vsub.s32 32, %v3786
        %v3788 = vshll.u32 %v3779, %v3786
        %v3789 = vshrl.u32 %v3771, %v3787
        %v3790 = vor.u32 %v3788, %v3789
        %v3791 = vsub.s32 4294967266, %v3786
        %v3792 = vadd.s32 %v3791, 127
        %v3793 = vshll.u32 %v3792, 23
        %v3794 = vor.u32 4788187, %v3793
        %v3795 = vand.u32 2147483647, %v3794
        %v3797 = vcvt.s32.f32 %v3790
        %v3798 = vmul.f32 %v3797, %v3795
        %v3799 = vxor.u32 %v3798, 2147483648
        %v3800 = vsel %vm3679, %v3799, %v3798
        %v3801 = vsub.s32 4, %v3777
        %v3802 = vsel %vm3679, %v3801, %v3777
        %v3803 = vsel %vm3678, %v225, %v3800
        %v3804 = vsel %vm3678, 0, %v3802
        %v3805 = vmul.f32 %v3803, %v3803
        %v3806 = vmul.f32 %v3805, -0.001358992
        %v3807 = vadd.f32 %v3806, 0.041655596
        %v3808 = vmul.f32 %v3805, %v3807
        %v3809 = vadd.f32 %v3808, -0.4999988
        %v3810 = vmul.f32 %v3805, %v3809
        %v3811 = vadd.f32 1.0, %v3810
        %v3812 = vmul.f32 %v3803, %v3803
        %v3813 = vmul.f32 %v3812, -0.00019511016
        %v3814 = vadd.f32 %v3813, 0.008332121
        %v3815 = vmul.f32 %v3812, %v3814
        %v3816 = vadd.f32 %v3815, -0.16666654
        %v3817 = vmul.f32 %v3812, %v3816
        %v3818 = vadd.f32 %v3817, 1.0
        %v3819 = vmul.f32 %v3818, %v3803
        %vm3820 = vweird.f32 %v225
        %v3821 = vadd.s32 %v3804, 3
        %v3822 = vand.u32 %v3821, 3
        %vm3823 = vcmp.lt.s32.totalorder %v3822, 2
        %vm3824 = vcmp.eq.s32.totalorder %v3822, 0
        %v3825 = vxor.u32 %v3819, 2147483648
        %v3826 = vsel %vm3824, %v3811, %v3825
        %vm3827 = vcmp.eq.s32.totalorder %v3822, 2
        %v3828 = vxor.u32 %v3811, 2147483648
        %v3829 = vsel %vm3827, %v3828, %v3819
        %v3830 = vsel %vm3823, %v3826, %v3829
        %v3831 = vsel %vm3820, nan, %v3830
        %v3832 = vand.u32 2147483647, %v226
        %vm3833 = vcmp.le.f32.partialorder %v3832, 0.7853982
        %vm3834 = vcmp.lt.s32.totalorder %v226, 0
        %v3835 = vand.u32 %v226, 2139095040
        %v3836 = vshrl.u32 %v3835, 23
        %v3837 = vsub.s32 %v3836, 127
        %v3838 = vand.u32 2147483647, %v226
        %v3839 = vand.u32 %v3838, 8388607
        %v3840 = vor.u32 %v3839, 8388608
        %v3841 = vsub.s32 0, %v3840
        %v3842 = vadd.s32 %v3837, 1
        %vm3843 = vcmp.gt.s32.totalorder %v3842, 0
        %v3844 = vsel %vm3843, %v3842, 0
        %v3845 = vshrl.u32 %v3844, 5
        %v3846 = vand.u32 %v3844, 31
        %v3847 = vsub.s32 32, %v3846
        %v3848 = vshrl.u32 683565275, %v3847
        %v3849 = vshll.u32 683565275, %v3846
        %v3850 = vshrl.u32 2475754826, %v3847
        %v3851 = vor.u32 %v3849, %v3850
        %v3852 = vshll.u32 2475754826, %v3846
        %v3853 = vshrl.u32 2131351028, %v3847
        %v3854 = vor.u32 %v3852, %v3853
        %v3855 = vshll.u32 2131351028, %v3846
        %v3856 = vshrl.u32 2102212464, %v3847
        %v3857 = vor.u32 %v3855, %v3856
        %v3858 = vshll.u32 2102212464, %v3846
        %v3859 = vshrl.u32 920167782, %v3847
        %v3860 = vor.u32 %v3858, %v3859
        %v3861 = vshll.u32 920167782, %v3846
        %v3862 = vshrl.u32 1326507024, %v3847
        %v3863 = vor.u32 %v3861, %v3862
        %vm3864 = vcmp.lt.s32.totalorder %v3845, 1
        %vm3865 = vcmp.lt.s32.totalorder %v3845, 2
        %vm3866 = vcmp.lt.s32.totalorder %v3845, 3
        %vm3867 = vcmp.lt.s32.totalorder %v3845, 4
        %v3868 = vsel %vm3864, %v3848, %v3851
        %v3869 = vsel %vm3867, %v3857, 2102212464
        %v3870 = vsel %vm3866, %v3854, %v3869
        %v3871 = vsel %vm3865, %v3868, %v3870
        %v3872 = vsel %vm3864, %v3851, %v3854
        %v3873 = vsel %vm3867, %v3860, 920167782
        %v3874 = vsel %vm3866, %v3857, %v3873
        %v3875 = vsel %vm3865, %v3872, %v3874
        %v3876 = vsel %vm3864, %v3854, %v3857
        %v3877 = vsel %vm3867, %v3863, 1326507024
        %v3878 = vsel %vm3866, %v3860, %v3877
        %v3879 = vsel %vm3865, %v3876, %v3878
        %v3880 = vshll.u32 %v3840, 8
        %v3881 = vand.u32 %v3880, 65535
        %v3882 = vshrl.u32 %v3880, 16
        %v3883 = vand.u32 %v3879, 65535
        %v3884 = vshrl.u32 %v3879, 16
        %v3885 = vmul.u32 %v3881, %v3883
        %v3886 = vmul.u32 %v3881, %v3884
        %v3887 = vmul.u32 %v3882, %v3883
        %v3888 = vmul.u32 %v3882, %v3884
        %v3889 = vshll.u32 %v3886, 16
        %v3890 = vshrl.u32 %v3886, 16
        %v3891 = vshll.u32 %v3887, 16
        %v3892 = vshrl.u32 %v3887, 16
        %vm3893 = vc.u32 %v3885, %v3889
        %v3894 = vsel %vm3893, 1, 0
        %v3895 = vadd.s32 %v3885, %v3889
        %v3896 = vadd.s32 %v3888, %v3894
        %vm3897 = vc.u32 %v3895, %v3891
        %v3898 = vsel %vm3897, 1, 0
        %v3899 = vadd.s32 %v3895, %v3891
        %v3900 = vadd.s32 %v3896, %v3898
        %v3901 = vadd.s32 %v3900, %v3890
        %v3902 = vadd.s32 %v3901, %v3892
        %v3903 = vand.u32 %v3880, 65535
        %v3904 = vshrl.u32 %v3880, 16
        %v3905 = vand.u32 %v3875, 65535
        %v3906 = vshrl.u32 %v3875, 16
        %v3907 = vmul.u32 %v3903, %v3905
        %v3908 = vmul.u32 %v3903, %v3906
        %v3909 = vmul.u32 %v3904, %v3905
        %v3910 = vmul.u32 %v3904, %v3906
        %v3911 = vshll.u32 %v3908, 16
        %v3912 = vshrl.u32 %v3908, 16
        %v3913 = vshll.u32 %v3909, 16
        %v3914 = vshrl.u32 %v3909, 16
        %vm3915 = vc.u32 %v3907, %v3911
        %v3916 = vsel %vm3915, 1, 0
        %v3917 = vadd.s32 %v3907, %v3911
        %v3918 = vadd.s32 %v3910, %v3916
        %vm3919 = vc.u32 %v3917, %v3913
        %v3920 = vsel %vm3919, 1, 0
        %v3921 = vadd.s32 %v3917, %v3913
        %v3922 = vadd.s32 %v3918, %v3920
        %v3923 = vadd.s32 %v3922, %v3912
        %v3924 = vadd.s32 %v3923, %v3914
        %v3925 = vmul.u32 %v3880, %v3871
        %v3926 = vadd.s32 %v3902, %v3921
        %vm3927 = vc.u32 %v3902, %v3921
        %v3928 = vadd.s32 %v3924, 1
        %v3929 = vsel %vm3927, %v3928, %v3924
        %v3930 = vadd.s32 %v3925, %v3929
        %v3931 = vadd.s32 %v3930, 536870912
        %v3932 = vshrl.u32 %v3931, 30
        %v3933 = vshll.u32 %v3932, 30
        %v3934 = vsub.s32 %v3930, %v3933
        %vm3935 = vcmp.lt.s32.totalorder %v3934, 0
        %v3936 = vsub.s32 0, %v3934
        %v3937 = vsel %vm3935, %v3936, %v3934
        %v3938 = vclz %v3937
        %v3939 = vsub.s32 %v3938, 2
        %vm3940 = vcmp.gt.s32.totalorder 0, %v3939
        %v3941 = vsel %vm3940, 0, %v3939
        %v3942 = vsub.s32 32, %v3941
        %v3943 = vshll.u32 %v3934, %v3941
        %v3944 = vshrl.u32 %v3926, %v3942
        %v3945 = vor.u32 %v3943, %v3944
        %v3946 = vsub.s32 4294967266, %v3941
        %v3947 = vadd.s32 %v3946, 127
        %v3948 = vshll.u32 %v3947, 23
        %v3949 = vor.u32 4788187, %v3948
        %v3950 = vand.u32 2147483647, %v3949
        %v3952 = vcvt.s32.f32 %v3945
        %v3953 = vmul.f32 %v3952, %v3950
        %v3954 = vxor.u32 %v3953, 2147483648
        %v3955 = vsel %vm3834, %v3954, %v3953
        %v3956 = vsub.s32 4, %v3932
        %v3957 = vsel %vm3834, %v3956, %v3932
        %v3958 = vsel %vm3833, %v226, %v3955
        %v3959 = vsel %vm3833, 0, %v3957
        %v3960 = vmul.f32 %v3958, %v3958
        %v3961 = vmul.f32 %v3960, -0.001358992
        %v3962 = vadd.f32 %v3961, 0.041655596
        %v3963 = vmul.f32 %v3960, %v3962
        %v3964 = vadd.f32 %v3963, -0.4999988
        %v3965 = vmul.f32 %v3960, %v3964
        %v3966 = vadd.f32 1.0, %v3965
        %v3967 = vmul.f32 %v3958, %v3958
        %v3968 = vmul.f32 %v3967, -0.00019511016
        %v3969 = vadd.f32 %v3968, 0.008332121
        %v3970 = vmul.f32 %v3967, %v3969
        %v3971 = vadd.f32 %v3970, -0.16666654
        %v3972 = vmul.f32 %v3967, %v3971
        %v3973 = vadd.f32 %v3972, 1.0
        %v3974 = vmul.f32 %v3973, %v3958
        %vm3975 = vweird.f32 %v226
        %v3976 = vadd.s32 %v3959, 3
        %v3977 = vand.u32 %v3976, 3
        %vm3978 = vcmp.lt.s32.totalorder %v3977, 2
        %vm3979 = vcmp.eq.s32.totalorder %v3977, 0
        %v3980 = vxor.u32 %v3974, 2147483648
        %v3981 = vsel %vm3979, %v3966, %v3980
        %vm3982 = vcmp.eq.s32.totalorder %v3977, 2
        %v3983 = vxor.u32 %v3966, 2147483648
        %v3984 = vsel %vm3982, %v3983, %v3974
        %v3985 = vsel %vm3978, %v3981, %v3984
        %v3986 = vsel %vm3975, nan, %v3985
        %v3987 = vand.u32 2147483647, %v227
        %vm3988 = vcmp.le.f32.partialorder %v3987, 0.7853982
        %vm3989 = vcmp.lt.s32.totalorder %v227, 0
        %v3990 = vand.u32 %v227, 2139095040
        %v3991 = vshrl.u32 %v3990, 23
        %v3992 = vsub.s32 %v3991, 127
        %v3993 = vand.u32 2147483647, %v227
        %v3994 = vand.u32 %v3993, 8388607
        %v3995 = vor.u32 %v3994, 8388608
        %v3996 = vsub.s32 0, %v3995
        %v3997 = vadd.s32 %v3992, 1
        %vm3998 = vcmp.gt.s32.totalorder %v3997, 0
        %v3999 = vsel %vm3998, %v3997, 0
        %v4000 = vshrl.u32 %v3999, 5
        %v4001 = vand.u32 %v3999, 31
        %v4002 = vsub.s32 32, %v4001
        %v4003 = vshrl.u32 683565275, %v4002
        %v4004 = vshll.u32 683565275, %v4001
        %v4005 = vshrl.u32 2475754826, %v4002
        %v4006 = vor.u32 %v4004, %v4005
        %v4007 = vshll.u32 2475754826, %v4001
        %v4008 = vshrl.u32 2131351028, %v4002
        %v4009 = vor.u32 %v4007, %v4008
        %v4010 = vshll.u32 2131351028, %v4001
        %v4011 = vshrl.u32 2102212464, %v4002
        %v4012 = vor.u32 %v4010, %v4011
        %v4013 = vshll.u32 2102212464, %v4001
        %v4014 = vshrl.u32 920167782, %v4002
        %v4015 = vor.u32 %v4013, %v4014
        %v4016 = vshll.u32 920167782, %v4001
        %v4017 = vshrl.u32 1326507024, %v4002
        %v4018 = vor.u32 %v4016, %v4017
        %vm4019 = vcmp.lt.s32.totalorder %v4000, 1
        %vm4020 = vcmp.lt.s32.totalorder %v4000, 2
        %vm4021 = vcmp.lt.s32.totalorder %v4000, 3
        %vm4022 = vcmp.lt.s32.totalorder %v4000, 4
        %v4023 = vsel %vm4019, %v4003, %v4006
        %v4024 = vsel %vm4022, %v4012, 2102212464
        %v4025 = vsel %vm4021, %v4009, %v4024
        %v4026 = vsel %vm4020, %v4023, %v4025
        %v4027 = vsel %vm4019, %v4006, %v4009
        %v4028 = vsel %vm4022, %v4015, 920167782
        %v4029 = vsel %vm4021, %v4012, %v4028
        %v4030 = vsel %vm4020, %v4027, %v4029
        %v4031 = vsel %vm4019, %v4009, %v4012
        %v4032 = vsel %vm4022, %v4018, 1326507024
        %v4033 = vsel %vm4021, %v4015, %v4032
        %v4034 = vsel %vm4020, %v4031, %v4033
        %v4035 = vshll.u32 %v3995, 8
        %v4036 = vand.u32 %v4035, 65535
        %v4037 = vshrl.u32 %v4035, 16
        %v4038 = vand.u32 %v4034, 65535
        %v4039 = vshrl.u32 %v4034, 16
        %v4040 = vmul.u32 %v4036, %v4038
        %v4041 = vmul.u32 %v4036, %v4039
        %v4042 = vmul.u32 %v4037, %v4038
        %v4043 = vmul.u32 %v4037, %v4039
        %v4044 = vshll.u32 %v4041, 16
        %v4045 = vshrl.u32 %v4041, 16
        %v4046 = vshll.u32 %v4042, 16
        %v4047 = vshrl.u32 %v4042, 16
        %vm4048 = vc.u32 %v4040, %v4044
        %v4049 = vsel %vm4048, 1, 0
        %v4050 = vadd.s32 %v4040, %v4044
        %v4051 = vadd.s32 %v4043, %v4049
        %vm4052 = vc.u32 %v4050, %v4046
        %v4053 = vsel %vm4052, 1, 0
        %v4054 = vadd.s32 %v4050, %v4046
        %v4055 = vadd.s32 %v4051, %v4053
        %v4056 = vadd.s32 %v4055, %v4045
        %v4057 = vadd.s32 %v4056, %v4047
        %v4058 = vand.u32 %v4035, 65535
        %v4059 = vshrl.u32 %v4035, 16
        %v4060 = vand.u32 %v4030, 65535
        %v4061 = vshrl.u32 %v4030, 16
        %v4062 = vmul.u32 %v4058, %v4060
        %v4063 = vmul.u32 %v4058, %v4061
        %v4064 = vmul.u32 %v4059, %v4060
        %v4065 = vmul.u32 %v4059, %v4061
        %v4066 = vshll.u32 %v4063, 16
        %v4067 = vshrl.u32 %v4063, 16
        %v4068 = vshll.u32 %v4064, 16
        %v4069 = vshrl.u32 %v4064, 16
        %vm4070 = vc.u32 %v4062, %v4066
        %v4071 = vsel %vm4070, 1, 0
        %v4072 = vadd.s32 %v4062, %v4066
        %v4073 = vadd.s32 %v4065, %v4071
        %vm4074 = vc.u32 %v4072, %v4068
        %v4075 = vsel %vm4074, 1, 0
        %v4076 = vadd.s32 %v4072, %v4068
        %v4077 = vadd.s32 %v4073, %v4075
        %v4078 = vadd.s32 %v4077, %v4067
        %v4079 = vadd.s32 %v4078, %v4069
        %v4080 = vmul.u32 %v4035, %v4026
        %v4081 = vadd.s32 %v4057, %v4076
        %vm4082 = vc.u32 %v4057, %v4076
        %v4083 = vadd.s32 %v4079, 1
        %v4084 = vsel %vm4082, %v4083, %v4079
        %v4085 = vadd.s32 %v4080, %v4084
        %v4086 = vadd.s32 %v4085, 536870912
        %v4087 = vshrl.u32 %v4086, 30
        %v4088 = vshll.u32 %v4087, 30
        %v4089 = vsub.s32 %v4085, %v4088
        %vm4090 = vcmp.lt.s32.totalorder %v4089, 0
        %v4091 = vsub.s32 0, %v4089
        %v4092 = vsel %vm4090, %v4091, %v4089
        %v4093 = vclz %v4092
        %v4094 = vsub.s32 %v4093, 2
        %vm4095 = vcmp.gt.s32.totalorder 0, %v4094
        %v4096 = vsel %vm4095, 0, %v4094
        %v4097 = vsub.s32 32, %v4096
        %v4098 = vshll.u32 %v4089, %v4096
        %v4099 = vshrl.u32 %v4081, %v4097
        %v4100 = vor.u32 %v4098, %v4099
        %v4101 = vsub.s32 4294967266, %v4096
        %v4102 = vadd.s32 %v4101, 127
        %v4103 = vshll.u32 %v4102, 23
        %v4104 = vor.u32 4788187, %v4103
        %v4105 = vand.u32 2147483647, %v4104
        %v4107 = vcvt.s32.f32 %v4100
        %v4108 = vmul.f32 %v4107, %v4105
        %v4109 = vxor.u32 %v4108, 2147483648
        %v4110 = vsel %vm3989, %v4109, %v4108
        %v4111 = vsub.s32 4, %v4087
        %v4112 = vsel %vm3989, %v4111, %v4087
        %v4113 = vsel %vm3988, %v227, %v4110
        %v4114 = vsel %vm3988, 0, %v4112
        %v4115 = vmul.f32 %v4113, %v4113
        %v4116 = vmul.f32 %v4115, -0.001358992
        %v4117 = vadd.f32 %v4116, 0.041655596
        %v4118 = vmul.f32 %v4115, %v4117
        %v4119 = vadd.f32 %v4118, -0.4999988
        %v4120 = vmul.f32 %v4115, %v4119
        %v4121 = vadd.f32 1.0, %v4120
        %v4122 = vmul.f32 %v4113, %v4113
        %v4123 = vmul.f32 %v4122, -0.00019511016
        %v4124 = vadd.f32 %v4123, 0.008332121
        %v4125 = vmul.f32 %v4122, %v4124
        %v4126 = vadd.f32 %v4125, -0.16666654
        %v4127 = vmul.f32 %v4122, %v4126
        %v4128 = vadd.f32 %v4127, 1.0
        %v4129 = vmul.f32 %v4128, %v4113
        %vm4130 = vweird.f32 %v227
        %v4131 = vadd.s32 %v4114, 3
        %v4132 = vand.u32 %v4131, 3
        %vm4133 = vcmp.lt.s32.totalorder %v4132, 2
        %vm4134 = vcmp.eq.s32.totalorder %v4132, 0
        %v4135 = vxor.u32 %v4129, 2147483648
        %v4136 = vsel %vm4134, %v4121, %v4135
        %vm4137 = vcmp.eq.s32.totalorder %v4132, 2
        %v4138 = vxor.u32 %v4121, 2147483648
        %v4139 = vsel %vm4137, %v4138, %v4129
        %v4140 = vsel %vm4133, %v4136, %v4139
        %v4141 = vsel %vm4130, nan, %v4140
        %v4142 = vand.u32 2147483647, %v228
        %vm4143 = vcmp.le.f32.partialorder %v4142, 0.7853982
        %vm4144 = vcmp.lt.s32.totalorder %v228, 0
        %v4145 = vand.u32 %v228, 2139095040
        %v4146 = vshrl.u32 %v4145, 23
        %v4147 = vsub.s32 %v4146, 127
        %v4148 = vand.u32 2147483647, %v228
        %v4149 = vand.u32 %v4148, 8388607
        %v4150 = vor.u32 %v4149, 8388608
        %v4151 = vsub.s32 0, %v4150
        %v4152 = vadd.s32 %v4147, 1
        %vm4153 = vcmp.gt.s32.totalorder %v4152, 0
        %v4154 = vsel %vm4153, %v4152, 0
        %v4155 = vshrl.u32 %v4154, 5
        %v4156 = vand.u32 %v4154, 31
        %v4157 = vsub.s32 32, %v4156
        %v4158 = vshrl.u32 683565275, %v4157
        %v4159 = vshll.u32 683565275, %v4156
        %v4160 = vshrl.u32 2475754826, %v4157
        %v4161 = vor.u32 %v4159, %v4160
        %v4162 = vshll.u32 2475754826, %v4156
        %v4163 = vshrl.u32 2131351028, %v4157
        %v4164 = vor.u32 %v4162, %v4163
        %v4165 = vshll.u32 2131351028, %v4156
        %v4166 = vshrl.u32 2102212464, %v4157
        %v4167 = vor.u32 %v4165, %v4166
        %v4168 = vshll.u32 2102212464, %v4156
        %v4169 = vshrl.u32 920167782, %v4157
        %v4170 = vor.u32 %v4168, %v4169
        %v4171 = vshll.u32 920167782, %v4156
        %v4172 = vshrl.u32 1326507024, %v4157
        %v4173 = vor.u32 %v4171, %v4172
        %vm4174 = vcmp.lt.s32.totalorder %v4155, 1
        %vm4175 = vcmp.lt.s32.totalorder %v4155, 2
        %vm4176 = vcmp.lt.s32.totalorder %v4155, 3
        %vm4177 = vcmp.lt.s32.totalorder %v4155, 4
        %v4178 = vsel %vm4174, %v4158, %v4161
        %v4179 = vsel %vm4177, %v4167, 2102212464
        %v4180 = vsel %vm4176, %v4164, %v4179
        %v4181 = vsel %vm4175, %v4178, %v4180
        %v4182 = vsel %vm4174, %v4161, %v4164
        %v4183 = vsel %vm4177, %v4170, 920167782
        %v4184 = vsel %vm4176, %v4167, %v4183
        %v4185 = vsel %vm4175, %v4182, %v4184
        %v4186 = vsel %vm4174, %v4164, %v4167
        %v4187 = vsel %vm4177, %v4173, 1326507024
        %v4188 = vsel %vm4176, %v4170, %v4187
        %v4189 = vsel %vm4175, %v4186, %v4188
        %v4190 = vshll.u32 %v4150, 8
        %v4191 = vand.u32 %v4190, 65535
        %v4192 = vshrl.u32 %v4190, 16
        %v4193 = vand.u32 %v4189, 65535
        %v4194 = vshrl.u32 %v4189, 16
        %v4195 = vmul.u32 %v4191, %v4193
        %v4196 = vmul.u32 %v4191, %v4194
        %v4197 = vmul.u32 %v4192, %v4193
        %v4198 = vmul.u32 %v4192, %v4194
        %v4199 = vshll.u32 %v4196, 16
        %v4200 = vshrl.u32 %v4196, 16
        %v4201 = vshll.u32 %v4197, 16
        %v4202 = vshrl.u32 %v4197, 16
        %vm4203 = vc.u32 %v4195, %v4199
        %v4204 = vsel %vm4203, 1, 0
        %v4205 = vadd.s32 %v4195, %v4199
        %v4206 = vadd.s32 %v4198, %v4204
        %vm4207 = vc.u32 %v4205, %v4201
        %v4208 = vsel %vm4207, 1, 0
        %v4209 = vadd.s32 %v4205, %v4201
        %v4210 = vadd.s32 %v4206, %v4208
        %v4211 = vadd.s32 %v4210, %v4200
        %v4212 = vadd.s32 %v4211, %v4202
        %v4213 = vand.u32 %v4190, 65535
        %v4214 = vshrl.u32 %v4190, 16
        %v4215 = vand.u32 %v4185, 65535
        %v4216 = vshrl.u32 %v4185, 16
        %v4217 = vmul.u32 %v4213, %v4215
        %v4218 = vmul.u32 %v4213, %v4216
        %v4219 = vmul.u32 %v4214, %v4215
        %v4220 = vmul.u32 %v4214, %v4216
        %v4221 = vshll.u32 %v4218, 16
        %v4222 = vshrl.u32 %v4218, 16
        %v4223 = vshll.u32 %v4219, 16
        %v4224 = vshrl.u32 %v4219, 16
        %vm4225 = vc.u32 %v4217, %v4221
        %v4226 = vsel %vm4225, 1, 0
        %v4227 = vadd.s32 %v4217, %v4221
        %v4228 = vadd.s32 %v4220, %v4226
        %vm4229 = vc.u32 %v4227, %v4223
        %v4230 = vsel %vm4229, 1, 0
        %v4231 = vadd.s32 %v4227, %v4223
        %v4232 = vadd.s32 %v4228, %v4230
        %v4233 = vadd.s32 %v4232, %v4222
        %v4234 = vadd.s32 %v4233, %v4224
        %v4235 = vmul.u32 %v4190, %v4181
        %v4236 = vadd.s32 %v4212, %v4231
        %vm4237 = vc.u32 %v4212, %v4231
        %v4238 = vadd.s32 %v4234, 1
        %v4239 = vsel %vm4237, %v4238, %v4234
        %v4240 = vadd.s32 %v4235, %v4239
        %v4241 = vadd.s32 %v4240, 536870912
        %v4242 = vshrl.u32 %v4241, 30
        %v4243 = vshll.u32 %v4242, 30
        %v4244 = vsub.s32 %v4240, %v4243
        %vm4245 = vcmp.lt.s32.totalorder %v4244, 0
        %v4246 = vsub.s32 0, %v4244
        %v4247 = vsel %vm4245, %v4246, %v4244
        %v4248 = vclz %v4247
        %v4249 = vsub.s32 %v4248, 2
        %vm4250 = vcmp.gt.s32.totalorder 0, %v4249
        %v4251 = vsel %vm4250, 0, %v4249
        %v4252 = vsub.s32 32, %v4251
        %v4253 = vshll.u32 %v4244, %v4251
        %v4254 = vshrl.u32 %v4236, %v4252
        %v4255 = vor.u32 %v4253, %v4254
        %v4256 = vsub.s32 4294967266, %v4251
        %v4257 = vadd.s32 %v4256, 127
        %v4258 = vshll.u32 %v4257, 23
        %v4259 = vor.u32 4788187, %v4258
        %v4260 = vand.u32 2147483647, %v4259
        %v4262 = vcvt.s32.f32 %v4255
        %v4263 = vmul.f32 %v4262, %v4260
        %v4264 = vxor.u32 %v4263, 2147483648
        %v4265 = vsel %vm4144, %v4264, %v4263
        %v4266 = vsub.s32 4, %v4242
        %v4267 = vsel %vm4144, %v4266, %v4242
        %v4268 = vsel %vm4143, %v228, %v4265
        %v4269 = vsel %vm4143, 0, %v4267
        %v4270 = vmul.f32 %v4268, %v4268
        %v4271 = vmul.f32 %v4270, -0.001358992
        %v4272 = vadd.f32 %v4271, 0.041655596
        %v4273 = vmul.f32 %v4270, %v4272
        %v4274 = vadd.f32 %v4273, -0.4999988
        %v4275 = vmul.f32 %v4270, %v4274
        %v4276 = vadd.f32 1.0, %v4275
        %v4277 = vmul.f32 %v4268, %v4268
        %v4278 = vmul.f32 %v4277, -0.00019511016
        %v4279 = vadd.f32 %v4278, 0.008332121
        %v4280 = vmul.f32 %v4277, %v4279
        %v4281 = vadd.f32 %v4280, -0.16666654
        %v4282 = vmul.f32 %v4277, %v4281
        %v4283 = vadd.f32 %v4282, 1.0
        %v4284 = vmul.f32 %v4283, %v4268
        %vm4285 = vweird.f32 %v228
        %v4286 = vadd.s32 %v4269, 3
        %v4287 = vand.u32 %v4286, 3
        %vm4288 = vcmp.lt.s32.totalorder %v4287, 2
        %vm4289 = vcmp.eq.s32.totalorder %v4287, 0
        %v4290 = vxor.u32 %v4284, 2147483648
        %v4291 = vsel %vm4289, %v4276, %v4290
        %vm4292 = vcmp.eq.s32.totalorder %v4287, 2
        %v4293 = vxor.u32 %v4276, 2147483648
        %v4294 = vsel %vm4292, %v4293, %v4284
        %v4295 = vsel %vm4288, %v4291, %v4294
        %v4296 = vsel %vm4285, nan, %v4295
        %v4297 = vand.u32 2147483647, %v229
        %vm4298 = vcmp.le.f32.partialorder %v4297, 0.7853982
        %vm4299 = vcmp.lt.s32.totalorder %v229, 0
        %v4300 = vand.u32 %v229, 2139095040
        %v4301 = vshrl.u32 %v4300, 23
        %v4302 = vsub.s32 %v4301, 127
        %v4303 = vand.u32 2147483647, %v229
        %v4304 = vand.u32 %v4303, 8388607
        %v4305 = vor.u32 %v4304, 8388608
        %v4306 = vsub.s32 0, %v4305
        %v4307 = vadd.s32 %v4302, 1
        %vm4308 = vcmp.gt.s32.totalorder %v4307, 0
        %v4309 = vsel %vm4308, %v4307, 0
        %v4310 = vshrl.u32 %v4309, 5
        %v4311 = vand.u32 %v4309, 31
        %v4312 = vsub.s32 32, %v4311
        %v4313 = vshrl.u32 683565275, %v4312
        %v4314 = vshll.u32 683565275, %v4311
        %v4315 = vshrl.u32 2475754826, %v4312
        %v4316 = vor.u32 %v4314, %v4315
        %v4317 = vshll.u32 2475754826, %v4311
        %v4318 = vshrl.u32 2131351028, %v4312
        %v4319 = vor.u32 %v4317, %v4318
        %v4320 = vshll.u32 2131351028, %v4311
        %v4321 = vshrl.u32 2102212464, %v4312
        %v4322 = vor.u32 %v4320, %v4321
        %v4323 = vshll.u32 2102212464, %v4311
        %v4324 = vshrl.u32 920167782, %v4312
        %v4325 = vor.u32 %v4323, %v4324
        %v4326 = vshll.u32 920167782, %v4311
        %v4327 = vshrl.u32 1326507024, %v4312
        %v4328 = vor.u32 %v4326, %v4327
        %vm4329 = vcmp.lt.s32.totalorder %v4310, 1
        %vm4330 = vcmp.lt.s32.totalorder %v4310, 2
        %vm4331 = vcmp.lt.s32.totalorder %v4310, 3
        %vm4332 = vcmp.lt.s32.totalorder %v4310, 4
        %v4333 = vsel %vm4329, %v4313, %v4316
        %v4334 = vsel %vm4332, %v4322, 2102212464
        %v4335 = vsel %vm4331, %v4319, %v4334
        %v4336 = vsel %vm4330, %v4333, %v4335
        %v4337 = vsel %vm4329, %v4316, %v4319
        %v4338 = vsel %vm4332, %v4325, 920167782
        %v4339 = vsel %vm4331, %v4322, %v4338
        %v4340 = vsel %vm4330, %v4337, %v4339
        %v4341 = vsel %vm4329, %v4319, %v4322
        %v4342 = vsel %vm4332, %v4328, 1326507024
        %v4343 = vsel %vm4331, %v4325, %v4342
        %v4344 = vsel %vm4330, %v4341, %v4343
        %v4345 = vshll.u32 %v4305, 8
        %v4346 = vand.u32 %v4345, 65535
        %v4347 = vshrl.u32 %v4345, 16
        %v4348 = vand.u32 %v4344, 65535
        %v4349 = vshrl.u32 %v4344, 16
        %v4350 = vmul.u32 %v4346, %v4348
        %v4351 = vmul.u32 %v4346, %v4349
        %v4352 = vmul.u32 %v4347, %v4348
        %v4353 = vmul.u32 %v4347, %v4349
        %v4354 = vshll.u32 %v4351, 16
        %v4355 = vshrl.u32 %v4351, 16
        %v4356 = vshll.u32 %v4352, 16
        %v4357 = vshrl.u32 %v4352, 16
        %vm4358 = vc.u32 %v4350, %v4354
        %v4359 = vsel %vm4358, 1, 0
        %v4360 = vadd.s32 %v4350, %v4354
        %v4361 = vadd.s32 %v4353, %v4359
        %vm4362 = vc.u32 %v4360, %v4356
        %v4363 = vsel %vm4362, 1, 0
        %v4364 = vadd.s32 %v4360, %v4356
        %v4365 = vadd.s32 %v4361, %v4363
        %v4366 = vadd.s32 %v4365, %v4355
        %v4367 = vadd.s32 %v4366, %v4357
        %v4368 = vand.u32 %v4345, 65535
        %v4369 = vshrl.u32 %v4345, 16
        %v4370 = vand.u32 %v4340, 65535
        %v4371 = vshrl.u32 %v4340, 16
        %v4372 = vmul.u32 %v4368, %v4370
        %v4373 = vmul.u32 %v4368, %v4371
        %v4374 = vmul.u32 %v4369, %v4370
        %v4375 = vmul.u32 %v4369, %v4371
        %v4376 = vshll.u32 %v4373, 16
        %v4377 = vshrl.u32 %v4373, 16
        %v4378 = vshll.u32 %v4374, 16
        %v4379 = vshrl.u32 %v4374, 16
        %vm4380 = vc.u32 %v4372, %v4376
        %v4381 = vsel %vm4380, 1, 0
        %v4382 = vadd.s32 %v4372, %v4376
        %v4383 = vadd.s32 %v4375, %v4381
        %vm4384 = vc.u32 %v4382, %v4378
        %v4385 = vsel %vm4384, 1, 0
        %v4386 = vadd.s32 %v4382, %v4378
        %v4387 = vadd.s32 %v4383, %v4385
        %v4388 = vadd.s32 %v4387, %v4377
        %v4389 = vadd.s32 %v4388, %v4379
        %v4390 = vmul.u32 %v4345, %v4336
        %v4391 = vadd.s32 %v4367, %v4386
        %vm4392 = vc.u32 %v4367, %v4386
        %v4393 = vadd.s32 %v4389, 1
        %v4394 = vsel %vm4392, %v4393, %v4389
        %v4395 = vadd.s32 %v4390, %v4394
        %v4396 = vadd.s32 %v4395, 536870912
        %v4397 = vshrl.u32 %v4396, 30
        %v4398 = vshll.u32 %v4397, 30
        %v4399 = vsub.s32 %v4395, %v4398
        %vm4400 = vcmp.lt.s32.totalorder %v4399, 0
        %v4401 = vsub.s32 0, %v4399
        %v4402 = vsel %vm4400, %v4401, %v4399
        %v4403 = vclz %v4402
        %v4404 = vsub.s32 %v4403, 2
        %vm4405 = vcmp.gt.s32.totalorder 0, %v4404
        %v4406 = vsel %vm4405, 0, %v4404
        %v4407 = vsub.s32 32, %v4406
        %v4408 = vshll.u32 %v4399, %v4406
        %v4409 = vshrl.u32 %v4391, %v4407
        %v4410 = vor.u32 %v4408, %v4409
        %v4411 = vsub.s32 4294967266, %v4406
        %v4412 = vadd.s32 %v4411, 127
        %v4413 = vshll.u32 %v4412, 23
        %v4414 = vor.u32 4788187, %v4413
        %v4415 = vand.u32 2147483647, %v4414
        %v4417 = vcvt.s32.f32 %v4410
        %v4418 = vmul.f32 %v4417, %v4415
        %v4419 = vxor.u32 %v4418, 2147483648
        %v4420 = vsel %vm4299, %v4419, %v4418
        %v4421 = vsub.s32 4, %v4397
        %v4422 = vsel %vm4299, %v4421, %v4397
        %v4423 = vsel %vm4298, %v229, %v4420
        %v4424 = vsel %vm4298, 0, %v4422
        %v4425 = vmul.f32 %v4423, %v4423
        %v4426 = vmul.f32 %v4425, -0.001358992
        %v4427 = vadd.f32 %v4426, 0.041655596
        %v4428 = vmul.f32 %v4425, %v4427
        %v4429 = vadd.f32 %v4428, -0.4999988
        %v4430 = vmul.f32 %v4425, %v4429
        %v4431 = vadd.f32 1.0, %v4430
        %v4432 = vmul.f32 %v4423, %v4423
        %v4433 = vmul.f32 %v4432, -0.00019511016
        %v4434 = vadd.f32 %v4433, 0.008332121
        %v4435 = vmul.f32 %v4432, %v4434
        %v4436 = vadd.f32 %v4435, -0.16666654
        %v4437 = vmul.f32 %v4432, %v4436
        %v4438 = vadd.f32 %v4437, 1.0
        %v4439 = vmul.f32 %v4438, %v4423
        %vm4440 = vweird.f32 %v229
        %v4441 = vadd.s32 %v4424, 3
        %v4442 = vand.u32 %v4441, 3
        %vm4443 = vcmp.lt.s32.totalorder %v4442, 2
        %vm4444 = vcmp.eq.s32.totalorder %v4442, 0
        %v4445 = vxor.u32 %v4439, 2147483648
        %v4446 = vsel %vm4444, %v4431, %v4445
        %vm4447 = vcmp.eq.s32.totalorder %v4442, 2
        %v4448 = vxor.u32 %v4431, 2147483648
        %v4449 = vsel %vm4447, %v4448, %v4439
        %v4450 = vsel %vm4443, %v4446, %v4449
        %v4451 = vsel %vm4440, nan, %v4450
        %v4452 = vand.u32 2147483647, %v230
        %vm4453 = vcmp.le.f32.partialorder %v4452, 0.7853982
        %vm4454 = vcmp.lt.s32.totalorder %v230, 0
        %v4455 = vand.u32 %v230, 2139095040
        %v4456 = vshrl.u32 %v4455, 23
        %v4457 = vsub.s32 %v4456, 127
        %v4458 = vand.u32 2147483647, %v230
        %v4459 = vand.u32 %v4458, 8388607
        %v4460 = vor.u32 %v4459, 8388608
        %v4461 = vsub.s32 0, %v4460
        %v4462 = vadd.s32 %v4457, 1
        %vm4463 = vcmp.gt.s32.totalorder %v4462, 0
        %v4464 = vsel %vm4463, %v4462, 0
        %v4465 = vshrl.u32 %v4464, 5
        %v4466 = vand.u32 %v4464, 31
        %v4467 = vsub.s32 32, %v4466
        %v4468 = vshrl.u32 683565275, %v4467
        %v4469 = vshll.u32 683565275, %v4466
        %v4470 = vshrl.u32 2475754826, %v4467
        %v4471 = vor.u32 %v4469, %v4470
        %v4472 = vshll.u32 2475754826, %v4466
        %v4473 = vshrl.u32 2131351028, %v4467
        %v4474 = vor.u32 %v4472, %v4473
        %v4475 = vshll.u32 2131351028, %v4466
        %v4476 = vshrl.u32 2102212464, %v4467
        %v4477 = vor.u32 %v4475, %v4476
        %v4478 = vshll.u32 2102212464, %v4466
        %v4479 = vshrl.u32 920167782, %v4467
        %v4480 = vor.u32 %v4478, %v4479
        %v4481 = vshll.u32 920167782, %v4466
        %v4482 = vshrl.u32 1326507024, %v4467
        %v4483 = vor.u32 %v4481, %v4482
        %vm4484 = vcmp.lt.s32.totalorder %v4465, 1
        %vm4485 = vcmp.lt.s32.totalorder %v4465, 2
        %vm4486 = vcmp.lt.s32.totalorder %v4465, 3
        %vm4487 = vcmp.lt.s32.totalorder %v4465, 4
        %v4488 = vsel %vm4484, %v4468, %v4471
        %v4489 = vsel %vm4487, %v4477, 2102212464
        %v4490 = vsel %vm4486, %v4474, %v4489
        %v4491 = vsel %vm4485, %v4488, %v4490
        %v4492 = vsel %vm4484, %v4471, %v4474
        %v4493 = vsel %vm4487, %v4480, 920167782
        %v4494 = vsel %vm4486, %v4477, %v4493
        %v4495 = vsel %vm4485, %v4492, %v4494
        %v4496 = vsel %vm4484, %v4474, %v4477
        %v4497 = vsel %vm4487, %v4483, 1326507024
        %v4498 = vsel %vm4486, %v4480, %v4497
        %v4499 = vsel %vm4485, %v4496, %v4498
        %v4500 = vshll.u32 %v4460, 8
        %v4501 = vand.u32 %v4500, 65535
        %v4502 = vshrl.u32 %v4500, 16
        %v4503 = vand.u32 %v4499, 65535
        %v4504 = vshrl.u32 %v4499, 16
        %v4505 = vmul.u32 %v4501, %v4503
        %v4506 = vmul.u32 %v4501, %v4504
        %v4507 = vmul.u32 %v4502, %v4503
        %v4508 = vmul.u32 %v4502, %v4504
        %v4509 = vshll.u32 %v4506, 16
        %v4510 = vshrl.u32 %v4506, 16
        %v4511 = vshll.u32 %v4507, 16
        %v4512 = vshrl.u32 %v4507, 16
        %vm4513 = vc.u32 %v4505, %v4509
        %v4514 = vsel %vm4513, 1, 0
        %v4515 = vadd.s32 %v4505, %v4509
        %v4516 = vadd.s32 %v4508, %v4514
        %vm4517 = vc.u32 %v4515, %v4511
        %v4518 = vsel %vm4517, 1, 0
        %v4519 = vadd.s32 %v4515, %v4511
        %v4520 = vadd.s32 %v4516, %v4518
        %v4521 = vadd.s32 %v4520, %v4510
        %v4522 = vadd.s32 %v4521, %v4512
        %v4523 = vand.u32 %v4500, 65535
        %v4524 = vshrl.u32 %v4500, 16
        %v4525 = vand.u32 %v4495, 65535
        %v4526 = vshrl.u32 %v4495, 16
        %v4527 = vmul.u32 %v4523, %v4525
        %v4528 = vmul.u32 %v4523, %v4526
        %v4529 = vmul.u32 %v4524, %v4525
        %v4530 = vmul.u32 %v4524, %v4526
        %v4531 = vshll.u32 %v4528, 16
        %v4532 = vshrl.u32 %v4528, 16
        %v4533 = vshll.u32 %v4529, 16
        %v4534 = vshrl.u32 %v4529, 16
        %vm4535 = vc.u32 %v4527, %v4531
        %v4536 = vsel %vm4535, 1, 0
        %v4537 = vadd.s32 %v4527, %v4531
        %v4538 = vadd.s32 %v4530, %v4536
        %vm4539 = vc.u32 %v4537, %v4533
        %v4540 = vsel %vm4539, 1, 0
        %v4541 = vadd.s32 %v4537, %v4533
        %v4542 = vadd.s32 %v4538, %v4540
        %v4543 = vadd.s32 %v4542, %v4532
        %v4544 = vadd.s32 %v4543, %v4534
        %v4545 = vmul.u32 %v4500, %v4491
        %v4546 = vadd.s32 %v4522, %v4541
        %vm4547 = vc.u32 %v4522, %v4541
        %v4548 = vadd.s32 %v4544, 1
        %v4549 = vsel %vm4547, %v4548, %v4544
        %v4550 = vadd.s32 %v4545, %v4549
        %v4551 = vadd.s32 %v4550, 536870912
        %v4552 = vshrl.u32 %v4551, 30
        %v4553 = vshll.u32 %v4552, 30
        %v4554 = vsub.s32 %v4550, %v4553
        %vm4555 = vcmp.lt.s32.totalorder %v4554, 0
        %v4556 = vsub.s32 0, %v4554
        %v4557 = vsel %vm4555, %v4556, %v4554
        %v4558 = vclz %v4557
        %v4559 = vsub.s32 %v4558, 2
        %vm4560 = vcmp.gt.s32.totalorder 0, %v4559
        %v4561 = vsel %vm4560, 0, %v4559
        %v4562 = vsub.s32 32, %v4561
        %v4563 = vshll.u32 %v4554, %v4561
        %v4564 = vshrl.u32 %v4546, %v4562
        %v4565 = vor.u32 %v4563, %v4564
        %v4566 = vsub.s32 4294967266, %v4561
        %v4567 = vadd.s32 %v4566, 127
        %v4568 = vshll.u32 %v4567, 23
        %v4569 = vor.u32 4788187, %v4568
        %v4570 = vand.u32 2147483647, %v4569
        %v4572 = vcvt.s32.f32 %v4565
        %v4573 = vmul.f32 %v4572, %v4570
        %v4574 = vxor.u32 %v4573, 2147483648
        %v4575 = vsel %vm4454, %v4574, %v4573
        %v4576 = vsub.s32 4, %v4552
        %v4577 = vsel %vm4454, %v4576, %v4552
        %v4578 = vsel %vm4453, %v230, %v4575
        %v4579 = vsel %vm4453, 0, %v4577
        %v4580 = vmul.f32 %v4578, %v4578
        %v4581 = vmul.f32 %v4580, -0.001358992
        %v4582 = vadd.f32 %v4581, 0.041655596
        %v4583 = vmul.f32 %v4580, %v4582
        %v4584 = vadd.f32 %v4583, -0.4999988
        %v4585 = vmul.f32 %v4580, %v4584
        %v4586 = vadd.f32 1.0, %v4585
        %v4587 = vmul.f32 %v4578, %v4578
        %v4588 = vmul.f32 %v4587, -0.00019511016
        %v4589 = vadd.f32 %v4588, 0.008332121
        %v4590 = vmul.f32 %v4587, %v4589
        %v4591 = vadd.f32 %v4590, -0.16666654
        %v4592 = vmul.f32 %v4587, %v4591
        %v4593 = vadd.f32 %v4592, 1.0
        %v4594 = vmul.f32 %v4593, %v4578
        %vm4595 = vweird.f32 %v230
        %v4596 = vadd.s32 %v4579, 3
        %v4597 = vand.u32 %v4596, 3
        %vm4598 = vcmp.lt.s32.totalorder %v4597, 2
        %vm4599 = vcmp.eq.s32.totalorder %v4597, 0
        %v4600 = vxor.u32 %v4594, 2147483648
        %v4601 = vsel %vm4599, %v4586, %v4600
        %vm4602 = vcmp.eq.s32.totalorder %v4597, 2
        %v4603 = vxor.u32 %v4586, 2147483648
        %v4604 = vsel %vm4602, %v4603, %v4594
        %v4605 = vsel %vm4598, %v4601, %v4604
        %v4606 = vsel %vm4595, nan, %v4605
        %v4607 = vand.u32 2147483647, %v231
        %vm4608 = vcmp.le.f32.partialorder %v4607, 0.7853982
        %vm4609 = vcmp.lt.s32.totalorder %v231, 0
        %v4610 = vand.u32 %v231, 2139095040
        %v4611 = vshrl.u32 %v4610, 23
        %v4612 = vsub.s32 %v4611, 127
        %v4613 = vand.u32 2147483647, %v231
        %v4614 = vand.u32 %v4613, 8388607
        %v4615 = vor.u32 %v4614, 8388608
        %v4616 = vsub.s32 0, %v4615
        %v4617 = vadd.s32 %v4612, 1
        %vm4618 = vcmp.gt.s32.totalorder %v4617, 0
        %v4619 = vsel %vm4618, %v4617, 0
        %v4620 = vshrl.u32 %v4619, 5
        %v4621 = vand.u32 %v4619, 31
        %v4622 = vsub.s32 32, %v4621
        %v4623 = vshrl.u32 683565275, %v4622
        %v4624 = vshll.u32 683565275, %v4621
        %v4625 = vshrl.u32 2475754826, %v4622
        %v4626 = vor.u32 %v4624, %v4625
        %v4627 = vshll.u32 2475754826, %v4621
        %v4628 = vshrl.u32 2131351028, %v4622
        %v4629 = vor.u32 %v4627, %v4628
        %v4630 = vshll.u32 2131351028, %v4621
        %v4631 = vshrl.u32 2102212464, %v4622
        %v4632 = vor.u32 %v4630, %v4631
        %v4633 = vshll.u32 2102212464, %v4621
        %v4634 = vshrl.u32 920167782, %v4622
        %v4635 = vor.u32 %v4633, %v4634
        %v4636 = vshll.u32 920167782, %v4621
        %v4637 = vshrl.u32 1326507024, %v4622
        %v4638 = vor.u32 %v4636, %v4637
        %vm4639 = vcmp.lt.s32.totalorder %v4620, 1
        %vm4640 = vcmp.lt.s32.totalorder %v4620, 2
        %vm4641 = vcmp.lt.s32.totalorder %v4620, 3
        %vm4642 = vcmp.lt.s32.totalorder %v4620, 4
        %v4643 = vsel %vm4639, %v4623, %v4626
        %v4644 = vsel %vm4642, %v4632, 2102212464
        %v4645 = vsel %vm4641, %v4629, %v4644
        %v4646 = vsel %vm4640, %v4643, %v4645
        %v4647 = vsel %vm4639, %v4626, %v4629
        %v4648 = vsel %vm4642, %v4635, 920167782
        %v4649 = vsel %vm4641, %v4632, %v4648
        %v4650 = vsel %vm4640, %v4647, %v4649
        %v4651 = vsel %vm4639, %v4629, %v4632
        %v4652 = vsel %vm4642, %v4638, 1326507024
        %v4653 = vsel %vm4641, %v4635, %v4652
        %v4654 = vsel %vm4640, %v4651, %v4653
        %v4655 = vshll.u32 %v4615, 8
        %v4656 = vand.u32 %v4655, 65535
        %v4657 = vshrl.u32 %v4655, 16
        %v4658 = vand.u32 %v4654, 65535
        %v4659 = vshrl.u32 %v4654, 16
        %v4660 = vmul.u32 %v4656, %v4658
        %v4661 = vmul.u32 %v4656, %v4659
        %v4662 = vmul.u32 %v4657, %v4658
        %v4663 = vmul.u32 %v4657, %v4659
        %v4664 = vshll.u32 %v4661, 16
        %v4665 = vshrl.u32 %v4661, 16
        %v4666 = vshll.u32 %v4662, 16
        %v4667 = vshrl.u32 %v4662, 16
        %vm4668 = vc.u32 %v4660, %v4664
        %v4669 = vsel %vm4668, 1, 0
        %v4670 = vadd.s32 %v4660, %v4664
        %v4671 = vadd.s32 %v4663, %v4669
        %vm4672 = vc.u32 %v4670, %v4666
        %v4673 = vsel %vm4672, 1, 0
        %v4674 = vadd.s32 %v4670, %v4666
        %v4675 = vadd.s32 %v4671, %v4673
        %v4676 = vadd.s32 %v4675, %v4665
        %v4677 = vadd.s32 %v4676, %v4667
        %v4678 = vand.u32 %v4655, 65535
        %v4679 = vshrl.u32 %v4655, 16
        %v4680 = vand.u32 %v4650, 65535
        %v4681 = vshrl.u32 %v4650, 16
        %v4682 = vmul.u32 %v4678, %v4680
        %v4683 = vmul.u32 %v4678, %v4681
        %v4684 = vmul.u32 %v4679, %v4680
        %v4685 = vmul.u32 %v4679, %v4681
        %v4686 = vshll.u32 %v4683, 16
        %v4687 = vshrl.u32 %v4683, 16
        %v4688 = vshll.u32 %v4684, 16
        %v4689 = vshrl.u32 %v4684, 16
        %vm4690 = vc.u32 %v4682, %v4686
        %v4691 = vsel %vm4690, 1, 0
        %v4692 = vadd.s32 %v4682, %v4686
        %v4693 = vadd.s32 %v4685, %v4691
        %vm4694 = vc.u32 %v4692, %v4688
        %v4695 = vsel %vm4694, 1, 0
        %v4696 = vadd.s32 %v4692, %v4688
        %v4697 = vadd.s32 %v4693, %v4695
        %v4698 = vadd.s32 %v4697, %v4687
        %v4699 = vadd.s32 %v4698, %v4689
        %v4700 = vmul.u32 %v4655, %v4646
        %v4701 = vadd.s32 %v4677, %v4696
        %vm4702 = vc.u32 %v4677, %v4696
        %v4703 = vadd.s32 %v4699, 1
        %v4704 = vsel %vm4702, %v4703, %v4699
        %v4705 = vadd.s32 %v4700, %v4704
        %v4706 = vadd.s32 %v4705, 536870912
        %v4707 = vshrl.u32 %v4706, 30
        %v4708 = vshll.u32 %v4707, 30
        %v4709 = vsub.s32 %v4705, %v4708
        %vm4710 = vcmp.lt.s32.totalorder %v4709, 0
        %v4711 = vsub.s32 0, %v4709
        %v4712 = vsel %vm4710, %v4711, %v4709
        %v4713 = vclz %v4712
        %v4714 = vsub.s32 %v4713, 2
        %vm4715 = vcmp.gt.s32.totalorder 0, %v4714
        %v4716 = vsel %vm4715, 0, %v4714
        %v4717 = vsub.s32 32, %v4716
        %v4718 = vshll.u32 %v4709, %v4716
        %v4719 = vshrl.u32 %v4701, %v4717
        %v4720 = vor.u32 %v4718, %v4719
        %v4721 = vsub.s32 4294967266, %v4716
        %v4722 = vadd.s32 %v4721, 127
        %v4723 = vshll.u32 %v4722, 23
        %v4724 = vor.u32 4788187, %v4723
        %v4725 = vand.u32 2147483647, %v4724
        %v4727 = vcvt.s32.f32 %v4720
        %v4728 = vmul.f32 %v4727, %v4725
        %v4729 = vxor.u32 %v4728, 2147483648
        %v4730 = vsel %vm4609, %v4729, %v4728
        %v4731 = vsub.s32 4, %v4707
        %v4732 = vsel %vm4609, %v4731, %v4707
        %v4733 = vsel %vm4608, %v231, %v4730
        %v4734 = vsel %vm4608, 0, %v4732
        %v4735 = vmul.f32 %v4733, %v4733
        %v4736 = vmul.f32 %v4735, -0.001358992
        %v4737 = vadd.f32 %v4736, 0.041655596
        %v4738 = vmul.f32 %v4735, %v4737
        %v4739 = vadd.f32 %v4738, -0.4999988
        %v4740 = vmul.f32 %v4735, %v4739
        %v4741 = vadd.f32 1.0, %v4740
        %v4742 = vmul.f32 %v4733, %v4733
        %v4743 = vmul.f32 %v4742, -0.00019511016
        %v4744 = vadd.f32 %v4743, 0.008332121
        %v4745 = vmul.f32 %v4742, %v4744
        %v4746 = vadd.f32 %v4745, -0.16666654
        %v4747 = vmul.f32 %v4742, %v4746
        %v4748 = vadd.f32 %v4747, 1.0
        %v4749 = vmul.f32 %v4748, %v4733
        %vm4750 = vweird.f32 %v231
        %v4751 = vadd.s32 %v4734, 3
        %v4752 = vand.u32 %v4751, 3
        %vm4753 = vcmp.lt.s32.totalorder %v4752, 2
        %vm4754 = vcmp.eq.s32.totalorder %v4752, 0
        %v4755 = vxor.u32 %v4749, 2147483648
        %v4756 = vsel %vm4754, %v4741, %v4755
        %vm4757 = vcmp.eq.s32.totalorder %v4752, 2
        %v4758 = vxor.u32 %v4741, 2147483648
        %v4759 = vsel %vm4757, %v4758, %v4749
        %v4760 = vsel %vm4753, %v4756, %v4759
        %v4761 = vsel %vm4750, nan, %v4760
        %v4762 = vand.u32 2147483647, %v232
        %vm4763 = vcmp.le.f32.partialorder %v4762, 0.7853982
        %vm4764 = vcmp.lt.s32.totalorder %v232, 0
        %v4765 = vand.u32 %v232, 2139095040
        %v4766 = vshrl.u32 %v4765, 23
        %v4767 = vsub.s32 %v4766, 127
        %v4768 = vand.u32 2147483647, %v232
        %v4769 = vand.u32 %v4768, 8388607
        %v4770 = vor.u32 %v4769, 8388608
        %v4771 = vsub.s32 0, %v4770
        %v4772 = vadd.s32 %v4767, 1
        %vm4773 = vcmp.gt.s32.totalorder %v4772, 0
        %v4774 = vsel %vm4773, %v4772, 0
        %v4775 = vshrl.u32 %v4774, 5
        %v4776 = vand.u32 %v4774, 31
        %v4777 = vsub.s32 32, %v4776
        %v4778 = vshrl.u32 683565275, %v4777
        %v4779 = vshll.u32 683565275, %v4776
        %v4780 = vshrl.u32 2475754826, %v4777
        %v4781 = vor.u32 %v4779, %v4780
        %v4782 = vshll.u32 2475754826, %v4776
        %v4783 = vshrl.u32 2131351028, %v4777
        %v4784 = vor.u32 %v4782, %v4783
        %v4785 = vshll.u32 2131351028, %v4776
        %v4786 = vshrl.u32 2102212464, %v4777
        %v4787 = vor.u32 %v4785, %v4786
        %v4788 = vshll.u32 2102212464, %v4776
        %v4789 = vshrl.u32 920167782, %v4777
        %v4790 = vor.u32 %v4788, %v4789
        %v4791 = vshll.u32 920167782, %v4776
        %v4792 = vshrl.u32 1326507024, %v4777
        %v4793 = vor.u32 %v4791, %v4792
        %vm4794 = vcmp.lt.s32.totalorder %v4775, 1
        %vm4795 = vcmp.lt.s32.totalorder %v4775, 2
        %vm4796 = vcmp.lt.s32.totalorder %v4775, 3
        %vm4797 = vcmp.lt.s32.totalorder %v4775, 4
        %v4798 = vsel %vm4794, %v4778, %v4781
        %v4799 = vsel %vm4797, %v4787, 2102212464
        %v4800 = vsel %vm4796, %v4784, %v4799
        %v4801 = vsel %vm4795, %v4798, %v4800
        %v4802 = vsel %vm4794, %v4781, %v4784
        %v4803 = vsel %vm4797, %v4790, 920167782
        %v4804 = vsel %vm4796, %v4787, %v4803
        %v4805 = vsel %vm4795, %v4802, %v4804
        %v4806 = vsel %vm4794, %v4784, %v4787
        %v4807 = vsel %vm4797, %v4793, 1326507024
        %v4808 = vsel %vm4796, %v4790, %v4807
        %v4809 = vsel %vm4795, %v4806, %v4808
        %v4810 = vshll.u32 %v4770, 8
        %v4811 = vand.u32 %v4810, 65535
        %v4812 = vshrl.u32 %v4810, 16
        %v4813 = vand.u32 %v4809, 65535
        %v4814 = vshrl.u32 %v4809, 16
        %v4815 = vmul.u32 %v4811, %v4813
        %v4816 = vmul.u32 %v4811, %v4814
        %v4817 = vmul.u32 %v4812, %v4813
        %v4818 = vmul.u32 %v4812, %v4814
        %v4819 = vshll.u32 %v4816, 16
        %v4820 = vshrl.u32 %v4816, 16
        %v4821 = vshll.u32 %v4817, 16
        %v4822 = vshrl.u32 %v4817, 16
        %vm4823 = vc.u32 %v4815, %v4819
        %v4824 = vsel %vm4823, 1, 0
        %v4825 = vadd.s32 %v4815, %v4819
        %v4826 = vadd.s32 %v4818, %v4824
        %vm4827 = vc.u32 %v4825, %v4821
        %v4828 = vsel %vm4827, 1, 0
        %v4829 = vadd.s32 %v4825, %v4821
        %v4830 = vadd.s32 %v4826, %v4828
        %v4831 = vadd.s32 %v4830, %v4820
        %v4832 = vadd.s32 %v4831, %v4822
        %v4833 = vand.u32 %v4810, 65535
        %v4834 = vshrl.u32 %v4810, 16
        %v4835 = vand.u32 %v4805, 65535
        %v4836 = vshrl.u32 %v4805, 16
        %v4837 = vmul.u32 %v4833, %v4835
        %v4838 = vmul.u32 %v4833, %v4836
        %v4839 = vmul.u32 %v4834, %v4835
        %v4840 = vmul.u32 %v4834, %v4836
        %v4841 = vshll.u32 %v4838, 16
        %v4842 = vshrl.u32 %v4838, 16
        %v4843 = vshll.u32 %v4839, 16
        %v4844 = vshrl.u32 %v4839, 16
        %vm4845 = vc.u32 %v4837, %v4841
        %v4846 = vsel %vm4845, 1, 0
        %v4847 = vadd.s32 %v4837, %v4841
        %v4848 = vadd.s32 %v4840, %v4846
        %vm4849 = vc.u32 %v4847, %v4843
        %v4850 = vsel %vm4849, 1, 0
        %v4851 = vadd.s32 %v4847, %v4843
        %v4852 = vadd.s32 %v4848, %v4850
        %v4853 = vadd.s32 %v4852, %v4842
        %v4854 = vadd.s32 %v4853, %v4844
        %v4855 = vmul.u32 %v4810, %v4801
        %v4856 = vadd.s32 %v4832, %v4851
        %vm4857 = vc.u32 %v4832, %v4851
        %v4858 = vadd.s32 %v4854, 1
        %v4859 = vsel %vm4857, %v4858, %v4854
        %v4860 = vadd.s32 %v4855, %v4859
        %v4861 = vadd.s32 %v4860, 536870912
        %v4862 = vshrl.u32 %v4861, 30
        %v4863 = vshll.u32 %v4862, 30
        %v4864 = vsub.s32 %v4860, %v4863
        %vm4865 = vcmp.lt.s32.totalorder %v4864, 0
        %v4866 = vsub.s32 0, %v4864
        %v4867 = vsel %vm4865, %v4866, %v4864
        %v4868 = vclz %v4867
        %v4869 = vsub.s32 %v4868, 2
        %vm4870 = vcmp.gt.s32.totalorder 0, %v4869
        %v4871 = vsel %vm4870, 0, %v4869
        %v4872 = vsub.s32 32, %v4871
        %v4873 = vshll.u32 %v4864, %v4871
        %v4874 = vshrl.u32 %v4856, %v4872
        %v4875 = vor.u32 %v4873, %v4874
        %v4876 = vsub.s32 4294967266, %v4871
        %v4877 = vadd.s32 %v4876, 127
        %v4878 = vshll.u32 %v4877, 23
        %v4879 = vor.u32 4788187, %v4878
        %v4880 = vand.u32 2147483647, %v4879
        %v4882 = vcvt.s32.f32 %v4875
        %v4883 = vmul.f32 %v4882, %v4880
        %v4884 = vxor.u32 %v4883, 2147483648
        %v4885 = vsel %vm4764, %v4884, %v4883
        %v4886 = vsub.s32 4, %v4862
        %v4887 = vsel %vm4764, %v4886, %v4862
        %v4888 = vsel %vm4763, %v232, %v4885
        %v4889 = vsel %vm4763, 0, %v4887
        %v4890 = vmul.f32 %v4888, %v4888
        %v4891 = vmul.f32 %v4890, -0.001358992
        %v4892 = vadd.f32 %v4891, 0.041655596
        %v4893 = vmul.f32 %v4890, %v4892
        %v4894 = vadd.f32 %v4893, -0.4999988
        %v4895 = vmul.f32 %v4890, %v4894
        %v4896 = vadd.f32 1.0, %v4895
        %v4897 = vmul.f32 %v4888, %v4888
        %v4898 = vmul.f32 %v4897, -0.00019511016
        %v4899 = vadd.f32 %v4898, 0.008332121
        %v4900 = vmul.f32 %v4897, %v4899
        %v4901 = vadd.f32 %v4900, -0.16666654
        %v4902 = vmul.f32 %v4897, %v4901
        %v4903 = vadd.f32 %v4902, 1.0
        %v4904 = vmul.f32 %v4903, %v4888
        %vm4905 = vweird.f32 %v232
        %v4906 = vadd.s32 %v4889, 3
        %v4907 = vand.u32 %v4906, 3
        %vm4908 = vcmp.lt.s32.totalorder %v4907, 2
        %vm4909 = vcmp.eq.s32.totalorder %v4907, 0
        %v4910 = vxor.u32 %v4904, 2147483648
        %v4911 = vsel %vm4909, %v4896, %v4910
        %vm4912 = vcmp.eq.s32.totalorder %v4907, 2
        %v4913 = vxor.u32 %v4896, 2147483648
        %v4914 = vsel %vm4912, %v4913, %v4904
        %v4915 = vsel %vm4908, %v4911, %v4914
        %v4916 = vsel %vm4905, nan, %v4915
        %v4917 = vand.u32 2147483647, %v233
        %vm4918 = vcmp.le.f32.partialorder %v4917, 0.7853982
        %vm4919 = vcmp.lt.s32.totalorder %v233, 0
        %v4920 = vand.u32 %v233, 2139095040
        %v4921 = vshrl.u32 %v4920, 23
        %v4922 = vsub.s32 %v4921, 127
        %v4923 = vand.u32 2147483647, %v233
        %v4924 = vand.u32 %v4923, 8388607
        %v4925 = vor.u32 %v4924, 8388608
        %v4926 = vsub.s32 0, %v4925
        %v4927 = vadd.s32 %v4922, 1
        %vm4928 = vcmp.gt.s32.totalorder %v4927, 0
        %v4929 = vsel %vm4928, %v4927, 0
        %v4930 = vshrl.u32 %v4929, 5
        %v4931 = vand.u32 %v4929, 31
        %v4932 = vsub.s32 32, %v4931
        %v4933 = vshrl.u32 683565275, %v4932
        %v4934 = vshll.u32 683565275, %v4931
        %v4935 = vshrl.u32 2475754826, %v4932
        %v4936 = vor.u32 %v4934, %v4935
        %v4937 = vshll.u32 2475754826, %v4931
        %v4938 = vshrl.u32 2131351028, %v4932
        %v4939 = vor.u32 %v4937, %v4938
        %v4940 = vshll.u32 2131351028, %v4931
        %v4941 = vshrl.u32 2102212464, %v4932
        %v4942 = vor.u32 %v4940, %v4941
        %v4943 = vshll.u32 2102212464, %v4931
        %v4944 = vshrl.u32 920167782, %v4932
        %v4945 = vor.u32 %v4943, %v4944
        %v4946 = vshll.u32 920167782, %v4931
        %v4947 = vshrl.u32 1326507024, %v4932
        %v4948 = vor.u32 %v4946, %v4947
        %vm4949 = vcmp.lt.s32.totalorder %v4930, 1
        %vm4950 = vcmp.lt.s32.totalorder %v4930, 2
        %vm4951 = vcmp.lt.s32.totalorder %v4930, 3
        %vm4952 = vcmp.lt.s32.totalorder %v4930, 4
        %v4953 = vsel %vm4949, %v4933, %v4936
        %v4954 = vsel %vm4952, %v4942, 2102212464
        %v4955 = vsel %vm4951, %v4939, %v4954
        %v4956 = vsel %vm4950, %v4953, %v4955
        %v4957 = vsel %vm4949, %v4936, %v4939
        %v4958 = vsel %vm4952, %v4945, 920167782
        %v4959 = vsel %vm4951, %v4942, %v4958
        %v4960 = vsel %vm4950, %v4957, %v4959
        %v4961 = vsel %vm4949, %v4939, %v4942
        %v4962 = vsel %vm4952, %v4948, 1326507024
        %v4963 = vsel %vm4951, %v4945, %v4962
        %v4964 = vsel %vm4950, %v4961, %v4963
        %v4965 = vshll.u32 %v4925, 8
        %v4966 = vand.u32 %v4965, 65535
        %v4967 = vshrl.u32 %v4965, 16
        %v4968 = vand.u32 %v4964, 65535
        %v4969 = vshrl.u32 %v4964, 16
        %v4970 = vmul.u32 %v4966, %v4968
        %v4971 = vmul.u32 %v4966, %v4969
        %v4972 = vmul.u32 %v4967, %v4968
        %v4973 = vmul.u32 %v4967, %v4969
        %v4974 = vshll.u32 %v4971, 16
        %v4975 = vshrl.u32 %v4971, 16
        %v4976 = vshll.u32 %v4972, 16
        %v4977 = vshrl.u32 %v4972, 16
        %vm4978 = vc.u32 %v4970, %v4974
        %v4979 = vsel %vm4978, 1, 0
        %v4980 = vadd.s32 %v4970, %v4974
        %v4981 = vadd.s32 %v4973, %v4979
        %vm4982 = vc.u32 %v4980, %v4976
        %v4983 = vsel %vm4982, 1, 0
        %v4984 = vadd.s32 %v4980, %v4976
        %v4985 = vadd.s32 %v4981, %v4983
        %v4986 = vadd.s32 %v4985, %v4975
        %v4987 = vadd.s32 %v4986, %v4977
        %v4988 = vand.u32 %v4965, 65535
        %v4989 = vshrl.u32 %v4965, 16
        %v4990 = vand.u32 %v4960, 65535
        %v4991 = vshrl.u32 %v4960, 16
        %v4992 = vmul.u32 %v4988, %v4990
        %v4993 = vmul.u32 %v4988, %v4991
        %v4994 = vmul.u32 %v4989, %v4990
        %v4995 = vmul.u32 %v4989, %v4991
        %v4996 = vshll.u32 %v4993, 16
        %v4997 = vshrl.u32 %v4993, 16
        %v4998 = vshll.u32 %v4994, 16
        %v4999 = vshrl.u32 %v4994, 16
        %vm5000 = vc.u32 %v4992, %v4996
        %v5001 = vsel %vm5000, 1, 0
        %v5002 = vadd.s32 %v4992, %v4996
        %v5003 = vadd.s32 %v4995, %v5001
        %vm5004 = vc.u32 %v5002, %v4998
        %v5005 = vsel %vm5004, 1, 0
        %v5006 = vadd.s32 %v5002, %v4998
        %v5007 = vadd.s32 %v5003, %v5005
        %v5008 = vadd.s32 %v5007, %v4997
        %v5009 = vadd.s32 %v5008, %v4999
        %v5010 = vmul.u32 %v4965, %v4956
        %v5011 = vadd.s32 %v4987, %v5006
        %vm5012 = vc.u32 %v4987, %v5006
        %v5013 = vadd.s32 %v5009, 1
        %v5014 = vsel %vm5012, %v5013, %v5009
        %v5015 = vadd.s32 %v5010, %v5014
        %v5016 = vadd.s32 %v5015, 536870912
        %v5017 = vshrl.u32 %v5016, 30
        %v5018 = vshll.u32 %v5017, 30
        %v5019 = vsub.s32 %v5015, %v5018
        %vm5020 = vcmp.lt.s32.totalorder %v5019, 0
        %v5021 = vsub.s32 0, %v5019
        %v5022 = vsel %vm5020, %v5021, %v5019
        %v5023 = vclz %v5022
        %v5024 = vsub.s32 %v5023, 2
        %vm5025 = vcmp.gt.s32.totalorder 0, %v5024
        %v5026 = vsel %vm5025, 0, %v5024
        %v5027 = vsub.s32 32, %v5026
        %v5028 = vshll.u32 %v5019, %v5026
        %v5029 = vshrl.u32 %v5011, %v5027
        %v5030 = vor.u32 %v5028, %v5029
        %v5031 = vsub.s32 4294967266, %v5026
        %v5032 = vadd.s32 %v5031, 127
        %v5033 = vshll.u32 %v5032, 23
        %v5034 = vor.u32 4788187, %v5033
        %v5035 = vand.u32 2147483647, %v5034
        %v5037 = vcvt.s32.f32 %v5030
        %v5038 = vmul.f32 %v5037, %v5035
        %v5039 = vxor.u32 %v5038, 2147483648
        %v5040 = vsel %vm4919, %v5039, %v5038
        %v5041 = vsub.s32 4, %v5017
        %v5042 = vsel %vm4919, %v5041, %v5017
        %v5043 = vsel %vm4918, %v233, %v5040
        %v5044 = vsel %vm4918, 0, %v5042
        %v5045 = vmul.f32 %v5043, %v5043
        %v5046 = vmul.f32 %v5045, -0.001358992
        %v5047 = vadd.f32 %v5046, 0.041655596
        %v5048 = vmul.f32 %v5045, %v5047
        %v5049 = vadd.f32 %v5048, -0.4999988
        %v5050 = vmul.f32 %v5045, %v5049
        %v5051 = vadd.f32 1.0, %v5050
        %v5052 = vmul.f32 %v5043, %v5043
        %v5053 = vmul.f32 %v5052, -0.00019511016
        %v5054 = vadd.f32 %v5053, 0.008332121
        %v5055 = vmul.f32 %v5052, %v5054
        %v5056 = vadd.f32 %v5055, -0.16666654
        %v5057 = vmul.f32 %v5052, %v5056
        %v5058 = vadd.f32 %v5057, 1.0
        %v5059 = vmul.f32 %v5058, %v5043
        %vm5060 = vweird.f32 %v233
        %v5061 = vadd.s32 %v5044, 3
        %v5062 = vand.u32 %v5061, 3
        %vm5063 = vcmp.lt.s32.totalorder %v5062, 2
        %vm5064 = vcmp.eq.s32.totalorder %v5062, 0
        %v5065 = vxor.u32 %v5059, 2147483648
        %v5066 = vsel %vm5064, %v5051, %v5065
        %vm5067 = vcmp.eq.s32.totalorder %v5062, 2
        %v5068 = vxor.u32 %v5051, 2147483648
        %v5069 = vsel %vm5067, %v5068, %v5059
        %v5070 = vsel %vm5063, %v5066, %v5069
        %v5071 = vsel %vm5060, nan, %v5070
        %v5072 = vand.u32 2147483647, %v234
        %vm5073 = vcmp.le.f32.partialorder %v5072, 0.7853982
        %vm5074 = vcmp.lt.s32.totalorder %v234, 0
        %v5075 = vand.u32 %v234, 2139095040
        %v5076 = vshrl.u32 %v5075, 23
        %v5077 = vsub.s32 %v5076, 127
        %v5078 = vand.u32 2147483647, %v234
        %v5079 = vand.u32 %v5078, 8388607
        %v5080 = vor.u32 %v5079, 8388608
        %v5081 = vsub.s32 0, %v5080
        %v5082 = vadd.s32 %v5077, 1
        %vm5083 = vcmp.gt.s32.totalorder %v5082, 0
        %v5084 = vsel %vm5083, %v5082, 0
        %v5085 = vshrl.u32 %v5084, 5
        %v5086 = vand.u32 %v5084, 31
        %v5087 = vsub.s32 32, %v5086
        %v5088 = vshrl.u32 683565275, %v5087
        %v5089 = vshll.u32 683565275, %v5086
        %v5090 = vshrl.u32 2475754826, %v5087
        %v5091 = vor.u32 %v5089, %v5090
        %v5092 = vshll.u32 2475754826, %v5086
        %v5093 = vshrl.u32 2131351028, %v5087
        %v5094 = vor.u32 %v5092, %v5093
        %v5095 = vshll.u32 2131351028, %v5086
        %v5096 = vshrl.u32 2102212464, %v5087
        %v5097 = vor.u32 %v5095, %v5096
        %v5098 = vshll.u32 2102212464, %v5086
        %v5099 = vshrl.u32 920167782, %v5087
        %v5100 = vor.u32 %v5098, %v5099
        %v5101 = vshll.u32 920167782, %v5086
        %v5102 = vshrl.u32 1326507024, %v5087
        %v5103 = vor.u32 %v5101, %v5102
        %vm5104 = vcmp.lt.s32.totalorder %v5085, 1
        %vm5105 = vcmp.lt.s32.totalorder %v5085, 2
        %vm5106 = vcmp.lt.s32.totalorder %v5085, 3
        %vm5107 = vcmp.lt.s32.totalorder %v5085, 4
        %v5108 = vsel %vm5104, %v5088, %v5091
        %v5109 = vsel %vm5107, %v5097, 2102212464
        %v5110 = vsel %vm5106, %v5094, %v5109
        %v5111 = vsel %vm5105, %v5108, %v5110
        %v5112 = vsel %vm5104, %v5091, %v5094
        %v5113 = vsel %vm5107, %v5100, 920167782
        %v5114 = vsel %vm5106, %v5097, %v5113
        %v5115 = vsel %vm5105, %v5112, %v5114
        %v5116 = vsel %vm5104, %v5094, %v5097
        %v5117 = vsel %vm5107, %v5103, 1326507024
        %v5118 = vsel %vm5106, %v5100, %v5117
        %v5119 = vsel %vm5105, %v5116, %v5118
        %v5120 = vshll.u32 %v5080, 8
        %v5121 = vand.u32 %v5120, 65535
        %v5122 = vshrl.u32 %v5120, 16
        %v5123 = vand.u32 %v5119, 65535
        %v5124 = vshrl.u32 %v5119, 16
        %v5125 = vmul.u32 %v5121, %v5123
        %v5126 = vmul.u32 %v5121, %v5124
        %v5127 = vmul.u32 %v5122, %v5123
        %v5128 = vmul.u32 %v5122, %v5124
        %v5129 = vshll.u32 %v5126, 16
        %v5130 = vshrl.u32 %v5126, 16
        %v5131 = vshll.u32 %v5127, 16
        %v5132 = vshrl.u32 %v5127, 16
        %vm5133 = vc.u32 %v5125, %v5129
        %v5134 = vsel %vm5133, 1, 0
        %v5135 = vadd.s32 %v5125, %v5129
        %v5136 = vadd.s32 %v5128, %v5134
        %vm5137 = vc.u32 %v5135, %v5131
        %v5138 = vsel %vm5137, 1, 0
        %v5139 = vadd.s32 %v5135, %v5131
        %v5140 = vadd.s32 %v5136, %v5138
        %v5141 = vadd.s32 %v5140, %v5130
        %v5142 = vadd.s32 %v5141, %v5132
        %v5143 = vand.u32 %v5120, 65535
        %v5144 = vshrl.u32 %v5120, 16
        %v5145 = vand.u32 %v5115, 65535
        %v5146 = vshrl.u32 %v5115, 16
        %v5147 = vmul.u32 %v5143, %v5145
        %v5148 = vmul.u32 %v5143, %v5146
        %v5149 = vmul.u32 %v5144, %v5145
        %v5150 = vmul.u32 %v5144, %v5146
        %v5151 = vshll.u32 %v5148, 16
        %v5152 = vshrl.u32 %v5148, 16
        %v5153 = vshll.u32 %v5149, 16
        %v5154 = vshrl.u32 %v5149, 16
        %vm5155 = vc.u32 %v5147, %v5151
        %v5156 = vsel %vm5155, 1, 0
        %v5157 = vadd.s32 %v5147, %v5151
        %v5158 = vadd.s32 %v5150, %v5156
        %vm5159 = vc.u32 %v5157, %v5153
        %v5160 = vsel %vm5159, 1, 0
        %v5161 = vadd.s32 %v5157, %v5153
        %v5162 = vadd.s32 %v5158, %v5160
        %v5163 = vadd.s32 %v5162, %v5152
        %v5164 = vadd.s32 %v5163, %v5154
        %v5165 = vmul.u32 %v5120, %v5111
        %v5166 = vadd.s32 %v5142, %v5161
        %vm5167 = vc.u32 %v5142, %v5161
        %v5168 = vadd.s32 %v5164, 1
        %v5169 = vsel %vm5167, %v5168, %v5164
        %v5170 = vadd.s32 %v5165, %v5169
        %v5171 = vadd.s32 %v5170, 536870912
        %v5172 = vshrl.u32 %v5171, 30
        %v5173 = vshll.u32 %v5172, 30
        %v5174 = vsub.s32 %v5170, %v5173
        %vm5175 = vcmp.lt.s32.totalorder %v5174, 0
        %v5176 = vsub.s32 0, %v5174
        %v5177 = vsel %vm5175, %v5176, %v5174
        %v5178 = vclz %v5177
        %v5179 = vsub.s32 %v5178, 2
        %vm5180 = vcmp.gt.s32.totalorder 0, %v5179
        %v5181 = vsel %vm5180, 0, %v5179
        %v5182 = vsub.s32 32, %v5181
        %v5183 = vshll.u32 %v5174, %v5181
        %v5184 = vshrl.u32 %v5166, %v5182
        %v5185 = vor.u32 %v5183, %v5184
        %v5186 = vsub.s32 4294967266, %v5181
        %v5187 = vadd.s32 %v5186, 127
        %v5188 = vshll.u32 %v5187, 23
        %v5189 = vor.u32 4788187, %v5188
        %v5190 = vand.u32 2147483647, %v5189
        %v5192 = vcvt.s32.f32 %v5185
        %v5193 = vmul.f32 %v5192, %v5190
        %v5194 = vxor.u32 %v5193, 2147483648
        %v5195 = vsel %vm5074, %v5194, %v5193
        %v5196 = vsub.s32 4, %v5172
        %v5197 = vsel %vm5074, %v5196, %v5172
        %v5198 = vsel %vm5073, %v234, %v5195
        %v5199 = vsel %vm5073, 0, %v5197
        %v5200 = vmul.f32 %v5198, %v5198
        %v5201 = vmul.f32 %v5200, -0.001358992
        %v5202 = vadd.f32 %v5201, 0.041655596
        %v5203 = vmul.f32 %v5200, %v5202
        %v5204 = vadd.f32 %v5203, -0.4999988
        %v5205 = vmul.f32 %v5200, %v5204
        %v5206 = vadd.f32 1.0, %v5205
        %v5207 = vmul.f32 %v5198, %v5198
        %v5208 = vmul.f32 %v5207, -0.00019511016
        %v5209 = vadd.f32 %v5208, 0.008332121
        %v5210 = vmul.f32 %v5207, %v5209
        %v5211 = vadd.f32 %v5210, -0.16666654
        %v5212 = vmul.f32 %v5207, %v5211
        %v5213 = vadd.f32 %v5212, 1.0
        %v5214 = vmul.f32 %v5213, %v5198
        %vm5215 = vweird.f32 %v234
        %v5216 = vadd.s32 %v5199, 3
        %v5217 = vand.u32 %v5216, 3
        %vm5218 = vcmp.lt.s32.totalorder %v5217, 2
        %vm5219 = vcmp.eq.s32.totalorder %v5217, 0
        %v5220 = vxor.u32 %v5214, 2147483648
        %v5221 = vsel %vm5219, %v5206, %v5220
        %vm5222 = vcmp.eq.s32.totalorder %v5217, 2
        %v5223 = vxor.u32 %v5206, 2147483648
        %v5224 = vsel %vm5222, %v5223, %v5214
        %v5225 = vsel %vm5218, %v5221, %v5224
        %v5226 = vsel %vm5215, nan, %v5225
        %v5227 = vand.u32 2147483647, %v235
        %vm5228 = vcmp.le.f32.partialorder %v5227, 0.7853982
        %vm5229 = vcmp.lt.s32.totalorder %v235, 0
        %v5230 = vand.u32 %v235, 2139095040
        %v5231 = vshrl.u32 %v5230, 23
        %v5232 = vsub.s32 %v5231, 127
        %v5233 = vand.u32 2147483647, %v235
        %v5234 = vand.u32 %v5233, 8388607
        %v5235 = vor.u32 %v5234, 8388608
        %v5236 = vsub.s32 0, %v5235
        %v5237 = vadd.s32 %v5232, 1
        %vm5238 = vcmp.gt.s32.totalorder %v5237, 0
        %v5239 = vsel %vm5238, %v5237, 0
        %v5240 = vshrl.u32 %v5239, 5
        %v5241 = vand.u32 %v5239, 31
        %v5242 = vsub.s32 32, %v5241
        %v5243 = vshrl.u32 683565275, %v5242
        %v5244 = vshll.u32 683565275, %v5241
        %v5245 = vshrl.u32 2475754826, %v5242
        %v5246 = vor.u32 %v5244, %v5245
        %v5247 = vshll.u32 2475754826, %v5241
        %v5248 = vshrl.u32 2131351028, %v5242
        %v5249 = vor.u32 %v5247, %v5248
        %v5250 = vshll.u32 2131351028, %v5241
        %v5251 = vshrl.u32 2102212464, %v5242
        %v5252 = vor.u32 %v5250, %v5251
        %v5253 = vshll.u32 2102212464, %v5241
        %v5254 = vshrl.u32 920167782, %v5242
        %v5255 = vor.u32 %v5253, %v5254
        %v5256 = vshll.u32 920167782, %v5241
        %v5257 = vshrl.u32 1326507024, %v5242
        %v5258 = vor.u32 %v5256, %v5257
        %vm5259 = vcmp.lt.s32.totalorder %v5240, 1
        %vm5260 = vcmp.lt.s32.totalorder %v5240, 2
        %vm5261 = vcmp.lt.s32.totalorder %v5240, 3
        %vm5262 = vcmp.lt.s32.totalorder %v5240, 4
        %v5263 = vsel %vm5259, %v5243, %v5246
        %v5264 = vsel %vm5262, %v5252, 2102212464
        %v5265 = vsel %vm5261, %v5249, %v5264
        %v5266 = vsel %vm5260, %v5263, %v5265
        %v5267 = vsel %vm5259, %v5246, %v5249
        %v5268 = vsel %vm5262, %v5255, 920167782
        %v5269 = vsel %vm5261, %v5252, %v5268
        %v5270 = vsel %vm5260, %v5267, %v5269
        %v5271 = vsel %vm5259, %v5249, %v5252
        %v5272 = vsel %vm5262, %v5258, 1326507024
        %v5273 = vsel %vm5261, %v5255, %v5272
        %v5274 = vsel %vm5260, %v5271, %v5273
        %v5275 = vshll.u32 %v5235, 8
        %v5276 = vand.u32 %v5275, 65535
        %v5277 = vshrl.u32 %v5275, 16
        %v5278 = vand.u32 %v5274, 65535
        %v5279 = vshrl.u32 %v5274, 16
        %v5280 = vmul.u32 %v5276, %v5278
        %v5281 = vmul.u32 %v5276, %v5279
        %v5282 = vmul.u32 %v5277, %v5278
        %v5283 = vmul.u32 %v5277, %v5279
        %v5284 = vshll.u32 %v5281, 16
        %v5285 = vshrl.u32 %v5281, 16
        %v5286 = vshll.u32 %v5282, 16
        %v5287 = vshrl.u32 %v5282, 16
        %vm5288 = vc.u32 %v5280, %v5284
        %v5289 = vsel %vm5288, 1, 0
        %v5290 = vadd.s32 %v5280, %v5284
        %v5291 = vadd.s32 %v5283, %v5289
        %vm5292 = vc.u32 %v5290, %v5286
        %v5293 = vsel %vm5292, 1, 0
        %v5294 = vadd.s32 %v5290, %v5286
        %v5295 = vadd.s32 %v5291, %v5293
        %v5296 = vadd.s32 %v5295, %v5285
        %v5297 = vadd.s32 %v5296, %v5287
        %v5298 = vand.u32 %v5275, 65535
        %v5299 = vshrl.u32 %v5275, 16
        %v5300 = vand.u32 %v5270, 65535
        %v5301 = vshrl.u32 %v5270, 16
        %v5302 = vmul.u32 %v5298, %v5300
        %v5303 = vmul.u32 %v5298, %v5301
        %v5304 = vmul.u32 %v5299, %v5300
        %v5305 = vmul.u32 %v5299, %v5301
        %v5306 = vshll.u32 %v5303, 16
        %v5307 = vshrl.u32 %v5303, 16
        %v5308 = vshll.u32 %v5304, 16
        %v5309 = vshrl.u32 %v5304, 16
        %vm5310 = vc.u32 %v5302, %v5306
        %v5311 = vsel %vm5310, 1, 0
        %v5312 = vadd.s32 %v5302, %v5306
        %v5313 = vadd.s32 %v5305, %v5311
        %vm5314 = vc.u32 %v5312, %v5308
        %v5315 = vsel %vm5314, 1, 0
        %v5316 = vadd.s32 %v5312, %v5308
        %v5317 = vadd.s32 %v5313, %v5315
        %v5318 = vadd.s32 %v5317, %v5307
        %v5319 = vadd.s32 %v5318, %v5309
        %v5320 = vmul.u32 %v5275, %v5266
        %v5321 = vadd.s32 %v5297, %v5316
        %vm5322 = vc.u32 %v5297, %v5316
        %v5323 = vadd.s32 %v5319, 1
        %v5324 = vsel %vm5322, %v5323, %v5319
        %v5325 = vadd.s32 %v5320, %v5324
        %v5326 = vadd.s32 %v5325, 536870912
        %v5327 = vshrl.u32 %v5326, 30
        %v5328 = vshll.u32 %v5327, 30
        %v5329 = vsub.s32 %v5325, %v5328
        %vm5330 = vcmp.lt.s32.totalorder %v5329, 0
        %v5331 = vsub.s32 0, %v5329
        %v5332 = vsel %vm5330, %v5331, %v5329
        %v5333 = vclz %v5332
        %v5334 = vsub.s32 %v5333, 2
        %vm5335 = vcmp.gt.s32.totalorder 0, %v5334
        %v5336 = vsel %vm5335, 0, %v5334
        %v5337 = vsub.s32 32, %v5336
        %v5338 = vshll.u32 %v5329, %v5336
        %v5339 = vshrl.u32 %v5321, %v5337
        %v5340 = vor.u32 %v5338, %v5339
        %v5341 = vsub.s32 4294967266, %v5336
        %v5342 = vadd.s32 %v5341, 127
        %v5343 = vshll.u32 %v5342, 23
        %v5344 = vor.u32 4788187, %v5343
        %v5345 = vand.u32 2147483647, %v5344
        %v5347 = vcvt.s32.f32 %v5340
        %v5348 = vmul.f32 %v5347, %v5345
        %v5349 = vxor.u32 %v5348, 2147483648
        %v5350 = vsel %vm5229, %v5349, %v5348
        %v5351 = vsub.s32 4, %v5327
        %v5352 = vsel %vm5229, %v5351, %v5327
        %v5353 = vsel %vm5228, %v235, %v5350
        %v5354 = vsel %vm5228, 0, %v5352
        %v5355 = vmul.f32 %v5353, %v5353
        %v5356 = vmul.f32 %v5355, -0.001358992
        %v5357 = vadd.f32 %v5356, 0.041655596
        %v5358 = vmul.f32 %v5355, %v5357
        %v5359 = vadd.f32 %v5358, -0.4999988
        %v5360 = vmul.f32 %v5355, %v5359
        %v5361 = vadd.f32 1.0, %v5360
        %v5362 = vmul.f32 %v5353, %v5353
        %v5363 = vmul.f32 %v5362, -0.00019511016
        %v5364 = vadd.f32 %v5363, 0.008332121
        %v5365 = vmul.f32 %v5362, %v5364
        %v5366 = vadd.f32 %v5365, -0.16666654
        %v5367 = vmul.f32 %v5362, %v5366
        %v5368 = vadd.f32 %v5367, 1.0
        %v5369 = vmul.f32 %v5368, %v5353
        %vm5370 = vweird.f32 %v235
        %v5371 = vadd.s32 %v5354, 3
        %v5372 = vand.u32 %v5371, 3
        %vm5373 = vcmp.lt.s32.totalorder %v5372, 2
        %vm5374 = vcmp.eq.s32.totalorder %v5372, 0
        %v5375 = vxor.u32 %v5369, 2147483648
        %v5376 = vsel %vm5374, %v5361, %v5375
        %vm5377 = vcmp.eq.s32.totalorder %v5372, 2
        %v5378 = vxor.u32 %v5361, 2147483648
        %v5379 = vsel %vm5377, %v5378, %v5369
        %v5380 = vsel %vm5373, %v5376, %v5379
        %v5381 = vsel %vm5370, nan, %v5380
        %v5382 = vand.u32 2147483647, %v236
        %vm5383 = vcmp.le.f32.partialorder %v5382, 0.7853982
        %vm5384 = vcmp.lt.s32.totalorder %v236, 0
        %v5385 = vand.u32 %v236, 2139095040
        %v5386 = vshrl.u32 %v5385, 23
        %v5387 = vsub.s32 %v5386, 127
        %v5388 = vand.u32 2147483647, %v236
        %v5389 = vand.u32 %v5388, 8388607
        %v5390 = vor.u32 %v5389, 8388608
        %v5391 = vsub.s32 0, %v5390
        %v5392 = vadd.s32 %v5387, 1
        %vm5393 = vcmp.gt.s32.totalorder %v5392, 0
        %v5394 = vsel %vm5393, %v5392, 0
        %v5395 = vshrl.u32 %v5394, 5
        %v5396 = vand.u32 %v5394, 31
        %v5397 = vsub.s32 32, %v5396
        %v5398 = vshrl.u32 683565275, %v5397
        %v5399 = vshll.u32 683565275, %v5396
        %v5400 = vshrl.u32 2475754826, %v5397
        %v5401 = vor.u32 %v5399, %v5400
        %v5402 = vshll.u32 2475754826, %v5396
        %v5403 = vshrl.u32 2131351028, %v5397
        %v5404 = vor.u32 %v5402, %v5403
        %v5405 = vshll.u32 2131351028, %v5396
        %v5406 = vshrl.u32 2102212464, %v5397
        %v5407 = vor.u32 %v5405, %v5406
        %v5408 = vshll.u32 2102212464, %v5396
        %v5409 = vshrl.u32 920167782, %v5397
        %v5410 = vor.u32 %v5408, %v5409
        %v5411 = vshll.u32 920167782, %v5396
        %v5412 = vshrl.u32 1326507024, %v5397
        %v5413 = vor.u32 %v5411, %v5412
        %vm5414 = vcmp.lt.s32.totalorder %v5395, 1
        %vm5415 = vcmp.lt.s32.totalorder %v5395, 2
        %vm5416 = vcmp.lt.s32.totalorder %v5395, 3
        %vm5417 = vcmp.lt.s32.totalorder %v5395, 4
        %v5418 = vsel %vm5414, %v5398, %v5401
        %v5419 = vsel %vm5417, %v5407, 2102212464
        %v5420 = vsel %vm5416, %v5404, %v5419
        %v5421 = vsel %vm5415, %v5418, %v5420
        %v5422 = vsel %vm5414, %v5401, %v5404
        %v5423 = vsel %vm5417, %v5410, 920167782
        %v5424 = vsel %vm5416, %v5407, %v5423
        %v5425 = vsel %vm5415, %v5422, %v5424
        %v5426 = vsel %vm5414, %v5404, %v5407
        %v5427 = vsel %vm5417, %v5413, 1326507024
        %v5428 = vsel %vm5416, %v5410, %v5427
        %v5429 = vsel %vm5415, %v5426, %v5428
        %v5430 = vshll.u32 %v5390, 8
        %v5431 = vand.u32 %v5430, 65535
        %v5432 = vshrl.u32 %v5430, 16
        %v5433 = vand.u32 %v5429, 65535
        %v5434 = vshrl.u32 %v5429, 16
        %v5435 = vmul.u32 %v5431, %v5433
        %v5436 = vmul.u32 %v5431, %v5434
        %v5437 = vmul.u32 %v5432, %v5433
        %v5438 = vmul.u32 %v5432, %v5434
        %v5439 = vshll.u32 %v5436, 16
        %v5440 = vshrl.u32 %v5436, 16
        %v5441 = vshll.u32 %v5437, 16
        %v5442 = vshrl.u32 %v5437, 16
        %vm5443 = vc.u32 %v5435, %v5439
        %v5444 = vsel %vm5443, 1, 0
        %v5445 = vadd.s32 %v5435, %v5439
        %v5446 = vadd.s32 %v5438, %v5444
        %vm5447 = vc.u32 %v5445, %v5441
        %v5448 = vsel %vm5447, 1, 0
        %v5449 = vadd.s32 %v5445, %v5441
        %v5450 = vadd.s32 %v5446, %v5448
        %v5451 = vadd.s32 %v5450, %v5440
        %v5452 = vadd.s32 %v5451, %v5442
        %v5453 = vand.u32 %v5430, 65535
        %v5454 = vshrl.u32 %v5430, 16
        %v5455 = vand.u32 %v5425, 65535
        %v5456 = vshrl.u32 %v5425, 16
        %v5457 = vmul.u32 %v5453, %v5455
        %v5458 = vmul.u32 %v5453, %v5456
        %v5459 = vmul.u32 %v5454, %v5455
        %v5460 = vmul.u32 %v5454, %v5456
        %v5461 = vshll.u32 %v5458, 16
        %v5462 = vshrl.u32 %v5458, 16
        %v5463 = vshll.u32 %v5459, 16
        %v5464 = vshrl.u32 %v5459, 16
        %vm5465 = vc.u32 %v5457, %v5461
        %v5466 = vsel %vm5465, 1, 0
        %v5467 = vadd.s32 %v5457, %v5461
        %v5468 = vadd.s32 %v5460, %v5466
        %vm5469 = vc.u32 %v5467, %v5463
        %v5470 = vsel %vm5469, 1, 0
        %v5471 = vadd.s32 %v5467, %v5463
        %v5472 = vadd.s32 %v5468, %v5470
        %v5473 = vadd.s32 %v5472, %v5462
        %v5474 = vadd.s32 %v5473, %v5464
        %v5475 = vmul.u32 %v5430, %v5421
        %v5476 = vadd.s32 %v5452, %v5471
        %vm5477 = vc.u32 %v5452, %v5471
        %v5478 = vadd.s32 %v5474, 1
        %v5479 = vsel %vm5477, %v5478, %v5474
        %v5480 = vadd.s32 %v5475, %v5479
        %v5481 = vadd.s32 %v5480, 536870912
        %v5482 = vshrl.u32 %v5481, 30
        %v5483 = vshll.u32 %v5482, 30
        %v5484 = vsub.s32 %v5480, %v5483
        %vm5485 = vcmp.lt.s32.totalorder %v5484, 0
        %v5486 = vsub.s32 0, %v5484
        %v5487 = vsel %vm5485, %v5486, %v5484
        %v5488 = vclz %v5487
        %v5489 = vsub.s32 %v5488, 2
        %vm5490 = vcmp.gt.s32.totalorder 0, %v5489
        %v5491 = vsel %vm5490, 0, %v5489
        %v5492 = vsub.s32 32, %v5491
        %v5493 = vshll.u32 %v5484, %v5491
        %v5494 = vshrl.u32 %v5476, %v5492
        %v5495 = vor.u32 %v5493, %v5494
        %v5496 = vsub.s32 4294967266, %v5491
        %v5497 = vadd.s32 %v5496, 127
        %v5498 = vshll.u32 %v5497, 23
        %v5499 = vor.u32 4788187, %v5498
        %v5500 = vand.u32 2147483647, %v5499
        %v5502 = vcvt.s32.f32 %v5495
        %v5503 = vmul.f32 %v5502, %v5500
        %v5504 = vxor.u32 %v5503, 2147483648
        %v5505 = vsel %vm5384, %v5504, %v5503
        %v5506 = vsub.s32 4, %v5482
        %v5507 = vsel %vm5384, %v5506, %v5482
        %v5508 = vsel %vm5383, %v236, %v5505
        %v5509 = vsel %vm5383, 0, %v5507
        %v5510 = vmul.f32 %v5508, %v5508
        %v5511 = vmul.f32 %v5510, -0.001358992
        %v5512 = vadd.f32 %v5511, 0.041655596
        %v5513 = vmul.f32 %v5510, %v5512
        %v5514 = vadd.f32 %v5513, -0.4999988
        %v5515 = vmul.f32 %v5510, %v5514
        %v5516 = vadd.f32 1.0, %v5515
        %v5517 = vmul.f32 %v5508, %v5508
        %v5518 = vmul.f32 %v5517, -0.00019511016
        %v5519 = vadd.f32 %v5518, 0.008332121
        %v5520 = vmul.f32 %v5517, %v5519
        %v5521 = vadd.f32 %v5520, -0.16666654
        %v5522 = vmul.f32 %v5517, %v5521
        %v5523 = vadd.f32 %v5522, 1.0
        %v5524 = vmul.f32 %v5523, %v5508
        %vm5525 = vweird.f32 %v236
        %v5526 = vadd.s32 %v5509, 3
        %v5527 = vand.u32 %v5526, 3
        %vm5528 = vcmp.lt.s32.totalorder %v5527, 2
        %vm5529 = vcmp.eq.s32.totalorder %v5527, 0
        %v5530 = vxor.u32 %v5524, 2147483648
        %v5531 = vsel %vm5529, %v5516, %v5530
        %vm5532 = vcmp.eq.s32.totalorder %v5527, 2
        %v5533 = vxor.u32 %v5516, 2147483648
        %v5534 = vsel %vm5532, %v5533, %v5524
        %v5535 = vsel %vm5528, %v5531, %v5534
        %v5536 = vsel %vm5525, nan, %v5535
        %v5537 = vand.u32 2147483647, %v237
        %vm5538 = vcmp.le.f32.partialorder %v5537, 0.7853982
        %vm5539 = vcmp.lt.s32.totalorder %v237, 0
        %v5540 = vand.u32 %v237, 2139095040
        %v5541 = vshrl.u32 %v5540, 23
        %v5542 = vsub.s32 %v5541, 127
        %v5543 = vand.u32 2147483647, %v237
        %v5544 = vand.u32 %v5543, 8388607
        %v5545 = vor.u32 %v5544, 8388608
        %v5546 = vsub.s32 0, %v5545
        %v5547 = vadd.s32 %v5542, 1
        %vm5548 = vcmp.gt.s32.totalorder %v5547, 0
        %v5549 = vsel %vm5548, %v5547, 0
        %v5550 = vshrl.u32 %v5549, 5
        %v5551 = vand.u32 %v5549, 31
        %v5552 = vsub.s32 32, %v5551
        %v5553 = vshrl.u32 683565275, %v5552
        %v5554 = vshll.u32 683565275, %v5551
        %v5555 = vshrl.u32 2475754826, %v5552
        %v5556 = vor.u32 %v5554, %v5555
        %v5557 = vshll.u32 2475754826, %v5551
        %v5558 = vshrl.u32 2131351028, %v5552
        %v5559 = vor.u32 %v5557, %v5558
        %v5560 = vshll.u32 2131351028, %v5551
        %v5561 = vshrl.u32 2102212464, %v5552
        %v5562 = vor.u32 %v5560, %v5561
        %v5563 = vshll.u32 2102212464, %v5551
        %v5564 = vshrl.u32 920167782, %v5552
        %v5565 = vor.u32 %v5563, %v5564
        %v5566 = vshll.u32 920167782, %v5551
        %v5567 = vshrl.u32 1326507024, %v5552
        %v5568 = vor.u32 %v5566, %v5567
        %vm5569 = vcmp.lt.s32.totalorder %v5550, 1
        %vm5570 = vcmp.lt.s32.totalorder %v5550, 2
        %vm5571 = vcmp.lt.s32.totalorder %v5550, 3
        %vm5572 = vcmp.lt.s32.totalorder %v5550, 4
        %v5573 = vsel %vm5569, %v5553, %v5556
        %v5574 = vsel %vm5572, %v5562, 2102212464
        %v5575 = vsel %vm5571, %v5559, %v5574
        %v5576 = vsel %vm5570, %v5573, %v5575
        %v5577 = vsel %vm5569, %v5556, %v5559
        %v5578 = vsel %vm5572, %v5565, 920167782
        %v5579 = vsel %vm5571, %v5562, %v5578
        %v5580 = vsel %vm5570, %v5577, %v5579
        %v5581 = vsel %vm5569, %v5559, %v5562
        %v5582 = vsel %vm5572, %v5568, 1326507024
        %v5583 = vsel %vm5571, %v5565, %v5582
        %v5584 = vsel %vm5570, %v5581, %v5583
        %v5585 = vshll.u32 %v5545, 8
        %v5586 = vand.u32 %v5585, 65535
        %v5587 = vshrl.u32 %v5585, 16
        %v5588 = vand.u32 %v5584, 65535
        %v5589 = vshrl.u32 %v5584, 16
        %v5590 = vmul.u32 %v5586, %v5588
        %v5591 = vmul.u32 %v5586, %v5589
        %v5592 = vmul.u32 %v5587, %v5588
        %v5593 = vmul.u32 %v5587, %v5589
        %v5594 = vshll.u32 %v5591, 16
        %v5595 = vshrl.u32 %v5591, 16
        %v5596 = vshll.u32 %v5592, 16
        %v5597 = vshrl.u32 %v5592, 16
        %vm5598 = vc.u32 %v5590, %v5594
        %v5599 = vsel %vm5598, 1, 0
        %v5600 = vadd.s32 %v5590, %v5594
        %v5601 = vadd.s32 %v5593, %v5599
        %vm5602 = vc.u32 %v5600, %v5596
        %v5603 = vsel %vm5602, 1, 0
        %v5604 = vadd.s32 %v5600, %v5596
        %v5605 = vadd.s32 %v5601, %v5603
        %v5606 = vadd.s32 %v5605, %v5595
        %v5607 = vadd.s32 %v5606, %v5597
        %v5608 = vand.u32 %v5585, 65535
        %v5609 = vshrl.u32 %v5585, 16
        %v5610 = vand.u32 %v5580, 65535
        %v5611 = vshrl.u32 %v5580, 16
        %v5612 = vmul.u32 %v5608, %v5610
        %v5613 = vmul.u32 %v5608, %v5611
        %v5614 = vmul.u32 %v5609, %v5610
        %v5615 = vmul.u32 %v5609, %v5611
        %v5616 = vshll.u32 %v5613, 16
        %v5617 = vshrl.u32 %v5613, 16
        %v5618 = vshll.u32 %v5614, 16
        %v5619 = vshrl.u32 %v5614, 16
        %vm5620 = vc.u32 %v5612, %v5616
        %v5621 = vsel %vm5620, 1, 0
        %v5622 = vadd.s32 %v5612, %v5616
        %v5623 = vadd.s32 %v5615, %v5621
        %vm5624 = vc.u32 %v5622, %v5618
        %v5625 = vsel %vm5624, 1, 0
        %v5626 = vadd.s32 %v5622, %v5618
        %v5627 = vadd.s32 %v5623, %v5625
        %v5628 = vadd.s32 %v5627, %v5617
        %v5629 = vadd.s32 %v5628, %v5619
        %v5630 = vmul.u32 %v5585, %v5576
        %v5631 = vadd.s32 %v5607, %v5626
        %vm5632 = vc.u32 %v5607, %v5626
        %v5633 = vadd.s32 %v5629, 1
        %v5634 = vsel %vm5632, %v5633, %v5629
        %v5635 = vadd.s32 %v5630, %v5634
        %v5636 = vadd.s32 %v5635, 536870912
        %v5637 = vshrl.u32 %v5636, 30
        %v5638 = vshll.u32 %v5637, 30
        %v5639 = vsub.s32 %v5635, %v5638
        %vm5640 = vcmp.lt.s32.totalorder %v5639, 0
        %v5641 = vsub.s32 0, %v5639
        %v5642 = vsel %vm5640, %v5641, %v5639
        %v5643 = vclz %v5642
        %v5644 = vsub.s32 %v5643, 2
        %vm5645 = vcmp.gt.s32.totalorder 0, %v5644
        %v5646 = vsel %vm5645, 0, %v5644
        %v5647 = vsub.s32 32, %v5646
        %v5648 = vshll.u32 %v5639, %v5646
        %v5649 = vshrl.u32 %v5631, %v5647
        %v5650 = vor.u32 %v5648, %v5649
        %v5651 = vsub.s32 4294967266, %v5646
        %v5652 = vadd.s32 %v5651, 127
        %v5653 = vshll.u32 %v5652, 23
        %v5654 = vor.u32 4788187, %v5653
        %v5655 = vand.u32 2147483647, %v5654
        %v5657 = vcvt.s32.f32 %v5650
        %v5658 = vmul.f32 %v5657, %v5655
        %v5659 = vxor.u32 %v5658, 2147483648
        %v5660 = vsel %vm5539, %v5659, %v5658
        %v5661 = vsub.s32 4, %v5637
        %v5662 = vsel %vm5539, %v5661, %v5637
        %v5663 = vsel %vm5538, %v237, %v5660
        %v5664 = vsel %vm5538, 0, %v5662
        %v5665 = vmul.f32 %v5663, %v5663
        %v5666 = vmul.f32 %v5665, -0.001358992
        %v5667 = vadd.f32 %v5666, 0.041655596
        %v5668 = vmul.f32 %v5665, %v5667
        %v5669 = vadd.f32 %v5668, -0.4999988
        %v5670 = vmul.f32 %v5665, %v5669
        %v5671 = vadd.f32 1.0, %v5670
        %v5672 = vmul.f32 %v5663, %v5663
        %v5673 = vmul.f32 %v5672, -0.00019511016
        %v5674 = vadd.f32 %v5673, 0.008332121
        %v5675 = vmul.f32 %v5672, %v5674
        %v5676 = vadd.f32 %v5675, -0.16666654
        %v5677 = vmul.f32 %v5672, %v5676
        %v5678 = vadd.f32 %v5677, 1.0
        %v5679 = vmul.f32 %v5678, %v5663
        %vm5680 = vweird.f32 %v237
        %v5681 = vadd.s32 %v5664, 3
        %v5682 = vand.u32 %v5681, 3
        %vm5683 = vcmp.lt.s32.totalorder %v5682, 2
        %vm5684 = vcmp.eq.s32.totalorder %v5682, 0
        %v5685 = vxor.u32 %v5679, 2147483648
        %v5686 = vsel %vm5684, %v5671, %v5685
        %vm5687 = vcmp.eq.s32.totalorder %v5682, 2
        %v5688 = vxor.u32 %v5671, 2147483648
        %v5689 = vsel %vm5687, %v5688, %v5679
        %v5690 = vsel %vm5683, %v5686, %v5689
        %v5691 = vsel %vm5680, nan, %v5690
        %v5692 = vand.u32 2147483647, %v238
        %vm5693 = vcmp.le.f32.partialorder %v5692, 0.7853982
        %vm5694 = vcmp.lt.s32.totalorder %v238, 0
        %v5695 = vand.u32 %v238, 2139095040
        %v5696 = vshrl.u32 %v5695, 23
        %v5697 = vsub.s32 %v5696, 127
        %v5698 = vand.u32 2147483647, %v238
        %v5699 = vand.u32 %v5698, 8388607
        %v5700 = vor.u32 %v5699, 8388608
        %v5701 = vsub.s32 0, %v5700
        %v5702 = vadd.s32 %v5697, 1
        %vm5703 = vcmp.gt.s32.totalorder %v5702, 0
        %v5704 = vsel %vm5703, %v5702, 0
        %v5705 = vshrl.u32 %v5704, 5
        %v5706 = vand.u32 %v5704, 31
        %v5707 = vsub.s32 32, %v5706
        %v5708 = vshrl.u32 683565275, %v5707
        %v5709 = vshll.u32 683565275, %v5706
        %v5710 = vshrl.u32 2475754826, %v5707
        %v5711 = vor.u32 %v5709, %v5710
        %v5712 = vshll.u32 2475754826, %v5706
        %v5713 = vshrl.u32 2131351028, %v5707
        %v5714 = vor.u32 %v5712, %v5713
        %v5715 = vshll.u32 2131351028, %v5706
        %v5716 = vshrl.u32 2102212464, %v5707
        %v5717 = vor.u32 %v5715, %v5716
        %v5718 = vshll.u32 2102212464, %v5706
        %v5719 = vshrl.u32 920167782, %v5707
        %v5720 = vor.u32 %v5718, %v5719
        %v5721 = vshll.u32 920167782, %v5706
        %v5722 = vshrl.u32 1326507024, %v5707
        %v5723 = vor.u32 %v5721, %v5722
        %vm5724 = vcmp.lt.s32.totalorder %v5705, 1
        %vm5725 = vcmp.lt.s32.totalorder %v5705, 2
        %vm5726 = vcmp.lt.s32.totalorder %v5705, 3
        %vm5727 = vcmp.lt.s32.totalorder %v5705, 4
        %v5728 = vsel %vm5724, %v5708, %v5711
        %v5729 = vsel %vm5727, %v5717, 2102212464
        %v5730 = vsel %vm5726, %v5714, %v5729
        %v5731 = vsel %vm5725, %v5728, %v5730
        %v5732 = vsel %vm5724, %v5711, %v5714
        %v5733 = vsel %vm5727, %v5720, 920167782
        %v5734 = vsel %vm5726, %v5717, %v5733
        %v5735 = vsel %vm5725, %v5732, %v5734
        %v5736 = vsel %vm5724, %v5714, %v5717
        %v5737 = vsel %vm5727, %v5723, 1326507024
        %v5738 = vsel %vm5726, %v5720, %v5737
        %v5739 = vsel %vm5725, %v5736, %v5738
        %v5740 = vshll.u32 %v5700, 8
        %v5741 = vand.u32 %v5740, 65535
        %v5742 = vshrl.u32 %v5740, 16
        %v5743 = vand.u32 %v5739, 65535
        %v5744 = vshrl.u32 %v5739, 16
        %v5745 = vmul.u32 %v5741, %v5743
        %v5746 = vmul.u32 %v5741, %v5744
        %v5747 = vmul.u32 %v5742, %v5743
        %v5748 = vmul.u32 %v5742, %v5744
        %v5749 = vshll.u32 %v5746, 16
        %v5750 = vshrl.u32 %v5746, 16
        %v5751 = vshll.u32 %v5747, 16
        %v5752 = vshrl.u32 %v5747, 16
        %vm5753 = vc.u32 %v5745, %v5749
        %v5754 = vsel %vm5753, 1, 0
        %v5755 = vadd.s32 %v5745, %v5749
        %v5756 = vadd.s32 %v5748, %v5754
        %vm5757 = vc.u32 %v5755, %v5751
        %v5758 = vsel %vm5757, 1, 0
        %v5759 = vadd.s32 %v5755, %v5751
        %v5760 = vadd.s32 %v5756, %v5758
        %v5761 = vadd.s32 %v5760, %v5750
        %v5762 = vadd.s32 %v5761, %v5752
        %v5763 = vand.u32 %v5740, 65535
        %v5764 = vshrl.u32 %v5740, 16
        %v5765 = vand.u32 %v5735, 65535
        %v5766 = vshrl.u32 %v5735, 16
        %v5767 = vmul.u32 %v5763, %v5765
        %v5768 = vmul.u32 %v5763, %v5766
        %v5769 = vmul.u32 %v5764, %v5765
        %v5770 = vmul.u32 %v5764, %v5766
        %v5771 = vshll.u32 %v5768, 16
        %v5772 = vshrl.u32 %v5768, 16
        %v5773 = vshll.u32 %v5769, 16
        %v5774 = vshrl.u32 %v5769, 16
        %vm5775 = vc.u32 %v5767, %v5771
        %v5776 = vsel %vm5775, 1, 0
        %v5777 = vadd.s32 %v5767, %v5771
        %v5778 = vadd.s32 %v5770, %v5776
        %vm5779 = vc.u32 %v5777, %v5773
        %v5780 = vsel %vm5779, 1, 0
        %v5781 = vadd.s32 %v5777, %v5773
        %v5782 = vadd.s32 %v5778, %v5780
        %v5783 = vadd.s32 %v5782, %v5772
        %v5784 = vadd.s32 %v5783, %v5774
        %v5785 = vmul.u32 %v5740, %v5731
        %v5786 = vadd.s32 %v5762, %v5781
        %vm5787 = vc.u32 %v5762, %v5781
        %v5788 = vadd.s32 %v5784, 1
        %v5789 = vsel %vm5787, %v5788, %v5784
        %v5790 = vadd.s32 %v5785, %v5789
        %v5791 = vadd.s32 %v5790, 536870912
        %v5792 = vshrl.u32 %v5791, 30
        %v5793 = vshll.u32 %v5792, 30
        %v5794 = vsub.s32 %v5790, %v5793
        %vm5795 = vcmp.lt.s32.totalorder %v5794, 0
        %v5796 = vsub.s32 0, %v5794
        %v5797 = vsel %vm5795, %v5796, %v5794
        %v5798 = vclz %v5797
        %v5799 = vsub.s32 %v5798, 2
        %vm5800 = vcmp.gt.s32.totalorder 0, %v5799
        %v5801 = vsel %vm5800, 0, %v5799
        %v5802 = vsub.s32 32, %v5801
        %v5803 = vshll.u32 %v5794, %v5801
        %v5804 = vshrl.u32 %v5786, %v5802
        %v5805 = vor.u32 %v5803, %v5804
        %v5806 = vsub.s32 4294967266, %v5801
        %v5807 = vadd.s32 %v5806, 127
        %v5808 = vshll.u32 %v5807, 23
        %v5809 = vor.u32 4788187, %v5808
        %v5810 = vand.u32 2147483647, %v5809
        %v5812 = vcvt.s32.f32 %v5805
        %v5813 = vmul.f32 %v5812, %v5810
        %v5814 = vxor.u32 %v5813, 2147483648
        %v5815 = vsel %vm5694, %v5814, %v5813
        %v5816 = vsub.s32 4, %v5792
        %v5817 = vsel %vm5694, %v5816, %v5792
        %v5818 = vsel %vm5693, %v238, %v5815
        %v5819 = vsel %vm5693, 0, %v5817
        %v5820 = vmul.f32 %v5818, %v5818
        %v5821 = vmul.f32 %v5820, -0.001358992
        %v5822 = vadd.f32 %v5821, 0.041655596
        %v5823 = vmul.f32 %v5820, %v5822
        %v5824 = vadd.f32 %v5823, -0.4999988
        %v5825 = vmul.f32 %v5820, %v5824
        %v5826 = vadd.f32 1.0, %v5825
        %v5827 = vmul.f32 %v5818, %v5818
        %v5828 = vmul.f32 %v5827, -0.00019511016
        %v5829 = vadd.f32 %v5828, 0.008332121
        %v5830 = vmul.f32 %v5827, %v5829
        %v5831 = vadd.f32 %v5830, -0.16666654
        %v5832 = vmul.f32 %v5827, %v5831
        %v5833 = vadd.f32 %v5832, 1.0
        %v5834 = vmul.f32 %v5833, %v5818
        %vm5835 = vweird.f32 %v238
        %v5836 = vadd.s32 %v5819, 3
        %v5837 = vand.u32 %v5836, 3
        %vm5838 = vcmp.lt.s32.totalorder %v5837, 2
        %vm5839 = vcmp.eq.s32.totalorder %v5837, 0
        %v5840 = vxor.u32 %v5834, 2147483648
        %v5841 = vsel %vm5839, %v5826, %v5840
        %vm5842 = vcmp.eq.s32.totalorder %v5837, 2
        %v5843 = vxor.u32 %v5826, 2147483648
        %v5844 = vsel %vm5842, %v5843, %v5834
        %v5845 = vsel %vm5838, %v5841, %v5844
        %v5846 = vsel %vm5835, nan, %v5845
        %v5847 = vand.u32 2147483647, %v239
        %vm5848 = vcmp.le.f32.partialorder %v5847, 0.7853982
        %vm5849 = vcmp.lt.s32.totalorder %v239, 0
        %v5850 = vand.u32 %v239, 2139095040
        %v5851 = vshrl.u32 %v5850, 23
        %v5852 = vsub.s32 %v5851, 127
        %v5853 = vand.u32 2147483647, %v239
        %v5854 = vand.u32 %v5853, 8388607
        %v5855 = vor.u32 %v5854, 8388608
        %v5856 = vsub.s32 0, %v5855
        %v5857 = vadd.s32 %v5852, 1
        %vm5858 = vcmp.gt.s32.totalorder %v5857, 0
        %v5859 = vsel %vm5858, %v5857, 0
        %v5860 = vshrl.u32 %v5859, 5
        %v5861 = vand.u32 %v5859, 31
        %v5862 = vsub.s32 32, %v5861
        %v5863 = vshrl.u32 683565275, %v5862
        %v5864 = vshll.u32 683565275, %v5861
        %v5865 = vshrl.u32 2475754826, %v5862
        %v5866 = vor.u32 %v5864, %v5865
        %v5867 = vshll.u32 2475754826, %v5861
        %v5868 = vshrl.u32 2131351028, %v5862
        %v5869 = vor.u32 %v5867, %v5868
        %v5870 = vshll.u32 2131351028, %v5861
        %v5871 = vshrl.u32 2102212464, %v5862
        %v5872 = vor.u32 %v5870, %v5871
        %v5873 = vshll.u32 2102212464, %v5861
        %v5874 = vshrl.u32 920167782, %v5862
        %v5875 = vor.u32 %v5873, %v5874
        %v5876 = vshll.u32 920167782, %v5861
        %v5877 = vshrl.u32 1326507024, %v5862
        %v5878 = vor.u32 %v5876, %v5877
        %vm5879 = vcmp.lt.s32.totalorder %v5860, 1
        %vm5880 = vcmp.lt.s32.totalorder %v5860, 2
        %vm5881 = vcmp.lt.s32.totalorder %v5860, 3
        %vm5882 = vcmp.lt.s32.totalorder %v5860, 4
        %v5883 = vsel %vm5879, %v5863, %v5866
        %v5884 = vsel %vm5882, %v5872, 2102212464
        %v5885 = vsel %vm5881, %v5869, %v5884
        %v5886 = vsel %vm5880, %v5883, %v5885
        %v5887 = vsel %vm5879, %v5866, %v5869
        %v5888 = vsel %vm5882, %v5875, 920167782
        %v5889 = vsel %vm5881, %v5872, %v5888
        %v5890 = vsel %vm5880, %v5887, %v5889
        %v5891 = vsel %vm5879, %v5869, %v5872
        %v5892 = vsel %vm5882, %v5878, 1326507024
        %v5893 = vsel %vm5881, %v5875, %v5892
        %v5894 = vsel %vm5880, %v5891, %v5893
        %v5895 = vshll.u32 %v5855, 8
        %v5896 = vand.u32 %v5895, 65535
        %v5897 = vshrl.u32 %v5895, 16
        %v5898 = vand.u32 %v5894, 65535
        %v5899 = vshrl.u32 %v5894, 16
        %v5900 = vmul.u32 %v5896, %v5898
        %v5901 = vmul.u32 %v5896, %v5899
        %v5902 = vmul.u32 %v5897, %v5898
        %v5903 = vmul.u32 %v5897, %v5899
        %v5904 = vshll.u32 %v5901, 16
        %v5905 = vshrl.u32 %v5901, 16
        %v5906 = vshll.u32 %v5902, 16
        %v5907 = vshrl.u32 %v5902, 16
        %vm5908 = vc.u32 %v5900, %v5904
        %v5909 = vsel %vm5908, 1, 0
        %v5910 = vadd.s32 %v5900, %v5904
        %v5911 = vadd.s32 %v5903, %v5909
        %vm5912 = vc.u32 %v5910, %v5906
        %v5913 = vsel %vm5912, 1, 0
        %v5914 = vadd.s32 %v5910, %v5906
        %v5915 = vadd.s32 %v5911, %v5913
        %v5916 = vadd.s32 %v5915, %v5905
        %v5917 = vadd.s32 %v5916, %v5907
        %v5918 = vand.u32 %v5895, 65535
        %v5919 = vshrl.u32 %v5895, 16
        %v5920 = vand.u32 %v5890, 65535
        %v5921 = vshrl.u32 %v5890, 16
        %v5922 = vmul.u32 %v5918, %v5920
        %v5923 = vmul.u32 %v5918, %v5921
        %v5924 = vmul.u32 %v5919, %v5920
        %v5925 = vmul.u32 %v5919, %v5921
        %v5926 = vshll.u32 %v5923, 16
        %v5927 = vshrl.u32 %v5923, 16
        %v5928 = vshll.u32 %v5924, 16
        %v5929 = vshrl.u32 %v5924, 16
        %vm5930 = vc.u32 %v5922, %v5926
        %v5931 = vsel %vm5930, 1, 0
        %v5932 = vadd.s32 %v5922, %v5926
        %v5933 = vadd.s32 %v5925, %v5931
        %vm5934 = vc.u32 %v5932, %v5928
        %v5935 = vsel %vm5934, 1, 0
        %v5936 = vadd.s32 %v5932, %v5928
        %v5937 = vadd.s32 %v5933, %v5935
        %v5938 = vadd.s32 %v5937, %v5927
        %v5939 = vadd.s32 %v5938, %v5929
        %v5940 = vmul.u32 %v5895, %v5886
        %v5941 = vadd.s32 %v5917, %v5936
        %vm5942 = vc.u32 %v5917, %v5936
        %v5943 = vadd.s32 %v5939, 1
        %v5944 = vsel %vm5942, %v5943, %v5939
        %v5945 = vadd.s32 %v5940, %v5944
        %v5946 = vadd.s32 %v5945, 536870912
        %v5947 = vshrl.u32 %v5946, 30
        %v5948 = vshll.u32 %v5947, 30
        %v5949 = vsub.s32 %v5945, %v5948
        %vm5950 = vcmp.lt.s32.totalorder %v5949, 0
        %v5951 = vsub.s32 0, %v5949
        %v5952 = vsel %vm5950, %v5951, %v5949
        %v5953 = vclz %v5952
        %v5954 = vsub.s32 %v5953, 2
        %vm5955 = vcmp.gt.s32.totalorder 0, %v5954
        %v5956 = vsel %vm5955, 0, %v5954
        %v5957 = vsub.s32 32, %v5956
        %v5958 = vshll.u32 %v5949, %v5956
        %v5959 = vshrl.u32 %v5941, %v5957
        %v5960 = vor.u32 %v5958, %v5959
        %v5961 = vsub.s32 4294967266, %v5956
        %v5962 = vadd.s32 %v5961, 127
        %v5963 = vshll.u32 %v5962, 23
        %v5964 = vor.u32 4788187, %v5963
        %v5965 = vand.u32 2147483647, %v5964
        %v5967 = vcvt.s32.f32 %v5960
        %v5968 = vmul.f32 %v5967, %v5965
        %v5969 = vxor.u32 %v5968, 2147483648
        %v5970 = vsel %vm5849, %v5969, %v5968
        %v5971 = vsub.s32 4, %v5947
        %v5972 = vsel %vm5849, %v5971, %v5947
        %v5973 = vsel %vm5848, %v239, %v5970
        %v5974 = vsel %vm5848, 0, %v5972
        %v5975 = vmul.f32 %v5973, %v5973
        %v5976 = vmul.f32 %v5975, -0.001358992
        %v5977 = vadd.f32 %v5976, 0.041655596
        %v5978 = vmul.f32 %v5975, %v5977
        %v5979 = vadd.f32 %v5978, -0.4999988
        %v5980 = vmul.f32 %v5975, %v5979
        %v5981 = vadd.f32 1.0, %v5980
        %v5982 = vmul.f32 %v5973, %v5973
        %v5983 = vmul.f32 %v5982, -0.00019511016
        %v5984 = vadd.f32 %v5983, 0.008332121
        %v5985 = vmul.f32 %v5982, %v5984
        %v5986 = vadd.f32 %v5985, -0.16666654
        %v5987 = vmul.f32 %v5982, %v5986
        %v5988 = vadd.f32 %v5987, 1.0
        %v5989 = vmul.f32 %v5988, %v5973
        %vm5990 = vweird.f32 %v239
        %v5991 = vadd.s32 %v5974, 3
        %v5992 = vand.u32 %v5991, 3
        %vm5993 = vcmp.lt.s32.totalorder %v5992, 2
        %vm5994 = vcmp.eq.s32.totalorder %v5992, 0
        %v5995 = vxor.u32 %v5989, 2147483648
        %v5996 = vsel %vm5994, %v5981, %v5995
        %vm5997 = vcmp.eq.s32.totalorder %v5992, 2
        %v5998 = vxor.u32 %v5981, 2147483648
        %v5999 = vsel %vm5997, %v5998, %v5989
        %v6000 = vsel %vm5993, %v5996, %v5999
        %v6001 = vsel %vm5990, nan, %v6000
        %v6002 = vand.u32 2147483647, %v240
        %vm6003 = vcmp.le.f32.partialorder %v6002, 0.7853982
        %vm6004 = vcmp.lt.s32.totalorder %v240, 0
        %v6005 = vand.u32 %v240, 2139095040
        %v6006 = vshrl.u32 %v6005, 23
        %v6007 = vsub.s32 %v6006, 127
        %v6008 = vand.u32 2147483647, %v240
        %v6009 = vand.u32 %v6008, 8388607
        %v6010 = vor.u32 %v6009, 8388608
        %v6011 = vsub.s32 0, %v6010
        %v6012 = vadd.s32 %v6007, 1
        %vm6013 = vcmp.gt.s32.totalorder %v6012, 0
        %v6014 = vsel %vm6013, %v6012, 0
        %v6015 = vshrl.u32 %v6014, 5
        %v6016 = vand.u32 %v6014, 31
        %v6017 = vsub.s32 32, %v6016
        %v6018 = vshrl.u32 683565275, %v6017
        %v6019 = vshll.u32 683565275, %v6016
        %v6020 = vshrl.u32 2475754826, %v6017
        %v6021 = vor.u32 %v6019, %v6020
        %v6022 = vshll.u32 2475754826, %v6016
        %v6023 = vshrl.u32 2131351028, %v6017
        %v6024 = vor.u32 %v6022, %v6023
        %v6025 = vshll.u32 2131351028, %v6016
        %v6026 = vshrl.u32 2102212464, %v6017
        %v6027 = vor.u32 %v6025, %v6026
        %v6028 = vshll.u32 2102212464, %v6016
        %v6029 = vshrl.u32 920167782, %v6017
        %v6030 = vor.u32 %v6028, %v6029
        %v6031 = vshll.u32 920167782, %v6016
        %v6032 = vshrl.u32 1326507024, %v6017
        %v6033 = vor.u32 %v6031, %v6032
        %vm6034 = vcmp.lt.s32.totalorder %v6015, 1
        %vm6035 = vcmp.lt.s32.totalorder %v6015, 2
        %vm6036 = vcmp.lt.s32.totalorder %v6015, 3
        %vm6037 = vcmp.lt.s32.totalorder %v6015, 4
        %v6038 = vsel %vm6034, %v6018, %v6021
        %v6039 = vsel %vm6037, %v6027, 2102212464
        %v6040 = vsel %vm6036, %v6024, %v6039
        %v6041 = vsel %vm6035, %v6038, %v6040
        %v6042 = vsel %vm6034, %v6021, %v6024
        %v6043 = vsel %vm6037, %v6030, 920167782
        %v6044 = vsel %vm6036, %v6027, %v6043
        %v6045 = vsel %vm6035, %v6042, %v6044
        %v6046 = vsel %vm6034, %v6024, %v6027
        %v6047 = vsel %vm6037, %v6033, 1326507024
        %v6048 = vsel %vm6036, %v6030, %v6047
        %v6049 = vsel %vm6035, %v6046, %v6048
        %v6050 = vshll.u32 %v6010, 8
        %v6051 = vand.u32 %v6050, 65535
        %v6052 = vshrl.u32 %v6050, 16
        %v6053 = vand.u32 %v6049, 65535
        %v6054 = vshrl.u32 %v6049, 16
        %v6055 = vmul.u32 %v6051, %v6053
        %v6056 = vmul.u32 %v6051, %v6054
        %v6057 = vmul.u32 %v6052, %v6053
        %v6058 = vmul.u32 %v6052, %v6054
        %v6059 = vshll.u32 %v6056, 16
        %v6060 = vshrl.u32 %v6056, 16
        %v6061 = vshll.u32 %v6057, 16
        %v6062 = vshrl.u32 %v6057, 16
        %vm6063 = vc.u32 %v6055, %v6059
        %v6064 = vsel %vm6063, 1, 0
        %v6065 = vadd.s32 %v6055, %v6059
        %v6066 = vadd.s32 %v6058, %v6064
        %vm6067 = vc.u32 %v6065, %v6061
        %v6068 = vsel %vm6067, 1, 0
        %v6069 = vadd.s32 %v6065, %v6061
        %v6070 = vadd.s32 %v6066, %v6068
        %v6071 = vadd.s32 %v6070, %v6060
        %v6072 = vadd.s32 %v6071, %v6062
        %v6073 = vand.u32 %v6050, 65535
        %v6074 = vshrl.u32 %v6050, 16
        %v6075 = vand.u32 %v6045, 65535
        %v6076 = vshrl.u32 %v6045, 16
        %v6077 = vmul.u32 %v6073, %v6075
        %v6078 = vmul.u32 %v6073, %v6076
        %v6079 = vmul.u32 %v6074, %v6075
        %v6080 = vmul.u32 %v6074, %v6076
        %v6081 = vshll.u32 %v6078, 16
        %v6082 = vshrl.u32 %v6078, 16
        %v6083 = vshll.u32 %v6079, 16
        %v6084 = vshrl.u32 %v6079, 16
        %vm6085 = vc.u32 %v6077, %v6081
        %v6086 = vsel %vm6085, 1, 0
        %v6087 = vadd.s32 %v6077, %v6081
        %v6088 = vadd.s32 %v6080, %v6086
        %vm6089 = vc.u32 %v6087, %v6083
        %v6090 = vsel %vm6089, 1, 0
        %v6091 = vadd.s32 %v6087, %v6083
        %v6092 = vadd.s32 %v6088, %v6090
        %v6093 = vadd.s32 %v6092, %v6082
        %v6094 = vadd.s32 %v6093, %v6084
        %v6095 = vmul.u32 %v6050, %v6041
        %v6096 = vadd.s32 %v6072, %v6091
        %vm6097 = vc.u32 %v6072, %v6091
        %v6098 = vadd.s32 %v6094, 1
        %v6099 = vsel %vm6097, %v6098, %v6094
        %v6100 = vadd.s32 %v6095, %v6099
        %v6101 = vadd.s32 %v6100, 536870912
        %v6102 = vshrl.u32 %v6101, 30
        %v6103 = vshll.u32 %v6102, 30
        %v6104 = vsub.s32 %v6100, %v6103
        %vm6105 = vcmp.lt.s32.totalorder %v6104, 0
        %v6106 = vsub.s32 0, %v6104
        %v6107 = vsel %vm6105, %v6106, %v6104
        %v6108 = vclz %v6107
        %v6109 = vsub.s32 %v6108, 2
        %vm6110 = vcmp.gt.s32.totalorder 0, %v6109
        %v6111 = vsel %vm6110, 0, %v6109
        %v6112 = vsub.s32 32, %v6111
        %v6113 = vshll.u32 %v6104, %v6111
        %v6114 = vshrl.u32 %v6096, %v6112
        %v6115 = vor.u32 %v6113, %v6114
        %v6116 = vsub.s32 4294967266, %v6111
        %v6117 = vadd.s32 %v6116, 127
        %v6118 = vshll.u32 %v6117, 23
        %v6119 = vor.u32 4788187, %v6118
        %v6120 = vand.u32 2147483647, %v6119
        %v6122 = vcvt.s32.f32 %v6115
        %v6123 = vmul.f32 %v6122, %v6120
        %v6124 = vxor.u32 %v6123, 2147483648
        %v6125 = vsel %vm6004, %v6124, %v6123
        %v6126 = vsub.s32 4, %v6102
        %v6127 = vsel %vm6004, %v6126, %v6102
        %v6128 = vsel %vm6003, %v240, %v6125
        %v6129 = vsel %vm6003, 0, %v6127
        %v6130 = vmul.f32 %v6128, %v6128
        %v6131 = vmul.f32 %v6130, -0.001358992
        %v6132 = vadd.f32 %v6131, 0.041655596
        %v6133 = vmul.f32 %v6130, %v6132
        %v6134 = vadd.f32 %v6133, -0.4999988
        %v6135 = vmul.f32 %v6130, %v6134
        %v6136 = vadd.f32 1.0, %v6135
        %v6137 = vmul.f32 %v6128, %v6128
        %v6138 = vmul.f32 %v6137, -0.00019511016
        %v6139 = vadd.f32 %v6138, 0.008332121
        %v6140 = vmul.f32 %v6137, %v6139
        %v6141 = vadd.f32 %v6140, -0.16666654
        %v6142 = vmul.f32 %v6137, %v6141
        %v6143 = vadd.f32 %v6142, 1.0
        %v6144 = vmul.f32 %v6143, %v6128
        %vm6145 = vweird.f32 %v240
        %v6146 = vadd.s32 %v6129, 3
        %v6147 = vand.u32 %v6146, 3
        %vm6148 = vcmp.lt.s32.totalorder %v6147, 2
        %vm6149 = vcmp.eq.s32.totalorder %v6147, 0
        %v6150 = vxor.u32 %v6144, 2147483648
        %v6151 = vsel %vm6149, %v6136, %v6150
        %vm6152 = vcmp.eq.s32.totalorder %v6147, 2
        %v6153 = vxor.u32 %v6136, 2147483648
        %v6154 = vsel %vm6152, %v6153, %v6144
        %v6155 = vsel %vm6148, %v6151, %v6154
        %v6156 = vsel %vm6145, nan, %v6155
        %v6157 = vand.u32 2147483647, %v241
        %vm6158 = vcmp.le.f32.partialorder %v6157, 0.7853982
        %vm6159 = vcmp.lt.s32.totalorder %v241, 0
        %v6160 = vand.u32 %v241, 2139095040
        %v6161 = vshrl.u32 %v6160, 23
        %v6162 = vsub.s32 %v6161, 127
        %v6163 = vand.u32 2147483647, %v241
        %v6164 = vand.u32 %v6163, 8388607
        %v6165 = vor.u32 %v6164, 8388608
        %v6166 = vsub.s32 0, %v6165
        %v6167 = vadd.s32 %v6162, 1
        %vm6168 = vcmp.gt.s32.totalorder %v6167, 0
        %v6169 = vsel %vm6168, %v6167, 0
        %v6170 = vshrl.u32 %v6169, 5
        %v6171 = vand.u32 %v6169, 31
        %v6172 = vsub.s32 32, %v6171
        %v6173 = vshrl.u32 683565275, %v6172
        %v6174 = vshll.u32 683565275, %v6171
        %v6175 = vshrl.u32 2475754826, %v6172
        %v6176 = vor.u32 %v6174, %v6175
        %v6177 = vshll.u32 2475754826, %v6171
        %v6178 = vshrl.u32 2131351028, %v6172
        %v6179 = vor.u32 %v6177, %v6178
        %v6180 = vshll.u32 2131351028, %v6171
        %v6181 = vshrl.u32 2102212464, %v6172
        %v6182 = vor.u32 %v6180, %v6181
        %v6183 = vshll.u32 2102212464, %v6171
        %v6184 = vshrl.u32 920167782, %v6172
        %v6185 = vor.u32 %v6183, %v6184
        %v6186 = vshll.u32 920167782, %v6171
        %v6187 = vshrl.u32 1326507024, %v6172
        %v6188 = vor.u32 %v6186, %v6187
        %vm6189 = vcmp.lt.s32.totalorder %v6170, 1
        %vm6190 = vcmp.lt.s32.totalorder %v6170, 2
        %vm6191 = vcmp.lt.s32.totalorder %v6170, 3
        %vm6192 = vcmp.lt.s32.totalorder %v6170, 4
        %v6193 = vsel %vm6189, %v6173, %v6176
        %v6194 = vsel %vm6192, %v6182, 2102212464
        %v6195 = vsel %vm6191, %v6179, %v6194
        %v6196 = vsel %vm6190, %v6193, %v6195
        %v6197 = vsel %vm6189, %v6176, %v6179
        %v6198 = vsel %vm6192, %v6185, 920167782
        %v6199 = vsel %vm6191, %v6182, %v6198
        %v6200 = vsel %vm6190, %v6197, %v6199
        %v6201 = vsel %vm6189, %v6179, %v6182
        %v6202 = vsel %vm6192, %v6188, 1326507024
        %v6203 = vsel %vm6191, %v6185, %v6202
        %v6204 = vsel %vm6190, %v6201, %v6203
        %v6205 = vshll.u32 %v6165, 8
        %v6206 = vand.u32 %v6205, 65535
        %v6207 = vshrl.u32 %v6205, 16
        %v6208 = vand.u32 %v6204, 65535
        %v6209 = vshrl.u32 %v6204, 16
        %v6210 = vmul.u32 %v6206, %v6208
        %v6211 = vmul.u32 %v6206, %v6209
        %v6212 = vmul.u32 %v6207, %v6208
        %v6213 = vmul.u32 %v6207, %v6209
        %v6214 = vshll.u32 %v6211, 16
        %v6215 = vshrl.u32 %v6211, 16
        %v6216 = vshll.u32 %v6212, 16
        %v6217 = vshrl.u32 %v6212, 16
        %vm6218 = vc.u32 %v6210, %v6214
        %v6219 = vsel %vm6218, 1, 0
        %v6220 = vadd.s32 %v6210, %v6214
        %v6221 = vadd.s32 %v6213, %v6219
        %vm6222 = vc.u32 %v6220, %v6216
        %v6223 = vsel %vm6222, 1, 0
        %v6224 = vadd.s32 %v6220, %v6216
        %v6225 = vadd.s32 %v6221, %v6223
        %v6226 = vadd.s32 %v6225, %v6215
        %v6227 = vadd.s32 %v6226, %v6217
        %v6228 = vand.u32 %v6205, 65535
        %v6229 = vshrl.u32 %v6205, 16
        %v6230 = vand.u32 %v6200, 65535
        %v6231 = vshrl.u32 %v6200, 16
        %v6232 = vmul.u32 %v6228, %v6230
        %v6233 = vmul.u32 %v6228, %v6231
        %v6234 = vmul.u32 %v6229, %v6230
        %v6235 = vmul.u32 %v6229, %v6231
        %v6236 = vshll.u32 %v6233, 16
        %v6237 = vshrl.u32 %v6233, 16
        %v6238 = vshll.u32 %v6234, 16
        %v6239 = vshrl.u32 %v6234, 16
        %vm6240 = vc.u32 %v6232, %v6236
        %v6241 = vsel %vm6240, 1, 0
        %v6242 = vadd.s32 %v6232, %v6236
        %v6243 = vadd.s32 %v6235, %v6241
        %vm6244 = vc.u32 %v6242, %v6238
        %v6245 = vsel %vm6244, 1, 0
        %v6246 = vadd.s32 %v6242, %v6238
        %v6247 = vadd.s32 %v6243, %v6245
        %v6248 = vadd.s32 %v6247, %v6237
        %v6249 = vadd.s32 %v6248, %v6239
        %v6250 = vmul.u32 %v6205, %v6196
        %v6251 = vadd.s32 %v6227, %v6246
        %vm6252 = vc.u32 %v6227, %v6246
        %v6253 = vadd.s32 %v6249, 1
        %v6254 = vsel %vm6252, %v6253, %v6249
        %v6255 = vadd.s32 %v6250, %v6254
        %v6256 = vadd.s32 %v6255, 536870912
        %v6257 = vshrl.u32 %v6256, 30
        %v6258 = vshll.u32 %v6257, 30
        %v6259 = vsub.s32 %v6255, %v6258
        %vm6260 = vcmp.lt.s32.totalorder %v6259, 0
        %v6261 = vsub.s32 0, %v6259
        %v6262 = vsel %vm6260, %v6261, %v6259
        %v6263 = vclz %v6262
        %v6264 = vsub.s32 %v6263, 2
        %vm6265 = vcmp.gt.s32.totalorder 0, %v6264
        %v6266 = vsel %vm6265, 0, %v6264
        %v6267 = vsub.s32 32, %v6266
        %v6268 = vshll.u32 %v6259, %v6266
        %v6269 = vshrl.u32 %v6251, %v6267
        %v6270 = vor.u32 %v6268, %v6269
        %v6271 = vsub.s32 4294967266, %v6266
        %v6272 = vadd.s32 %v6271, 127
        %v6273 = vshll.u32 %v6272, 23
        %v6274 = vor.u32 4788187, %v6273
        %v6275 = vand.u32 2147483647, %v6274
        %v6277 = vcvt.s32.f32 %v6270
        %v6278 = vmul.f32 %v6277, %v6275
        %v6279 = vxor.u32 %v6278, 2147483648
        %v6280 = vsel %vm6159, %v6279, %v6278
        %v6281 = vsub.s32 4, %v6257
        %v6282 = vsel %vm6159, %v6281, %v6257
        %v6283 = vsel %vm6158, %v241, %v6280
        %v6284 = vsel %vm6158, 0, %v6282
        %v6285 = vmul.f32 %v6283, %v6283
        %v6286 = vmul.f32 %v6285, -0.001358992
        %v6287 = vadd.f32 %v6286, 0.041655596
        %v6288 = vmul.f32 %v6285, %v6287
        %v6289 = vadd.f32 %v6288, -0.4999988
        %v6290 = vmul.f32 %v6285, %v6289
        %v6291 = vadd.f32 1.0, %v6290
        %v6292 = vmul.f32 %v6283, %v6283
        %v6293 = vmul.f32 %v6292, -0.00019511016
        %v6294 = vadd.f32 %v6293, 0.008332121
        %v6295 = vmul.f32 %v6292, %v6294
        %v6296 = vadd.f32 %v6295, -0.16666654
        %v6297 = vmul.f32 %v6292, %v6296
        %v6298 = vadd.f32 %v6297, 1.0
        %v6299 = vmul.f32 %v6298, %v6283
        %vm6300 = vweird.f32 %v241
        %v6301 = vadd.s32 %v6284, 3
        %v6302 = vand.u32 %v6301, 3
        %vm6303 = vcmp.lt.s32.totalorder %v6302, 2
        %vm6304 = vcmp.eq.s32.totalorder %v6302, 0
        %v6305 = vxor.u32 %v6299, 2147483648
        %v6306 = vsel %vm6304, %v6291, %v6305
        %vm6307 = vcmp.eq.s32.totalorder %v6302, 2
        %v6308 = vxor.u32 %v6291, 2147483648
        %v6309 = vsel %vm6307, %v6308, %v6299
        %v6310 = vsel %vm6303, %v6306, %v6309
        %v6311 = vsel %vm6300, nan, %v6310
        %v6312 = vand.u32 2147483647, %v242
        %vm6313 = vcmp.le.f32.partialorder %v6312, 0.7853982
        %vm6314 = vcmp.lt.s32.totalorder %v242, 0
        %v6315 = vand.u32 %v242, 2139095040
        %v6316 = vshrl.u32 %v6315, 23
        %v6317 = vsub.s32 %v6316, 127
        %v6318 = vand.u32 2147483647, %v242
        %v6319 = vand.u32 %v6318, 8388607
        %v6320 = vor.u32 %v6319, 8388608
        %v6321 = vsub.s32 0, %v6320
        %v6322 = vadd.s32 %v6317, 1
        %vm6323 = vcmp.gt.s32.totalorder %v6322, 0
        %v6324 = vsel %vm6323, %v6322, 0
        %v6325 = vshrl.u32 %v6324, 5
        %v6326 = vand.u32 %v6324, 31
        %v6327 = vsub.s32 32, %v6326
        %v6328 = vshrl.u32 683565275, %v6327
        %v6329 = vshll.u32 683565275, %v6326
        %v6330 = vshrl.u32 2475754826, %v6327
        %v6331 = vor.u32 %v6329, %v6330
        %v6332 = vshll.u32 2475754826, %v6326
        %v6333 = vshrl.u32 2131351028, %v6327
        %v6334 = vor.u32 %v6332, %v6333
        %v6335 = vshll.u32 2131351028, %v6326
        %v6336 = vshrl.u32 2102212464, %v6327
        %v6337 = vor.u32 %v6335, %v6336
        %v6338 = vshll.u32 2102212464, %v6326
        %v6339 = vshrl.u32 920167782, %v6327
        %v6340 = vor.u32 %v6338, %v6339
        %v6341 = vshll.u32 920167782, %v6326
        %v6342 = vshrl.u32 1326507024, %v6327
        %v6343 = vor.u32 %v6341, %v6342
        %vm6344 = vcmp.lt.s32.totalorder %v6325, 1
        %vm6345 = vcmp.lt.s32.totalorder %v6325, 2
        %vm6346 = vcmp.lt.s32.totalorder %v6325, 3
        %vm6347 = vcmp.lt.s32.totalorder %v6325, 4
        %v6348 = vsel %vm6344, %v6328, %v6331
        %v6349 = vsel %vm6347, %v6337, 2102212464
        %v6350 = vsel %vm6346, %v6334, %v6349
        %v6351 = vsel %vm6345, %v6348, %v6350
        %v6352 = vsel %vm6344, %v6331, %v6334
        %v6353 = vsel %vm6347, %v6340, 920167782
        %v6354 = vsel %vm6346, %v6337, %v6353
        %v6355 = vsel %vm6345, %v6352, %v6354
        %v6356 = vsel %vm6344, %v6334, %v6337
        %v6357 = vsel %vm6347, %v6343, 1326507024
        %v6358 = vsel %vm6346, %v6340, %v6357
        %v6359 = vsel %vm6345, %v6356, %v6358
        %v6360 = vshll.u32 %v6320, 8
        %v6361 = vand.u32 %v6360, 65535
        %v6362 = vshrl.u32 %v6360, 16
        %v6363 = vand.u32 %v6359, 65535
        %v6364 = vshrl.u32 %v6359, 16
        %v6365 = vmul.u32 %v6361, %v6363
        %v6366 = vmul.u32 %v6361, %v6364
        %v6367 = vmul.u32 %v6362, %v6363
        %v6368 = vmul.u32 %v6362, %v6364
        %v6369 = vshll.u32 %v6366, 16
        %v6370 = vshrl.u32 %v6366, 16
        %v6371 = vshll.u32 %v6367, 16
        %v6372 = vshrl.u32 %v6367, 16
        %vm6373 = vc.u32 %v6365, %v6369
        %v6374 = vsel %vm6373, 1, 0
        %v6375 = vadd.s32 %v6365, %v6369
        %v6376 = vadd.s32 %v6368, %v6374
        %vm6377 = vc.u32 %v6375, %v6371
        %v6378 = vsel %vm6377, 1, 0
        %v6379 = vadd.s32 %v6375, %v6371
        %v6380 = vadd.s32 %v6376, %v6378
        %v6381 = vadd.s32 %v6380, %v6370
        %v6382 = vadd.s32 %v6381, %v6372
        %v6383 = vand.u32 %v6360, 65535
        %v6384 = vshrl.u32 %v6360, 16
        %v6385 = vand.u32 %v6355, 65535
        %v6386 = vshrl.u32 %v6355, 16
        %v6387 = vmul.u32 %v6383, %v6385
        %v6388 = vmul.u32 %v6383, %v6386
        %v6389 = vmul.u32 %v6384, %v6385
        %v6390 = vmul.u32 %v6384, %v6386
        %v6391 = vshll.u32 %v6388, 16
        %v6392 = vshrl.u32 %v6388, 16
        %v6393 = vshll.u32 %v6389, 16
        %v6394 = vshrl.u32 %v6389, 16
        %vm6395 = vc.u32 %v6387, %v6391
        %v6396 = vsel %vm6395, 1, 0
        %v6397 = vadd.s32 %v6387, %v6391
        %v6398 = vadd.s32 %v6390, %v6396
        %vm6399 = vc.u32 %v6397, %v6393
        %v6400 = vsel %vm6399, 1, 0
        %v6401 = vadd.s32 %v6397, %v6393
        %v6402 = vadd.s32 %v6398, %v6400
        %v6403 = vadd.s32 %v6402, %v6392
        %v6404 = vadd.s32 %v6403, %v6394
        %v6405 = vmul.u32 %v6360, %v6351
        %v6406 = vadd.s32 %v6382, %v6401
        %vm6407 = vc.u32 %v6382, %v6401
        %v6408 = vadd.s32 %v6404, 1
        %v6409 = vsel %vm6407, %v6408, %v6404
        %v6410 = vadd.s32 %v6405, %v6409
        %v6411 = vadd.s32 %v6410, 536870912
        %v6412 = vshrl.u32 %v6411, 30
        %v6413 = vshll.u32 %v6412, 30
        %v6414 = vsub.s32 %v6410, %v6413
        %vm6415 = vcmp.lt.s32.totalorder %v6414, 0
        %v6416 = vsub.s32 0, %v6414
        %v6417 = vsel %vm6415, %v6416, %v6414
        %v6418 = vclz %v6417
        %v6419 = vsub.s32 %v6418, 2
        %vm6420 = vcmp.gt.s32.totalorder 0, %v6419
        %v6421 = vsel %vm6420, 0, %v6419
        %v6422 = vsub.s32 32, %v6421
        %v6423 = vshll.u32 %v6414, %v6421
        %v6424 = vshrl.u32 %v6406, %v6422
        %v6425 = vor.u32 %v6423, %v6424
        %v6426 = vsub.s32 4294967266, %v6421
        %v6427 = vadd.s32 %v6426, 127
        %v6428 = vshll.u32 %v6427, 23
        %v6429 = vor.u32 4788187, %v6428
        %v6430 = vand.u32 2147483647, %v6429
        %v6432 = vcvt.s32.f32 %v6425
        %v6433 = vmul.f32 %v6432, %v6430
        %v6434 = vxor.u32 %v6433, 2147483648
        %v6435 = vsel %vm6314, %v6434, %v6433
        %v6436 = vsub.s32 4, %v6412
        %v6437 = vsel %vm6314, %v6436, %v6412
        %v6438 = vsel %vm6313, %v242, %v6435
        %v6439 = vsel %vm6313, 0, %v6437
        %v6440 = vmul.f32 %v6438, %v6438
        %v6441 = vmul.f32 %v6440, -0.001358992
        %v6442 = vadd.f32 %v6441, 0.041655596
        %v6443 = vmul.f32 %v6440, %v6442
        %v6444 = vadd.f32 %v6443, -0.4999988
        %v6445 = vmul.f32 %v6440, %v6444
        %v6446 = vadd.f32 1.0, %v6445
        %v6447 = vmul.f32 %v6438, %v6438
        %v6448 = vmul.f32 %v6447, -0.00019511016
        %v6449 = vadd.f32 %v6448, 0.008332121
        %v6450 = vmul.f32 %v6447, %v6449
        %v6451 = vadd.f32 %v6450, -0.16666654
        %v6452 = vmul.f32 %v6447, %v6451
        %v6453 = vadd.f32 %v6452, 1.0
        %v6454 = vmul.f32 %v6453, %v6438
        %vm6455 = vweird.f32 %v242
        %v6456 = vadd.s32 %v6439, 3
        %v6457 = vand.u32 %v6456, 3
        %vm6458 = vcmp.lt.s32.totalorder %v6457, 2
        %vm6459 = vcmp.eq.s32.totalorder %v6457, 0
        %v6460 = vxor.u32 %v6454, 2147483648
        %v6461 = vsel %vm6459, %v6446, %v6460
        %vm6462 = vcmp.eq.s32.totalorder %v6457, 2
        %v6463 = vxor.u32 %v6446, 2147483648
        %v6464 = vsel %vm6462, %v6463, %v6454
        %v6465 = vsel %vm6458, %v6461, %v6464
        %v6466 = vsel %vm6455, nan, %v6465
        %v6467 = vand.u32 2147483647, %v243
        %vm6468 = vcmp.le.f32.partialorder %v6467, 0.7853982
        %vm6469 = vcmp.lt.s32.totalorder %v243, 0
        %v6470 = vand.u32 %v243, 2139095040
        %v6471 = vshrl.u32 %v6470, 23
        %v6472 = vsub.s32 %v6471, 127
        %v6473 = vand.u32 2147483647, %v243
        %v6474 = vand.u32 %v6473, 8388607
        %v6475 = vor.u32 %v6474, 8388608
        %v6476 = vsub.s32 0, %v6475
        %v6477 = vadd.s32 %v6472, 1
        %vm6478 = vcmp.gt.s32.totalorder %v6477, 0
        %v6479 = vsel %vm6478, %v6477, 0
        %v6480 = vshrl.u32 %v6479, 5
        %v6481 = vand.u32 %v6479, 31
        %v6482 = vsub.s32 32, %v6481
        %v6483 = vshrl.u32 683565275, %v6482
        %v6484 = vshll.u32 683565275, %v6481
        %v6485 = vshrl.u32 2475754826, %v6482
        %v6486 = vor.u32 %v6484, %v6485
        %v6487 = vshll.u32 2475754826, %v6481
        %v6488 = vshrl.u32 2131351028, %v6482
        %v6489 = vor.u32 %v6487, %v6488
        %v6490 = vshll.u32 2131351028, %v6481
        %v6491 = vshrl.u32 2102212464, %v6482
        %v6492 = vor.u32 %v6490, %v6491
        %v6493 = vshll.u32 2102212464, %v6481
        %v6494 = vshrl.u32 920167782, %v6482
        %v6495 = vor.u32 %v6493, %v6494
        %v6496 = vshll.u32 920167782, %v6481
        %v6497 = vshrl.u32 1326507024, %v6482
        %v6498 = vor.u32 %v6496, %v6497
        %vm6499 = vcmp.lt.s32.totalorder %v6480, 1
        %vm6500 = vcmp.lt.s32.totalorder %v6480, 2
        %vm6501 = vcmp.lt.s32.totalorder %v6480, 3
        %vm6502 = vcmp.lt.s32.totalorder %v6480, 4
        %v6503 = vsel %vm6499, %v6483, %v6486
        %v6504 = vsel %vm6502, %v6492, 2102212464
        %v6505 = vsel %vm6501, %v6489, %v6504
        %v6506 = vsel %vm6500, %v6503, %v6505
        %v6507 = vsel %vm6499, %v6486, %v6489
        %v6508 = vsel %vm6502, %v6495, 920167782
        %v6509 = vsel %vm6501, %v6492, %v6508
        %v6510 = vsel %vm6500, %v6507, %v6509
        %v6511 = vsel %vm6499, %v6489, %v6492
        %v6512 = vsel %vm6502, %v6498, 1326507024
        %v6513 = vsel %vm6501, %v6495, %v6512
        %v6514 = vsel %vm6500, %v6511, %v6513
        %v6515 = vshll.u32 %v6475, 8
        %v6516 = vand.u32 %v6515, 65535
        %v6517 = vshrl.u32 %v6515, 16
        %v6518 = vand.u32 %v6514, 65535
        %v6519 = vshrl.u32 %v6514, 16
        %v6520 = vmul.u32 %v6516, %v6518
        %v6521 = vmul.u32 %v6516, %v6519
        %v6522 = vmul.u32 %v6517, %v6518
        %v6523 = vmul.u32 %v6517, %v6519
        %v6524 = vshll.u32 %v6521, 16
        %v6525 = vshrl.u32 %v6521, 16
        %v6526 = vshll.u32 %v6522, 16
        %v6527 = vshrl.u32 %v6522, 16
        %vm6528 = vc.u32 %v6520, %v6524
        %v6529 = vsel %vm6528, 1, 0
        %v6530 = vadd.s32 %v6520, %v6524
        %v6531 = vadd.s32 %v6523, %v6529
        %vm6532 = vc.u32 %v6530, %v6526
        %v6533 = vsel %vm6532, 1, 0
        %v6534 = vadd.s32 %v6530, %v6526
        %v6535 = vadd.s32 %v6531, %v6533
        %v6536 = vadd.s32 %v6535, %v6525
        %v6537 = vadd.s32 %v6536, %v6527
        %v6538 = vand.u32 %v6515, 65535
        %v6539 = vshrl.u32 %v6515, 16
        %v6540 = vand.u32 %v6510, 65535
        %v6541 = vshrl.u32 %v6510, 16
        %v6542 = vmul.u32 %v6538, %v6540
        %v6543 = vmul.u32 %v6538, %v6541
        %v6544 = vmul.u32 %v6539, %v6540
        %v6545 = vmul.u32 %v6539, %v6541
        %v6546 = vshll.u32 %v6543, 16
        %v6547 = vshrl.u32 %v6543, 16
        %v6548 = vshll.u32 %v6544, 16
        %v6549 = vshrl.u32 %v6544, 16
        %vm6550 = vc.u32 %v6542, %v6546
        %v6551 = vsel %vm6550, 1, 0
        %v6552 = vadd.s32 %v6542, %v6546
        %v6553 = vadd.s32 %v6545, %v6551
        %vm6554 = vc.u32 %v6552, %v6548
        %v6555 = vsel %vm6554, 1, 0
        %v6556 = vadd.s32 %v6552, %v6548
        %v6557 = vadd.s32 %v6553, %v6555
        %v6558 = vadd.s32 %v6557, %v6547
        %v6559 = vadd.s32 %v6558, %v6549
        %v6560 = vmul.u32 %v6515, %v6506
        %v6561 = vadd.s32 %v6537, %v6556
        %vm6562 = vc.u32 %v6537, %v6556
        %v6563 = vadd.s32 %v6559, 1
        %v6564 = vsel %vm6562, %v6563, %v6559
        %v6565 = vadd.s32 %v6560, %v6564
        %v6566 = vadd.s32 %v6565, 536870912
        %v6567 = vshrl.u32 %v6566, 30
        %v6568 = vshll.u32 %v6567, 30
        %v6569 = vsub.s32 %v6565, %v6568
        %vm6570 = vcmp.lt.s32.totalorder %v6569, 0
        %v6571 = vsub.s32 0, %v6569
        %v6572 = vsel %vm6570, %v6571, %v6569
        %v6573 = vclz %v6572
        %v6574 = vsub.s32 %v6573, 2
        %vm6575 = vcmp.gt.s32.totalorder 0, %v6574
        %v6576 = vsel %vm6575, 0, %v6574
        %v6577 = vsub.s32 32, %v6576
        %v6578 = vshll.u32 %v6569, %v6576
        %v6579 = vshrl.u32 %v6561, %v6577
        %v6580 = vor.u32 %v6578, %v6579
        %v6581 = vsub.s32 4294967266, %v6576
        %v6582 = vadd.s32 %v6581, 127
        %v6583 = vshll.u32 %v6582, 23
        %v6584 = vor.u32 4788187, %v6583
        %v6585 = vand.u32 2147483647, %v6584
        %v6587 = vcvt.s32.f32 %v6580
        %v6588 = vmul.f32 %v6587, %v6585
        %v6589 = vxor.u32 %v6588, 2147483648
        %v6590 = vsel %vm6469, %v6589, %v6588
        %v6591 = vsub.s32 4, %v6567
        %v6592 = vsel %vm6469, %v6591, %v6567
        %v6593 = vsel %vm6468, %v243, %v6590
        %v6594 = vsel %vm6468, 0, %v6592
        %v6595 = vmul.f32 %v6593, %v6593
        %v6596 = vmul.f32 %v6595, -0.001358992
        %v6597 = vadd.f32 %v6596, 0.041655596
        %v6598 = vmul.f32 %v6595, %v6597
        %v6599 = vadd.f32 %v6598, -0.4999988
        %v6600 = vmul.f32 %v6595, %v6599
        %v6601 = vadd.f32 1.0, %v6600
        %v6602 = vmul.f32 %v6593, %v6593
        %v6603 = vmul.f32 %v6602, -0.00019511016
        %v6604 = vadd.f32 %v6603, 0.008332121
        %v6605 = vmul.f32 %v6602, %v6604
        %v6606 = vadd.f32 %v6605, -0.16666654
        %v6607 = vmul.f32 %v6602, %v6606
        %v6608 = vadd.f32 %v6607, 1.0
        %v6609 = vmul.f32 %v6608, %v6593
        %vm6610 = vweird.f32 %v243
        %v6611 = vadd.s32 %v6594, 3
        %v6612 = vand.u32 %v6611, 3
        %vm6613 = vcmp.lt.s32.totalorder %v6612, 2
        %vm6614 = vcmp.eq.s32.totalorder %v6612, 0
        %v6615 = vxor.u32 %v6609, 2147483648
        %v6616 = vsel %vm6614, %v6601, %v6615
        %vm6617 = vcmp.eq.s32.totalorder %v6612, 2
        %v6618 = vxor.u32 %v6601, 2147483648
        %v6619 = vsel %vm6617, %v6618, %v6609
        %v6620 = vsel %vm6613, %v6616, %v6619
        %v6621 = vsel %vm6610, nan, %v6620
        %v6622 = vand.u32 2147483647, %v244
        %vm6623 = vcmp.le.f32.partialorder %v6622, 0.7853982
        %vm6624 = vcmp.lt.s32.totalorder %v244, 0
        %v6625 = vand.u32 %v244, 2139095040
        %v6626 = vshrl.u32 %v6625, 23
        %v6627 = vsub.s32 %v6626, 127
        %v6628 = vand.u32 2147483647, %v244
        %v6629 = vand.u32 %v6628, 8388607
        %v6630 = vor.u32 %v6629, 8388608
        %v6631 = vsub.s32 0, %v6630
        %v6632 = vadd.s32 %v6627, 1
        %vm6633 = vcmp.gt.s32.totalorder %v6632, 0
        %v6634 = vsel %vm6633, %v6632, 0
        %v6635 = vshrl.u32 %v6634, 5
        %v6636 = vand.u32 %v6634, 31
        %v6637 = vsub.s32 32, %v6636
        %v6638 = vshrl.u32 683565275, %v6637
        %v6639 = vshll.u32 683565275, %v6636
        %v6640 = vshrl.u32 2475754826, %v6637
        %v6641 = vor.u32 %v6639, %v6640
        %v6642 = vshll.u32 2475754826, %v6636
        %v6643 = vshrl.u32 2131351028, %v6637
        %v6644 = vor.u32 %v6642, %v6643
        %v6645 = vshll.u32 2131351028, %v6636
        %v6646 = vshrl.u32 2102212464, %v6637
        %v6647 = vor.u32 %v6645, %v6646
        %v6648 = vshll.u32 2102212464, %v6636
        %v6649 = vshrl.u32 920167782, %v6637
        %v6650 = vor.u32 %v6648, %v6649
        %v6651 = vshll.u32 920167782, %v6636
        %v6652 = vshrl.u32 1326507024, %v6637
        %v6653 = vor.u32 %v6651, %v6652
        %vm6654 = vcmp.lt.s32.totalorder %v6635, 1
        %vm6655 = vcmp.lt.s32.totalorder %v6635, 2
        %vm6656 = vcmp.lt.s32.totalorder %v6635, 3
        %vm6657 = vcmp.lt.s32.totalorder %v6635, 4
        %v6658 = vsel %vm6654, %v6638, %v6641
        %v6659 = vsel %vm6657, %v6647, 2102212464
        %v6660 = vsel %vm6656, %v6644, %v6659
        %v6661 = vsel %vm6655, %v6658, %v6660
        %v6662 = vsel %vm6654, %v6641, %v6644
        %v6663 = vsel %vm6657, %v6650, 920167782
        %v6664 = vsel %vm6656, %v6647, %v6663
        %v6665 = vsel %vm6655, %v6662, %v6664
        %v6666 = vsel %vm6654, %v6644, %v6647
        %v6667 = vsel %vm6657, %v6653, 1326507024
        %v6668 = vsel %vm6656, %v6650, %v6667
        %v6669 = vsel %vm6655, %v6666, %v6668
        %v6670 = vshll.u32 %v6630, 8
        %v6671 = vand.u32 %v6670, 65535
        %v6672 = vshrl.u32 %v6670, 16
        %v6673 = vand.u32 %v6669, 65535
        %v6674 = vshrl.u32 %v6669, 16
        %v6675 = vmul.u32 %v6671, %v6673
        %v6676 = vmul.u32 %v6671, %v6674
        %v6677 = vmul.u32 %v6672, %v6673
        %v6678 = vmul.u32 %v6672, %v6674
        %v6679 = vshll.u32 %v6676, 16
        %v6680 = vshrl.u32 %v6676, 16
        %v6681 = vshll.u32 %v6677, 16
        %v6682 = vshrl.u32 %v6677, 16
        %vm6683 = vc.u32 %v6675, %v6679
        %v6684 = vsel %vm6683, 1, 0
        %v6685 = vadd.s32 %v6675, %v6679
        %v6686 = vadd.s32 %v6678, %v6684
        %vm6687 = vc.u32 %v6685, %v6681
        %v6688 = vsel %vm6687, 1, 0
        %v6689 = vadd.s32 %v6685, %v6681
        %v6690 = vadd.s32 %v6686, %v6688
        %v6691 = vadd.s32 %v6690, %v6680
        %v6692 = vadd.s32 %v6691, %v6682
        %v6693 = vand.u32 %v6670, 65535
        %v6694 = vshrl.u32 %v6670, 16
        %v6695 = vand.u32 %v6665, 65535
        %v6696 = vshrl.u32 %v6665, 16
        %v6697 = vmul.u32 %v6693, %v6695
        %v6698 = vmul.u32 %v6693, %v6696
        %v6699 = vmul.u32 %v6694, %v6695
        %v6700 = vmul.u32 %v6694, %v6696
        %v6701 = vshll.u32 %v6698, 16
        %v6702 = vshrl.u32 %v6698, 16
        %v6703 = vshll.u32 %v6699, 16
        %v6704 = vshrl.u32 %v6699, 16
        %vm6705 = vc.u32 %v6697, %v6701
        %v6706 = vsel %vm6705, 1, 0
        %v6707 = vadd.s32 %v6697, %v6701
        %v6708 = vadd.s32 %v6700, %v6706
        %vm6709 = vc.u32 %v6707, %v6703
        %v6710 = vsel %vm6709, 1, 0
        %v6711 = vadd.s32 %v6707, %v6703
        %v6712 = vadd.s32 %v6708, %v6710
        %v6713 = vadd.s32 %v6712, %v6702
        %v6714 = vadd.s32 %v6713, %v6704
        %v6715 = vmul.u32 %v6670, %v6661
        %v6716 = vadd.s32 %v6692, %v6711
        %vm6717 = vc.u32 %v6692, %v6711
        %v6718 = vadd.s32 %v6714, 1
        %v6719 = vsel %vm6717, %v6718, %v6714
        %v6720 = vadd.s32 %v6715, %v6719
        %v6721 = vadd.s32 %v6720, 536870912
        %v6722 = vshrl.u32 %v6721, 30
        %v6723 = vshll.u32 %v6722, 30
        %v6724 = vsub.s32 %v6720, %v6723
        %vm6725 = vcmp.lt.s32.totalorder %v6724, 0
        %v6726 = vsub.s32 0, %v6724
        %v6727 = vsel %vm6725, %v6726, %v6724
        %v6728 = vclz %v6727
        %v6729 = vsub.s32 %v6728, 2
        %vm6730 = vcmp.gt.s32.totalorder 0, %v6729
        %v6731 = vsel %vm6730, 0, %v6729
        %v6732 = vsub.s32 32, %v6731
        %v6733 = vshll.u32 %v6724, %v6731
        %v6734 = vshrl.u32 %v6716, %v6732
        %v6735 = vor.u32 %v6733, %v6734
        %v6736 = vsub.s32 4294967266, %v6731
        %v6737 = vadd.s32 %v6736, 127
        %v6738 = vshll.u32 %v6737, 23
        %v6739 = vor.u32 4788187, %v6738
        %v6740 = vand.u32 2147483647, %v6739
        %v6742 = vcvt.s32.f32 %v6735
        %v6743 = vmul.f32 %v6742, %v6740
        %v6744 = vxor.u32 %v6743, 2147483648
        %v6745 = vsel %vm6624, %v6744, %v6743
        %v6746 = vsub.s32 4, %v6722
        %v6747 = vsel %vm6624, %v6746, %v6722
        %v6748 = vsel %vm6623, %v244, %v6745
        %v6749 = vsel %vm6623, 0, %v6747
        %v6750 = vmul.f32 %v6748, %v6748
        %v6751 = vmul.f32 %v6750, -0.001358992
        %v6752 = vadd.f32 %v6751, 0.041655596
        %v6753 = vmul.f32 %v6750, %v6752
        %v6754 = vadd.f32 %v6753, -0.4999988
        %v6755 = vmul.f32 %v6750, %v6754
        %v6756 = vadd.f32 1.0, %v6755
        %v6757 = vmul.f32 %v6748, %v6748
        %v6758 = vmul.f32 %v6757, -0.00019511016
        %v6759 = vadd.f32 %v6758, 0.008332121
        %v6760 = vmul.f32 %v6757, %v6759
        %v6761 = vadd.f32 %v6760, -0.16666654
        %v6762 = vmul.f32 %v6757, %v6761
        %v6763 = vadd.f32 %v6762, 1.0
        %v6764 = vmul.f32 %v6763, %v6748
        %vm6765 = vweird.f32 %v244
        %v6766 = vadd.s32 %v6749, 3
        %v6767 = vand.u32 %v6766, 3
        %vm6768 = vcmp.lt.s32.totalorder %v6767, 2
        %vm6769 = vcmp.eq.s32.totalorder %v6767, 0
        %v6770 = vxor.u32 %v6764, 2147483648
        %v6771 = vsel %vm6769, %v6756, %v6770
        %vm6772 = vcmp.eq.s32.totalorder %v6767, 2
        %v6773 = vxor.u32 %v6756, 2147483648
        %v6774 = vsel %vm6772, %v6773, %v6764
        %v6775 = vsel %vm6768, %v6771, %v6774
        %v6776 = vsel %vm6765, nan, %v6775
        %v6777 = vand.u32 2147483647, %v245
        %vm6778 = vcmp.le.f32.partialorder %v6777, 0.7853982
        %vm6779 = vcmp.lt.s32.totalorder %v245, 0
        %v6780 = vand.u32 %v245, 2139095040
        %v6781 = vshrl.u32 %v6780, 23
        %v6782 = vsub.s32 %v6781, 127
        %v6783 = vand.u32 2147483647, %v245
        %v6784 = vand.u32 %v6783, 8388607
        %v6785 = vor.u32 %v6784, 8388608
        %v6786 = vsub.s32 0, %v6785
        %v6787 = vadd.s32 %v6782, 1
        %vm6788 = vcmp.gt.s32.totalorder %v6787, 0
        %v6789 = vsel %vm6788, %v6787, 0
        %v6790 = vshrl.u32 %v6789, 5
        %v6791 = vand.u32 %v6789, 31
        %v6792 = vsub.s32 32, %v6791
        %v6793 = vshrl.u32 683565275, %v6792
        %v6794 = vshll.u32 683565275, %v6791
        %v6795 = vshrl.u32 2475754826, %v6792
        %v6796 = vor.u32 %v6794, %v6795
        %v6797 = vshll.u32 2475754826, %v6791
        %v6798 = vshrl.u32 2131351028, %v6792
        %v6799 = vor.u32 %v6797, %v6798
        %v6800 = vshll.u32 2131351028, %v6791
        %v6801 = vshrl.u32 2102212464, %v6792
        %v6802 = vor.u32 %v6800, %v6801
        %v6803 = vshll.u32 2102212464, %v6791
        %v6804 = vshrl.u32 920167782, %v6792
        %v6805 = vor.u32 %v6803, %v6804
        %v6806 = vshll.u32 920167782, %v6791
        %v6807 = vshrl.u32 1326507024, %v6792
        %v6808 = vor.u32 %v6806, %v6807
        %vm6809 = vcmp.lt.s32.totalorder %v6790, 1
        %vm6810 = vcmp.lt.s32.totalorder %v6790, 2
        %vm6811 = vcmp.lt.s32.totalorder %v6790, 3
        %vm6812 = vcmp.lt.s32.totalorder %v6790, 4
        %v6813 = vsel %vm6809, %v6793, %v6796
        %v6814 = vsel %vm6812, %v6802, 2102212464
        %v6815 = vsel %vm6811, %v6799, %v6814
        %v6816 = vsel %vm6810, %v6813, %v6815
        %v6817 = vsel %vm6809, %v6796, %v6799
        %v6818 = vsel %vm6812, %v6805, 920167782
        %v6819 = vsel %vm6811, %v6802, %v6818
        %v6820 = vsel %vm6810, %v6817, %v6819
        %v6821 = vsel %vm6809, %v6799, %v6802
        %v6822 = vsel %vm6812, %v6808, 1326507024
        %v6823 = vsel %vm6811, %v6805, %v6822
        %v6824 = vsel %vm6810, %v6821, %v6823
        %v6825 = vshll.u32 %v6785, 8
        %v6826 = vand.u32 %v6825, 65535
        %v6827 = vshrl.u32 %v6825, 16
        %v6828 = vand.u32 %v6824, 65535
        %v6829 = vshrl.u32 %v6824, 16
        %v6830 = vmul.u32 %v6826, %v6828
        %v6831 = vmul.u32 %v6826, %v6829
        %v6832 = vmul.u32 %v6827, %v6828
        %v6833 = vmul.u32 %v6827, %v6829
        %v6834 = vshll.u32 %v6831, 16
        %v6835 = vshrl.u32 %v6831, 16
        %v6836 = vshll.u32 %v6832, 16
        %v6837 = vshrl.u32 %v6832, 16
        %vm6838 = vc.u32 %v6830, %v6834
        %v6839 = vsel %vm6838, 1, 0
        %v6840 = vadd.s32 %v6830, %v6834
        %v6841 = vadd.s32 %v6833, %v6839
        %vm6842 = vc.u32 %v6840, %v6836
        %v6843 = vsel %vm6842, 1, 0
        %v6844 = vadd.s32 %v6840, %v6836
        %v6845 = vadd.s32 %v6841, %v6843
        %v6846 = vadd.s32 %v6845, %v6835
        %v6847 = vadd.s32 %v6846, %v6837
        %v6848 = vand.u32 %v6825, 65535
        %v6849 = vshrl.u32 %v6825, 16
        %v6850 = vand.u32 %v6820, 65535
        %v6851 = vshrl.u32 %v6820, 16
        %v6852 = vmul.u32 %v6848, %v6850
        %v6853 = vmul.u32 %v6848, %v6851
        %v6854 = vmul.u32 %v6849, %v6850
        %v6855 = vmul.u32 %v6849, %v6851
        %v6856 = vshll.u32 %v6853, 16
        %v6857 = vshrl.u32 %v6853, 16
        %v6858 = vshll.u32 %v6854, 16
        %v6859 = vshrl.u32 %v6854, 16
        %vm6860 = vc.u32 %v6852, %v6856
        %v6861 = vsel %vm6860, 1, 0
        %v6862 = vadd.s32 %v6852, %v6856
        %v6863 = vadd.s32 %v6855, %v6861
        %vm6864 = vc.u32 %v6862, %v6858
        %v6865 = vsel %vm6864, 1, 0
        %v6866 = vadd.s32 %v6862, %v6858
        %v6867 = vadd.s32 %v6863, %v6865
        %v6868 = vadd.s32 %v6867, %v6857
        %v6869 = vadd.s32 %v6868, %v6859
        %v6870 = vmul.u32 %v6825, %v6816
        %v6871 = vadd.s32 %v6847, %v6866
        %vm6872 = vc.u32 %v6847, %v6866
        %v6873 = vadd.s32 %v6869, 1
        %v6874 = vsel %vm6872, %v6873, %v6869
        %v6875 = vadd.s32 %v6870, %v6874
        %v6876 = vadd.s32 %v6875, 536870912
        %v6877 = vshrl.u32 %v6876, 30
        %v6878 = vshll.u32 %v6877, 30
        %v6879 = vsub.s32 %v6875, %v6878
        %vm6880 = vcmp.lt.s32.totalorder %v6879, 0
        %v6881 = vsub.s32 0, %v6879
        %v6882 = vsel %vm6880, %v6881, %v6879
        %v6883 = vclz %v6882
        %v6884 = vsub.s32 %v6883, 2
        %vm6885 = vcmp.gt.s32.totalorder 0, %v6884
        %v6886 = vsel %vm6885, 0, %v6884
        %v6887 = vsub.s32 32, %v6886
        %v6888 = vshll.u32 %v6879, %v6886
        %v6889 = vshrl.u32 %v6871, %v6887
        %v6890 = vor.u32 %v6888, %v6889
        %v6891 = vsub.s32 4294967266, %v6886
        %v6892 = vadd.s32 %v6891, 127
        %v6893 = vshll.u32 %v6892, 23
        %v6894 = vor.u32 4788187, %v6893
        %v6895 = vand.u32 2147483647, %v6894
        %v6897 = vcvt.s32.f32 %v6890
        %v6898 = vmul.f32 %v6897, %v6895
        %v6899 = vxor.u32 %v6898, 2147483648
        %v6900 = vsel %vm6779, %v6899, %v6898
        %v6901 = vsub.s32 4, %v6877
        %v6902 = vsel %vm6779, %v6901, %v6877
        %v6903 = vsel %vm6778, %v245, %v6900
        %v6904 = vsel %vm6778, 0, %v6902
        %v6905 = vmul.f32 %v6903, %v6903
        %v6906 = vmul.f32 %v6905, -0.001358992
        %v6907 = vadd.f32 %v6906, 0.041655596
        %v6908 = vmul.f32 %v6905, %v6907
        %v6909 = vadd.f32 %v6908, -0.4999988
        %v6910 = vmul.f32 %v6905, %v6909
        %v6911 = vadd.f32 1.0, %v6910
        %v6912 = vmul.f32 %v6903, %v6903
        %v6913 = vmul.f32 %v6912, -0.00019511016
        %v6914 = vadd.f32 %v6913, 0.008332121
        %v6915 = vmul.f32 %v6912, %v6914
        %v6916 = vadd.f32 %v6915, -0.16666654
        %v6917 = vmul.f32 %v6912, %v6916
        %v6918 = vadd.f32 %v6917, 1.0
        %v6919 = vmul.f32 %v6918, %v6903
        %vm6920 = vweird.f32 %v245
        %v6921 = vadd.s32 %v6904, 3
        %v6922 = vand.u32 %v6921, 3
        %vm6923 = vcmp.lt.s32.totalorder %v6922, 2
        %vm6924 = vcmp.eq.s32.totalorder %v6922, 0
        %v6925 = vxor.u32 %v6919, 2147483648
        %v6926 = vsel %vm6924, %v6911, %v6925
        %vm6927 = vcmp.eq.s32.totalorder %v6922, 2
        %v6928 = vxor.u32 %v6911, 2147483648
        %v6929 = vsel %vm6927, %v6928, %v6919
        %v6930 = vsel %vm6923, %v6926, %v6929
        %v6931 = vsel %vm6920, nan, %v6930
        %v6932 = vand.u32 2147483647, %v246
        %vm6933 = vcmp.le.f32.partialorder %v6932, 0.7853982
        %vm6934 = vcmp.lt.s32.totalorder %v246, 0
        %v6935 = vand.u32 %v246, 2139095040
        %v6936 = vshrl.u32 %v6935, 23
        %v6937 = vsub.s32 %v6936, 127
        %v6938 = vand.u32 2147483647, %v246
        %v6939 = vand.u32 %v6938, 8388607
        %v6940 = vor.u32 %v6939, 8388608
        %v6941 = vsub.s32 0, %v6940
        %v6942 = vadd.s32 %v6937, 1
        %vm6943 = vcmp.gt.s32.totalorder %v6942, 0
        %v6944 = vsel %vm6943, %v6942, 0
        %v6945 = vshrl.u32 %v6944, 5
        %v6946 = vand.u32 %v6944, 31
        %v6947 = vsub.s32 32, %v6946
        %v6948 = vshrl.u32 683565275, %v6947
        %v6949 = vshll.u32 683565275, %v6946
        %v6950 = vshrl.u32 2475754826, %v6947
        %v6951 = vor.u32 %v6949, %v6950
        %v6952 = vshll.u32 2475754826, %v6946
        %v6953 = vshrl.u32 2131351028, %v6947
        %v6954 = vor.u32 %v6952, %v6953
        %v6955 = vshll.u32 2131351028, %v6946
        %v6956 = vshrl.u32 2102212464, %v6947
        %v6957 = vor.u32 %v6955, %v6956
        %v6958 = vshll.u32 2102212464, %v6946
        %v6959 = vshrl.u32 920167782, %v6947
        %v6960 = vor.u32 %v6958, %v6959
        %v6961 = vshll.u32 920167782, %v6946
        %v6962 = vshrl.u32 1326507024, %v6947
        %v6963 = vor.u32 %v6961, %v6962
        %vm6964 = vcmp.lt.s32.totalorder %v6945, 1
        %vm6965 = vcmp.lt.s32.totalorder %v6945, 2
        %vm6966 = vcmp.lt.s32.totalorder %v6945, 3
        %vm6967 = vcmp.lt.s32.totalorder %v6945, 4
        %v6968 = vsel %vm6964, %v6948, %v6951
        %v6969 = vsel %vm6967, %v6957, 2102212464
        %v6970 = vsel %vm6966, %v6954, %v6969
        %v6971 = vsel %vm6965, %v6968, %v6970
        %v6972 = vsel %vm6964, %v6951, %v6954
        %v6973 = vsel %vm6967, %v6960, 920167782
        %v6974 = vsel %vm6966, %v6957, %v6973
        %v6975 = vsel %vm6965, %v6972, %v6974
        %v6976 = vsel %vm6964, %v6954, %v6957
        %v6977 = vsel %vm6967, %v6963, 1326507024
        %v6978 = vsel %vm6966, %v6960, %v6977
        %v6979 = vsel %vm6965, %v6976, %v6978
        %v6980 = vshll.u32 %v6940, 8
        %v6981 = vand.u32 %v6980, 65535
        %v6982 = vshrl.u32 %v6980, 16
        %v6983 = vand.u32 %v6979, 65535
        %v6984 = vshrl.u32 %v6979, 16
        %v6985 = vmul.u32 %v6981, %v6983
        %v6986 = vmul.u32 %v6981, %v6984
        %v6987 = vmul.u32 %v6982, %v6983
        %v6988 = vmul.u32 %v6982, %v6984
        %v6989 = vshll.u32 %v6986, 16
        %v6990 = vshrl.u32 %v6986, 16
        %v6991 = vshll.u32 %v6987, 16
        %v6992 = vshrl.u32 %v6987, 16
        %vm6993 = vc.u32 %v6985, %v6989
        %v6994 = vsel %vm6993, 1, 0
        %v6995 = vadd.s32 %v6985, %v6989
        %v6996 = vadd.s32 %v6988, %v6994
        %vm6997 = vc.u32 %v6995, %v6991
        %v6998 = vsel %vm6997, 1, 0
        %v6999 = vadd.s32 %v6995, %v6991
        %v7000 = vadd.s32 %v6996, %v6998
        %v7001 = vadd.s32 %v7000, %v6990
        %v7002 = vadd.s32 %v7001, %v6992
        %v7003 = vand.u32 %v6980, 65535
        %v7004 = vshrl.u32 %v6980, 16
        %v7005 = vand.u32 %v6975, 65535
        %v7006 = vshrl.u32 %v6975, 16
        %v7007 = vmul.u32 %v7003, %v7005
        %v7008 = vmul.u32 %v7003, %v7006
        %v7009 = vmul.u32 %v7004, %v7005
        %v7010 = vmul.u32 %v7004, %v7006
        %v7011 = vshll.u32 %v7008, 16
        %v7012 = vshrl.u32 %v7008, 16
        %v7013 = vshll.u32 %v7009, 16
        %v7014 = vshrl.u32 %v7009, 16
        %vm7015 = vc.u32 %v7007, %v7011
        %v7016 = vsel %vm7015, 1, 0
        %v7017 = vadd.s32 %v7007, %v7011
        %v7018 = vadd.s32 %v7010, %v7016
        %vm7019 = vc.u32 %v7017, %v7013
        %v7020 = vsel %vm7019, 1, 0
        %v7021 = vadd.s32 %v7017, %v7013
        %v7022 = vadd.s32 %v7018, %v7020
        %v7023 = vadd.s32 %v7022, %v7012
        %v7024 = vadd.s32 %v7023, %v7014
        %v7025 = vmul.u32 %v6980, %v6971
        %v7026 = vadd.s32 %v7002, %v7021
        %vm7027 = vc.u32 %v7002, %v7021
        %v7028 = vadd.s32 %v7024, 1
        %v7029 = vsel %vm7027, %v7028, %v7024
        %v7030 = vadd.s32 %v7025, %v7029
        %v7031 = vadd.s32 %v7030, 536870912
        %v7032 = vshrl.u32 %v7031, 30
        %v7033 = vshll.u32 %v7032, 30
        %v7034 = vsub.s32 %v7030, %v7033
        %vm7035 = vcmp.lt.s32.totalorder %v7034, 0
        %v7036 = vsub.s32 0, %v7034
        %v7037 = vsel %vm7035, %v7036, %v7034
        %v7038 = vclz %v7037
        %v7039 = vsub.s32 %v7038, 2
        %vm7040 = vcmp.gt.s32.totalorder 0, %v7039
        %v7041 = vsel %vm7040, 0, %v7039
        %v7042 = vsub.s32 32, %v7041
        %v7043 = vshll.u32 %v7034, %v7041
        %v7044 = vshrl.u32 %v7026, %v7042
        %v7045 = vor.u32 %v7043, %v7044
        %v7046 = vsub.s32 4294967266, %v7041
        %v7047 = vadd.s32 %v7046, 127
        %v7048 = vshll.u32 %v7047, 23
        %v7049 = vor.u32 4788187, %v7048
        %v7050 = vand.u32 2147483647, %v7049
        %v7052 = vcvt.s32.f32 %v7045
        %v7053 = vmul.f32 %v7052, %v7050
        %v7054 = vxor.u32 %v7053, 2147483648
        %v7055 = vsel %vm6934, %v7054, %v7053
        %v7056 = vsub.s32 4, %v7032
        %v7057 = vsel %vm6934, %v7056, %v7032
        %v7058 = vsel %vm6933, %v246, %v7055
        %v7059 = vsel %vm6933, 0, %v7057
        %v7060 = vmul.f32 %v7058, %v7058
        %v7061 = vmul.f32 %v7060, -0.001358992
        %v7062 = vadd.f32 %v7061, 0.041655596
        %v7063 = vmul.f32 %v7060, %v7062
        %v7064 = vadd.f32 %v7063, -0.4999988
        %v7065 = vmul.f32 %v7060, %v7064
        %v7066 = vadd.f32 1.0, %v7065
        %v7067 = vmul.f32 %v7058, %v7058
        %v7068 = vmul.f32 %v7067, -0.00019511016
        %v7069 = vadd.f32 %v7068, 0.008332121
        %v7070 = vmul.f32 %v7067, %v7069
        %v7071 = vadd.f32 %v7070, -0.16666654
        %v7072 = vmul.f32 %v7067, %v7071
        %v7073 = vadd.f32 %v7072, 1.0
        %v7074 = vmul.f32 %v7073, %v7058
        %vm7075 = vweird.f32 %v246
        %v7076 = vadd.s32 %v7059, 3
        %v7077 = vand.u32 %v7076, 3
        %vm7078 = vcmp.lt.s32.totalorder %v7077, 2
        %vm7079 = vcmp.eq.s32.totalorder %v7077, 0
        %v7080 = vxor.u32 %v7074, 2147483648
        %v7081 = vsel %vm7079, %v7066, %v7080
        %vm7082 = vcmp.eq.s32.totalorder %v7077, 2
        %v7083 = vxor.u32 %v7066, 2147483648
        %v7084 = vsel %vm7082, %v7083, %v7074
        %v7085 = vsel %vm7078, %v7081, %v7084
        %v7086 = vsel %vm7075, nan, %v7085
        %v7087 = vand.u32 2147483647, %v247
        %vm7088 = vcmp.le.f32.partialorder %v7087, 0.7853982
        %vm7089 = vcmp.lt.s32.totalorder %v247, 0
        %v7090 = vand.u32 %v247, 2139095040
        %v7091 = vshrl.u32 %v7090, 23
        %v7092 = vsub.s32 %v7091, 127
        %v7093 = vand.u32 2147483647, %v247
        %v7094 = vand.u32 %v7093, 8388607
        %v7095 = vor.u32 %v7094, 8388608
        %v7096 = vsub.s32 0, %v7095
        %v7097 = vadd.s32 %v7092, 1
        %vm7098 = vcmp.gt.s32.totalorder %v7097, 0
        %v7099 = vsel %vm7098, %v7097, 0
        %v7100 = vshrl.u32 %v7099, 5
        %v7101 = vand.u32 %v7099, 31
        %v7102 = vsub.s32 32, %v7101
        %v7103 = vshrl.u32 683565275, %v7102
        %v7104 = vshll.u32 683565275, %v7101
        %v7105 = vshrl.u32 2475754826, %v7102
        %v7106 = vor.u32 %v7104, %v7105
        %v7107 = vshll.u32 2475754826, %v7101
        %v7108 = vshrl.u32 2131351028, %v7102
        %v7109 = vor.u32 %v7107, %v7108
        %v7110 = vshll.u32 2131351028, %v7101
        %v7111 = vshrl.u32 2102212464, %v7102
        %v7112 = vor.u32 %v7110, %v7111
        %v7113 = vshll.u32 2102212464, %v7101
        %v7114 = vshrl.u32 920167782, %v7102
        %v7115 = vor.u32 %v7113, %v7114
        %v7116 = vshll.u32 920167782, %v7101
        %v7117 = vshrl.u32 1326507024, %v7102
        %v7118 = vor.u32 %v7116, %v7117
        %vm7119 = vcmp.lt.s32.totalorder %v7100, 1
        %vm7120 = vcmp.lt.s32.totalorder %v7100, 2
        %vm7121 = vcmp.lt.s32.totalorder %v7100, 3
        %vm7122 = vcmp.lt.s32.totalorder %v7100, 4
        %v7123 = vsel %vm7119, %v7103, %v7106
        %v7124 = vsel %vm7122, %v7112, 2102212464
        %v7125 = vsel %vm7121, %v7109, %v7124
        %v7126 = vsel %vm7120, %v7123, %v7125
        %v7127 = vsel %vm7119, %v7106, %v7109
        %v7128 = vsel %vm7122, %v7115, 920167782
        %v7129 = vsel %vm7121, %v7112, %v7128
        %v7130 = vsel %vm7120, %v7127, %v7129
        %v7131 = vsel %vm7119, %v7109, %v7112
        %v7132 = vsel %vm7122, %v7118, 1326507024
        %v7133 = vsel %vm7121, %v7115, %v7132
        %v7134 = vsel %vm7120, %v7131, %v7133
        %v7135 = vshll.u32 %v7095, 8
        %v7136 = vand.u32 %v7135, 65535
        %v7137 = vshrl.u32 %v7135, 16
        %v7138 = vand.u32 %v7134, 65535
        %v7139 = vshrl.u32 %v7134, 16
        %v7140 = vmul.u32 %v7136, %v7138
        %v7141 = vmul.u32 %v7136, %v7139
        %v7142 = vmul.u32 %v7137, %v7138
        %v7143 = vmul.u32 %v7137, %v7139
        %v7144 = vshll.u32 %v7141, 16
        %v7145 = vshrl.u32 %v7141, 16
        %v7146 = vshll.u32 %v7142, 16
        %v7147 = vshrl.u32 %v7142, 16
        %vm7148 = vc.u32 %v7140, %v7144
        %v7149 = vsel %vm7148, 1, 0
        %v7150 = vadd.s32 %v7140, %v7144
        %v7151 = vadd.s32 %v7143, %v7149
        %vm7152 = vc.u32 %v7150, %v7146
        %v7153 = vsel %vm7152, 1, 0
        %v7154 = vadd.s32 %v7150, %v7146
        %v7155 = vadd.s32 %v7151, %v7153
        %v7156 = vadd.s32 %v7155, %v7145
        %v7157 = vadd.s32 %v7156, %v7147
        %v7158 = vand.u32 %v7135, 65535
        %v7159 = vshrl.u32 %v7135, 16
        %v7160 = vand.u32 %v7130, 65535
        %v7161 = vshrl.u32 %v7130, 16
        %v7162 = vmul.u32 %v7158, %v7160
        %v7163 = vmul.u32 %v7158, %v7161
        %v7164 = vmul.u32 %v7159, %v7160
        %v7165 = vmul.u32 %v7159, %v7161
        %v7166 = vshll.u32 %v7163, 16
        %v7167 = vshrl.u32 %v7163, 16
        %v7168 = vshll.u32 %v7164, 16
        %v7169 = vshrl.u32 %v7164, 16
        %vm7170 = vc.u32 %v7162, %v7166
        %v7171 = vsel %vm7170, 1, 0
        %v7172 = vadd.s32 %v7162, %v7166
        %v7173 = vadd.s32 %v7165, %v7171
        %vm7174 = vc.u32 %v7172, %v7168
        %v7175 = vsel %vm7174, 1, 0
        %v7176 = vadd.s32 %v7172, %v7168
        %v7177 = vadd.s32 %v7173, %v7175
        %v7178 = vadd.s32 %v7177, %v7167
        %v7179 = vadd.s32 %v7178, %v7169
        %v7180 = vmul.u32 %v7135, %v7126
        %v7181 = vadd.s32 %v7157, %v7176
        %vm7182 = vc.u32 %v7157, %v7176
        %v7183 = vadd.s32 %v7179, 1
        %v7184 = vsel %vm7182, %v7183, %v7179
        %v7185 = vadd.s32 %v7180, %v7184
        %v7186 = vadd.s32 %v7185, 536870912
        %v7187 = vshrl.u32 %v7186, 30
        %v7188 = vshll.u32 %v7187, 30
        %v7189 = vsub.s32 %v7185, %v7188
        %vm7190 = vcmp.lt.s32.totalorder %v7189, 0
        %v7191 = vsub.s32 0, %v7189
        %v7192 = vsel %vm7190, %v7191, %v7189
        %v7193 = vclz %v7192
        %v7194 = vsub.s32 %v7193, 2
        %vm7195 = vcmp.gt.s32.totalorder 0, %v7194
        %v7196 = vsel %vm7195, 0, %v7194
        %v7197 = vsub.s32 32, %v7196
        %v7198 = vshll.u32 %v7189, %v7196
        %v7199 = vshrl.u32 %v7181, %v7197
        %v7200 = vor.u32 %v7198, %v7199
        %v7201 = vsub.s32 4294967266, %v7196
        %v7202 = vadd.s32 %v7201, 127
        %v7203 = vshll.u32 %v7202, 23
        %v7204 = vor.u32 4788187, %v7203
        %v7205 = vand.u32 2147483647, %v7204
        %v7207 = vcvt.s32.f32 %v7200
        %v7208 = vmul.f32 %v7207, %v7205
        %v7209 = vxor.u32 %v7208, 2147483648
        %v7210 = vsel %vm7089, %v7209, %v7208
        %v7211 = vsub.s32 4, %v7187
        %v7212 = vsel %vm7089, %v7211, %v7187
        %v7213 = vsel %vm7088, %v247, %v7210
        %v7214 = vsel %vm7088, 0, %v7212
        %v7215 = vmul.f32 %v7213, %v7213
        %v7216 = vmul.f32 %v7215, -0.001358992
        %v7217 = vadd.f32 %v7216, 0.041655596
        %v7218 = vmul.f32 %v7215, %v7217
        %v7219 = vadd.f32 %v7218, -0.4999988
        %v7220 = vmul.f32 %v7215, %v7219
        %v7221 = vadd.f32 1.0, %v7220
        %v7222 = vmul.f32 %v7213, %v7213
        %v7223 = vmul.f32 %v7222, -0.00019511016
        %v7224 = vadd.f32 %v7223, 0.008332121
        %v7225 = vmul.f32 %v7222, %v7224
        %v7226 = vadd.f32 %v7225, -0.16666654
        %v7227 = vmul.f32 %v7222, %v7226
        %v7228 = vadd.f32 %v7227, 1.0
        %v7229 = vmul.f32 %v7228, %v7213
        %vm7230 = vweird.f32 %v247
        %v7231 = vadd.s32 %v7214, 3
        %v7232 = vand.u32 %v7231, 3
        %vm7233 = vcmp.lt.s32.totalorder %v7232, 2
        %vm7234 = vcmp.eq.s32.totalorder %v7232, 0
        %v7235 = vxor.u32 %v7229, 2147483648
        %v7236 = vsel %vm7234, %v7221, %v7235
        %vm7237 = vcmp.eq.s32.totalorder %v7232, 2
        %v7238 = vxor.u32 %v7221, 2147483648
        %v7239 = vsel %vm7237, %v7238, %v7229
        %v7240 = vsel %vm7233, %v7236, %v7239
        %v7241 = vsel %vm7230, nan, %v7240
        %v7242 = vand.u32 2147483647, %v248
        %vm7243 = vcmp.le.f32.partialorder %v7242, 0.7853982
        %vm7244 = vcmp.lt.s32.totalorder %v248, 0
        %v7245 = vand.u32 %v248, 2139095040
        %v7246 = vshrl.u32 %v7245, 23
        %v7247 = vsub.s32 %v7246, 127
        %v7248 = vand.u32 2147483647, %v248
        %v7249 = vand.u32 %v7248, 8388607
        %v7250 = vor.u32 %v7249, 8388608
        %v7251 = vsub.s32 0, %v7250
        %v7252 = vadd.s32 %v7247, 1
        %vm7253 = vcmp.gt.s32.totalorder %v7252, 0
        %v7254 = vsel %vm7253, %v7252, 0
        %v7255 = vshrl.u32 %v7254, 5
        %v7256 = vand.u32 %v7254, 31
        %v7257 = vsub.s32 32, %v7256
        %v7258 = vshrl.u32 683565275, %v7257
        %v7259 = vshll.u32 683565275, %v7256
        %v7260 = vshrl.u32 2475754826, %v7257
        %v7261 = vor.u32 %v7259, %v7260
        %v7262 = vshll.u32 2475754826, %v7256
        %v7263 = vshrl.u32 2131351028, %v7257
        %v7264 = vor.u32 %v7262, %v7263
        %v7265 = vshll.u32 2131351028, %v7256
        %v7266 = vshrl.u32 2102212464, %v7257
        %v7267 = vor.u32 %v7265, %v7266
        %v7268 = vshll.u32 2102212464, %v7256
        %v7269 = vshrl.u32 920167782, %v7257
        %v7270 = vor.u32 %v7268, %v7269
        %v7271 = vshll.u32 920167782, %v7256
        %v7272 = vshrl.u32 1326507024, %v7257
        %v7273 = vor.u32 %v7271, %v7272
        %vm7274 = vcmp.lt.s32.totalorder %v7255, 1
        %vm7275 = vcmp.lt.s32.totalorder %v7255, 2
        %vm7276 = vcmp.lt.s32.totalorder %v7255, 3
        %vm7277 = vcmp.lt.s32.totalorder %v7255, 4
        %v7278 = vsel %vm7274, %v7258, %v7261
        %v7279 = vsel %vm7277, %v7267, 2102212464
        %v7280 = vsel %vm7276, %v7264, %v7279
        %v7281 = vsel %vm7275, %v7278, %v7280
        %v7282 = vsel %vm7274, %v7261, %v7264
        %v7283 = vsel %vm7277, %v7270, 920167782
        %v7284 = vsel %vm7276, %v7267, %v7283
        %v7285 = vsel %vm7275, %v7282, %v7284
        %v7286 = vsel %vm7274, %v7264, %v7267
        %v7287 = vsel %vm7277, %v7273, 1326507024
        %v7288 = vsel %vm7276, %v7270, %v7287
        %v7289 = vsel %vm7275, %v7286, %v7288
        %v7290 = vshll.u32 %v7250, 8
        %v7291 = vand.u32 %v7290, 65535
        %v7292 = vshrl.u32 %v7290, 16
        %v7293 = vand.u32 %v7289, 65535
        %v7294 = vshrl.u32 %v7289, 16
        %v7295 = vmul.u32 %v7291, %v7293
        %v7296 = vmul.u32 %v7291, %v7294
        %v7297 = vmul.u32 %v7292, %v7293
        %v7298 = vmul.u32 %v7292, %v7294
        %v7299 = vshll.u32 %v7296, 16
        %v7300 = vshrl.u32 %v7296, 16
        %v7301 = vshll.u32 %v7297, 16
        %v7302 = vshrl.u32 %v7297, 16
        %vm7303 = vc.u32 %v7295, %v7299
        %v7304 = vsel %vm7303, 1, 0
        %v7305 = vadd.s32 %v7295, %v7299
        %v7306 = vadd.s32 %v7298, %v7304
        %vm7307 = vc.u32 %v7305, %v7301
        %v7308 = vsel %vm7307, 1, 0
        %v7309 = vadd.s32 %v7305, %v7301
        %v7310 = vadd.s32 %v7306, %v7308
        %v7311 = vadd.s32 %v7310, %v7300
        %v7312 = vadd.s32 %v7311, %v7302
        %v7313 = vand.u32 %v7290, 65535
        %v7314 = vshrl.u32 %v7290, 16
        %v7315 = vand.u32 %v7285, 65535
        %v7316 = vshrl.u32 %v7285, 16
        %v7317 = vmul.u32 %v7313, %v7315
        %v7318 = vmul.u32 %v7313, %v7316
        %v7319 = vmul.u32 %v7314, %v7315
        %v7320 = vmul.u32 %v7314, %v7316
        %v7321 = vshll.u32 %v7318, 16
        %v7322 = vshrl.u32 %v7318, 16
        %v7323 = vshll.u32 %v7319, 16
        %v7324 = vshrl.u32 %v7319, 16
        %vm7325 = vc.u32 %v7317, %v7321
        %v7326 = vsel %vm7325, 1, 0
        %v7327 = vadd.s32 %v7317, %v7321
        %v7328 = vadd.s32 %v7320, %v7326
        %vm7329 = vc.u32 %v7327, %v7323
        %v7330 = vsel %vm7329, 1, 0
        %v7331 = vadd.s32 %v7327, %v7323
        %v7332 = vadd.s32 %v7328, %v7330
        %v7333 = vadd.s32 %v7332, %v7322
        %v7334 = vadd.s32 %v7333, %v7324
        %v7335 = vmul.u32 %v7290, %v7281
        %v7336 = vadd.s32 %v7312, %v7331
        %vm7337 = vc.u32 %v7312, %v7331
        %v7338 = vadd.s32 %v7334, 1
        %v7339 = vsel %vm7337, %v7338, %v7334
        %v7340 = vadd.s32 %v7335, %v7339
        %v7341 = vadd.s32 %v7340, 536870912
        %v7342 = vshrl.u32 %v7341, 30
        %v7343 = vshll.u32 %v7342, 30
        %v7344 = vsub.s32 %v7340, %v7343
        %vm7345 = vcmp.lt.s32.totalorder %v7344, 0
        %v7346 = vsub.s32 0, %v7344
        %v7347 = vsel %vm7345, %v7346, %v7344
        %v7348 = vclz %v7347
        %v7349 = vsub.s32 %v7348, 2
        %vm7350 = vcmp.gt.s32.totalorder 0, %v7349
        %v7351 = vsel %vm7350, 0, %v7349
        %v7352 = vsub.s32 32, %v7351
        %v7353 = vshll.u32 %v7344, %v7351
        %v7354 = vshrl.u32 %v7336, %v7352
        %v7355 = vor.u32 %v7353, %v7354
        %v7356 = vsub.s32 4294967266, %v7351
        %v7357 = vadd.s32 %v7356, 127
        %v7358 = vshll.u32 %v7357, 23
        %v7359 = vor.u32 4788187, %v7358
        %v7360 = vand.u32 2147483647, %v7359
        %v7362 = vcvt.s32.f32 %v7355
        %v7363 = vmul.f32 %v7362, %v7360
        %v7364 = vxor.u32 %v7363, 2147483648
        %v7365 = vsel %vm7244, %v7364, %v7363
        %v7366 = vsub.s32 4, %v7342
        %v7367 = vsel %vm7244, %v7366, %v7342
        %v7368 = vsel %vm7243, %v248, %v7365
        %v7369 = vsel %vm7243, 0, %v7367
        %v7370 = vmul.f32 %v7368, %v7368
        %v7371 = vmul.f32 %v7370, -0.001358992
        %v7372 = vadd.f32 %v7371, 0.041655596
        %v7373 = vmul.f32 %v7370, %v7372
        %v7374 = vadd.f32 %v7373, -0.4999988
        %v7375 = vmul.f32 %v7370, %v7374
        %v7376 = vadd.f32 1.0, %v7375
        %v7377 = vmul.f32 %v7368, %v7368
        %v7378 = vmul.f32 %v7377, -0.00019511016
        %v7379 = vadd.f32 %v7378, 0.008332121
        %v7380 = vmul.f32 %v7377, %v7379
        %v7381 = vadd.f32 %v7380, -0.16666654
        %v7382 = vmul.f32 %v7377, %v7381
        %v7383 = vadd.f32 %v7382, 1.0
        %v7384 = vmul.f32 %v7383, %v7368
        %vm7385 = vweird.f32 %v248
        %v7386 = vadd.s32 %v7369, 3
        %v7387 = vand.u32 %v7386, 3
        %vm7388 = vcmp.lt.s32.totalorder %v7387, 2
        %vm7389 = vcmp.eq.s32.totalorder %v7387, 0
        %v7390 = vxor.u32 %v7384, 2147483648
        %v7391 = vsel %vm7389, %v7376, %v7390
        %vm7392 = vcmp.eq.s32.totalorder %v7387, 2
        %v7393 = vxor.u32 %v7376, 2147483648
        %v7394 = vsel %vm7392, %v7393, %v7384
        %v7395 = vsel %vm7388, %v7391, %v7394
        %v7396 = vsel %vm7385, nan, %v7395
        %v7397 = vand.u32 2147483647, %v249
        %vm7398 = vcmp.le.f32.partialorder %v7397, 0.7853982
        %vm7399 = vcmp.lt.s32.totalorder %v249, 0
        %v7400 = vand.u32 %v249, 2139095040
        %v7401 = vshrl.u32 %v7400, 23
        %v7402 = vsub.s32 %v7401, 127
        %v7403 = vand.u32 2147483647, %v249
        %v7404 = vand.u32 %v7403, 8388607
        %v7405 = vor.u32 %v7404, 8388608
        %v7406 = vsub.s32 0, %v7405
        %v7407 = vadd.s32 %v7402, 1
        %vm7408 = vcmp.gt.s32.totalorder %v7407, 0
        %v7409 = vsel %vm7408, %v7407, 0
        %v7410 = vshrl.u32 %v7409, 5
        %v7411 = vand.u32 %v7409, 31
        %v7412 = vsub.s32 32, %v7411
        %v7413 = vshrl.u32 683565275, %v7412
        %v7414 = vshll.u32 683565275, %v7411
        %v7415 = vshrl.u32 2475754826, %v7412
        %v7416 = vor.u32 %v7414, %v7415
        %v7417 = vshll.u32 2475754826, %v7411
        %v7418 = vshrl.u32 2131351028, %v7412
        %v7419 = vor.u32 %v7417, %v7418
        %v7420 = vshll.u32 2131351028, %v7411
        %v7421 = vshrl.u32 2102212464, %v7412
        %v7422 = vor.u32 %v7420, %v7421
        %v7423 = vshll.u32 2102212464, %v7411
        %v7424 = vshrl.u32 920167782, %v7412
        %v7425 = vor.u32 %v7423, %v7424
        %v7426 = vshll.u32 920167782, %v7411
        %v7427 = vshrl.u32 1326507024, %v7412
        %v7428 = vor.u32 %v7426, %v7427
        %vm7429 = vcmp.lt.s32.totalorder %v7410, 1
        %vm7430 = vcmp.lt.s32.totalorder %v7410, 2
        %vm7431 = vcmp.lt.s32.totalorder %v7410, 3
        %vm7432 = vcmp.lt.s32.totalorder %v7410, 4
        %v7433 = vsel %vm7429, %v7413, %v7416
        %v7434 = vsel %vm7432, %v7422, 2102212464
        %v7435 = vsel %vm7431, %v7419, %v7434
        %v7436 = vsel %vm7430, %v7433, %v7435
        %v7437 = vsel %vm7429, %v7416, %v7419
        %v7438 = vsel %vm7432, %v7425, 920167782
        %v7439 = vsel %vm7431, %v7422, %v7438
        %v7440 = vsel %vm7430, %v7437, %v7439
        %v7441 = vsel %vm7429, %v7419, %v7422
        %v7442 = vsel %vm7432, %v7428, 1326507024
        %v7443 = vsel %vm7431, %v7425, %v7442
        %v7444 = vsel %vm7430, %v7441, %v7443
        %v7445 = vshll.u32 %v7405, 8
        %v7446 = vand.u32 %v7445, 65535
        %v7447 = vshrl.u32 %v7445, 16
        %v7448 = vand.u32 %v7444, 65535
        %v7449 = vshrl.u32 %v7444, 16
        %v7450 = vmul.u32 %v7446, %v7448
        %v7451 = vmul.u32 %v7446, %v7449
        %v7452 = vmul.u32 %v7447, %v7448
        %v7453 = vmul.u32 %v7447, %v7449
        %v7454 = vshll.u32 %v7451, 16
        %v7455 = vshrl.u32 %v7451, 16
        %v7456 = vshll.u32 %v7452, 16
        %v7457 = vshrl.u32 %v7452, 16
        %vm7458 = vc.u32 %v7450, %v7454
        %v7459 = vsel %vm7458, 1, 0
        %v7460 = vadd.s32 %v7450, %v7454
        %v7461 = vadd.s32 %v7453, %v7459
        %vm7462 = vc.u32 %v7460, %v7456
        %v7463 = vsel %vm7462, 1, 0
        %v7464 = vadd.s32 %v7460, %v7456
        %v7465 = vadd.s32 %v7461, %v7463
        %v7466 = vadd.s32 %v7465, %v7455
        %v7467 = vadd.s32 %v7466, %v7457
        %v7468 = vand.u32 %v7445, 65535
        %v7469 = vshrl.u32 %v7445, 16
        %v7470 = vand.u32 %v7440, 65535
        %v7471 = vshrl.u32 %v7440, 16
        %v7472 = vmul.u32 %v7468, %v7470
        %v7473 = vmul.u32 %v7468, %v7471
        %v7474 = vmul.u32 %v7469, %v7470
        %v7475 = vmul.u32 %v7469, %v7471
        %v7476 = vshll.u32 %v7473, 16
        %v7477 = vshrl.u32 %v7473, 16
        %v7478 = vshll.u32 %v7474, 16
        %v7479 = vshrl.u32 %v7474, 16
        %vm7480 = vc.u32 %v7472, %v7476
        %v7481 = vsel %vm7480, 1, 0
        %v7482 = vadd.s32 %v7472, %v7476
        %v7483 = vadd.s32 %v7475, %v7481
        %vm7484 = vc.u32 %v7482, %v7478
        %v7485 = vsel %vm7484, 1, 0
        %v7486 = vadd.s32 %v7482, %v7478
        %v7487 = vadd.s32 %v7483, %v7485
        %v7488 = vadd.s32 %v7487, %v7477
        %v7489 = vadd.s32 %v7488, %v7479
        %v7490 = vmul.u32 %v7445, %v7436
        %v7491 = vadd.s32 %v7467, %v7486
        %vm7492 = vc.u32 %v7467, %v7486
        %v7493 = vadd.s32 %v7489, 1
        %v7494 = vsel %vm7492, %v7493, %v7489
        %v7495 = vadd.s32 %v7490, %v7494
        %v7496 = vadd.s32 %v7495, 536870912
        %v7497 = vshrl.u32 %v7496, 30
        %v7498 = vshll.u32 %v7497, 30
        %v7499 = vsub.s32 %v7495, %v7498
        %vm7500 = vcmp.lt.s32.totalorder %v7499, 0
        %v7501 = vsub.s32 0, %v7499
        %v7502 = vsel %vm7500, %v7501, %v7499
        %v7503 = vclz %v7502
        %v7504 = vsub.s32 %v7503, 2
        %vm7505 = vcmp.gt.s32.totalorder 0, %v7504
        %v7506 = vsel %vm7505, 0, %v7504
        %v7507 = vsub.s32 32, %v7506
        %v7508 = vshll.u32 %v7499, %v7506
        %v7509 = vshrl.u32 %v7491, %v7507
        %v7510 = vor.u32 %v7508, %v7509
        %v7511 = vsub.s32 4294967266, %v7506
        %v7512 = vadd.s32 %v7511, 127
        %v7513 = vshll.u32 %v7512, 23
        %v7514 = vor.u32 4788187, %v7513
        %v7515 = vand.u32 2147483647, %v7514
        %v7517 = vcvt.s32.f32 %v7510
        %v7518 = vmul.f32 %v7517, %v7515
        %v7519 = vxor.u32 %v7518, 2147483648
        %v7520 = vsel %vm7399, %v7519, %v7518
        %v7521 = vsub.s32 4, %v7497
        %v7522 = vsel %vm7399, %v7521, %v7497
        %v7523 = vsel %vm7398, %v249, %v7520
        %v7524 = vsel %vm7398, 0, %v7522
        %v7525 = vmul.f32 %v7523, %v7523
        %v7526 = vmul.f32 %v7525, -0.001358992
        %v7527 = vadd.f32 %v7526, 0.041655596
        %v7528 = vmul.f32 %v7525, %v7527
        %v7529 = vadd.f32 %v7528, -0.4999988
        %v7530 = vmul.f32 %v7525, %v7529
        %v7531 = vadd.f32 1.0, %v7530
        %v7532 = vmul.f32 %v7523, %v7523
        %v7533 = vmul.f32 %v7532, -0.00019511016
        %v7534 = vadd.f32 %v7533, 0.008332121
        %v7535 = vmul.f32 %v7532, %v7534
        %v7536 = vadd.f32 %v7535, -0.16666654
        %v7537 = vmul.f32 %v7532, %v7536
        %v7538 = vadd.f32 %v7537, 1.0
        %v7539 = vmul.f32 %v7538, %v7523
        %vm7540 = vweird.f32 %v249
        %v7541 = vadd.s32 %v7524, 3
        %v7542 = vand.u32 %v7541, 3
        %vm7543 = vcmp.lt.s32.totalorder %v7542, 2
        %vm7544 = vcmp.eq.s32.totalorder %v7542, 0
        %v7545 = vxor.u32 %v7539, 2147483648
        %v7546 = vsel %vm7544, %v7531, %v7545
        %vm7547 = vcmp.eq.s32.totalorder %v7542, 2
        %v7548 = vxor.u32 %v7531, 2147483648
        %v7549 = vsel %vm7547, %v7548, %v7539
        %v7550 = vsel %vm7543, %v7546, %v7549
        %v7551 = vsel %vm7540, nan, %v7550
        %v7552 = vand.u32 2147483647, %v250
        %vm7553 = vcmp.le.f32.partialorder %v7552, 0.7853982
        %vm7554 = vcmp.lt.s32.totalorder %v250, 0
        %v7555 = vand.u32 %v250, 2139095040
        %v7556 = vshrl.u32 %v7555, 23
        %v7557 = vsub.s32 %v7556, 127
        %v7558 = vand.u32 2147483647, %v250
        %v7559 = vand.u32 %v7558, 8388607
        %v7560 = vor.u32 %v7559, 8388608
        %v7561 = vsub.s32 0, %v7560
        %v7562 = vadd.s32 %v7557, 1
        %vm7563 = vcmp.gt.s32.totalorder %v7562, 0
        %v7564 = vsel %vm7563, %v7562, 0
        %v7565 = vshrl.u32 %v7564, 5
        %v7566 = vand.u32 %v7564, 31
        %v7567 = vsub.s32 32, %v7566
        %v7568 = vshrl.u32 683565275, %v7567
        %v7569 = vshll.u32 683565275, %v7566
        %v7570 = vshrl.u32 2475754826, %v7567
        %v7571 = vor.u32 %v7569, %v7570
        %v7572 = vshll.u32 2475754826, %v7566
        %v7573 = vshrl.u32 2131351028, %v7567
        %v7574 = vor.u32 %v7572, %v7573
        %v7575 = vshll.u32 2131351028, %v7566
        %v7576 = vshrl.u32 2102212464, %v7567
        %v7577 = vor.u32 %v7575, %v7576
        %v7578 = vshll.u32 2102212464, %v7566
        %v7579 = vshrl.u32 920167782, %v7567
        %v7580 = vor.u32 %v7578, %v7579
        %v7581 = vshll.u32 920167782, %v7566
        %v7582 = vshrl.u32 1326507024, %v7567
        %v7583 = vor.u32 %v7581, %v7582
        %vm7584 = vcmp.lt.s32.totalorder %v7565, 1
        %vm7585 = vcmp.lt.s32.totalorder %v7565, 2
        %vm7586 = vcmp.lt.s32.totalorder %v7565, 3
        %vm7587 = vcmp.lt.s32.totalorder %v7565, 4
        %v7588 = vsel %vm7584, %v7568, %v7571
        %v7589 = vsel %vm7587, %v7577, 2102212464
        %v7590 = vsel %vm7586, %v7574, %v7589
        %v7591 = vsel %vm7585, %v7588, %v7590
        %v7592 = vsel %vm7584, %v7571, %v7574
        %v7593 = vsel %vm7587, %v7580, 920167782
        %v7594 = vsel %vm7586, %v7577, %v7593
        %v7595 = vsel %vm7585, %v7592, %v7594
        %v7596 = vsel %vm7584, %v7574, %v7577
        %v7597 = vsel %vm7587, %v7583, 1326507024
        %v7598 = vsel %vm7586, %v7580, %v7597
        %v7599 = vsel %vm7585, %v7596, %v7598
        %v7600 = vshll.u32 %v7560, 8
        %v7601 = vand.u32 %v7600, 65535
        %v7602 = vshrl.u32 %v7600, 16
        %v7603 = vand.u32 %v7599, 65535
        %v7604 = vshrl.u32 %v7599, 16
        %v7605 = vmul.u32 %v7601, %v7603
        %v7606 = vmul.u32 %v7601, %v7604
        %v7607 = vmul.u32 %v7602, %v7603
        %v7608 = vmul.u32 %v7602, %v7604
        %v7609 = vshll.u32 %v7606, 16
        %v7610 = vshrl.u32 %v7606, 16
        %v7611 = vshll.u32 %v7607, 16
        %v7612 = vshrl.u32 %v7607, 16
        %vm7613 = vc.u32 %v7605, %v7609
        %v7614 = vsel %vm7613, 1, 0
        %v7615 = vadd.s32 %v7605, %v7609
        %v7616 = vadd.s32 %v7608, %v7614
        %vm7617 = vc.u32 %v7615, %v7611
        %v7618 = vsel %vm7617, 1, 0
        %v7619 = vadd.s32 %v7615, %v7611
        %v7620 = vadd.s32 %v7616, %v7618
        %v7621 = vadd.s32 %v7620, %v7610
        %v7622 = vadd.s32 %v7621, %v7612
        %v7623 = vand.u32 %v7600, 65535
        %v7624 = vshrl.u32 %v7600, 16
        %v7625 = vand.u32 %v7595, 65535
        %v7626 = vshrl.u32 %v7595, 16
        %v7627 = vmul.u32 %v7623, %v7625
        %v7628 = vmul.u32 %v7623, %v7626
        %v7629 = vmul.u32 %v7624, %v7625
        %v7630 = vmul.u32 %v7624, %v7626
        %v7631 = vshll.u32 %v7628, 16
        %v7632 = vshrl.u32 %v7628, 16
        %v7633 = vshll.u32 %v7629, 16
        %v7634 = vshrl.u32 %v7629, 16
        %vm7635 = vc.u32 %v7627, %v7631
        %v7636 = vsel %vm7635, 1, 0
        %v7637 = vadd.s32 %v7627, %v7631
        %v7638 = vadd.s32 %v7630, %v7636
        %vm7639 = vc.u32 %v7637, %v7633
        %v7640 = vsel %vm7639, 1, 0
        %v7641 = vadd.s32 %v7637, %v7633
        %v7642 = vadd.s32 %v7638, %v7640
        %v7643 = vadd.s32 %v7642, %v7632
        %v7644 = vadd.s32 %v7643, %v7634
        %v7645 = vmul.u32 %v7600, %v7591
        %v7646 = vadd.s32 %v7622, %v7641
        %vm7647 = vc.u32 %v7622, %v7641
        %v7648 = vadd.s32 %v7644, 1
        %v7649 = vsel %vm7647, %v7648, %v7644
        %v7650 = vadd.s32 %v7645, %v7649
        %v7651 = vadd.s32 %v7650, 536870912
        %v7652 = vshrl.u32 %v7651, 30
        %v7653 = vshll.u32 %v7652, 30
        %v7654 = vsub.s32 %v7650, %v7653
        %vm7655 = vcmp.lt.s32.totalorder %v7654, 0
        %v7656 = vsub.s32 0, %v7654
        %v7657 = vsel %vm7655, %v7656, %v7654
        %v7658 = vclz %v7657
        %v7659 = vsub.s32 %v7658, 2
        %vm7660 = vcmp.gt.s32.totalorder 0, %v7659
        %v7661 = vsel %vm7660, 0, %v7659
        %v7662 = vsub.s32 32, %v7661
        %v7663 = vshll.u32 %v7654, %v7661
        %v7664 = vshrl.u32 %v7646, %v7662
        %v7665 = vor.u32 %v7663, %v7664
        %v7666 = vsub.s32 4294967266, %v7661
        %v7667 = vadd.s32 %v7666, 127
        %v7668 = vshll.u32 %v7667, 23
        %v7669 = vor.u32 4788187, %v7668
        %v7670 = vand.u32 2147483647, %v7669
        %v7672 = vcvt.s32.f32 %v7665
        %v7673 = vmul.f32 %v7672, %v7670
        %v7674 = vxor.u32 %v7673, 2147483648
        %v7675 = vsel %vm7554, %v7674, %v7673
        %v7676 = vsub.s32 4, %v7652
        %v7677 = vsel %vm7554, %v7676, %v7652
        %v7678 = vsel %vm7553, %v250, %v7675
        %v7679 = vsel %vm7553, 0, %v7677
        %v7680 = vmul.f32 %v7678, %v7678
        %v7681 = vmul.f32 %v7680, -0.001358992
        %v7682 = vadd.f32 %v7681, 0.041655596
        %v7683 = vmul.f32 %v7680, %v7682
        %v7684 = vadd.f32 %v7683, -0.4999988
        %v7685 = vmul.f32 %v7680, %v7684
        %v7686 = vadd.f32 1.0, %v7685
        %v7687 = vmul.f32 %v7678, %v7678
        %v7688 = vmul.f32 %v7687, -0.00019511016
        %v7689 = vadd.f32 %v7688, 0.008332121
        %v7690 = vmul.f32 %v7687, %v7689
        %v7691 = vadd.f32 %v7690, -0.16666654
        %v7692 = vmul.f32 %v7687, %v7691
        %v7693 = vadd.f32 %v7692, 1.0
        %v7694 = vmul.f32 %v7693, %v7678
        %vm7695 = vweird.f32 %v250
        %v7696 = vadd.s32 %v7679, 3
        %v7697 = vand.u32 %v7696, 3
        %vm7698 = vcmp.lt.s32.totalorder %v7697, 2
        %vm7699 = vcmp.eq.s32.totalorder %v7697, 0
        %v7700 = vxor.u32 %v7694, 2147483648
        %v7701 = vsel %vm7699, %v7686, %v7700
        %vm7702 = vcmp.eq.s32.totalorder %v7697, 2
        %v7703 = vxor.u32 %v7686, 2147483648
        %v7704 = vsel %vm7702, %v7703, %v7694
        %v7705 = vsel %vm7698, %v7701, %v7704
        %v7706 = vsel %vm7695, nan, %v7705
        %v7707 = vand.u32 2147483647, %v251
        %vm7708 = vcmp.le.f32.partialorder %v7707, 0.7853982
        %vm7709 = vcmp.lt.s32.totalorder %v251, 0
        %v7710 = vand.u32 %v251, 2139095040
        %v7711 = vshrl.u32 %v7710, 23
        %v7712 = vsub.s32 %v7711, 127
        %v7713 = vand.u32 2147483647, %v251
        %v7714 = vand.u32 %v7713, 8388607
        %v7715 = vor.u32 %v7714, 8388608
        %v7716 = vsub.s32 0, %v7715
        %v7717 = vadd.s32 %v7712, 1
        %vm7718 = vcmp.gt.s32.totalorder %v7717, 0
        %v7719 = vsel %vm7718, %v7717, 0
        %v7720 = vshrl.u32 %v7719, 5
        %v7721 = vand.u32 %v7719, 31
        %v7722 = vsub.s32 32, %v7721
        %v7723 = vshrl.u32 683565275, %v7722
        %v7724 = vshll.u32 683565275, %v7721
        %v7725 = vshrl.u32 2475754826, %v7722
        %v7726 = vor.u32 %v7724, %v7725
        %v7727 = vshll.u32 2475754826, %v7721
        %v7728 = vshrl.u32 2131351028, %v7722
        %v7729 = vor.u32 %v7727, %v7728
        %v7730 = vshll.u32 2131351028, %v7721
        %v7731 = vshrl.u32 2102212464, %v7722
        %v7732 = vor.u32 %v7730, %v7731
        %v7733 = vshll.u32 2102212464, %v7721
        %v7734 = vshrl.u32 920167782, %v7722
        %v7735 = vor.u32 %v7733, %v7734
        %v7736 = vshll.u32 920167782, %v7721
        %v7737 = vshrl.u32 1326507024, %v7722
        %v7738 = vor.u32 %v7736, %v7737
        %vm7739 = vcmp.lt.s32.totalorder %v7720, 1
        %vm7740 = vcmp.lt.s32.totalorder %v7720, 2
        %vm7741 = vcmp.lt.s32.totalorder %v7720, 3
        %vm7742 = vcmp.lt.s32.totalorder %v7720, 4
        %v7743 = vsel %vm7739, %v7723, %v7726
        %v7744 = vsel %vm7742, %v7732, 2102212464
        %v7745 = vsel %vm7741, %v7729, %v7744
        %v7746 = vsel %vm7740, %v7743, %v7745
        %v7747 = vsel %vm7739, %v7726, %v7729
        %v7748 = vsel %vm7742, %v7735, 920167782
        %v7749 = vsel %vm7741, %v7732, %v7748
        %v7750 = vsel %vm7740, %v7747, %v7749
        %v7751 = vsel %vm7739, %v7729, %v7732
        %v7752 = vsel %vm7742, %v7738, 1326507024
        %v7753 = vsel %vm7741, %v7735, %v7752
        %v7754 = vsel %vm7740, %v7751, %v7753
        %v7755 = vshll.u32 %v7715, 8
        %v7756 = vand.u32 %v7755, 65535
        %v7757 = vshrl.u32 %v7755, 16
        %v7758 = vand.u32 %v7754, 65535
        %v7759 = vshrl.u32 %v7754, 16
        %v7760 = vmul.u32 %v7756, %v7758
        %v7761 = vmul.u32 %v7756, %v7759
        %v7762 = vmul.u32 %v7757, %v7758
        %v7763 = vmul.u32 %v7757, %v7759
        %v7764 = vshll.u32 %v7761, 16
        %v7765 = vshrl.u32 %v7761, 16
        %v7766 = vshll.u32 %v7762, 16
        %v7767 = vshrl.u32 %v7762, 16
        %vm7768 = vc.u32 %v7760, %v7764
        %v7769 = vsel %vm7768, 1, 0
        %v7770 = vadd.s32 %v7760, %v7764
        %v7771 = vadd.s32 %v7763, %v7769
        %vm7772 = vc.u32 %v7770, %v7766
        %v7773 = vsel %vm7772, 1, 0
        %v7774 = vadd.s32 %v7770, %v7766
        %v7775 = vadd.s32 %v7771, %v7773
        %v7776 = vadd.s32 %v7775, %v7765
        %v7777 = vadd.s32 %v7776, %v7767
        %v7778 = vand.u32 %v7755, 65535
        %v7779 = vshrl.u32 %v7755, 16
        %v7780 = vand.u32 %v7750, 65535
        %v7781 = vshrl.u32 %v7750, 16
        %v7782 = vmul.u32 %v7778, %v7780
        %v7783 = vmul.u32 %v7778, %v7781
        %v7784 = vmul.u32 %v7779, %v7780
        %v7785 = vmul.u32 %v7779, %v7781
        %v7786 = vshll.u32 %v7783, 16
        %v7787 = vshrl.u32 %v7783, 16
        %v7788 = vshll.u32 %v7784, 16
        %v7789 = vshrl.u32 %v7784, 16
        %vm7790 = vc.u32 %v7782, %v7786
        %v7791 = vsel %vm7790, 1, 0
        %v7792 = vadd.s32 %v7782, %v7786
        %v7793 = vadd.s32 %v7785, %v7791
        %vm7794 = vc.u32 %v7792, %v7788
        %v7795 = vsel %vm7794, 1, 0
        %v7796 = vadd.s32 %v7792, %v7788
        %v7797 = vadd.s32 %v7793, %v7795
        %v7798 = vadd.s32 %v7797, %v7787
        %v7799 = vadd.s32 %v7798, %v7789
        %v7800 = vmul.u32 %v7755, %v7746
        %v7801 = vadd.s32 %v7777, %v7796
        %vm7802 = vc.u32 %v7777, %v7796
        %v7803 = vadd.s32 %v7799, 1
        %v7804 = vsel %vm7802, %v7803, %v7799
        %v7805 = vadd.s32 %v7800, %v7804
        %v7806 = vadd.s32 %v7805, 536870912
        %v7807 = vshrl.u32 %v7806, 30
        %v7808 = vshll.u32 %v7807, 30
        %v7809 = vsub.s32 %v7805, %v7808
        %vm7810 = vcmp.lt.s32.totalorder %v7809, 0
        %v7811 = vsub.s32 0, %v7809
        %v7812 = vsel %vm7810, %v7811, %v7809
        %v7813 = vclz %v7812
        %v7814 = vsub.s32 %v7813, 2
        %vm7815 = vcmp.gt.s32.totalorder 0, %v7814
        %v7816 = vsel %vm7815, 0, %v7814
        %v7817 = vsub.s32 32, %v7816
        %v7818 = vshll.u32 %v7809, %v7816
        %v7819 = vshrl.u32 %v7801, %v7817
        %v7820 = vor.u32 %v7818, %v7819
        %v7821 = vsub.s32 4294967266, %v7816
        %v7822 = vadd.s32 %v7821, 127
        %v7823 = vshll.u32 %v7822, 23
        %v7824 = vor.u32 4788187, %v7823
        %v7825 = vand.u32 2147483647, %v7824
        %v7827 = vcvt.s32.f32 %v7820
        %v7828 = vmul.f32 %v7827, %v7825
        %v7829 = vxor.u32 %v7828, 2147483648
        %v7830 = vsel %vm7709, %v7829, %v7828
        %v7831 = vsub.s32 4, %v7807
        %v7832 = vsel %vm7709, %v7831, %v7807
        %v7833 = vsel %vm7708, %v251, %v7830
        %v7834 = vsel %vm7708, 0, %v7832
        %v7835 = vmul.f32 %v7833, %v7833
        %v7836 = vmul.f32 %v7835, -0.001358992
        %v7837 = vadd.f32 %v7836, 0.041655596
        %v7838 = vmul.f32 %v7835, %v7837
        %v7839 = vadd.f32 %v7838, -0.4999988
        %v7840 = vmul.f32 %v7835, %v7839
        %v7841 = vadd.f32 1.0, %v7840
        %v7842 = vmul.f32 %v7833, %v7833
        %v7843 = vmul.f32 %v7842, -0.00019511016
        %v7844 = vadd.f32 %v7843, 0.008332121
        %v7845 = vmul.f32 %v7842, %v7844
        %v7846 = vadd.f32 %v7845, -0.16666654
        %v7847 = vmul.f32 %v7842, %v7846
        %v7848 = vadd.f32 %v7847, 1.0
        %v7849 = vmul.f32 %v7848, %v7833
        %vm7850 = vweird.f32 %v251
        %v7851 = vadd.s32 %v7834, 3
        %v7852 = vand.u32 %v7851, 3
        %vm7853 = vcmp.lt.s32.totalorder %v7852, 2
        %vm7854 = vcmp.eq.s32.totalorder %v7852, 0
        %v7855 = vxor.u32 %v7849, 2147483648
        %v7856 = vsel %vm7854, %v7841, %v7855
        %vm7857 = vcmp.eq.s32.totalorder %v7852, 2
        %v7858 = vxor.u32 %v7841, 2147483648
        %v7859 = vsel %vm7857, %v7858, %v7849
        %v7860 = vsel %vm7853, %v7856, %v7859
        %v7861 = vsel %vm7850, nan, %v7860
        %v7862 = vand.u32 2147483647, %v252
        %vm7863 = vcmp.le.f32.partialorder %v7862, 0.7853982
        %vm7864 = vcmp.lt.s32.totalorder %v252, 0
        %v7865 = vand.u32 %v252, 2139095040
        %v7866 = vshrl.u32 %v7865, 23
        %v7867 = vsub.s32 %v7866, 127
        %v7868 = vand.u32 2147483647, %v252
        %v7869 = vand.u32 %v7868, 8388607
        %v7870 = vor.u32 %v7869, 8388608
        %v7871 = vsub.s32 0, %v7870
        %v7872 = vadd.s32 %v7867, 1
        %vm7873 = vcmp.gt.s32.totalorder %v7872, 0
        %v7874 = vsel %vm7873, %v7872, 0
        %v7875 = vshrl.u32 %v7874, 5
        %v7876 = vand.u32 %v7874, 31
        %v7877 = vsub.s32 32, %v7876
        %v7878 = vshrl.u32 683565275, %v7877
        %v7879 = vshll.u32 683565275, %v7876
        %v7880 = vshrl.u32 2475754826, %v7877
        %v7881 = vor.u32 %v7879, %v7880
        %v7882 = vshll.u32 2475754826, %v7876
        %v7883 = vshrl.u32 2131351028, %v7877
        %v7884 = vor.u32 %v7882, %v7883
        %v7885 = vshll.u32 2131351028, %v7876
        %v7886 = vshrl.u32 2102212464, %v7877
        %v7887 = vor.u32 %v7885, %v7886
        %v7888 = vshll.u32 2102212464, %v7876
        %v7889 = vshrl.u32 920167782, %v7877
        %v7890 = vor.u32 %v7888, %v7889
        %v7891 = vshll.u32 920167782, %v7876
        %v7892 = vshrl.u32 1326507024, %v7877
        %v7893 = vor.u32 %v7891, %v7892
        %vm7894 = vcmp.lt.s32.totalorder %v7875, 1
        %vm7895 = vcmp.lt.s32.totalorder %v7875, 2
        %vm7896 = vcmp.lt.s32.totalorder %v7875, 3
        %vm7897 = vcmp.lt.s32.totalorder %v7875, 4
        %v7898 = vsel %vm7894, %v7878, %v7881
        %v7899 = vsel %vm7897, %v7887, 2102212464
        %v7900 = vsel %vm7896, %v7884, %v7899
        %v7901 = vsel %vm7895, %v7898, %v7900
        %v7902 = vsel %vm7894, %v7881, %v7884
        %v7903 = vsel %vm7897, %v7890, 920167782
        %v7904 = vsel %vm7896, %v7887, %v7903
        %v7905 = vsel %vm7895, %v7902, %v7904
        %v7906 = vsel %vm7894, %v7884, %v7887
        %v7907 = vsel %vm7897, %v7893, 1326507024
        %v7908 = vsel %vm7896, %v7890, %v7907
        %v7909 = vsel %vm7895, %v7906, %v7908
        %v7910 = vshll.u32 %v7870, 8
        %v7911 = vand.u32 %v7910, 65535
        %v7912 = vshrl.u32 %v7910, 16
        %v7913 = vand.u32 %v7909, 65535
        %v7914 = vshrl.u32 %v7909, 16
        %v7915 = vmul.u32 %v7911, %v7913
        %v7916 = vmul.u32 %v7911, %v7914
        %v7917 = vmul.u32 %v7912, %v7913
        %v7918 = vmul.u32 %v7912, %v7914
        %v7919 = vshll.u32 %v7916, 16
        %v7920 = vshrl.u32 %v7916, 16
        %v7921 = vshll.u32 %v7917, 16
        %v7922 = vshrl.u32 %v7917, 16
        %vm7923 = vc.u32 %v7915, %v7919
        %v7924 = vsel %vm7923, 1, 0
        %v7925 = vadd.s32 %v7915, %v7919
        %v7926 = vadd.s32 %v7918, %v7924
        %vm7927 = vc.u32 %v7925, %v7921
        %v7928 = vsel %vm7927, 1, 0
        %v7929 = vadd.s32 %v7925, %v7921
        %v7930 = vadd.s32 %v7926, %v7928
        %v7931 = vadd.s32 %v7930, %v7920
        %v7932 = vadd.s32 %v7931, %v7922
        %v7933 = vand.u32 %v7910, 65535
        %v7934 = vshrl.u32 %v7910, 16
        %v7935 = vand.u32 %v7905, 65535
        %v7936 = vshrl.u32 %v7905, 16
        %v7937 = vmul.u32 %v7933, %v7935
        %v7938 = vmul.u32 %v7933, %v7936
        %v7939 = vmul.u32 %v7934, %v7935
        %v7940 = vmul.u32 %v7934, %v7936
        %v7941 = vshll.u32 %v7938, 16
        %v7942 = vshrl.u32 %v7938, 16
        %v7943 = vshll.u32 %v7939, 16
        %v7944 = vshrl.u32 %v7939, 16
        %vm7945 = vc.u32 %v7937, %v7941
        %v7946 = vsel %vm7945, 1, 0
        %v7947 = vadd.s32 %v7937, %v7941
        %v7948 = vadd.s32 %v7940, %v7946
        %vm7949 = vc.u32 %v7947, %v7943
        %v7950 = vsel %vm7949, 1, 0
        %v7951 = vadd.s32 %v7947, %v7943
        %v7952 = vadd.s32 %v7948, %v7950
        %v7953 = vadd.s32 %v7952, %v7942
        %v7954 = vadd.s32 %v7953, %v7944
        %v7955 = vmul.u32 %v7910, %v7901
        %v7956 = vadd.s32 %v7932, %v7951
        %vm7957 = vc.u32 %v7932, %v7951
        %v7958 = vadd.s32 %v7954, 1
        %v7959 = vsel %vm7957, %v7958, %v7954
        %v7960 = vadd.s32 %v7955, %v7959
        %v7961 = vadd.s32 %v7960, 536870912
        %v7962 = vshrl.u32 %v7961, 30
        %v7963 = vshll.u32 %v7962, 30
        %v7964 = vsub.s32 %v7960, %v7963
        %vm7965 = vcmp.lt.s32.totalorder %v7964, 0
        %v7966 = vsub.s32 0, %v7964
        %v7967 = vsel %vm7965, %v7966, %v7964
        %v7968 = vclz %v7967
        %v7969 = vsub.s32 %v7968, 2
        %vm7970 = vcmp.gt.s32.totalorder 0, %v7969
        %v7971 = vsel %vm7970, 0, %v7969
        %v7972 = vsub.s32 32, %v7971
        %v7973 = vshll.u32 %v7964, %v7971
        %v7974 = vshrl.u32 %v7956, %v7972
        %v7975 = vor.u32 %v7973, %v7974
        %v7976 = vsub.s32 4294967266, %v7971
        %v7977 = vadd.s32 %v7976, 127
        %v7978 = vshll.u32 %v7977, 23
        %v7979 = vor.u32 4788187, %v7978
        %v7980 = vand.u32 2147483647, %v7979
        %v7982 = vcvt.s32.f32 %v7975
        %v7983 = vmul.f32 %v7982, %v7980
        %v7984 = vxor.u32 %v7983, 2147483648
        %v7985 = vsel %vm7864, %v7984, %v7983
        %v7986 = vsub.s32 4, %v7962
        %v7987 = vsel %vm7864, %v7986, %v7962
        %v7988 = vsel %vm7863, %v252, %v7985
        %v7989 = vsel %vm7863, 0, %v7987
        %v7990 = vmul.f32 %v7988, %v7988
        %v7991 = vmul.f32 %v7990, -0.001358992
        %v7992 = vadd.f32 %v7991, 0.041655596
        %v7993 = vmul.f32 %v7990, %v7992
        %v7994 = vadd.f32 %v7993, -0.4999988
        %v7995 = vmul.f32 %v7990, %v7994
        %v7996 = vadd.f32 1.0, %v7995
        %v7997 = vmul.f32 %v7988, %v7988
        %v7998 = vmul.f32 %v7997, -0.00019511016
        %v7999 = vadd.f32 %v7998, 0.008332121
        %v8000 = vmul.f32 %v7997, %v7999
        %v8001 = vadd.f32 %v8000, -0.16666654
        %v8002 = vmul.f32 %v7997, %v8001
        %v8003 = vadd.f32 %v8002, 1.0
        %v8004 = vmul.f32 %v8003, %v7988
        %vm8005 = vweird.f32 %v252
        %v8006 = vadd.s32 %v7989, 3
        %v8007 = vand.u32 %v8006, 3
        %vm8008 = vcmp.lt.s32.totalorder %v8007, 2
        %vm8009 = vcmp.eq.s32.totalorder %v8007, 0
        %v8010 = vxor.u32 %v8004, 2147483648
        %v8011 = vsel %vm8009, %v7996, %v8010
        %vm8012 = vcmp.eq.s32.totalorder %v8007, 2
        %v8013 = vxor.u32 %v7996, 2147483648
        %v8014 = vsel %vm8012, %v8013, %v8004
        %v8015 = vsel %vm8008, %v8011, %v8014
        %v8016 = vsel %vm8005, nan, %v8015
        %v8017 = vand.u32 2147483647, %v253
        %vm8018 = vcmp.le.f32.partialorder %v8017, 0.7853982
        %vm8019 = vcmp.lt.s32.totalorder %v253, 0
        %v8020 = vand.u32 %v253, 2139095040
        %v8021 = vshrl.u32 %v8020, 23
        %v8022 = vsub.s32 %v8021, 127
        %v8023 = vand.u32 2147483647, %v253
        %v8024 = vand.u32 %v8023, 8388607
        %v8025 = vor.u32 %v8024, 8388608
        %v8026 = vsub.s32 0, %v8025
        %v8027 = vadd.s32 %v8022, 1
        %vm8028 = vcmp.gt.s32.totalorder %v8027, 0
        %v8029 = vsel %vm8028, %v8027, 0
        %v8030 = vshrl.u32 %v8029, 5
        %v8031 = vand.u32 %v8029, 31
        %v8032 = vsub.s32 32, %v8031
        %v8033 = vshrl.u32 683565275, %v8032
        %v8034 = vshll.u32 683565275, %v8031
        %v8035 = vshrl.u32 2475754826, %v8032
        %v8036 = vor.u32 %v8034, %v8035
        %v8037 = vshll.u32 2475754826, %v8031
        %v8038 = vshrl.u32 2131351028, %v8032
        %v8039 = vor.u32 %v8037, %v8038
        %v8040 = vshll.u32 2131351028, %v8031
        %v8041 = vshrl.u32 2102212464, %v8032
        %v8042 = vor.u32 %v8040, %v8041
        %v8043 = vshll.u32 2102212464, %v8031
        %v8044 = vshrl.u32 920167782, %v8032
        %v8045 = vor.u32 %v8043, %v8044
        %v8046 = vshll.u32 920167782, %v8031
        %v8047 = vshrl.u32 1326507024, %v8032
        %v8048 = vor.u32 %v8046, %v8047
        %vm8049 = vcmp.lt.s32.totalorder %v8030, 1
        %vm8050 = vcmp.lt.s32.totalorder %v8030, 2
        %vm8051 = vcmp.lt.s32.totalorder %v8030, 3
        %vm8052 = vcmp.lt.s32.totalorder %v8030, 4
        %v8053 = vsel %vm8049, %v8033, %v8036
        %v8054 = vsel %vm8052, %v8042, 2102212464
        %v8055 = vsel %vm8051, %v8039, %v8054
        %v8056 = vsel %vm8050, %v8053, %v8055
        %v8057 = vsel %vm8049, %v8036, %v8039
        %v8058 = vsel %vm8052, %v8045, 920167782
        %v8059 = vsel %vm8051, %v8042, %v8058
        %v8060 = vsel %vm8050, %v8057, %v8059
        %v8061 = vsel %vm8049, %v8039, %v8042
        %v8062 = vsel %vm8052, %v8048, 1326507024
        %v8063 = vsel %vm8051, %v8045, %v8062
        %v8064 = vsel %vm8050, %v8061, %v8063
        %v8065 = vshll.u32 %v8025, 8
        %v8066 = vand.u32 %v8065, 65535
        %v8067 = vshrl.u32 %v8065, 16
        %v8068 = vand.u32 %v8064, 65535
        %v8069 = vshrl.u32 %v8064, 16
        %v8070 = vmul.u32 %v8066, %v8068
        %v8071 = vmul.u32 %v8066, %v8069
        %v8072 = vmul.u32 %v8067, %v8068
        %v8073 = vmul.u32 %v8067, %v8069
        %v8074 = vshll.u32 %v8071, 16
        %v8075 = vshrl.u32 %v8071, 16
        %v8076 = vshll.u32 %v8072, 16
        %v8077 = vshrl.u32 %v8072, 16
        %vm8078 = vc.u32 %v8070, %v8074
        %v8079 = vsel %vm8078, 1, 0
        %v8080 = vadd.s32 %v8070, %v8074
        %v8081 = vadd.s32 %v8073, %v8079
        %vm8082 = vc.u32 %v8080, %v8076
        %v8083 = vsel %vm8082, 1, 0
        %v8084 = vadd.s32 %v8080, %v8076
        %v8085 = vadd.s32 %v8081, %v8083
        %v8086 = vadd.s32 %v8085, %v8075
        %v8087 = vadd.s32 %v8086, %v8077
        %v8088 = vand.u32 %v8065, 65535
        %v8089 = vshrl.u32 %v8065, 16
        %v8090 = vand.u32 %v8060, 65535
        %v8091 = vshrl.u32 %v8060, 16
        %v8092 = vmul.u32 %v8088, %v8090
        %v8093 = vmul.u32 %v8088, %v8091
        %v8094 = vmul.u32 %v8089, %v8090
        %v8095 = vmul.u32 %v8089, %v8091
        %v8096 = vshll.u32 %v8093, 16
        %v8097 = vshrl.u32 %v8093, 16
        %v8098 = vshll.u32 %v8094, 16
        %v8099 = vshrl.u32 %v8094, 16
        %vm8100 = vc.u32 %v8092, %v8096
        %v8101 = vsel %vm8100, 1, 0
        %v8102 = vadd.s32 %v8092, %v8096
        %v8103 = vadd.s32 %v8095, %v8101
        %vm8104 = vc.u32 %v8102, %v8098
        %v8105 = vsel %vm8104, 1, 0
        %v8106 = vadd.s32 %v8102, %v8098
        %v8107 = vadd.s32 %v8103, %v8105
        %v8108 = vadd.s32 %v8107, %v8097
        %v8109 = vadd.s32 %v8108, %v8099
        %v8110 = vmul.u32 %v8065, %v8056
        %v8111 = vadd.s32 %v8087, %v8106
        %vm8112 = vc.u32 %v8087, %v8106
        %v8113 = vadd.s32 %v8109, 1
        %v8114 = vsel %vm8112, %v8113, %v8109
        %v8115 = vadd.s32 %v8110, %v8114
        %v8116 = vadd.s32 %v8115, 536870912
        %v8117 = vshrl.u32 %v8116, 30
        %v8118 = vshll.u32 %v8117, 30
        %v8119 = vsub.s32 %v8115, %v8118
        %vm8120 = vcmp.lt.s32.totalorder %v8119, 0
        %v8121 = vsub.s32 0, %v8119
        %v8122 = vsel %vm8120, %v8121, %v8119
        %v8123 = vclz %v8122
        %v8124 = vsub.s32 %v8123, 2
        %vm8125 = vcmp.gt.s32.totalorder 0, %v8124
        %v8126 = vsel %vm8125, 0, %v8124
        %v8127 = vsub.s32 32, %v8126
        %v8128 = vshll.u32 %v8119, %v8126
        %v8129 = vshrl.u32 %v8111, %v8127
        %v8130 = vor.u32 %v8128, %v8129
        %v8131 = vsub.s32 4294967266, %v8126
        %v8132 = vadd.s32 %v8131, 127
        %v8133 = vshll.u32 %v8132, 23
        %v8134 = vor.u32 4788187, %v8133
        %v8135 = vand.u32 2147483647, %v8134
        %v8137 = vcvt.s32.f32 %v8130
        %v8138 = vmul.f32 %v8137, %v8135
        %v8139 = vxor.u32 %v8138, 2147483648
        %v8140 = vsel %vm8019, %v8139, %v8138
        %v8141 = vsub.s32 4, %v8117
        %v8142 = vsel %vm8019, %v8141, %v8117
        %v8143 = vsel %vm8018, %v253, %v8140
        %v8144 = vsel %vm8018, 0, %v8142
        %v8145 = vmul.f32 %v8143, %v8143
        %v8146 = vmul.f32 %v8145, -0.001358992
        %v8147 = vadd.f32 %v8146, 0.041655596
        %v8148 = vmul.f32 %v8145, %v8147
        %v8149 = vadd.f32 %v8148, -0.4999988
        %v8150 = vmul.f32 %v8145, %v8149
        %v8151 = vadd.f32 1.0, %v8150
        %v8152 = vmul.f32 %v8143, %v8143
        %v8153 = vmul.f32 %v8152, -0.00019511016
        %v8154 = vadd.f32 %v8153, 0.008332121
        %v8155 = vmul.f32 %v8152, %v8154
        %v8156 = vadd.f32 %v8155, -0.16666654
        %v8157 = vmul.f32 %v8152, %v8156
        %v8158 = vadd.f32 %v8157, 1.0
        %v8159 = vmul.f32 %v8158, %v8143
        %vm8160 = vweird.f32 %v253
        %v8161 = vadd.s32 %v8144, 3
        %v8162 = vand.u32 %v8161, 3
        %vm8163 = vcmp.lt.s32.totalorder %v8162, 2
        %vm8164 = vcmp.eq.s32.totalorder %v8162, 0
        %v8165 = vxor.u32 %v8159, 2147483648
        %v8166 = vsel %vm8164, %v8151, %v8165
        %vm8167 = vcmp.eq.s32.totalorder %v8162, 2
        %v8168 = vxor.u32 %v8151, 2147483648
        %v8169 = vsel %vm8167, %v8168, %v8159
        %v8170 = vsel %vm8163, %v8166, %v8169
        %v8171 = vsel %vm8160, nan, %v8170
        %v8172 = vand.u32 2147483647, %v254
        %vm8173 = vcmp.le.f32.partialorder %v8172, 0.7853982
        %vm8174 = vcmp.lt.s32.totalorder %v254, 0
        %v8175 = vand.u32 %v254, 2139095040
        %v8176 = vshrl.u32 %v8175, 23
        %v8177 = vsub.s32 %v8176, 127
        %v8178 = vand.u32 2147483647, %v254
        %v8179 = vand.u32 %v8178, 8388607
        %v8180 = vor.u32 %v8179, 8388608
        %v8181 = vsub.s32 0, %v8180
        %v8182 = vadd.s32 %v8177, 1
        %vm8183 = vcmp.gt.s32.totalorder %v8182, 0
        %v8184 = vsel %vm8183, %v8182, 0
        %v8185 = vshrl.u32 %v8184, 5
        %v8186 = vand.u32 %v8184, 31
        %v8187 = vsub.s32 32, %v8186
        %v8188 = vshrl.u32 683565275, %v8187
        %v8189 = vshll.u32 683565275, %v8186
        %v8190 = vshrl.u32 2475754826, %v8187
        %v8191 = vor.u32 %v8189, %v8190
        %v8192 = vshll.u32 2475754826, %v8186
        %v8193 = vshrl.u32 2131351028, %v8187
        %v8194 = vor.u32 %v8192, %v8193
        %v8195 = vshll.u32 2131351028, %v8186
        %v8196 = vshrl.u32 2102212464, %v8187
        %v8197 = vor.u32 %v8195, %v8196
        %v8198 = vshll.u32 2102212464, %v8186
        %v8199 = vshrl.u32 920167782, %v8187
        %v8200 = vor.u32 %v8198, %v8199
        %v8201 = vshll.u32 920167782, %v8186
        %v8202 = vshrl.u32 1326507024, %v8187
        %v8203 = vor.u32 %v8201, %v8202
        %vm8204 = vcmp.lt.s32.totalorder %v8185, 1
        %vm8205 = vcmp.lt.s32.totalorder %v8185, 2
        %vm8206 = vcmp.lt.s32.totalorder %v8185, 3
        %vm8207 = vcmp.lt.s32.totalorder %v8185, 4
        %v8208 = vsel %vm8204, %v8188, %v8191
        %v8209 = vsel %vm8207, %v8197, 2102212464
        %v8210 = vsel %vm8206, %v8194, %v8209
        %v8211 = vsel %vm8205, %v8208, %v8210
        %v8212 = vsel %vm8204, %v8191, %v8194
        %v8213 = vsel %vm8207, %v8200, 920167782
        %v8214 = vsel %vm8206, %v8197, %v8213
        %v8215 = vsel %vm8205, %v8212, %v8214
        %v8216 = vsel %vm8204, %v8194, %v8197
        %v8217 = vsel %vm8207, %v8203, 1326507024
        %v8218 = vsel %vm8206, %v8200, %v8217
        %v8219 = vsel %vm8205, %v8216, %v8218
        %v8220 = vshll.u32 %v8180, 8
        %v8221 = vand.u32 %v8220, 65535
        %v8222 = vshrl.u32 %v8220, 16
        %v8223 = vand.u32 %v8219, 65535
        %v8224 = vshrl.u32 %v8219, 16
        %v8225 = vmul.u32 %v8221, %v8223
        %v8226 = vmul.u32 %v8221, %v8224
        %v8227 = vmul.u32 %v8222, %v8223
        %v8228 = vmul.u32 %v8222, %v8224
        %v8229 = vshll.u32 %v8226, 16
        %v8230 = vshrl.u32 %v8226, 16
        %v8231 = vshll.u32 %v8227, 16
        %v8232 = vshrl.u32 %v8227, 16
        %vm8233 = vc.u32 %v8225, %v8229
        %v8234 = vsel %vm8233, 1, 0
        %v8235 = vadd.s32 %v8225, %v8229
        %v8236 = vadd.s32 %v8228, %v8234
        %vm8237 = vc.u32 %v8235, %v8231
        %v8238 = vsel %vm8237, 1, 0
        %v8239 = vadd.s32 %v8235, %v8231
        %v8240 = vadd.s32 %v8236, %v8238
        %v8241 = vadd.s32 %v8240, %v8230
        %v8242 = vadd.s32 %v8241, %v8232
        %v8243 = vand.u32 %v8220, 65535
        %v8244 = vshrl.u32 %v8220, 16
        %v8245 = vand.u32 %v8215, 65535
        %v8246 = vshrl.u32 %v8215, 16
        %v8247 = vmul.u32 %v8243, %v8245
        %v8248 = vmul.u32 %v8243, %v8246
        %v8249 = vmul.u32 %v8244, %v8245
        %v8250 = vmul.u32 %v8244, %v8246
        %v8251 = vshll.u32 %v8248, 16
        %v8252 = vshrl.u32 %v8248, 16
        %v8253 = vshll.u32 %v8249, 16
        %v8254 = vshrl.u32 %v8249, 16
        %vm8255 = vc.u32 %v8247, %v8251
        %v8256 = vsel %vm8255, 1, 0
        %v8257 = vadd.s32 %v8247, %v8251
        %v8258 = vadd.s32 %v8250, %v8256
        %vm8259 = vc.u32 %v8257, %v8253
        %v8260 = vsel %vm8259, 1, 0
        %v8261 = vadd.s32 %v8257, %v8253
        %v8262 = vadd.s32 %v8258, %v8260
        %v8263 = vadd.s32 %v8262, %v8252
        %v8264 = vadd.s32 %v8263, %v8254
        %v8265 = vmul.u32 %v8220, %v8211
        %v8266 = vadd.s32 %v8242, %v8261
        %vm8267 = vc.u32 %v8242, %v8261
        %v8268 = vadd.s32 %v8264, 1
        %v8269 = vsel %vm8267, %v8268, %v8264
        %v8270 = vadd.s32 %v8265, %v8269
        %v8271 = vadd.s32 %v8270, 536870912
        %v8272 = vshrl.u32 %v8271, 30
        %v8273 = vshll.u32 %v8272, 30
        %v8274 = vsub.s32 %v8270, %v8273
        %vm8275 = vcmp.lt.s32.totalorder %v8274, 0
        %v8276 = vsub.s32 0, %v8274
        %v8277 = vsel %vm8275, %v8276, %v8274
        %v8278 = vclz %v8277
        %v8279 = vsub.s32 %v8278, 2
        %vm8280 = vcmp.gt.s32.totalorder 0, %v8279
        %v8281 = vsel %vm8280, 0, %v8279
        %v8282 = vsub.s32 32, %v8281
        %v8283 = vshll.u32 %v8274, %v8281
        %v8284 = vshrl.u32 %v8266, %v8282
        %v8285 = vor.u32 %v8283, %v8284
        %v8286 = vsub.s32 4294967266, %v8281
        %v8287 = vadd.s32 %v8286, 127
        %v8288 = vshll.u32 %v8287, 23
        %v8289 = vor.u32 4788187, %v8288
        %v8290 = vand.u32 2147483647, %v8289
        %v8292 = vcvt.s32.f32 %v8285
        %v8293 = vmul.f32 %v8292, %v8290
        %v8294 = vxor.u32 %v8293, 2147483648
        %v8295 = vsel %vm8174, %v8294, %v8293
        %v8296 = vsub.s32 4, %v8272
        %v8297 = vsel %vm8174, %v8296, %v8272
        %v8298 = vsel %vm8173, %v254, %v8295
        %v8299 = vsel %vm8173, 0, %v8297
        %v8300 = vmul.f32 %v8298, %v8298
        %v8301 = vmul.f32 %v8300, -0.001358992
        %v8302 = vadd.f32 %v8301, 0.041655596
        %v8303 = vmul.f32 %v8300, %v8302
        %v8304 = vadd.f32 %v8303, -0.4999988
        %v8305 = vmul.f32 %v8300, %v8304
        %v8306 = vadd.f32 1.0, %v8305
        %v8307 = vmul.f32 %v8298, %v8298
        %v8308 = vmul.f32 %v8307, -0.00019511016
        %v8309 = vadd.f32 %v8308, 0.008332121
        %v8310 = vmul.f32 %v8307, %v8309
        %v8311 = vadd.f32 %v8310, -0.16666654
        %v8312 = vmul.f32 %v8307, %v8311
        %v8313 = vadd.f32 %v8312, 1.0
        %v8314 = vmul.f32 %v8313, %v8298
        %vm8315 = vweird.f32 %v254
        %v8316 = vadd.s32 %v8299, 3
        %v8317 = vand.u32 %v8316, 3
        %vm8318 = vcmp.lt.s32.totalorder %v8317, 2
        %vm8319 = vcmp.eq.s32.totalorder %v8317, 0
        %v8320 = vxor.u32 %v8314, 2147483648
        %v8321 = vsel %vm8319, %v8306, %v8320
        %vm8322 = vcmp.eq.s32.totalorder %v8317, 2
        %v8323 = vxor.u32 %v8306, 2147483648
        %v8324 = vsel %vm8322, %v8323, %v8314
        %v8325 = vsel %vm8318, %v8321, %v8324
        %v8326 = vsel %vm8315, nan, %v8325
        %v8327 = vand.u32 2147483647, %v255
        %vm8328 = vcmp.le.f32.partialorder %v8327, 0.7853982
        %vm8329 = vcmp.lt.s32.totalorder %v255, 0
        %v8330 = vand.u32 %v255, 2139095040
        %v8331 = vshrl.u32 %v8330, 23
        %v8332 = vsub.s32 %v8331, 127
        %v8333 = vand.u32 2147483647, %v255
        %v8334 = vand.u32 %v8333, 8388607
        %v8335 = vor.u32 %v8334, 8388608
        %v8336 = vsub.s32 0, %v8335
        %v8337 = vadd.s32 %v8332, 1
        %vm8338 = vcmp.gt.s32.totalorder %v8337, 0
        %v8339 = vsel %vm8338, %v8337, 0
        %v8340 = vshrl.u32 %v8339, 5
        %v8341 = vand.u32 %v8339, 31
        %v8342 = vsub.s32 32, %v8341
        %v8343 = vshrl.u32 683565275, %v8342
        %v8344 = vshll.u32 683565275, %v8341
        %v8345 = vshrl.u32 2475754826, %v8342
        %v8346 = vor.u32 %v8344, %v8345
        %v8347 = vshll.u32 2475754826, %v8341
        %v8348 = vshrl.u32 2131351028, %v8342
        %v8349 = vor.u32 %v8347, %v8348
        %v8350 = vshll.u32 2131351028, %v8341
        %v8351 = vshrl.u32 2102212464, %v8342
        %v8352 = vor.u32 %v8350, %v8351
        %v8353 = vshll.u32 2102212464, %v8341
        %v8354 = vshrl.u32 920167782, %v8342
        %v8355 = vor.u32 %v8353, %v8354
        %v8356 = vshll.u32 920167782, %v8341
        %v8357 = vshrl.u32 1326507024, %v8342
        %v8358 = vor.u32 %v8356, %v8357
        %vm8359 = vcmp.lt.s32.totalorder %v8340, 1
        %vm8360 = vcmp.lt.s32.totalorder %v8340, 2
        %vm8361 = vcmp.lt.s32.totalorder %v8340, 3
        %vm8362 = vcmp.lt.s32.totalorder %v8340, 4
        %v8363 = vsel %vm8359, %v8343, %v8346
        %v8364 = vsel %vm8362, %v8352, 2102212464
        %v8365 = vsel %vm8361, %v8349, %v8364
        %v8366 = vsel %vm8360, %v8363, %v8365
        %v8367 = vsel %vm8359, %v8346, %v8349
        %v8368 = vsel %vm8362, %v8355, 920167782
        %v8369 = vsel %vm8361, %v8352, %v8368
        %v8370 = vsel %vm8360, %v8367, %v8369
        %v8371 = vsel %vm8359, %v8349, %v8352
        %v8372 = vsel %vm8362, %v8358, 1326507024
        %v8373 = vsel %vm8361, %v8355, %v8372
        %v8374 = vsel %vm8360, %v8371, %v8373
        %v8375 = vshll.u32 %v8335, 8
        %v8376 = vand.u32 %v8375, 65535
        %v8377 = vshrl.u32 %v8375, 16
        %v8378 = vand.u32 %v8374, 65535
        %v8379 = vshrl.u32 %v8374, 16
        %v8380 = vmul.u32 %v8376, %v8378
        %v8381 = vmul.u32 %v8376, %v8379
        %v8382 = vmul.u32 %v8377, %v8378
        %v8383 = vmul.u32 %v8377, %v8379
        %v8384 = vshll.u32 %v8381, 16
        %v8385 = vshrl.u32 %v8381, 16
        %v8386 = vshll.u32 %v8382, 16
        %v8387 = vshrl.u32 %v8382, 16
        %vm8388 = vc.u32 %v8380, %v8384
        %v8389 = vsel %vm8388, 1, 0
        %v8390 = vadd.s32 %v8380, %v8384
        %v8391 = vadd.s32 %v8383, %v8389
        %vm8392 = vc.u32 %v8390, %v8386
        %v8393 = vsel %vm8392, 1, 0
        %v8394 = vadd.s32 %v8390, %v8386
        %v8395 = vadd.s32 %v8391, %v8393
        %v8396 = vadd.s32 %v8395, %v8385
        %v8397 = vadd.s32 %v8396, %v8387
        %v8398 = vand.u32 %v8375, 65535
        %v8399 = vshrl.u32 %v8375, 16
        %v8400 = vand.u32 %v8370, 65535
        %v8401 = vshrl.u32 %v8370, 16
        %v8402 = vmul.u32 %v8398, %v8400
        %v8403 = vmul.u32 %v8398, %v8401
        %v8404 = vmul.u32 %v8399, %v8400
        %v8405 = vmul.u32 %v8399, %v8401
        %v8406 = vshll.u32 %v8403, 16
        %v8407 = vshrl.u32 %v8403, 16
        %v8408 = vshll.u32 %v8404, 16
        %v8409 = vshrl.u32 %v8404, 16
        %vm8410 = vc.u32 %v8402, %v8406
        %v8411 = vsel %vm8410, 1, 0
        %v8412 = vadd.s32 %v8402, %v8406
        %v8413 = vadd.s32 %v8405, %v8411
        %vm8414 = vc.u32 %v8412, %v8408
        %v8415 = vsel %vm8414, 1, 0
        %v8416 = vadd.s32 %v8412, %v8408
        %v8417 = vadd.s32 %v8413, %v8415
        %v8418 = vadd.s32 %v8417, %v8407
        %v8419 = vadd.s32 %v8418, %v8409
        %v8420 = vmul.u32 %v8375, %v8366
        %v8421 = vadd.s32 %v8397, %v8416
        %vm8422 = vc.u32 %v8397, %v8416
        %v8423 = vadd.s32 %v8419, 1
        %v8424 = vsel %vm8422, %v8423, %v8419
        %v8425 = vadd.s32 %v8420, %v8424
        %v8426 = vadd.s32 %v8425, 536870912
        %v8427 = vshrl.u32 %v8426, 30
        %v8428 = vshll.u32 %v8427, 30
        %v8429 = vsub.s32 %v8425, %v8428
        %vm8430 = vcmp.lt.s32.totalorder %v8429, 0
        %v8431 = vsub.s32 0, %v8429
        %v8432 = vsel %vm8430, %v8431, %v8429
        %v8433 = vclz %v8432
        %v8434 = vsub.s32 %v8433, 2
        %vm8435 = vcmp.gt.s32.totalorder 0, %v8434
        %v8436 = vsel %vm8435, 0, %v8434
        %v8437 = vsub.s32 32, %v8436
        %v8438 = vshll.u32 %v8429, %v8436
        %v8439 = vshrl.u32 %v8421, %v8437
        %v8440 = vor.u32 %v8438, %v8439
        %v8441 = vsub.s32 4294967266, %v8436
        %v8442 = vadd.s32 %v8441, 127
        %v8443 = vshll.u32 %v8442, 23
        %v8444 = vor.u32 4788187, %v8443
        %v8445 = vand.u32 2147483647, %v8444
        %v8447 = vcvt.s32.f32 %v8440
        %v8448 = vmul.f32 %v8447, %v8445
        %v8449 = vxor.u32 %v8448, 2147483648
        %v8450 = vsel %vm8329, %v8449, %v8448
        %v8451 = vsub.s32 4, %v8427
        %v8452 = vsel %vm8329, %v8451, %v8427
        %v8453 = vsel %vm8328, %v255, %v8450
        %v8454 = vsel %vm8328, 0, %v8452
        %v8455 = vmul.f32 %v8453, %v8453
        %v8456 = vmul.f32 %v8455, -0.001358992
        %v8457 = vadd.f32 %v8456, 0.041655596
        %v8458 = vmul.f32 %v8455, %v8457
        %v8459 = vadd.f32 %v8458, -0.4999988
        %v8460 = vmul.f32 %v8455, %v8459
        %v8461 = vadd.f32 1.0, %v8460
        %v8462 = vmul.f32 %v8453, %v8453
        %v8463 = vmul.f32 %v8462, -0.00019511016
        %v8464 = vadd.f32 %v8463, 0.008332121
        %v8465 = vmul.f32 %v8462, %v8464
        %v8466 = vadd.f32 %v8465, -0.16666654
        %v8467 = vmul.f32 %v8462, %v8466
        %v8468 = vadd.f32 %v8467, 1.0
        %v8469 = vmul.f32 %v8468, %v8453
        %vm8470 = vweird.f32 %v255
        %v8471 = vadd.s32 %v8454, 3
        %v8472 = vand.u32 %v8471, 3
        %vm8473 = vcmp.lt.s32.totalorder %v8472, 2
        %vm8474 = vcmp.eq.s32.totalorder %v8472, 0
        %v8475 = vxor.u32 %v8469, 2147483648
        %v8476 = vsel %vm8474, %v8461, %v8475
        %vm8477 = vcmp.eq.s32.totalorder %v8472, 2
        %v8478 = vxor.u32 %v8461, 2147483648
        %v8479 = vsel %vm8477, %v8478, %v8469
        %v8480 = vsel %vm8473, %v8476, %v8479
        %v8481 = vsel %vm8470, nan, %v8480
        %v8482 = vand.u32 2147483647, %v256
        %vm8483 = vcmp.le.f32.partialorder %v8482, 0.7853982
        %vm8484 = vcmp.lt.s32.totalorder %v256, 0
        %v8485 = vand.u32 %v256, 2139095040
        %v8486 = vshrl.u32 %v8485, 23
        %v8487 = vsub.s32 %v8486, 127
        %v8488 = vand.u32 2147483647, %v256
        %v8489 = vand.u32 %v8488, 8388607
        %v8490 = vor.u32 %v8489, 8388608
        %v8491 = vsub.s32 0, %v8490
        %v8492 = vadd.s32 %v8487, 1
        %vm8493 = vcmp.gt.s32.totalorder %v8492, 0
        %v8494 = vsel %vm8493, %v8492, 0
        %v8495 = vshrl.u32 %v8494, 5
        %v8496 = vand.u32 %v8494, 31
        %v8497 = vsub.s32 32, %v8496
        %v8498 = vshrl.u32 683565275, %v8497
        %v8499 = vshll.u32 683565275, %v8496
        %v8500 = vshrl.u32 2475754826, %v8497
        %v8501 = vor.u32 %v8499, %v8500
        %v8502 = vshll.u32 2475754826, %v8496
        %v8503 = vshrl.u32 2131351028, %v8497
        %v8504 = vor.u32 %v8502, %v8503
        %v8505 = vshll.u32 2131351028, %v8496
        %v8506 = vshrl.u32 2102212464, %v8497
        %v8507 = vor.u32 %v8505, %v8506
        %v8508 = vshll.u32 2102212464, %v8496
        %v8509 = vshrl.u32 920167782, %v8497
        %v8510 = vor.u32 %v8508, %v8509
        %v8511 = vshll.u32 920167782, %v8496
        %v8512 = vshrl.u32 1326507024, %v8497
        %v8513 = vor.u32 %v8511, %v8512
        %vm8514 = vcmp.lt.s32.totalorder %v8495, 1
        %vm8515 = vcmp.lt.s32.totalorder %v8495, 2
        %vm8516 = vcmp.lt.s32.totalorder %v8495, 3
        %vm8517 = vcmp.lt.s32.totalorder %v8495, 4
        %v8518 = vsel %vm8514, %v8498, %v8501
        %v8519 = vsel %vm8517, %v8507, 2102212464
        %v8520 = vsel %vm8516, %v8504, %v8519
        %v8521 = vsel %vm8515, %v8518, %v8520
        %v8522 = vsel %vm8514, %v8501, %v8504
        %v8523 = vsel %vm8517, %v8510, 920167782
        %v8524 = vsel %vm8516, %v8507, %v8523
        %v8525 = vsel %vm8515, %v8522, %v8524
        %v8526 = vsel %vm8514, %v8504, %v8507
        %v8527 = vsel %vm8517, %v8513, 1326507024
        %v8528 = vsel %vm8516, %v8510, %v8527
        %v8529 = vsel %vm8515, %v8526, %v8528
        %v8530 = vshll.u32 %v8490, 8
        %v8531 = vand.u32 %v8530, 65535
        %v8532 = vshrl.u32 %v8530, 16
        %v8533 = vand.u32 %v8529, 65535
        %v8534 = vshrl.u32 %v8529, 16
        %v8535 = vmul.u32 %v8531, %v8533
        %v8536 = vmul.u32 %v8531, %v8534
        %v8537 = vmul.u32 %v8532, %v8533
        %v8538 = vmul.u32 %v8532, %v8534
        %v8539 = vshll.u32 %v8536, 16
        %v8540 = vshrl.u32 %v8536, 16
        %v8541 = vshll.u32 %v8537, 16
        %v8542 = vshrl.u32 %v8537, 16
        %vm8543 = vc.u32 %v8535, %v8539
        %v8544 = vsel %vm8543, 1, 0
        %v8545 = vadd.s32 %v8535, %v8539
        %v8546 = vadd.s32 %v8538, %v8544
        %vm8547 = vc.u32 %v8545, %v8541
        %v8548 = vsel %vm8547, 1, 0
        %v8549 = vadd.s32 %v8545, %v8541
        %v8550 = vadd.s32 %v8546, %v8548
        %v8551 = vadd.s32 %v8550, %v8540
        %v8552 = vadd.s32 %v8551, %v8542
        %v8553 = vand.u32 %v8530, 65535
        %v8554 = vshrl.u32 %v8530, 16
        %v8555 = vand.u32 %v8525, 65535
        %v8556 = vshrl.u32 %v8525, 16
        %v8557 = vmul.u32 %v8553, %v8555
        %v8558 = vmul.u32 %v8553, %v8556
        %v8559 = vmul.u32 %v8554, %v8555
        %v8560 = vmul.u32 %v8554, %v8556
        %v8561 = vshll.u32 %v8558, 16
        %v8562 = vshrl.u32 %v8558, 16
        %v8563 = vshll.u32 %v8559, 16
        %v8564 = vshrl.u32 %v8559, 16
        %vm8565 = vc.u32 %v8557, %v8561
        %v8566 = vsel %vm8565, 1, 0
        %v8567 = vadd.s32 %v8557, %v8561
        %v8568 = vadd.s32 %v8560, %v8566
        %vm8569 = vc.u32 %v8567, %v8563
        %v8570 = vsel %vm8569, 1, 0
        %v8571 = vadd.s32 %v8567, %v8563
        %v8572 = vadd.s32 %v8568, %v8570
        %v8573 = vadd.s32 %v8572, %v8562
        %v8574 = vadd.s32 %v8573, %v8564
        %v8575 = vmul.u32 %v8530, %v8521
        %v8576 = vadd.s32 %v8552, %v8571
        %vm8577 = vc.u32 %v8552, %v8571
        %v8578 = vadd.s32 %v8574, 1
        %v8579 = vsel %vm8577, %v8578, %v8574
        %v8580 = vadd.s32 %v8575, %v8579
        %v8581 = vadd.s32 %v8580, 536870912
        %v8582 = vshrl.u32 %v8581, 30
        %v8583 = vshll.u32 %v8582, 30
        %v8584 = vsub.s32 %v8580, %v8583
        %vm8585 = vcmp.lt.s32.totalorder %v8584, 0
        %v8586 = vsub.s32 0, %v8584
        %v8587 = vsel %vm8585, %v8586, %v8584
        %v8588 = vclz %v8587
        %v8589 = vsub.s32 %v8588, 2
        %vm8590 = vcmp.gt.s32.totalorder 0, %v8589
        %v8591 = vsel %vm8590, 0, %v8589
        %v8592 = vsub.s32 32, %v8591
        %v8593 = vshll.u32 %v8584, %v8591
        %v8594 = vshrl.u32 %v8576, %v8592
        %v8595 = vor.u32 %v8593, %v8594
        %v8596 = vsub.s32 4294967266, %v8591
        %v8597 = vadd.s32 %v8596, 127
        %v8598 = vshll.u32 %v8597, 23
        %v8599 = vor.u32 4788187, %v8598
        %v8600 = vand.u32 2147483647, %v8599
        %v8602 = vcvt.s32.f32 %v8595
        %v8603 = vmul.f32 %v8602, %v8600
        %v8604 = vxor.u32 %v8603, 2147483648
        %v8605 = vsel %vm8484, %v8604, %v8603
        %v8606 = vsub.s32 4, %v8582
        %v8607 = vsel %vm8484, %v8606, %v8582
        %v8608 = vsel %vm8483, %v256, %v8605
        %v8609 = vsel %vm8483, 0, %v8607
        %v8610 = vmul.f32 %v8608, %v8608
        %v8611 = vmul.f32 %v8610, -0.001358992
        %v8612 = vadd.f32 %v8611, 0.041655596
        %v8613 = vmul.f32 %v8610, %v8612
        %v8614 = vadd.f32 %v8613, -0.4999988
        %v8615 = vmul.f32 %v8610, %v8614
        %v8616 = vadd.f32 1.0, %v8615
        %v8617 = vmul.f32 %v8608, %v8608
        %v8618 = vmul.f32 %v8617, -0.00019511016
        %v8619 = vadd.f32 %v8618, 0.008332121
        %v8620 = vmul.f32 %v8617, %v8619
        %v8621 = vadd.f32 %v8620, -0.16666654
        %v8622 = vmul.f32 %v8617, %v8621
        %v8623 = vadd.f32 %v8622, 1.0
        %v8624 = vmul.f32 %v8623, %v8608
        %vm8625 = vweird.f32 %v256
        %v8626 = vadd.s32 %v8609, 3
        %v8627 = vand.u32 %v8626, 3
        %vm8628 = vcmp.lt.s32.totalorder %v8627, 2
        %vm8629 = vcmp.eq.s32.totalorder %v8627, 0
        %v8630 = vxor.u32 %v8624, 2147483648
        %v8631 = vsel %vm8629, %v8616, %v8630
        %vm8632 = vcmp.eq.s32.totalorder %v8627, 2
        %v8633 = vxor.u32 %v8616, 2147483648
        %v8634 = vsel %vm8632, %v8633, %v8624
        %v8635 = vsel %vm8628, %v8631, %v8634
        %v8636 = vsel %vm8625, nan, %v8635
        %v8637 = vand.u32 2147483647, %v257
        %vm8638 = vcmp.le.f32.partialorder %v8637, 0.7853982
        %vm8639 = vcmp.lt.s32.totalorder %v257, 0
        %v8640 = vand.u32 %v257, 2139095040
        %v8641 = vshrl.u32 %v8640, 23
        %v8642 = vsub.s32 %v8641, 127
        %v8643 = vand.u32 2147483647, %v257
        %v8644 = vand.u32 %v8643, 8388607
        %v8645 = vor.u32 %v8644, 8388608
        %v8646 = vsub.s32 0, %v8645
        %v8647 = vadd.s32 %v8642, 1
        %vm8648 = vcmp.gt.s32.totalorder %v8647, 0
        %v8649 = vsel %vm8648, %v8647, 0
        %v8650 = vshrl.u32 %v8649, 5
        %v8651 = vand.u32 %v8649, 31
        %v8652 = vsub.s32 32, %v8651
        %v8653 = vshrl.u32 683565275, %v8652
        %v8654 = vshll.u32 683565275, %v8651
        %v8655 = vshrl.u32 2475754826, %v8652
        %v8656 = vor.u32 %v8654, %v8655
        %v8657 = vshll.u32 2475754826, %v8651
        %v8658 = vshrl.u32 2131351028, %v8652
        %v8659 = vor.u32 %v8657, %v8658
        %v8660 = vshll.u32 2131351028, %v8651
        %v8661 = vshrl.u32 2102212464, %v8652
        %v8662 = vor.u32 %v8660, %v8661
        %v8663 = vshll.u32 2102212464, %v8651
        %v8664 = vshrl.u32 920167782, %v8652
        %v8665 = vor.u32 %v8663, %v8664
        %v8666 = vshll.u32 920167782, %v8651
        %v8667 = vshrl.u32 1326507024, %v8652
        %v8668 = vor.u32 %v8666, %v8667
        %vm8669 = vcmp.lt.s32.totalorder %v8650, 1
        %vm8670 = vcmp.lt.s32.totalorder %v8650, 2
        %vm8671 = vcmp.lt.s32.totalorder %v8650, 3
        %vm8672 = vcmp.lt.s32.totalorder %v8650, 4
        %v8673 = vsel %vm8669, %v8653, %v8656
        %v8674 = vsel %vm8672, %v8662, 2102212464
        %v8675 = vsel %vm8671, %v8659, %v8674
        %v8676 = vsel %vm8670, %v8673, %v8675
        %v8677 = vsel %vm8669, %v8656, %v8659
        %v8678 = vsel %vm8672, %v8665, 920167782
        %v8679 = vsel %vm8671, %v8662, %v8678
        %v8680 = vsel %vm8670, %v8677, %v8679
        %v8681 = vsel %vm8669, %v8659, %v8662
        %v8682 = vsel %vm8672, %v8668, 1326507024
        %v8683 = vsel %vm8671, %v8665, %v8682
        %v8684 = vsel %vm8670, %v8681, %v8683
        %v8685 = vshll.u32 %v8645, 8
        %v8686 = vand.u32 %v8685, 65535
        %v8687 = vshrl.u32 %v8685, 16
        %v8688 = vand.u32 %v8684, 65535
        %v8689 = vshrl.u32 %v8684, 16
        %v8690 = vmul.u32 %v8686, %v8688
        %v8691 = vmul.u32 %v8686, %v8689
        %v8692 = vmul.u32 %v8687, %v8688
        %v8693 = vmul.u32 %v8687, %v8689
        %v8694 = vshll.u32 %v8691, 16
        %v8695 = vshrl.u32 %v8691, 16
        %v8696 = vshll.u32 %v8692, 16
        %v8697 = vshrl.u32 %v8692, 16
        %vm8698 = vc.u32 %v8690, %v8694
        %v8699 = vsel %vm8698, 1, 0
        %v8700 = vadd.s32 %v8690, %v8694
        %v8701 = vadd.s32 %v8693, %v8699
        %vm8702 = vc.u32 %v8700, %v8696
        %v8703 = vsel %vm8702, 1, 0
        %v8704 = vadd.s32 %v8700, %v8696
        %v8705 = vadd.s32 %v8701, %v8703
        %v8706 = vadd.s32 %v8705, %v8695
        %v8707 = vadd.s32 %v8706, %v8697
        %v8708 = vand.u32 %v8685, 65535
        %v8709 = vshrl.u32 %v8685, 16
        %v8710 = vand.u32 %v8680, 65535
        %v8711 = vshrl.u32 %v8680, 16
        %v8712 = vmul.u32 %v8708, %v8710
        %v8713 = vmul.u32 %v8708, %v8711
        %v8714 = vmul.u32 %v8709, %v8710
        %v8715 = vmul.u32 %v8709, %v8711
        %v8716 = vshll.u32 %v8713, 16
        %v8717 = vshrl.u32 %v8713, 16
        %v8718 = vshll.u32 %v8714, 16
        %v8719 = vshrl.u32 %v8714, 16
        %vm8720 = vc.u32 %v8712, %v8716
        %v8721 = vsel %vm8720, 1, 0
        %v8722 = vadd.s32 %v8712, %v8716
        %v8723 = vadd.s32 %v8715, %v8721
        %vm8724 = vc.u32 %v8722, %v8718
        %v8725 = vsel %vm8724, 1, 0
        %v8726 = vadd.s32 %v8722, %v8718
        %v8727 = vadd.s32 %v8723, %v8725
        %v8728 = vadd.s32 %v8727, %v8717
        %v8729 = vadd.s32 %v8728, %v8719
        %v8730 = vmul.u32 %v8685, %v8676
        %v8731 = vadd.s32 %v8707, %v8726
        %vm8732 = vc.u32 %v8707, %v8726
        %v8733 = vadd.s32 %v8729, 1
        %v8734 = vsel %vm8732, %v8733, %v8729
        %v8735 = vadd.s32 %v8730, %v8734
        %v8736 = vadd.s32 %v8735, 536870912
        %v8737 = vshrl.u32 %v8736, 30
        %v8738 = vshll.u32 %v8737, 30
        %v8739 = vsub.s32 %v8735, %v8738
        %vm8740 = vcmp.lt.s32.totalorder %v8739, 0
        %v8741 = vsub.s32 0, %v8739
        %v8742 = vsel %vm8740, %v8741, %v8739
        %v8743 = vclz %v8742
        %v8744 = vsub.s32 %v8743, 2
        %vm8745 = vcmp.gt.s32.totalorder 0, %v8744
        %v8746 = vsel %vm8745, 0, %v8744
        %v8747 = vsub.s32 32, %v8746
        %v8748 = vshll.u32 %v8739, %v8746
        %v8749 = vshrl.u32 %v8731, %v8747
        %v8750 = vor.u32 %v8748, %v8749
        %v8751 = vsub.s32 4294967266, %v8746
        %v8752 = vadd.s32 %v8751, 127
        %v8753 = vshll.u32 %v8752, 23
        %v8754 = vor.u32 4788187, %v8753
        %v8755 = vand.u32 2147483647, %v8754
        %v8757 = vcvt.s32.f32 %v8750
        %v8758 = vmul.f32 %v8757, %v8755
        %v8759 = vxor.u32 %v8758, 2147483648
        %v8760 = vsel %vm8639, %v8759, %v8758
        %v8761 = vsub.s32 4, %v8737
        %v8762 = vsel %vm8639, %v8761, %v8737
        %v8763 = vsel %vm8638, %v257, %v8760
        %v8764 = vsel %vm8638, 0, %v8762
        %v8765 = vmul.f32 %v8763, %v8763
        %v8766 = vmul.f32 %v8765, -0.001358992
        %v8767 = vadd.f32 %v8766, 0.041655596
        %v8768 = vmul.f32 %v8765, %v8767
        %v8769 = vadd.f32 %v8768, -0.4999988
        %v8770 = vmul.f32 %v8765, %v8769
        %v8771 = vadd.f32 1.0, %v8770
        %v8772 = vmul.f32 %v8763, %v8763
        %v8773 = vmul.f32 %v8772, -0.00019511016
        %v8774 = vadd.f32 %v8773, 0.008332121
        %v8775 = vmul.f32 %v8772, %v8774
        %v8776 = vadd.f32 %v8775, -0.16666654
        %v8777 = vmul.f32 %v8772, %v8776
        %v8778 = vadd.f32 %v8777, 1.0
        %v8779 = vmul.f32 %v8778, %v8763
        %vm8780 = vweird.f32 %v257
        %v8781 = vadd.s32 %v8764, 3
        %v8782 = vand.u32 %v8781, 3
        %vm8783 = vcmp.lt.s32.totalorder %v8782, 2
        %vm8784 = vcmp.eq.s32.totalorder %v8782, 0
        %v8785 = vxor.u32 %v8779, 2147483648
        %v8786 = vsel %vm8784, %v8771, %v8785
        %vm8787 = vcmp.eq.s32.totalorder %v8782, 2
        %v8788 = vxor.u32 %v8771, 2147483648
        %v8789 = vsel %vm8787, %v8788, %v8779
        %v8790 = vsel %vm8783, %v8786, %v8789
        %v8791 = vsel %vm8780, nan, %v8790
        %v8792 = vand.u32 2147483647, %v258
        %vm8793 = vcmp.le.f32.partialorder %v8792, 0.7853982
        %vm8794 = vcmp.lt.s32.totalorder %v258, 0
        %v8795 = vand.u32 %v258, 2139095040
        %v8796 = vshrl.u32 %v8795, 23
        %v8797 = vsub.s32 %v8796, 127
        %v8798 = vand.u32 2147483647, %v258
        %v8799 = vand.u32 %v8798, 8388607
        %v8800 = vor.u32 %v8799, 8388608
        %v8801 = vsub.s32 0, %v8800
        %v8802 = vadd.s32 %v8797, 1
        %vm8803 = vcmp.gt.s32.totalorder %v8802, 0
        %v8804 = vsel %vm8803, %v8802, 0
        %v8805 = vshrl.u32 %v8804, 5
        %v8806 = vand.u32 %v8804, 31
        %v8807 = vsub.s32 32, %v8806
        %v8808 = vshrl.u32 683565275, %v8807
        %v8809 = vshll.u32 683565275, %v8806
        %v8810 = vshrl.u32 2475754826, %v8807
        %v8811 = vor.u32 %v8809, %v8810
        %v8812 = vshll.u32 2475754826, %v8806
        %v8813 = vshrl.u32 2131351028, %v8807
        %v8814 = vor.u32 %v8812, %v8813
        %v8815 = vshll.u32 2131351028, %v8806
        %v8816 = vshrl.u32 2102212464, %v8807
        %v8817 = vor.u32 %v8815, %v8816
        %v8818 = vshll.u32 2102212464, %v8806
        %v8819 = vshrl.u32 920167782, %v8807
        %v8820 = vor.u32 %v8818, %v8819
        %v8821 = vshll.u32 920167782, %v8806
        %v8822 = vshrl.u32 1326507024, %v8807
        %v8823 = vor.u32 %v8821, %v8822
        %vm8824 = vcmp.lt.s32.totalorder %v8805, 1
        %vm8825 = vcmp.lt.s32.totalorder %v8805, 2
        %vm8826 = vcmp.lt.s32.totalorder %v8805, 3
        %vm8827 = vcmp.lt.s32.totalorder %v8805, 4
        %v8828 = vsel %vm8824, %v8808, %v8811
        %v8829 = vsel %vm8827, %v8817, 2102212464
        %v8830 = vsel %vm8826, %v8814, %v8829
        %v8831 = vsel %vm8825, %v8828, %v8830
        %v8832 = vsel %vm8824, %v8811, %v8814
        %v8833 = vsel %vm8827, %v8820, 920167782
        %v8834 = vsel %vm8826, %v8817, %v8833
        %v8835 = vsel %vm8825, %v8832, %v8834
        %v8836 = vsel %vm8824, %v8814, %v8817
        %v8837 = vsel %vm8827, %v8823, 1326507024
        %v8838 = vsel %vm8826, %v8820, %v8837
        %v8839 = vsel %vm8825, %v8836, %v8838
        %v8840 = vshll.u32 %v8800, 8
        %v8841 = vand.u32 %v8840, 65535
        %v8842 = vshrl.u32 %v8840, 16
        %v8843 = vand.u32 %v8839, 65535
        %v8844 = vshrl.u32 %v8839, 16
        %v8845 = vmul.u32 %v8841, %v8843
        %v8846 = vmul.u32 %v8841, %v8844
        %v8847 = vmul.u32 %v8842, %v8843
        %v8848 = vmul.u32 %v8842, %v8844
        %v8849 = vshll.u32 %v8846, 16
        %v8850 = vshrl.u32 %v8846, 16
        %v8851 = vshll.u32 %v8847, 16
        %v8852 = vshrl.u32 %v8847, 16
        %vm8853 = vc.u32 %v8845, %v8849
        %v8854 = vsel %vm8853, 1, 0
        %v8855 = vadd.s32 %v8845, %v8849
        %v8856 = vadd.s32 %v8848, %v8854
        %vm8857 = vc.u32 %v8855, %v8851
        %v8858 = vsel %vm8857, 1, 0
        %v8859 = vadd.s32 %v8855, %v8851
        %v8860 = vadd.s32 %v8856, %v8858
        %v8861 = vadd.s32 %v8860, %v8850
        %v8862 = vadd.s32 %v8861, %v8852
        %v8863 = vand.u32 %v8840, 65535
        %v8864 = vshrl.u32 %v8840, 16
        %v8865 = vand.u32 %v8835, 65535
        %v8866 = vshrl.u32 %v8835, 16
        %v8867 = vmul.u32 %v8863, %v8865
        %v8868 = vmul.u32 %v8863, %v8866
        %v8869 = vmul.u32 %v8864, %v8865
        %v8870 = vmul.u32 %v8864, %v8866
        %v8871 = vshll.u32 %v8868, 16
        %v8872 = vshrl.u32 %v8868, 16
        %v8873 = vshll.u32 %v8869, 16
        %v8874 = vshrl.u32 %v8869, 16
        %vm8875 = vc.u32 %v8867, %v8871
        %v8876 = vsel %vm8875, 1, 0
        %v8877 = vadd.s32 %v8867, %v8871
        %v8878 = vadd.s32 %v8870, %v8876
        %vm8879 = vc.u32 %v8877, %v8873
        %v8880 = vsel %vm8879, 1, 0
        %v8881 = vadd.s32 %v8877, %v8873
        %v8882 = vadd.s32 %v8878, %v8880
        %v8883 = vadd.s32 %v8882, %v8872
        %v8884 = vadd.s32 %v8883, %v8874
        %v8885 = vmul.u32 %v8840, %v8831
        %v8886 = vadd.s32 %v8862, %v8881
        %vm8887 = vc.u32 %v8862, %v8881
        %v8888 = vadd.s32 %v8884, 1
        %v8889 = vsel %vm8887, %v8888, %v8884
        %v8890 = vadd.s32 %v8885, %v8889
        %v8891 = vadd.s32 %v8890, 536870912
        %v8892 = vshrl.u32 %v8891, 30
        %v8893 = vshll.u32 %v8892, 30
        %v8894 = vsub.s32 %v8890, %v8893
        %vm8895 = vcmp.lt.s32.totalorder %v8894, 0
        %v8896 = vsub.s32 0, %v8894
        %v8897 = vsel %vm8895, %v8896, %v8894
        %v8898 = vclz %v8897
        %v8899 = vsub.s32 %v8898, 2
        %vm8900 = vcmp.gt.s32.totalorder 0, %v8899
        %v8901 = vsel %vm8900, 0, %v8899
        %v8902 = vsub.s32 32, %v8901
        %v8903 = vshll.u32 %v8894, %v8901
        %v8904 = vshrl.u32 %v8886, %v8902
        %v8905 = vor.u32 %v8903, %v8904
        %v8906 = vsub.s32 4294967266, %v8901
        %v8907 = vadd.s32 %v8906, 127
        %v8908 = vshll.u32 %v8907, 23
        %v8909 = vor.u32 4788187, %v8908
        %v8910 = vand.u32 2147483647, %v8909
        %v8912 = vcvt.s32.f32 %v8905
        %v8913 = vmul.f32 %v8912, %v8910
        %v8914 = vxor.u32 %v8913, 2147483648
        %v8915 = vsel %vm8794, %v8914, %v8913
        %v8916 = vsub.s32 4, %v8892
        %v8917 = vsel %vm8794, %v8916, %v8892
        %v8918 = vsel %vm8793, %v258, %v8915
        %v8919 = vsel %vm8793, 0, %v8917
        %v8920 = vmul.f32 %v8918, %v8918
        %v8921 = vmul.f32 %v8920, -0.001358992
        %v8922 = vadd.f32 %v8921, 0.041655596
        %v8923 = vmul.f32 %v8920, %v8922
        %v8924 = vadd.f32 %v8923, -0.4999988
        %v8925 = vmul.f32 %v8920, %v8924
        %v8926 = vadd.f32 1.0, %v8925
        %v8927 = vmul.f32 %v8918, %v8918
        %v8928 = vmul.f32 %v8927, -0.00019511016
        %v8929 = vadd.f32 %v8928, 0.008332121
        %v8930 = vmul.f32 %v8927, %v8929
        %v8931 = vadd.f32 %v8930, -0.16666654
        %v8932 = vmul.f32 %v8927, %v8931
        %v8933 = vadd.f32 %v8932, 1.0
        %v8934 = vmul.f32 %v8933, %v8918
        %vm8935 = vweird.f32 %v258
        %v8936 = vadd.s32 %v8919, 3
        %v8937 = vand.u32 %v8936, 3
        %vm8938 = vcmp.lt.s32.totalorder %v8937, 2
        %vm8939 = vcmp.eq.s32.totalorder %v8937, 0
        %v8940 = vxor.u32 %v8934, 2147483648
        %v8941 = vsel %vm8939, %v8926, %v8940
        %vm8942 = vcmp.eq.s32.totalorder %v8937, 2
        %v8943 = vxor.u32 %v8926, 2147483648
        %v8944 = vsel %vm8942, %v8943, %v8934
        %v8945 = vsel %vm8938, %v8941, %v8944
        %v8946 = vsel %vm8935, nan, %v8945
        %v8947 = vand.u32 2147483647, %v259
        %vm8948 = vcmp.le.f32.partialorder %v8947, 0.7853982
        %vm8949 = vcmp.lt.s32.totalorder %v259, 0
        %v8950 = vand.u32 %v259, 2139095040
        %v8951 = vshrl.u32 %v8950, 23
        %v8952 = vsub.s32 %v8951, 127
        %v8953 = vand.u32 2147483647, %v259
        %v8954 = vand.u32 %v8953, 8388607
        %v8955 = vor.u32 %v8954, 8388608
        %v8956 = vsub.s32 0, %v8955
        %v8957 = vadd.s32 %v8952, 1
        %vm8958 = vcmp.gt.s32.totalorder %v8957, 0
        %v8959 = vsel %vm8958, %v8957, 0
        %v8960 = vshrl.u32 %v8959, 5
        %v8961 = vand.u32 %v8959, 31
        %v8962 = vsub.s32 32, %v8961
        %v8963 = vshrl.u32 683565275, %v8962
        %v8964 = vshll.u32 683565275, %v8961
        %v8965 = vshrl.u32 2475754826, %v8962
        %v8966 = vor.u32 %v8964, %v8965
        %v8967 = vshll.u32 2475754826, %v8961
        %v8968 = vshrl.u32 2131351028, %v8962
        %v8969 = vor.u32 %v8967, %v8968
        %v8970 = vshll.u32 2131351028, %v8961
        %v8971 = vshrl.u32 2102212464, %v8962
        %v8972 = vor.u32 %v8970, %v8971
        %v8973 = vshll.u32 2102212464, %v8961
        %v8974 = vshrl.u32 920167782, %v8962
        %v8975 = vor.u32 %v8973, %v8974
        %v8976 = vshll.u32 920167782, %v8961
        %v8977 = vshrl.u32 1326507024, %v8962
        %v8978 = vor.u32 %v8976, %v8977
        %vm8979 = vcmp.lt.s32.totalorder %v8960, 1
        %vm8980 = vcmp.lt.s32.totalorder %v8960, 2
        %vm8981 = vcmp.lt.s32.totalorder %v8960, 3
        %vm8982 = vcmp.lt.s32.totalorder %v8960, 4
        %v8983 = vsel %vm8979, %v8963, %v8966
        %v8984 = vsel %vm8982, %v8972, 2102212464
        %v8985 = vsel %vm8981, %v8969, %v8984
        %v8986 = vsel %vm8980, %v8983, %v8985
        %v8987 = vsel %vm8979, %v8966, %v8969
        %v8988 = vsel %vm8982, %v8975, 920167782
        %v8989 = vsel %vm8981, %v8972, %v8988
        %v8990 = vsel %vm8980, %v8987, %v8989
        %v8991 = vsel %vm8979, %v8969, %v8972
        %v8992 = vsel %vm8982, %v8978, 1326507024
        %v8993 = vsel %vm8981, %v8975, %v8992
        %v8994 = vsel %vm8980, %v8991, %v8993
        %v8995 = vshll.u32 %v8955, 8
        %v8996 = vand.u32 %v8995, 65535
        %v8997 = vshrl.u32 %v8995, 16
        %v8998 = vand.u32 %v8994, 65535
        %v8999 = vshrl.u32 %v8994, 16
        %v9000 = vmul.u32 %v8996, %v8998
        %v9001 = vmul.u32 %v8996, %v8999
        %v9002 = vmul.u32 %v8997, %v8998
        %v9003 = vmul.u32 %v8997, %v8999
        %v9004 = vshll.u32 %v9001, 16
        %v9005 = vshrl.u32 %v9001, 16
        %v9006 = vshll.u32 %v9002, 16
        %v9007 = vshrl.u32 %v9002, 16
        %vm9008 = vc.u32 %v9000, %v9004
        %v9009 = vsel %vm9008, 1, 0
        %v9010 = vadd.s32 %v9000, %v9004
        %v9011 = vadd.s32 %v9003, %v9009
        %vm9012 = vc.u32 %v9010, %v9006
        %v9013 = vsel %vm9012, 1, 0
        %v9014 = vadd.s32 %v9010, %v9006
        %v9015 = vadd.s32 %v9011, %v9013
        %v9016 = vadd.s32 %v9015, %v9005
        %v9017 = vadd.s32 %v9016, %v9007
        %v9018 = vand.u32 %v8995, 65535
        %v9019 = vshrl.u32 %v8995, 16
        %v9020 = vand.u32 %v8990, 65535
        %v9021 = vshrl.u32 %v8990, 16
        %v9022 = vmul.u32 %v9018, %v9020
        %v9023 = vmul.u32 %v9018, %v9021
        %v9024 = vmul.u32 %v9019, %v9020
        %v9025 = vmul.u32 %v9019, %v9021
        %v9026 = vshll.u32 %v9023, 16
        %v9027 = vshrl.u32 %v9023, 16
        %v9028 = vshll.u32 %v9024, 16
        %v9029 = vshrl.u32 %v9024, 16
        %vm9030 = vc.u32 %v9022, %v9026
        %v9031 = vsel %vm9030, 1, 0
        %v9032 = vadd.s32 %v9022, %v9026
        %v9033 = vadd.s32 %v9025, %v9031
        %vm9034 = vc.u32 %v9032, %v9028
        %v9035 = vsel %vm9034, 1, 0
        %v9036 = vadd.s32 %v9032, %v9028
        %v9037 = vadd.s32 %v9033, %v9035
        %v9038 = vadd.s32 %v9037, %v9027
        %v9039 = vadd.s32 %v9038, %v9029
        %v9040 = vmul.u32 %v8995, %v8986
        %v9041 = vadd.s32 %v9017, %v9036
        %vm9042 = vc.u32 %v9017, %v9036
        %v9043 = vadd.s32 %v9039, 1
        %v9044 = vsel %vm9042, %v9043, %v9039
        %v9045 = vadd.s32 %v9040, %v9044
        %v9046 = vadd.s32 %v9045, 536870912
        %v9047 = vshrl.u32 %v9046, 30
        %v9048 = vshll.u32 %v9047, 30
        %v9049 = vsub.s32 %v9045, %v9048
        %vm9050 = vcmp.lt.s32.totalorder %v9049, 0
        %v9051 = vsub.s32 0, %v9049
        %v9052 = vsel %vm9050, %v9051, %v9049
        %v9053 = vclz %v9052
        %v9054 = vsub.s32 %v9053, 2
        %vm9055 = vcmp.gt.s32.totalorder 0, %v9054
        %v9056 = vsel %vm9055, 0, %v9054
        %v9057 = vsub.s32 32, %v9056
        %v9058 = vshll.u32 %v9049, %v9056
        %v9059 = vshrl.u32 %v9041, %v9057
        %v9060 = vor.u32 %v9058, %v9059
        %v9061 = vsub.s32 4294967266, %v9056
        %v9062 = vadd.s32 %v9061, 127
        %v9063 = vshll.u32 %v9062, 23
        %v9064 = vor.u32 4788187, %v9063
        %v9065 = vand.u32 2147483647, %v9064
        %v9067 = vcvt.s32.f32 %v9060
        %v9068 = vmul.f32 %v9067, %v9065
        %v9069 = vxor.u32 %v9068, 2147483648
        %v9070 = vsel %vm8949, %v9069, %v9068
        %v9071 = vsub.s32 4, %v9047
        %v9072 = vsel %vm8949, %v9071, %v9047
        %v9073 = vsel %vm8948, %v259, %v9070
        %v9074 = vsel %vm8948, 0, %v9072
        %v9075 = vmul.f32 %v9073, %v9073
        %v9076 = vmul.f32 %v9075, -0.001358992
        %v9077 = vadd.f32 %v9076, 0.041655596
        %v9078 = vmul.f32 %v9075, %v9077
        %v9079 = vadd.f32 %v9078, -0.4999988
        %v9080 = vmul.f32 %v9075, %v9079
        %v9081 = vadd.f32 1.0, %v9080
        %v9082 = vmul.f32 %v9073, %v9073
        %v9083 = vmul.f32 %v9082, -0.00019511016
        %v9084 = vadd.f32 %v9083, 0.008332121
        %v9085 = vmul.f32 %v9082, %v9084
        %v9086 = vadd.f32 %v9085, -0.16666654
        %v9087 = vmul.f32 %v9082, %v9086
        %v9088 = vadd.f32 %v9087, 1.0
        %v9089 = vmul.f32 %v9088, %v9073
        %vm9090 = vweird.f32 %v259
        %v9091 = vadd.s32 %v9074, 3
        %v9092 = vand.u32 %v9091, 3
        %vm9093 = vcmp.lt.s32.totalorder %v9092, 2
        %vm9094 = vcmp.eq.s32.totalorder %v9092, 0
        %v9095 = vxor.u32 %v9089, 2147483648
        %v9096 = vsel %vm9094, %v9081, %v9095
        %vm9097 = vcmp.eq.s32.totalorder %v9092, 2
        %v9098 = vxor.u32 %v9081, 2147483648
        %v9099 = vsel %vm9097, %v9098, %v9089
        %v9100 = vsel %vm9093, %v9096, %v9099
        %v9101 = vsel %vm9090, nan, %v9100
        %v9102 = vand.u32 2147483647, %v260
        %vm9103 = vcmp.le.f32.partialorder %v9102, 0.7853982
        %vm9104 = vcmp.lt.s32.totalorder %v260, 0
        %v9105 = vand.u32 %v260, 2139095040
        %v9106 = vshrl.u32 %v9105, 23
        %v9107 = vsub.s32 %v9106, 127
        %v9108 = vand.u32 2147483647, %v260
        %v9109 = vand.u32 %v9108, 8388607
        %v9110 = vor.u32 %v9109, 8388608
        %v9111 = vsub.s32 0, %v9110
        %v9112 = vadd.s32 %v9107, 1
        %vm9113 = vcmp.gt.s32.totalorder %v9112, 0
        %v9114 = vsel %vm9113, %v9112, 0
        %v9115 = vshrl.u32 %v9114, 5
        %v9116 = vand.u32 %v9114, 31
        %v9117 = vsub.s32 32, %v9116
        %v9118 = vshrl.u32 683565275, %v9117
        %v9119 = vshll.u32 683565275, %v9116
        %v9120 = vshrl.u32 2475754826, %v9117
        %v9121 = vor.u32 %v9119, %v9120
        %v9122 = vshll.u32 2475754826, %v9116
        %v9123 = vshrl.u32 2131351028, %v9117
        %v9124 = vor.u32 %v9122, %v9123
        %v9125 = vshll.u32 2131351028, %v9116
        %v9126 = vshrl.u32 2102212464, %v9117
        %v9127 = vor.u32 %v9125, %v9126
        %v9128 = vshll.u32 2102212464, %v9116
        %v9129 = vshrl.u32 920167782, %v9117
        %v9130 = vor.u32 %v9128, %v9129
        %v9131 = vshll.u32 920167782, %v9116
        %v9132 = vshrl.u32 1326507024, %v9117
        %v9133 = vor.u32 %v9131, %v9132
        %vm9134 = vcmp.lt.s32.totalorder %v9115, 1
        %vm9135 = vcmp.lt.s32.totalorder %v9115, 2
        %vm9136 = vcmp.lt.s32.totalorder %v9115, 3
        %vm9137 = vcmp.lt.s32.totalorder %v9115, 4
        %v9138 = vsel %vm9134, %v9118, %v9121
        %v9139 = vsel %vm9137, %v9127, 2102212464
        %v9140 = vsel %vm9136, %v9124, %v9139
        %v9141 = vsel %vm9135, %v9138, %v9140
        %v9142 = vsel %vm9134, %v9121, %v9124
        %v9143 = vsel %vm9137, %v9130, 920167782
        %v9144 = vsel %vm9136, %v9127, %v9143
        %v9145 = vsel %vm9135, %v9142, %v9144
        %v9146 = vsel %vm9134, %v9124, %v9127
        %v9147 = vsel %vm9137, %v9133, 1326507024
        %v9148 = vsel %vm9136, %v9130, %v9147
        %v9149 = vsel %vm9135, %v9146, %v9148
        %v9150 = vshll.u32 %v9110, 8
        %v9151 = vand.u32 %v9150, 65535
        %v9152 = vshrl.u32 %v9150, 16
        %v9153 = vand.u32 %v9149, 65535
        %v9154 = vshrl.u32 %v9149, 16
        %v9155 = vmul.u32 %v9151, %v9153
        %v9156 = vmul.u32 %v9151, %v9154
        %v9157 = vmul.u32 %v9152, %v9153
        %v9158 = vmul.u32 %v9152, %v9154
        %v9159 = vshll.u32 %v9156, 16
        %v9160 = vshrl.u32 %v9156, 16
        %v9161 = vshll.u32 %v9157, 16
        %v9162 = vshrl.u32 %v9157, 16
        %vm9163 = vc.u32 %v9155, %v9159
        %v9164 = vsel %vm9163, 1, 0
        %v9165 = vadd.s32 %v9155, %v9159
        %v9166 = vadd.s32 %v9158, %v9164
        %vm9167 = vc.u32 %v9165, %v9161
        %v9168 = vsel %vm9167, 1, 0
        %v9169 = vadd.s32 %v9165, %v9161
        %v9170 = vadd.s32 %v9166, %v9168
        %v9171 = vadd.s32 %v9170, %v9160
        %v9172 = vadd.s32 %v9171, %v9162
        %v9173 = vand.u32 %v9150, 65535
        %v9174 = vshrl.u32 %v9150, 16
        %v9175 = vand.u32 %v9145, 65535
        %v9176 = vshrl.u32 %v9145, 16
        %v9177 = vmul.u32 %v9173, %v9175
        %v9178 = vmul.u32 %v9173, %v9176
        %v9179 = vmul.u32 %v9174, %v9175
        %v9180 = vmul.u32 %v9174, %v9176
        %v9181 = vshll.u32 %v9178, 16
        %v9182 = vshrl.u32 %v9178, 16
        %v9183 = vshll.u32 %v9179, 16
        %v9184 = vshrl.u32 %v9179, 16
        %vm9185 = vc.u32 %v9177, %v9181
        %v9186 = vsel %vm9185, 1, 0
        %v9187 = vadd.s32 %v9177, %v9181
        %v9188 = vadd.s32 %v9180, %v9186
        %vm9189 = vc.u32 %v9187, %v9183
        %v9190 = vsel %vm9189, 1, 0
        %v9191 = vadd.s32 %v9187, %v9183
        %v9192 = vadd.s32 %v9188, %v9190
        %v9193 = vadd.s32 %v9192, %v9182
        %v9194 = vadd.s32 %v9193, %v9184
        %v9195 = vmul.u32 %v9150, %v9141
        %v9196 = vadd.s32 %v9172, %v9191
        %vm9197 = vc.u32 %v9172, %v9191
        %v9198 = vadd.s32 %v9194, 1
        %v9199 = vsel %vm9197, %v9198, %v9194
        %v9200 = vadd.s32 %v9195, %v9199
        %v9201 = vadd.s32 %v9200, 536870912
        %v9202 = vshrl.u32 %v9201, 30
        %v9203 = vshll.u32 %v9202, 30
        %v9204 = vsub.s32 %v9200, %v9203
        %vm9205 = vcmp.lt.s32.totalorder %v9204, 0
        %v9206 = vsub.s32 0, %v9204
        %v9207 = vsel %vm9205, %v9206, %v9204
        %v9208 = vclz %v9207
        %v9209 = vsub.s32 %v9208, 2
        %vm9210 = vcmp.gt.s32.totalorder 0, %v9209
        %v9211 = vsel %vm9210, 0, %v9209
        %v9212 = vsub.s32 32, %v9211
        %v9213 = vshll.u32 %v9204, %v9211
        %v9214 = vshrl.u32 %v9196, %v9212
        %v9215 = vor.u32 %v9213, %v9214
        %v9216 = vsub.s32 4294967266, %v9211
        %v9217 = vadd.s32 %v9216, 127
        %v9218 = vshll.u32 %v9217, 23
        %v9219 = vor.u32 4788187, %v9218
        %v9220 = vand.u32 2147483647, %v9219
        %v9222 = vcvt.s32.f32 %v9215
        %v9223 = vmul.f32 %v9222, %v9220
        %v9224 = vxor.u32 %v9223, 2147483648
        %v9225 = vsel %vm9104, %v9224, %v9223
        %v9226 = vsub.s32 4, %v9202
        %v9227 = vsel %vm9104, %v9226, %v9202
        %v9228 = vsel %vm9103, %v260, %v9225
        %v9229 = vsel %vm9103, 0, %v9227
        %v9230 = vmul.f32 %v9228, %v9228
        %v9231 = vmul.f32 %v9230, -0.001358992
        %v9232 = vadd.f32 %v9231, 0.041655596
        %v9233 = vmul.f32 %v9230, %v9232
        %v9234 = vadd.f32 %v9233, -0.4999988
        %v9235 = vmul.f32 %v9230, %v9234
        %v9236 = vadd.f32 1.0, %v9235
        %v9237 = vmul.f32 %v9228, %v9228
        %v9238 = vmul.f32 %v9237, -0.00019511016
        %v9239 = vadd.f32 %v9238, 0.008332121
        %v9240 = vmul.f32 %v9237, %v9239
        %v9241 = vadd.f32 %v9240, -0.16666654
        %v9242 = vmul.f32 %v9237, %v9241
        %v9243 = vadd.f32 %v9242, 1.0
        %v9244 = vmul.f32 %v9243, %v9228
        %vm9245 = vweird.f32 %v260
        %v9246 = vadd.s32 %v9229, 3
        %v9247 = vand.u32 %v9246, 3
        %vm9248 = vcmp.lt.s32.totalorder %v9247, 2
        %vm9249 = vcmp.eq.s32.totalorder %v9247, 0
        %v9250 = vxor.u32 %v9244, 2147483648
        %v9251 = vsel %vm9249, %v9236, %v9250
        %vm9252 = vcmp.eq.s32.totalorder %v9247, 2
        %v9253 = vxor.u32 %v9236, 2147483648
        %v9254 = vsel %vm9252, %v9253, %v9244
        %v9255 = vsel %vm9248, %v9251, %v9254
        %v9256 = vsel %vm9245, nan, %v9255
        %v9257 = vand.u32 2147483647, %v261
        %vm9258 = vcmp.le.f32.partialorder %v9257, 0.7853982
        %vm9259 = vcmp.lt.s32.totalorder %v261, 0
        %v9260 = vand.u32 %v261, 2139095040
        %v9261 = vshrl.u32 %v9260, 23
        %v9262 = vsub.s32 %v9261, 127
        %v9263 = vand.u32 2147483647, %v261
        %v9264 = vand.u32 %v9263, 8388607
        %v9265 = vor.u32 %v9264, 8388608
        %v9266 = vsub.s32 0, %v9265
        %v9267 = vadd.s32 %v9262, 1
        %vm9268 = vcmp.gt.s32.totalorder %v9267, 0
        %v9269 = vsel %vm9268, %v9267, 0
        %v9270 = vshrl.u32 %v9269, 5
        %v9271 = vand.u32 %v9269, 31
        %v9272 = vsub.s32 32, %v9271
        %v9273 = vshrl.u32 683565275, %v9272
        %v9274 = vshll.u32 683565275, %v9271
        %v9275 = vshrl.u32 2475754826, %v9272
        %v9276 = vor.u32 %v9274, %v9275
        %v9277 = vshll.u32 2475754826, %v9271
        %v9278 = vshrl.u32 2131351028, %v9272
        %v9279 = vor.u32 %v9277, %v9278
        %v9280 = vshll.u32 2131351028, %v9271
        %v9281 = vshrl.u32 2102212464, %v9272
        %v9282 = vor.u32 %v9280, %v9281
        %v9283 = vshll.u32 2102212464, %v9271
        %v9284 = vshrl.u32 920167782, %v9272
        %v9285 = vor.u32 %v9283, %v9284
        %v9286 = vshll.u32 920167782, %v9271
        %v9287 = vshrl.u32 1326507024, %v9272
        %v9288 = vor.u32 %v9286, %v9287
        %vm9289 = vcmp.lt.s32.totalorder %v9270, 1
        %vm9290 = vcmp.lt.s32.totalorder %v9270, 2
        %vm9291 = vcmp.lt.s32.totalorder %v9270, 3
        %vm9292 = vcmp.lt.s32.totalorder %v9270, 4
        %v9293 = vsel %vm9289, %v9273, %v9276
        %v9294 = vsel %vm9292, %v9282, 2102212464
        %v9295 = vsel %vm9291, %v9279, %v9294
        %v9296 = vsel %vm9290, %v9293, %v9295
        %v9297 = vsel %vm9289, %v9276, %v9279
        %v9298 = vsel %vm9292, %v9285, 920167782
        %v9299 = vsel %vm9291, %v9282, %v9298
        %v9300 = vsel %vm9290, %v9297, %v9299
        %v9301 = vsel %vm9289, %v9279, %v9282
        %v9302 = vsel %vm9292, %v9288, 1326507024
        %v9303 = vsel %vm9291, %v9285, %v9302
        %v9304 = vsel %vm9290, %v9301, %v9303
        %v9305 = vshll.u32 %v9265, 8
        %v9306 = vand.u32 %v9305, 65535
        %v9307 = vshrl.u32 %v9305, 16
        %v9308 = vand.u32 %v9304, 65535
        %v9309 = vshrl.u32 %v9304, 16
        %v9310 = vmul.u32 %v9306, %v9308
        %v9311 = vmul.u32 %v9306, %v9309
        %v9312 = vmul.u32 %v9307, %v9308
        %v9313 = vmul.u32 %v9307, %v9309
        %v9314 = vshll.u32 %v9311, 16
        %v9315 = vshrl.u32 %v9311, 16
        %v9316 = vshll.u32 %v9312, 16
        %v9317 = vshrl.u32 %v9312, 16
        %vm9318 = vc.u32 %v9310, %v9314
        %v9319 = vsel %vm9318, 1, 0
        %v9320 = vadd.s32 %v9310, %v9314
        %v9321 = vadd.s32 %v9313, %v9319
        %vm9322 = vc.u32 %v9320, %v9316
        %v9323 = vsel %vm9322, 1, 0
        %v9324 = vadd.s32 %v9320, %v9316
        %v9325 = vadd.s32 %v9321, %v9323
        %v9326 = vadd.s32 %v9325, %v9315
        %v9327 = vadd.s32 %v9326, %v9317
        %v9328 = vand.u32 %v9305, 65535
        %v9329 = vshrl.u32 %v9305, 16
        %v9330 = vand.u32 %v9300, 65535
        %v9331 = vshrl.u32 %v9300, 16
        %v9332 = vmul.u32 %v9328, %v9330
        %v9333 = vmul.u32 %v9328, %v9331
        %v9334 = vmul.u32 %v9329, %v9330
        %v9335 = vmul.u32 %v9329, %v9331
        %v9336 = vshll.u32 %v9333, 16
        %v9337 = vshrl.u32 %v9333, 16
        %v9338 = vshll.u32 %v9334, 16
        %v9339 = vshrl.u32 %v9334, 16
        %vm9340 = vc.u32 %v9332, %v9336
        %v9341 = vsel %vm9340, 1, 0
        %v9342 = vadd.s32 %v9332, %v9336
        %v9343 = vadd.s32 %v9335, %v9341
        %vm9344 = vc.u32 %v9342, %v9338
        %v9345 = vsel %vm9344, 1, 0
        %v9346 = vadd.s32 %v9342, %v9338
        %v9347 = vadd.s32 %v9343, %v9345
        %v9348 = vadd.s32 %v9347, %v9337
        %v9349 = vadd.s32 %v9348, %v9339
        %v9350 = vmul.u32 %v9305, %v9296
        %v9351 = vadd.s32 %v9327, %v9346
        %vm9352 = vc.u32 %v9327, %v9346
        %v9353 = vadd.s32 %v9349, 1
        %v9354 = vsel %vm9352, %v9353, %v9349
        %v9355 = vadd.s32 %v9350, %v9354
        %v9356 = vadd.s32 %v9355, 536870912
        %v9357 = vshrl.u32 %v9356, 30
        %v9358 = vshll.u32 %v9357, 30
        %v9359 = vsub.s32 %v9355, %v9358
        %vm9360 = vcmp.lt.s32.totalorder %v9359, 0
        %v9361 = vsub.s32 0, %v9359
        %v9362 = vsel %vm9360, %v9361, %v9359
        %v9363 = vclz %v9362
        %v9364 = vsub.s32 %v9363, 2
        %vm9365 = vcmp.gt.s32.totalorder 0, %v9364
        %v9366 = vsel %vm9365, 0, %v9364
        %v9367 = vsub.s32 32, %v9366
        %v9368 = vshll.u32 %v9359, %v9366
        %v9369 = vshrl.u32 %v9351, %v9367
        %v9370 = vor.u32 %v9368, %v9369
        %v9371 = vsub.s32 4294967266, %v9366
        %v9372 = vadd.s32 %v9371, 127
        %v9373 = vshll.u32 %v9372, 23
        %v9374 = vor.u32 4788187, %v9373
        %v9375 = vand.u32 2147483647, %v9374
        %v9377 = vcvt.s32.f32 %v9370
        %v9378 = vmul.f32 %v9377, %v9375
        %v9379 = vxor.u32 %v9378, 2147483648
        %v9380 = vsel %vm9259, %v9379, %v9378
        %v9381 = vsub.s32 4, %v9357
        %v9382 = vsel %vm9259, %v9381, %v9357
        %v9383 = vsel %vm9258, %v261, %v9380
        %v9384 = vsel %vm9258, 0, %v9382
        %v9385 = vmul.f32 %v9383, %v9383
        %v9386 = vmul.f32 %v9385, -0.001358992
        %v9387 = vadd.f32 %v9386, 0.041655596
        %v9388 = vmul.f32 %v9385, %v9387
        %v9389 = vadd.f32 %v9388, -0.4999988
        %v9390 = vmul.f32 %v9385, %v9389
        %v9391 = vadd.f32 1.0, %v9390
        %v9392 = vmul.f32 %v9383, %v9383
        %v9393 = vmul.f32 %v9392, -0.00019511016
        %v9394 = vadd.f32 %v9393, 0.008332121
        %v9395 = vmul.f32 %v9392, %v9394
        %v9396 = vadd.f32 %v9395, -0.16666654
        %v9397 = vmul.f32 %v9392, %v9396
        %v9398 = vadd.f32 %v9397, 1.0
        %v9399 = vmul.f32 %v9398, %v9383
        %vm9400 = vweird.f32 %v261
        %v9401 = vadd.s32 %v9384, 3
        %v9402 = vand.u32 %v9401, 3
        %vm9403 = vcmp.lt.s32.totalorder %v9402, 2
        %vm9404 = vcmp.eq.s32.totalorder %v9402, 0
        %v9405 = vxor.u32 %v9399, 2147483648
        %v9406 = vsel %vm9404, %v9391, %v9405
        %vm9407 = vcmp.eq.s32.totalorder %v9402, 2
        %v9408 = vxor.u32 %v9391, 2147483648
        %v9409 = vsel %vm9407, %v9408, %v9399
        %v9410 = vsel %vm9403, %v9406, %v9409
        %v9411 = vsel %vm9400, nan, %v9410
        %v9412 = vand.u32 2147483647, %v262
        %vm9413 = vcmp.le.f32.partialorder %v9412, 0.7853982
        %vm9414 = vcmp.lt.s32.totalorder %v262, 0
        %v9415 = vand.u32 %v262, 2139095040
        %v9416 = vshrl.u32 %v9415, 23
        %v9417 = vsub.s32 %v9416, 127
        %v9418 = vand.u32 2147483647, %v262
        %v9419 = vand.u32 %v9418, 8388607
        %v9420 = vor.u32 %v9419, 8388608
        %v9421 = vsub.s32 0, %v9420
        %v9422 = vadd.s32 %v9417, 1
        %vm9423 = vcmp.gt.s32.totalorder %v9422, 0
        %v9424 = vsel %vm9423, %v9422, 0
        %v9425 = vshrl.u32 %v9424, 5
        %v9426 = vand.u32 %v9424, 31
        %v9427 = vsub.s32 32, %v9426
        %v9428 = vshrl.u32 683565275, %v9427
        %v9429 = vshll.u32 683565275, %v9426
        %v9430 = vshrl.u32 2475754826, %v9427
        %v9431 = vor.u32 %v9429, %v9430
        %v9432 = vshll.u32 2475754826, %v9426
        %v9433 = vshrl.u32 2131351028, %v9427
        %v9434 = vor.u32 %v9432, %v9433
        %v9435 = vshll.u32 2131351028, %v9426
        %v9436 = vshrl.u32 2102212464, %v9427
        %v9437 = vor.u32 %v9435, %v9436
        %v9438 = vshll.u32 2102212464, %v9426
        %v9439 = vshrl.u32 920167782, %v9427
        %v9440 = vor.u32 %v9438, %v9439
        %v9441 = vshll.u32 920167782, %v9426
        %v9442 = vshrl.u32 1326507024, %v9427
        %v9443 = vor.u32 %v9441, %v9442
        %vm9444 = vcmp.lt.s32.totalorder %v9425, 1
        %vm9445 = vcmp.lt.s32.totalorder %v9425, 2
        %vm9446 = vcmp.lt.s32.totalorder %v9425, 3
        %vm9447 = vcmp.lt.s32.totalorder %v9425, 4
        %v9448 = vsel %vm9444, %v9428, %v9431
        %v9449 = vsel %vm9447, %v9437, 2102212464
        %v9450 = vsel %vm9446, %v9434, %v9449
        %v9451 = vsel %vm9445, %v9448, %v9450
        %v9452 = vsel %vm9444, %v9431, %v9434
        %v9453 = vsel %vm9447, %v9440, 920167782
        %v9454 = vsel %vm9446, %v9437, %v9453
        %v9455 = vsel %vm9445, %v9452, %v9454
        %v9456 = vsel %vm9444, %v9434, %v9437
        %v9457 = vsel %vm9447, %v9443, 1326507024
        %v9458 = vsel %vm9446, %v9440, %v9457
        %v9459 = vsel %vm9445, %v9456, %v9458
        %v9460 = vshll.u32 %v9420, 8
        %v9461 = vand.u32 %v9460, 65535
        %v9462 = vshrl.u32 %v9460, 16
        %v9463 = vand.u32 %v9459, 65535
        %v9464 = vshrl.u32 %v9459, 16
        %v9465 = vmul.u32 %v9461, %v9463
        %v9466 = vmul.u32 %v9461, %v9464
        %v9467 = vmul.u32 %v9462, %v9463
        %v9468 = vmul.u32 %v9462, %v9464
        %v9469 = vshll.u32 %v9466, 16
        %v9470 = vshrl.u32 %v9466, 16
        %v9471 = vshll.u32 %v9467, 16
        %v9472 = vshrl.u32 %v9467, 16
        %vm9473 = vc.u32 %v9465, %v9469
        %v9474 = vsel %vm9473, 1, 0
        %v9475 = vadd.s32 %v9465, %v9469
        %v9476 = vadd.s32 %v9468, %v9474
        %vm9477 = vc.u32 %v9475, %v9471
        %v9478 = vsel %vm9477, 1, 0
        %v9479 = vadd.s32 %v9475, %v9471
        %v9480 = vadd.s32 %v9476, %v9478
        %v9481 = vadd.s32 %v9480, %v9470
        %v9482 = vadd.s32 %v9481, %v9472
        %v9483 = vand.u32 %v9460, 65535
        %v9484 = vshrl.u32 %v9460, 16
        %v9485 = vand.u32 %v9455, 65535
        %v9486 = vshrl.u32 %v9455, 16
        %v9487 = vmul.u32 %v9483, %v9485
        %v9488 = vmul.u32 %v9483, %v9486
        %v9489 = vmul.u32 %v9484, %v9485
        %v9490 = vmul.u32 %v9484, %v9486
        %v9491 = vshll.u32 %v9488, 16
        %v9492 = vshrl.u32 %v9488, 16
        %v9493 = vshll.u32 %v9489, 16
        %v9494 = vshrl.u32 %v9489, 16
        %vm9495 = vc.u32 %v9487, %v9491
        %v9496 = vsel %vm9495, 1, 0
        %v9497 = vadd.s32 %v9487, %v9491
        %v9498 = vadd.s32 %v9490, %v9496
        %vm9499 = vc.u32 %v9497, %v9493
        %v9500 = vsel %vm9499, 1, 0
        %v9501 = vadd.s32 %v9497, %v9493
        %v9502 = vadd.s32 %v9498, %v9500
        %v9503 = vadd.s32 %v9502, %v9492
        %v9504 = vadd.s32 %v9503, %v9494
        %v9505 = vmul.u32 %v9460, %v9451
        %v9506 = vadd.s32 %v9482, %v9501
        %vm9507 = vc.u32 %v9482, %v9501
        %v9508 = vadd.s32 %v9504, 1
        %v9509 = vsel %vm9507, %v9508, %v9504
        %v9510 = vadd.s32 %v9505, %v9509
        %v9511 = vadd.s32 %v9510, 536870912
        %v9512 = vshrl.u32 %v9511, 30
        %v9513 = vshll.u32 %v9512, 30
        %v9514 = vsub.s32 %v9510, %v9513
        %vm9515 = vcmp.lt.s32.totalorder %v9514, 0
        %v9516 = vsub.s32 0, %v9514
        %v9517 = vsel %vm9515, %v9516, %v9514
        %v9518 = vclz %v9517
        %v9519 = vsub.s32 %v9518, 2
        %vm9520 = vcmp.gt.s32.totalorder 0, %v9519
        %v9521 = vsel %vm9520, 0, %v9519
        %v9522 = vsub.s32 32, %v9521
        %v9523 = vshll.u32 %v9514, %v9521
        %v9524 = vshrl.u32 %v9506, %v9522
        %v9525 = vor.u32 %v9523, %v9524
        %v9526 = vsub.s32 4294967266, %v9521
        %v9527 = vadd.s32 %v9526, 127
        %v9528 = vshll.u32 %v9527, 23
        %v9529 = vor.u32 4788187, %v9528
        %v9530 = vand.u32 2147483647, %v9529
        %v9532 = vcvt.s32.f32 %v9525
        %v9533 = vmul.f32 %v9532, %v9530
        %v9534 = vxor.u32 %v9533, 2147483648
        %v9535 = vsel %vm9414, %v9534, %v9533
        %v9536 = vsub.s32 4, %v9512
        %v9537 = vsel %vm9414, %v9536, %v9512
        %v9538 = vsel %vm9413, %v262, %v9535
        %v9539 = vsel %vm9413, 0, %v9537
        %v9540 = vmul.f32 %v9538, %v9538
        %v9541 = vmul.f32 %v9540, -0.001358992
        %v9542 = vadd.f32 %v9541, 0.041655596
        %v9543 = vmul.f32 %v9540, %v9542
        %v9544 = vadd.f32 %v9543, -0.4999988
        %v9545 = vmul.f32 %v9540, %v9544
        %v9546 = vadd.f32 1.0, %v9545
        %v9547 = vmul.f32 %v9538, %v9538
        %v9548 = vmul.f32 %v9547, -0.00019511016
        %v9549 = vadd.f32 %v9548, 0.008332121
        %v9550 = vmul.f32 %v9547, %v9549
        %v9551 = vadd.f32 %v9550, -0.16666654
        %v9552 = vmul.f32 %v9547, %v9551
        %v9553 = vadd.f32 %v9552, 1.0
        %v9554 = vmul.f32 %v9553, %v9538
        %vm9555 = vweird.f32 %v262
        %v9556 = vadd.s32 %v9539, 3
        %v9557 = vand.u32 %v9556, 3
        %vm9558 = vcmp.lt.s32.totalorder %v9557, 2
        %vm9559 = vcmp.eq.s32.totalorder %v9557, 0
        %v9560 = vxor.u32 %v9554, 2147483648
        %v9561 = vsel %vm9559, %v9546, %v9560
        %vm9562 = vcmp.eq.s32.totalorder %v9557, 2
        %v9563 = vxor.u32 %v9546, 2147483648
        %v9564 = vsel %vm9562, %v9563, %v9554
        %v9565 = vsel %vm9558, %v9561, %v9564
        %v9566 = vsel %vm9555, nan, %v9565
        %v9567 = vand.u32 2147483647, %v263
        %vm9568 = vcmp.le.f32.partialorder %v9567, 0.7853982
        %vm9569 = vcmp.lt.s32.totalorder %v263, 0
        %v9570 = vand.u32 %v263, 2139095040
        %v9571 = vshrl.u32 %v9570, 23
        %v9572 = vsub.s32 %v9571, 127
        %v9573 = vand.u32 2147483647, %v263
        %v9574 = vand.u32 %v9573, 8388607
        %v9575 = vor.u32 %v9574, 8388608
        %v9576 = vsub.s32 0, %v9575
        %v9577 = vadd.s32 %v9572, 1
        %vm9578 = vcmp.gt.s32.totalorder %v9577, 0
        %v9579 = vsel %vm9578, %v9577, 0
        %v9580 = vshrl.u32 %v9579, 5
        %v9581 = vand.u32 %v9579, 31
        %v9582 = vsub.s32 32, %v9581
        %v9583 = vshrl.u32 683565275, %v9582
        %v9584 = vshll.u32 683565275, %v9581
        %v9585 = vshrl.u32 2475754826, %v9582
        %v9586 = vor.u32 %v9584, %v9585
        %v9587 = vshll.u32 2475754826, %v9581
        %v9588 = vshrl.u32 2131351028, %v9582
        %v9589 = vor.u32 %v9587, %v9588
        %v9590 = vshll.u32 2131351028, %v9581
        %v9591 = vshrl.u32 2102212464, %v9582
        %v9592 = vor.u32 %v9590, %v9591
        %v9593 = vshll.u32 2102212464, %v9581
        %v9594 = vshrl.u32 920167782, %v9582
        %v9595 = vor.u32 %v9593, %v9594
        %v9596 = vshll.u32 920167782, %v9581
        %v9597 = vshrl.u32 1326507024, %v9582
        %v9598 = vor.u32 %v9596, %v9597
        %vm9599 = vcmp.lt.s32.totalorder %v9580, 1
        %vm9600 = vcmp.lt.s32.totalorder %v9580, 2
        %vm9601 = vcmp.lt.s32.totalorder %v9580, 3
        %vm9602 = vcmp.lt.s32.totalorder %v9580, 4
        %v9603 = vsel %vm9599, %v9583, %v9586
        %v9604 = vsel %vm9602, %v9592, 2102212464
        %v9605 = vsel %vm9601, %v9589, %v9604
        %v9606 = vsel %vm9600, %v9603, %v9605
        %v9607 = vsel %vm9599, %v9586, %v9589
        %v9608 = vsel %vm9602, %v9595, 920167782
        %v9609 = vsel %vm9601, %v9592, %v9608
        %v9610 = vsel %vm9600, %v9607, %v9609
        %v9611 = vsel %vm9599, %v9589, %v9592
        %v9612 = vsel %vm9602, %v9598, 1326507024
        %v9613 = vsel %vm9601, %v9595, %v9612
        %v9614 = vsel %vm9600, %v9611, %v9613
        %v9615 = vshll.u32 %v9575, 8
        %v9616 = vand.u32 %v9615, 65535
        %v9617 = vshrl.u32 %v9615, 16
        %v9618 = vand.u32 %v9614, 65535
        %v9619 = vshrl.u32 %v9614, 16
        %v9620 = vmul.u32 %v9616, %v9618
        %v9621 = vmul.u32 %v9616, %v9619
        %v9622 = vmul.u32 %v9617, %v9618
        %v9623 = vmul.u32 %v9617, %v9619
        %v9624 = vshll.u32 %v9621, 16
        %v9625 = vshrl.u32 %v9621, 16
        %v9626 = vshll.u32 %v9622, 16
        %v9627 = vshrl.u32 %v9622, 16
        %vm9628 = vc.u32 %v9620, %v9624
        %v9629 = vsel %vm9628, 1, 0
        %v9630 = vadd.s32 %v9620, %v9624
        %v9631 = vadd.s32 %v9623, %v9629
        %vm9632 = vc.u32 %v9630, %v9626
        %v9633 = vsel %vm9632, 1, 0
        %v9634 = vadd.s32 %v9630, %v9626
        %v9635 = vadd.s32 %v9631, %v9633
        %v9636 = vadd.s32 %v9635, %v9625
        %v9637 = vadd.s32 %v9636, %v9627
        %v9638 = vand.u32 %v9615, 65535
        %v9639 = vshrl.u32 %v9615, 16
        %v9640 = vand.u32 %v9610, 65535
        %v9641 = vshrl.u32 %v9610, 16
        %v9642 = vmul.u32 %v9638, %v9640
        %v9643 = vmul.u32 %v9638, %v9641
        %v9644 = vmul.u32 %v9639, %v9640
        %v9645 = vmul.u32 %v9639, %v9641
        %v9646 = vshll.u32 %v9643, 16
        %v9647 = vshrl.u32 %v9643, 16
        %v9648 = vshll.u32 %v9644, 16
        %v9649 = vshrl.u32 %v9644, 16
        %vm9650 = vc.u32 %v9642, %v9646
        %v9651 = vsel %vm9650, 1, 0
        %v9652 = vadd.s32 %v9642, %v9646
        %v9653 = vadd.s32 %v9645, %v9651
        %vm9654 = vc.u32 %v9652, %v9648
        %v9655 = vsel %vm9654, 1, 0
        %v9656 = vadd.s32 %v9652, %v9648
        %v9657 = vadd.s32 %v9653, %v9655
        %v9658 = vadd.s32 %v9657, %v9647
        %v9659 = vadd.s32 %v9658, %v9649
        %v9660 = vmul.u32 %v9615, %v9606
        %v9661 = vadd.s32 %v9637, %v9656
        %vm9662 = vc.u32 %v9637, %v9656
        %v9663 = vadd.s32 %v9659, 1
        %v9664 = vsel %vm9662, %v9663, %v9659
        %v9665 = vadd.s32 %v9660, %v9664
        %v9666 = vadd.s32 %v9665, 536870912
        %v9667 = vshrl.u32 %v9666, 30
        %v9668 = vshll.u32 %v9667, 30
        %v9669 = vsub.s32 %v9665, %v9668
        %vm9670 = vcmp.lt.s32.totalorder %v9669, 0
        %v9671 = vsub.s32 0, %v9669
        %v9672 = vsel %vm9670, %v9671, %v9669
        %v9673 = vclz %v9672
        %v9674 = vsub.s32 %v9673, 2
        %vm9675 = vcmp.gt.s32.totalorder 0, %v9674
        %v9676 = vsel %vm9675, 0, %v9674
        %v9677 = vsub.s32 32, %v9676
        %v9678 = vshll.u32 %v9669, %v9676
        %v9679 = vshrl.u32 %v9661, %v9677
        %v9680 = vor.u32 %v9678, %v9679
        %v9681 = vsub.s32 4294967266, %v9676
        %v9682 = vadd.s32 %v9681, 127
        %v9683 = vshll.u32 %v9682, 23
        %v9684 = vor.u32 4788187, %v9683
        %v9685 = vand.u32 2147483647, %v9684
        %v9687 = vcvt.s32.f32 %v9680
        %v9688 = vmul.f32 %v9687, %v9685
        %v9689 = vxor.u32 %v9688, 2147483648
        %v9690 = vsel %vm9569, %v9689, %v9688
        %v9691 = vsub.s32 4, %v9667
        %v9692 = vsel %vm9569, %v9691, %v9667
        %v9693 = vsel %vm9568, %v263, %v9690
        %v9694 = vsel %vm9568, 0, %v9692
        %v9695 = vmul.f32 %v9693, %v9693
        %v9696 = vmul.f32 %v9695, -0.001358992
        %v9697 = vadd.f32 %v9696, 0.041655596
        %v9698 = vmul.f32 %v9695, %v9697
        %v9699 = vadd.f32 %v9698, -0.4999988
        %v9700 = vmul.f32 %v9695, %v9699
        %v9701 = vadd.f32 1.0, %v9700
        %v9702 = vmul.f32 %v9693, %v9693
        %v9703 = vmul.f32 %v9702, -0.00019511016
        %v9704 = vadd.f32 %v9703, 0.008332121
        %v9705 = vmul.f32 %v9702, %v9704
        %v9706 = vadd.f32 %v9705, -0.16666654
        %v9707 = vmul.f32 %v9702, %v9706
        %v9708 = vadd.f32 %v9707, 1.0
        %v9709 = vmul.f32 %v9708, %v9693
        %vm9710 = vweird.f32 %v263
        %v9711 = vadd.s32 %v9694, 3
        %v9712 = vand.u32 %v9711, 3
        %vm9713 = vcmp.lt.s32.totalorder %v9712, 2
        %vm9714 = vcmp.eq.s32.totalorder %v9712, 0
        %v9715 = vxor.u32 %v9709, 2147483648
        %v9716 = vsel %vm9714, %v9701, %v9715
        %vm9717 = vcmp.eq.s32.totalorder %v9712, 2
        %v9718 = vxor.u32 %v9701, 2147483648
        %v9719 = vsel %vm9717, %v9718, %v9709
        %v9720 = vsel %vm9713, %v9716, %v9719
        %v9721 = vsel %vm9710, nan, %v9720
        %v9722 = vand.u32 2147483647, %v264
        %vm9723 = vcmp.le.f32.partialorder %v9722, 0.7853982
        %vm9724 = vcmp.lt.s32.totalorder %v264, 0
        %v9725 = vand.u32 %v264, 2139095040
        %v9726 = vshrl.u32 %v9725, 23
        %v9727 = vsub.s32 %v9726, 127
        %v9728 = vand.u32 2147483647, %v264
        %v9729 = vand.u32 %v9728, 8388607
        %v9730 = vor.u32 %v9729, 8388608
        %v9731 = vsub.s32 0, %v9730
        %v9732 = vadd.s32 %v9727, 1
        %vm9733 = vcmp.gt.s32.totalorder %v9732, 0
        %v9734 = vsel %vm9733, %v9732, 0
        %v9735 = vshrl.u32 %v9734, 5
        %v9736 = vand.u32 %v9734, 31
        %v9737 = vsub.s32 32, %v9736
        %v9738 = vshrl.u32 683565275, %v9737
        %v9739 = vshll.u32 683565275, %v9736
        %v9740 = vshrl.u32 2475754826, %v9737
        %v9741 = vor.u32 %v9739, %v9740
        %v9742 = vshll.u32 2475754826, %v9736
        %v9743 = vshrl.u32 2131351028, %v9737
        %v9744 = vor.u32 %v9742, %v9743
        %v9745 = vshll.u32 2131351028, %v9736
        %v9746 = vshrl.u32 2102212464, %v9737
        %v9747 = vor.u32 %v9745, %v9746
        %v9748 = vshll.u32 2102212464, %v9736
        %v9749 = vshrl.u32 920167782, %v9737
        %v9750 = vor.u32 %v9748, %v9749
        %v9751 = vshll.u32 920167782, %v9736
        %v9752 = vshrl.u32 1326507024, %v9737
        %v9753 = vor.u32 %v9751, %v9752
        %vm9754 = vcmp.lt.s32.totalorder %v9735, 1
        %vm9755 = vcmp.lt.s32.totalorder %v9735, 2
        %vm9756 = vcmp.lt.s32.totalorder %v9735, 3
        %vm9757 = vcmp.lt.s32.totalorder %v9735, 4
        %v9758 = vsel %vm9754, %v9738, %v9741
        %v9759 = vsel %vm9757, %v9747, 2102212464
        %v9760 = vsel %vm9756, %v9744, %v9759
        %v9761 = vsel %vm9755, %v9758, %v9760
        %v9762 = vsel %vm9754, %v9741, %v9744
        %v9763 = vsel %vm9757, %v9750, 920167782
        %v9764 = vsel %vm9756, %v9747, %v9763
        %v9765 = vsel %vm9755, %v9762, %v9764
        %v9766 = vsel %vm9754, %v9744, %v9747
        %v9767 = vsel %vm9757, %v9753, 1326507024
        %v9768 = vsel %vm9756, %v9750, %v9767
        %v9769 = vsel %vm9755, %v9766, %v9768
        %v9770 = vshll.u32 %v9730, 8
        %v9771 = vand.u32 %v9770, 65535
        %v9772 = vshrl.u32 %v9770, 16
        %v9773 = vand.u32 %v9769, 65535
        %v9774 = vshrl.u32 %v9769, 16
        %v9775 = vmul.u32 %v9771, %v9773
        %v9776 = vmul.u32 %v9771, %v9774
        %v9777 = vmul.u32 %v9772, %v9773
        %v9778 = vmul.u32 %v9772, %v9774
        %v9779 = vshll.u32 %v9776, 16
        %v9780 = vshrl.u32 %v9776, 16
        %v9781 = vshll.u32 %v9777, 16
        %v9782 = vshrl.u32 %v9777, 16
        %vm9783 = vc.u32 %v9775, %v9779
        %v9784 = vsel %vm9783, 1, 0
        %v9785 = vadd.s32 %v9775, %v9779
        %v9786 = vadd.s32 %v9778, %v9784
        %vm9787 = vc.u32 %v9785, %v9781
        %v9788 = vsel %vm9787, 1, 0
        %v9789 = vadd.s32 %v9785, %v9781
        %v9790 = vadd.s32 %v9786, %v9788
        %v9791 = vadd.s32 %v9790, %v9780
        %v9792 = vadd.s32 %v9791, %v9782
        %v9793 = vand.u32 %v9770, 65535
        %v9794 = vshrl.u32 %v9770, 16
        %v9795 = vand.u32 %v9765, 65535
        %v9796 = vshrl.u32 %v9765, 16
        %v9797 = vmul.u32 %v9793, %v9795
        %v9798 = vmul.u32 %v9793, %v9796
        %v9799 = vmul.u32 %v9794, %v9795
        %v9800 = vmul.u32 %v9794, %v9796
        %v9801 = vshll.u32 %v9798, 16
        %v9802 = vshrl.u32 %v9798, 16
        %v9803 = vshll.u32 %v9799, 16
        %v9804 = vshrl.u32 %v9799, 16
        %vm9805 = vc.u32 %v9797, %v9801
        %v9806 = vsel %vm9805, 1, 0
        %v9807 = vadd.s32 %v9797, %v9801
        %v9808 = vadd.s32 %v9800, %v9806
        %vm9809 = vc.u32 %v9807, %v9803
        %v9810 = vsel %vm9809, 1, 0
        %v9811 = vadd.s32 %v9807, %v9803
        %v9812 = vadd.s32 %v9808, %v9810
        %v9813 = vadd.s32 %v9812, %v9802
        %v9814 = vadd.s32 %v9813, %v9804
        %v9815 = vmul.u32 %v9770, %v9761
        %v9816 = vadd.s32 %v9792, %v9811
        %vm9817 = vc.u32 %v9792, %v9811
        %v9818 = vadd.s32 %v9814, 1
        %v9819 = vsel %vm9817, %v9818, %v9814
        %v9820 = vadd.s32 %v9815, %v9819
        %v9821 = vadd.s32 %v9820, 536870912
        %v9822 = vshrl.u32 %v9821, 30
        %v9823 = vshll.u32 %v9822, 30
        %v9824 = vsub.s32 %v9820, %v9823
        %vm9825 = vcmp.lt.s32.totalorder %v9824, 0
        %v9826 = vsub.s32 0, %v9824
        %v9827 = vsel %vm9825, %v9826, %v9824
        %v9828 = vclz %v9827
        %v9829 = vsub.s32 %v9828, 2
        %vm9830 = vcmp.gt.s32.totalorder 0, %v9829
        %v9831 = vsel %vm9830, 0, %v9829
        %v9832 = vsub.s32 32, %v9831
        %v9833 = vshll.u32 %v9824, %v9831
        %v9834 = vshrl.u32 %v9816, %v9832
        %v9835 = vor.u32 %v9833, %v9834
        %v9836 = vsub.s32 4294967266, %v9831
        %v9837 = vadd.s32 %v9836, 127
        %v9838 = vshll.u32 %v9837, 23
        %v9839 = vor.u32 4788187, %v9838
        %v9840 = vand.u32 2147483647, %v9839
        %v9842 = vcvt.s32.f32 %v9835
        %v9843 = vmul.f32 %v9842, %v9840
        %v9844 = vxor.u32 %v9843, 2147483648
        %v9845 = vsel %vm9724, %v9844, %v9843
        %v9846 = vsub.s32 4, %v9822
        %v9847 = vsel %vm9724, %v9846, %v9822
        %v9848 = vsel %vm9723, %v264, %v9845
        %v9849 = vsel %vm9723, 0, %v9847
        %v9850 = vmul.f32 %v9848, %v9848
        %v9851 = vmul.f32 %v9850, -0.001358992
        %v9852 = vadd.f32 %v9851, 0.041655596
        %v9853 = vmul.f32 %v9850, %v9852
        %v9854 = vadd.f32 %v9853, -0.4999988
        %v9855 = vmul.f32 %v9850, %v9854
        %v9856 = vadd.f32 1.0, %v9855
        %v9857 = vmul.f32 %v9848, %v9848
        %v9858 = vmul.f32 %v9857, -0.00019511016
        %v9859 = vadd.f32 %v9858, 0.008332121
        %v9860 = vmul.f32 %v9857, %v9859
        %v9861 = vadd.f32 %v9860, -0.16666654
        %v9862 = vmul.f32 %v9857, %v9861
        %v9863 = vadd.f32 %v9862, 1.0
        %v9864 = vmul.f32 %v9863, %v9848
        %vm9865 = vweird.f32 %v264
        %v9866 = vadd.s32 %v9849, 3
        %v9867 = vand.u32 %v9866, 3
        %vm9868 = vcmp.lt.s32.totalorder %v9867, 2
        %vm9869 = vcmp.eq.s32.totalorder %v9867, 0
        %v9870 = vxor.u32 %v9864, 2147483648
        %v9871 = vsel %vm9869, %v9856, %v9870
        %vm9872 = vcmp.eq.s32.totalorder %v9867, 2
        %v9873 = vxor.u32 %v9856, 2147483648
        %v9874 = vsel %vm9872, %v9873, %v9864
        %v9875 = vsel %vm9868, %v9871, %v9874
        %v9876 = vsel %vm9865, nan, %v9875
        %v9877 = vand.u32 2147483647, %v265
        %vm9878 = vcmp.le.f32.partialorder %v9877, 0.7853982
        %vm9879 = vcmp.lt.s32.totalorder %v265, 0
        %v9880 = vand.u32 %v265, 2139095040
        %v9881 = vshrl.u32 %v9880, 23
        %v9882 = vsub.s32 %v9881, 127
        %v9883 = vand.u32 2147483647, %v265
        %v9884 = vand.u32 %v9883, 8388607
        %v9885 = vor.u32 %v9884, 8388608
        %v9886 = vsub.s32 0, %v9885
        %v9887 = vadd.s32 %v9882, 1
        %vm9888 = vcmp.gt.s32.totalorder %v9887, 0
        %v9889 = vsel %vm9888, %v9887, 0
        %v9890 = vshrl.u32 %v9889, 5
        %v9891 = vand.u32 %v9889, 31
        %v9892 = vsub.s32 32, %v9891
        %v9893 = vshrl.u32 683565275, %v9892
        %v9894 = vshll.u32 683565275, %v9891
        %v9895 = vshrl.u32 2475754826, %v9892
        %v9896 = vor.u32 %v9894, %v9895
        %v9897 = vshll.u32 2475754826, %v9891
        %v9898 = vshrl.u32 2131351028, %v9892
        %v9899 = vor.u32 %v9897, %v9898
        %v9900 = vshll.u32 2131351028, %v9891
        %v9901 = vshrl.u32 2102212464, %v9892
        %v9902 = vor.u32 %v9900, %v9901
        %v9903 = vshll.u32 2102212464, %v9891
        %v9904 = vshrl.u32 920167782, %v9892
        %v9905 = vor.u32 %v9903, %v9904
        %v9906 = vshll.u32 920167782, %v9891
        %v9907 = vshrl.u32 1326507024, %v9892
        %v9908 = vor.u32 %v9906, %v9907
        %vm9909 = vcmp.lt.s32.totalorder %v9890, 1
        %vm9910 = vcmp.lt.s32.totalorder %v9890, 2
        %vm9911 = vcmp.lt.s32.totalorder %v9890, 3
        %vm9912 = vcmp.lt.s32.totalorder %v9890, 4
        %v9913 = vsel %vm9909, %v9893, %v9896
        %v9914 = vsel %vm9912, %v9902, 2102212464
        %v9915 = vsel %vm9911, %v9899, %v9914
        %v9916 = vsel %vm9910, %v9913, %v9915
        %v9917 = vsel %vm9909, %v9896, %v9899
        %v9918 = vsel %vm9912, %v9905, 920167782
        %v9919 = vsel %vm9911, %v9902, %v9918
        %v9920 = vsel %vm9910, %v9917, %v9919
        %v9921 = vsel %vm9909, %v9899, %v9902
        %v9922 = vsel %vm9912, %v9908, 1326507024
        %v9923 = vsel %vm9911, %v9905, %v9922
        %v9924 = vsel %vm9910, %v9921, %v9923
        %v9925 = vshll.u32 %v9885, 8
        %v9926 = vand.u32 %v9925, 65535
        %v9927 = vshrl.u32 %v9925, 16
        %v9928 = vand.u32 %v9924, 65535
        %v9929 = vshrl.u32 %v9924, 16
        %v9930 = vmul.u32 %v9926, %v9928
        %v9931 = vmul.u32 %v9926, %v9929
        %v9932 = vmul.u32 %v9927, %v9928
        %v9933 = vmul.u32 %v9927, %v9929
        %v9934 = vshll.u32 %v9931, 16
        %v9935 = vshrl.u32 %v9931, 16
        %v9936 = vshll.u32 %v9932, 16
        %v9937 = vshrl.u32 %v9932, 16
        %vm9938 = vc.u32 %v9930, %v9934
        %v9939 = vsel %vm9938, 1, 0
        %v9940 = vadd.s32 %v9930, %v9934
        %v9941 = vadd.s32 %v9933, %v9939
        %vm9942 = vc.u32 %v9940, %v9936
        %v9943 = vsel %vm9942, 1, 0
        %v9944 = vadd.s32 %v9940, %v9936
        %v9945 = vadd.s32 %v9941, %v9943
        %v9946 = vadd.s32 %v9945, %v9935
        %v9947 = vadd.s32 %v9946, %v9937
        %v9948 = vand.u32 %v9925, 65535
        %v9949 = vshrl.u32 %v9925, 16
        %v9950 = vand.u32 %v9920, 65535
        %v9951 = vshrl.u32 %v9920, 16
        %v9952 = vmul.u32 %v9948, %v9950
        %v9953 = vmul.u32 %v9948, %v9951
        %v9954 = vmul.u32 %v9949, %v9950
        %v9955 = vmul.u32 %v9949, %v9951
        %v9956 = vshll.u32 %v9953, 16
        %v9957 = vshrl.u32 %v9953, 16
        %v9958 = vshll.u32 %v9954, 16
        %v9959 = vshrl.u32 %v9954, 16
        %vm9960 = vc.u32 %v9952, %v9956
        %v9961 = vsel %vm9960, 1, 0
        %v9962 = vadd.s32 %v9952, %v9956
        %v9963 = vadd.s32 %v9955, %v9961
        %vm9964 = vc.u32 %v9962, %v9958
        %v9965 = vsel %vm9964, 1, 0
        %v9966 = vadd.s32 %v9962, %v9958
        %v9967 = vadd.s32 %v9963, %v9965
        %v9968 = vadd.s32 %v9967, %v9957
        %v9969 = vadd.s32 %v9968, %v9959
        %v9970 = vmul.u32 %v9925, %v9916
        %v9971 = vadd.s32 %v9947, %v9966
        %vm9972 = vc.u32 %v9947, %v9966
        %v9973 = vadd.s32 %v9969, 1
        %v9974 = vsel %vm9972, %v9973, %v9969
        %v9975 = vadd.s32 %v9970, %v9974
        %v9976 = vadd.s32 %v9975, 536870912
        %v9977 = vshrl.u32 %v9976, 30
        %v9978 = vshll.u32 %v9977, 30
        %v9979 = vsub.s32 %v9975, %v9978
        %vm9980 = vcmp.lt.s32.totalorder %v9979, 0
        %v9981 = vsub.s32 0, %v9979
        %v9982 = vsel %vm9980, %v9981, %v9979
        %v9983 = vclz %v9982
        %v9984 = vsub.s32 %v9983, 2
        %vm9985 = vcmp.gt.s32.totalorder 0, %v9984
        %v9986 = vsel %vm9985, 0, %v9984
        %v9987 = vsub.s32 32, %v9986
        %v9988 = vshll.u32 %v9979, %v9986
        %v9989 = vshrl.u32 %v9971, %v9987
        %v9990 = vor.u32 %v9988, %v9989
        %v9991 = vsub.s32 4294967266, %v9986
        %v9992 = vadd.s32 %v9991, 127
        %v9993 = vshll.u32 %v9992, 23
        %v9994 = vor.u32 4788187, %v9993
        %v9995 = vand.u32 2147483647, %v9994
        %v9997 = vcvt.s32.f32 %v9990
        %v9998 = vmul.f32 %v9997, %v9995
        %v9999 = vxor.u32 %v9998, 2147483648
        %v10000 = vsel %vm9879, %v9999, %v9998
        %v10001 = vsub.s32 4, %v9977
        %v10002 = vsel %vm9879, %v10001, %v9977
        %v10003 = vsel %vm9878, %v265, %v10000
        %v10004 = vsel %vm9878, 0, %v10002
        %v10005 = vmul.f32 %v10003, %v10003
        %v10006 = vmul.f32 %v10005, -0.001358992
        %v10007 = vadd.f32 %v10006, 0.041655596
        %v10008 = vmul.f32 %v10005, %v10007
        %v10009 = vadd.f32 %v10008, -0.4999988
        %v10010 = vmul.f32 %v10005, %v10009
        %v10011 = vadd.f32 1.0, %v10010
        %v10012 = vmul.f32 %v10003, %v10003
        %v10013 = vmul.f32 %v10012, -0.00019511016
        %v10014 = vadd.f32 %v10013, 0.008332121
        %v10015 = vmul.f32 %v10012, %v10014
        %v10016 = vadd.f32 %v10015, -0.16666654
        %v10017 = vmul.f32 %v10012, %v10016
        %v10018 = vadd.f32 %v10017, 1.0
        %v10019 = vmul.f32 %v10018, %v10003
        %vm10020 = vweird.f32 %v265
        %v10021 = vadd.s32 %v10004, 3
        %v10022 = vand.u32 %v10021, 3
        %vm10023 = vcmp.lt.s32.totalorder %v10022, 2
        %vm10024 = vcmp.eq.s32.totalorder %v10022, 0
        %v10025 = vxor.u32 %v10019, 2147483648
        %v10026 = vsel %vm10024, %v10011, %v10025
        %vm10027 = vcmp.eq.s32.totalorder %v10022, 2
        %v10028 = vxor.u32 %v10011, 2147483648
        %v10029 = vsel %vm10027, %v10028, %v10019
        %v10030 = vsel %vm10023, %v10026, %v10029
        %v10031 = vsel %vm10020, nan, %v10030
        %v10032 = vand.u32 2147483647, %v266
        %vm10033 = vcmp.le.f32.partialorder %v10032, 0.7853982
        %vm10034 = vcmp.lt.s32.totalorder %v266, 0
        %v10035 = vand.u32 %v266, 2139095040
        %v10036 = vshrl.u32 %v10035, 23
        %v10037 = vsub.s32 %v10036, 127
        %v10038 = vand.u32 2147483647, %v266
        %v10039 = vand.u32 %v10038, 8388607
        %v10040 = vor.u32 %v10039, 8388608
        %v10041 = vsub.s32 0, %v10040
        %v10042 = vadd.s32 %v10037, 1
        %vm10043 = vcmp.gt.s32.totalorder %v10042, 0
        %v10044 = vsel %vm10043, %v10042, 0
        %v10045 = vshrl.u32 %v10044, 5
        %v10046 = vand.u32 %v10044, 31
        %v10047 = vsub.s32 32, %v10046
        %v10048 = vshrl.u32 683565275, %v10047
        %v10049 = vshll.u32 683565275, %v10046
        %v10050 = vshrl.u32 2475754826, %v10047
        %v10051 = vor.u32 %v10049, %v10050
        %v10052 = vshll.u32 2475754826, %v10046
        %v10053 = vshrl.u32 2131351028, %v10047
        %v10054 = vor.u32 %v10052, %v10053
        %v10055 = vshll.u32 2131351028, %v10046
        %v10056 = vshrl.u32 2102212464, %v10047
        %v10057 = vor.u32 %v10055, %v10056
        %v10058 = vshll.u32 2102212464, %v10046
        %v10059 = vshrl.u32 920167782, %v10047
        %v10060 = vor.u32 %v10058, %v10059
        %v10061 = vshll.u32 920167782, %v10046
        %v10062 = vshrl.u32 1326507024, %v10047
        %v10063 = vor.u32 %v10061, %v10062
        %vm10064 = vcmp.lt.s32.totalorder %v10045, 1
        %vm10065 = vcmp.lt.s32.totalorder %v10045, 2
        %vm10066 = vcmp.lt.s32.totalorder %v10045, 3
        %vm10067 = vcmp.lt.s32.totalorder %v10045, 4
        %v10068 = vsel %vm10064, %v10048, %v10051
        %v10069 = vsel %vm10067, %v10057, 2102212464
        %v10070 = vsel %vm10066, %v10054, %v10069
        %v10071 = vsel %vm10065, %v10068, %v10070
        %v10072 = vsel %vm10064, %v10051, %v10054
        %v10073 = vsel %vm10067, %v10060, 920167782
        %v10074 = vsel %vm10066, %v10057, %v10073
        %v10075 = vsel %vm10065, %v10072, %v10074
        %v10076 = vsel %vm10064, %v10054, %v10057
        %v10077 = vsel %vm10067, %v10063, 1326507024
        %v10078 = vsel %vm10066, %v10060, %v10077
        %v10079 = vsel %vm10065, %v10076, %v10078
        %v10080 = vshll.u32 %v10040, 8
        %v10081 = vand.u32 %v10080, 65535
        %v10082 = vshrl.u32 %v10080, 16
        %v10083 = vand.u32 %v10079, 65535
        %v10084 = vshrl.u32 %v10079, 16
        %v10085 = vmul.u32 %v10081, %v10083
        %v10086 = vmul.u32 %v10081, %v10084
        %v10087 = vmul.u32 %v10082, %v10083
        %v10088 = vmul.u32 %v10082, %v10084
        %v10089 = vshll.u32 %v10086, 16
        %v10090 = vshrl.u32 %v10086, 16
        %v10091 = vshll.u32 %v10087, 16
        %v10092 = vshrl.u32 %v10087, 16
        %vm10093 = vc.u32 %v10085, %v10089
        %v10094 = vsel %vm10093, 1, 0
        %v10095 = vadd.s32 %v10085, %v10089
        %v10096 = vadd.s32 %v10088, %v10094
        %vm10097 = vc.u32 %v10095, %v10091
        %v10098 = vsel %vm10097, 1, 0
        %v10099 = vadd.s32 %v10095, %v10091
        %v10100 = vadd.s32 %v10096, %v10098
        %v10101 = vadd.s32 %v10100, %v10090
        %v10102 = vadd.s32 %v10101, %v10092
        %v10103 = vand.u32 %v10080, 65535
        %v10104 = vshrl.u32 %v10080, 16
        %v10105 = vand.u32 %v10075, 65535
        %v10106 = vshrl.u32 %v10075, 16
        %v10107 = vmul.u32 %v10103, %v10105
        %v10108 = vmul.u32 %v10103, %v10106
        %v10109 = vmul.u32 %v10104, %v10105
        %v10110 = vmul.u32 %v10104, %v10106
        %v10111 = vshll.u32 %v10108, 16
        %v10112 = vshrl.u32 %v10108, 16
        %v10113 = vshll.u32 %v10109, 16
        %v10114 = vshrl.u32 %v10109, 16
        %vm10115 = vc.u32 %v10107, %v10111
        %v10116 = vsel %vm10115, 1, 0
        %v10117 = vadd.s32 %v10107, %v10111
        %v10118 = vadd.s32 %v10110, %v10116
        %vm10119 = vc.u32 %v10117, %v10113
        %v10120 = vsel %vm10119, 1, 0
        %v10121 = vadd.s32 %v10117, %v10113
        %v10122 = vadd.s32 %v10118, %v10120
        %v10123 = vadd.s32 %v10122, %v10112
        %v10124 = vadd.s32 %v10123, %v10114
        %v10125 = vmul.u32 %v10080, %v10071
        %v10126 = vadd.s32 %v10102, %v10121
        %vm10127 = vc.u32 %v10102, %v10121
        %v10128 = vadd.s32 %v10124, 1
        %v10129 = vsel %vm10127, %v10128, %v10124
        %v10130 = vadd.s32 %v10125, %v10129
        %v10131 = vadd.s32 %v10130, 536870912
        %v10132 = vshrl.u32 %v10131, 30
        %v10133 = vshll.u32 %v10132, 30
        %v10134 = vsub.s32 %v10130, %v10133
        %vm10135 = vcmp.lt.s32.totalorder %v10134, 0
        %v10136 = vsub.s32 0, %v10134
        %v10137 = vsel %vm10135, %v10136, %v10134
        %v10138 = vclz %v10137
        %v10139 = vsub.s32 %v10138, 2
        %vm10140 = vcmp.gt.s32.totalorder 0, %v10139
        %v10141 = vsel %vm10140, 0, %v10139
        %v10142 = vsub.s32 32, %v10141
        %v10143 = vshll.u32 %v10134, %v10141
        %v10144 = vshrl.u32 %v10126, %v10142
        %v10145 = vor.u32 %v10143, %v10144
        %v10146 = vsub.s32 4294967266, %v10141
        %v10147 = vadd.s32 %v10146, 127
        %v10148 = vshll.u32 %v10147, 23
        %v10149 = vor.u32 4788187, %v10148
        %v10150 = vand.u32 2147483647, %v10149
        %v10152 = vcvt.s32.f32 %v10145
        %v10153 = vmul.f32 %v10152, %v10150
        %v10154 = vxor.u32 %v10153, 2147483648
        %v10155 = vsel %vm10034, %v10154, %v10153
        %v10156 = vsub.s32 4, %v10132
        %v10157 = vsel %vm10034, %v10156, %v10132
        %v10158 = vsel %vm10033, %v266, %v10155
        %v10159 = vsel %vm10033, 0, %v10157
        %v10160 = vmul.f32 %v10158, %v10158
        %v10161 = vmul.f32 %v10160, -0.001358992
        %v10162 = vadd.f32 %v10161, 0.041655596
        %v10163 = vmul.f32 %v10160, %v10162
        %v10164 = vadd.f32 %v10163, -0.4999988
        %v10165 = vmul.f32 %v10160, %v10164
        %v10166 = vadd.f32 1.0, %v10165
        %v10167 = vmul.f32 %v10158, %v10158
        %v10168 = vmul.f32 %v10167, -0.00019511016
        %v10169 = vadd.f32 %v10168, 0.008332121
        %v10170 = vmul.f32 %v10167, %v10169
        %v10171 = vadd.f32 %v10170, -0.16666654
        %v10172 = vmul.f32 %v10167, %v10171
        %v10173 = vadd.f32 %v10172, 1.0
        %v10174 = vmul.f32 %v10173, %v10158
        %vm10175 = vweird.f32 %v266
        %v10176 = vadd.s32 %v10159, 3
        %v10177 = vand.u32 %v10176, 3
        %vm10178 = vcmp.lt.s32.totalorder %v10177, 2
        %vm10179 = vcmp.eq.s32.totalorder %v10177, 0
        %v10180 = vxor.u32 %v10174, 2147483648
        %v10181 = vsel %vm10179, %v10166, %v10180
        %vm10182 = vcmp.eq.s32.totalorder %v10177, 2
        %v10183 = vxor.u32 %v10166, 2147483648
        %v10184 = vsel %vm10182, %v10183, %v10174
        %v10185 = vsel %vm10178, %v10181, %v10184
        %v10186 = vsel %vm10175, nan, %v10185
        %10187 = vst [vmem:[%s136] sm:$0xff] %v421
        %10188 = vst [vmem:[%s136 + $0x8] sm:$0xff] %v576
        %10189 = vst [vmem:[%s136 + $0x10] sm:$0xff] %v731
        %10190 = vst [vmem:[%s136 + $0x18] sm:$0xff] %v886
        %10191 = vst [vmem:[%s136 + $0x20] sm:$0xff] %v1041
        %10192 = vst [vmem:[%s136 + $0x28] sm:$0xff] %v1196
        %10193 = vst [vmem:[%s136 + $0x30] sm:$0xff] %v1351
        %10194 = vst [vmem:[%s136 + $0x38] sm:$0xff] %v1506
        %10195 = vst [vmem:[%s136 + $0x40] sm:$0xff] %v1661
        %10196 = vst [vmem:[%s136 + $0x48] sm:$0xff] %v1816
        %10197 = vst [vmem:[%s136 + $0x50] sm:$0xff] %v1971
        %10198 = vst [vmem:[%s136 + $0x58] sm:$0xff] %v2126
        %10199 = vst [vmem:[%s136 + $0x60] sm:$0xff] %v2281
        %10200 = vst [vmem:[%s136 + $0x68] sm:$0xff] %v2436
        %10201 = vst [vmem:[%s136 + $0x70] sm:$0xff] %v2591
        %10202 = vst [vmem:[%s136 + $0x78] sm:$0xff] %v2746
        %10203 = vst [vmem:[%s136 + $0x80] sm:$0xff] %v2901
        %10204 = vst [vmem:[%s136 + $0x88] sm:$0xff] %v3056
        %10205 = vst [vmem:[%s136 + $0x90] sm:$0xff] %v3211
        %10206 = vst [vmem:[%s136 + $0x98] sm:$0xff] %v3366
        %10207 = vst [vmem:[%s136 + $0xa0] sm:$0xff] %v3521
        %10208 = vst [vmem:[%s136 + $0xa8] sm:$0xff] %v3676
        %10209 = vst [vmem:[%s136 + $0xb0] sm:$0xff] %v3831
        %10210 = vst [vmem:[%s136 + $0xb8] sm:$0xff] %v3986
        %10211 = vst [vmem:[%s136 + $0xc0] sm:$0xff] %v4141
        %10212 = vst [vmem:[%s136 + $0xc8] sm:$0xff] %v4296
        %10213 = vst [vmem:[%s136 + $0xd0] sm:$0xff] %v4451
        %10214 = vst [vmem:[%s136 + $0xd8] sm:$0xff] %v4606
        %10215 = vst [vmem:[%s136 + $0xe0] sm:$0xff] %v4761
        %10216 = vst [vmem:[%s136 + $0xe8] sm:$0xff] %v4916
        %10217 = vst [vmem:[%s136 + $0xf0] sm:$0xff] %v5071
        %10218 = vst [vmem:[%s136 + $0xf8] sm:$0xff] %v5226
        %10219 = vst [vmem:[%s136 + $0x100] sm:$0xff] %v5381
        %10220 = vst [vmem:[%s136 + $0x108] sm:$0xff] %v5536
        %10221 = vst [vmem:[%s136 + $0x110] sm:$0xff] %v5691
        %10222 = vst [vmem:[%s136 + $0x118] sm:$0xff] %v5846
        %10223 = vst [vmem:[%s136 + $0x120] sm:$0xff] %v6001
        %10224 = vst [vmem:[%s136 + $0x128] sm:$0xff] %v6156
        %10225 = vst [vmem:[%s136 + $0x130] sm:$0xff] %v6311
        %10226 = vst [vmem:[%s136 + $0x138] sm:$0xff] %v6466
        %10227 = vst [vmem:[%s136 + $0x140] sm:$0xff] %v6621
        %10228 = vst [vmem:[%s136 + $0x148] sm:$0xff] %v6776
        %10229 = vst [vmem:[%s136 + $0x150] sm:$0xff] %v6931
        %10230 = vst [vmem:[%s136 + $0x158] sm:$0xff] %v7086
        %10231 = vst [vmem:[%s136 + $0x160] sm:$0xff] %v7241
        %10232 = vst [vmem:[%s136 + $0x168] sm:$0xff] %v7396
        %10233 = vst [vmem:[%s136 + $0x170] sm:$0xff] %v7551
        %10234 = vst [vmem:[%s136 + $0x178] sm:$0xff] %v7706
        %10235 = vst [vmem:[%s136 + $0x180] sm:$0xff] %v7861
        %10236 = vst [vmem:[%s136 + $0x188] sm:$0xff] %v8016
        %10237 = vst [vmem:[%s136 + $0x190] sm:$0xff] %v8171
        %10238 = vst [vmem:[%s136 + $0x198] sm:$0xff] %v8326
        %10239 = vst [vmem:[%s136 + $0x1a0] sm:$0xff] %v8481
        %10240 = vst [vmem:[%s136 + $0x1a8] sm:$0xff] %v8636
        %10241 = vst [vmem:[%s136 + $0x1b0] sm:$0xff] %v8791
        %10242 = vst [vmem:[%s136 + $0x1b8] sm:$0xff] %v8946
        %10243 = vst [vmem:[%s136 + $0x1c0] sm:$0xff] %v9101
        %10244 = vst [vmem:[%s136 + $0x1c8] sm:$0xff] %v9256
        %10245 = vst [vmem:[%s136 + $0x1d0] sm:$0xff] %v9411
        %10246 = vst [vmem:[%s136 + $0x1d8] sm:$0xff] %v9566
        %10247 = vst [vmem:[%s136 + $0x1e0] sm:$0xff] %v9721
        %10248 = vst [vmem:[%s136 + $0x1e8] sm:$0xff] %v9876
        %10249 = vst [vmem:[%s136 + $0x1f0] sm:$0xff] %v10031
        %10250 = vst [vmem:[%s136 + $0x1f8] sm:$0xff] %v10186
        %s10251 = sand.u32 %s52, 1
        %s10252 = scalar_lea.sflag [#allocation4], %s10251
        %s10253 = sand.u32 %s52, 1
        %s10254 = smul.addr %s10253, 512
        %s10255 = scalar_lea.vmem [#allocation5], %s10254
        // Predicated region
        $region29: #{tpu_custom_call.1} parent=23 // pred_check
          %p10256 = pneg %p62
        $region30: #{tpu_custom_call.1} parent=23 // pred_check_branch
          %10258 = sbr.rel (%p10256) target = $region32
        $region31: #{tpu_custom_call.1} parent=23 // pred_region
          %s10259 = smul.u32 64, %s18
          %10261 = vsyncadd %s10252, 0
          %s10262 = smul.addr %s10259, 8
          %s10263 = scalar_lea.hbm %s1, %s10262
          %s10264 = sshll.u32 %s10255, 4
          %s10265 = int_to_ptr.vmem [resolvable:$true] %s10264
          %s10266 = sshll.u32 %s10263, 4
          %s10267 = int_to_ptr.hbm [resolvable:$true] %s10266
          %10272 = dma.vmem_to_hbm [thread:$0]  %s10265, 8192, %s10267, %s10252, 128, 128, 8
        $region32: #{tpu_custom_call.1} parent=23 // pred_fallthru
          _
      $region24: #{tpu_custom_call.1} parent=5 // pred_fallthru
        _
      %p10273 = scmp.le.s32.totalorder 2, %s13
      // Predicated region
      $region33: #{tpu_custom_call.1} parent=5 // pred_check
        %p10274 = pneg %p10273
      $region34: #{tpu_custom_call.1} parent=5 // pred_check_branch
        %10276 = sbr.rel (%p10274) target = $region36
      $region35: #{tpu_custom_call.1} parent=5 // pred_region
        %s10277 = ssub.s32 %s13, 2
        // Predicated region
        $region37: #{tpu_custom_call.1} parent=35 // pred_check
          %p10278 = pneg %p68
        $region38: #{tpu_custom_call.1} parent=35 // pred_check_branch
          %10280 = sbr.rel (%p10278) target = $region40
        $region39: #{tpu_custom_call.1} parent=35 // pred_region
          %s10281 = sand.u32 %s53, 1
          %s10282 = scalar_lea.sflag [#allocation4], %s10281
          %s10283 = sand.u32 %s53, 1
          %s10284 = smul.addr %s10283, 512
          %s10285 = scalar_lea.vmem [#allocation5], %s10284
          %10287 = dma.done %s10282, 8192
        $region40: #{tpu_custom_call.1} parent=35 // pred_fallthru
          _
      $region36: #{tpu_custom_call.1} parent=5 // pred_fallthru
        _
    $region6: #{tpu_custom_call.1} parent=1 // loop_footer
      %s17 = sadd.s32 1, %s13
    $region7: #{tpu_custom_call.1} parent=1 // loop_footer_branch
      %12 = sbr.rel target = $region3
    $region8: #{tpu_custom_call.1} parent=1 // loop_exit
      _
    %10288 = vsyncpa [#allocation3], 1
    %s10289 = scalar_lea.sflag [#allocation3], 1
    %10290 = vsyncpa %s10289, 1
    %10291 = vsyncpa [#allocation4], 1
    %s10292 = scalar_lea.sflag [#allocation4], 1
    %10293 = vsyncpa %s10292, 1

</llo_original>
